<compile_context>
chip_gen: v7x
topology: tpu7x:2x2x1
jax: 0.10.0
libtpu: 0.0.40
codegen_flags: <defaults>
</compile_context>

<pallas_src>
import functools

import jax
import jax.numpy as jnp
from jax import lax
from jax.experimental import pallas as pl
from jax.experimental.pallas import tpu as pltpu


def _round_up(v, m):
    return (v + m - 1) // m * m


def _fused_block_kernel(xw_ref, w1_ref, s1_ref, b1_ref, w2_ref, s2_ref, b2_ref,
                        res_ref, out_ref, h_scr, *, img_h, img_w):
    """One (batch, row-tile) step of the fused BasicBlock forward.

    xw_ref : (1, 1, TH+4, Wp, Cp)  halo'd, zero/lane-padded input window (bf16)
    w*_ref : (3, 3, Cp, Cp)        bf16 conv weights (HWIO, channel padded)
    s*/b*  : (1, Cp)               folded BN scale / bias (f32)
    res_ref: (1, TH, Wc, Cp)       residual tile (f32)
    out_ref: (1, TH, Wc, Cp)
    h_scr  : (TH+2, Wh, Cp)        VMEM scratch for the conv1+bn1+relu result (bf16)
    """
    r = pl.program_id(1)

    th = out_ref.shape[1]            # output rows per tile
    wc = out_ref.shape[2]            # conv2 window width (>= W, multiple of 8)
    wh = wc + 8                      # conv1 window width (holds conv2's +-1 col halo)
    cin_p = xw_ref.shape[-1]
    cout_p = out_ref.shape[3]
    hs1 = th + 2                     # conv1 rows per tile (+-1 row halo)

    x_win = xw_ref[0, 0]             # (th+4, Wp, Cp) bf16

    # ---- conv1 (3x3, pad=1) + bn1 + relu over th+2 rows ----
    acc1 = jnp.zeros((hs1 * wh, cout_p), jnp.float32)
    for dx in range(3):
        xs = x_win[:, dx:dx + wh, :]                     # dx tap shift, width stays mult-of-8
        for dy in range(3):
            rows = xs[dy:dy + hs1].reshape(hs1 * wh, cin_p)
            acc1 = acc1 + jnp.dot(rows, w1_ref[dy, dx],
                                  preferred_element_type=jnp.float32)
    h1 = jnp.maximum(acc1 * s1_ref[...] + b1_ref[...], 0.0)
    h1 = h1.reshape(hs1, wh, cout_p)

    # zero conv2's implicit padding ring + out-of-image rows/cols (+ width-pad junk)
    grow = r * th + lax.broadcasted_iota(jnp.int32, (hs1, wh, cout_p), 0)
    gcol = lax.broadcasted_iota(jnp.int32, (hs1, wh, cout_p), 1)
    valid = (grow >= 1) & (grow <= img_h) & (gcol >= 1) & (gcol <= img_w)
    h_scr[...] = jnp.where(valid, h1, 0.0).astype(jnp.bfloat16)

    # ---- conv2 (3x3, pad=1) + bn2 + residual + relu over th rows ----
    acc2 = jnp.zeros((th * wc, cout_p), jnp.float32)
    for dx in range(3):
        for dy in range(3):
            rows = h_scr[dy:dy + th, dx:dx + wc, :].reshape(th * wc, cout_p)
            acc2 = acc2 + jnp.dot(rows, w2_ref[dy, dx],
                                  preferred_element_type=jnp.float32)
    y = (acc2 * s2_ref[...] + b2_ref[...]).reshape(th, wc, cout_p)
    y = jnp.maximum(y + res_ref[0], 0.0)
    out_ref[0] = y.astype(out_ref.dtype)


def _fold_bn(bn, c_pad, eps=1e-5):
    scale = bn["gamma"] / jnp.sqrt(bn["var"] + eps)
    bias = bn["beta"] - bn["mean"] * scale
    scale = jnp.pad(scale, (0, c_pad - scale.shape[0]))
    bias = jnp.pad(bias, (0, c_pad - bias.shape[0]))
    return scale[None, :].astype(jnp.float32), bias[None, :].astype(jnp.float32)


def _pad_weight(w, cin_p, cout_p):
    _, _, ci, co = w.shape
    wp = jnp.pad(w, ((0, 0), (0, 0), (0, cin_p - ci), (0, cout_p - co)))
    return wp.astype(jnp.bfloat16)


@jax.jit
def basic_block_forward(x_nchw, params):
    """Equivalent of BasicBlock.forward with stride=1, downsample=None (eval-mode BN)."""
    N, Cin, H, W = x_nchw.shape
    Cout = params["w1"].shape[-1]
    assert Cin == Cout, "stride=1 / downsample=None BasicBlock requires in_c == out_c"

    cin_p = _round_up(Cin, 128)          # lane-dense channels
    cout_p = _round_up(Cout, 128)
    wc = _round_up(W, 8)                 # kernel output width (sublane aligned)
    wh = wc + 8                          # conv1 window width
    wp = wh + 8                          # padded-input width

    # Row tile: largest multiple of 8 dividing H (capped for VMEM), else whole H.
    th = H
    for cand in (32, 24, 16, 8):
        if H % cand == 0:
            th = cand
            break
    n_row_tiles = H // th

    x_nhwc = jnp.transpose(x_nchw, (0, 2, 3, 1))            # NCHW -> NHWC

    # bf16, zero/lane-padded input, then gather overlapping (+-2 row halo) windows
    # per row tile so the kernel input is a plain auto-pipelined BlockSpec.
    xp = jnp.pad(x_nhwc.astype(jnp.bfloat16),
                 ((0, 0), (2, 2), (2, wp - W - 2), (0, cin_p - Cin)))
    row_idx = jnp.arange(n_row_tiles)[:, None] * th + jnp.arange(th + 4)[None, :]
    xw = xp[:, row_idx]                                      # (N, R, th+4, wp, cin_p)

    # residual stays f32 (exact add in the f32 epilogue); padded lanes/cols are zero.
    res = jnp.pad(x_nhwc, ((0, 0), (0, 0), (0, wc - W), (0, cout_p - Cin)))

    w1 = _pad_weight(params["w1"], cin_p, cout_p)
    w2 = _pad_weight(params["w2"], cout_p, cout_p)
    s1, b1 = _fold_bn(params["bn1"], cout_p)
    s2, b2 = _fold_bn(params["bn2"], cout_p)

    kern = functools.partial(_fused_block_kernel, img_h=H, img_w=W)
    out = pl.pallas_call(
        kern,
        out_shape=jax.ShapeDtypeStruct((N, H, wc, cout_p), x_nchw.dtype),
        grid=(N, n_row_tiles),
        in_specs=[
            pl.BlockSpec((1, 1, th + 4, wp, cin_p), lambda n, r: (n, r, 0, 0, 0)),  # x window
            pl.BlockSpec((3, 3, cin_p, cout_p), lambda n, r: (0, 0, 0, 0)),         # w1
            pl.BlockSpec((1, cout_p), lambda n, r: (0, 0)),                         # s1
            pl.BlockSpec((1, cout_p), lambda n, r: (0, 0)),                         # b1
            pl.BlockSpec((3, 3, cout_p, cout_p), lambda n, r: (0, 0, 0, 0)),        # w2
            pl.BlockSpec((1, cout_p), lambda n, r: (0, 0)),                         # s2
            pl.BlockSpec((1, cout_p), lambda n, r: (0, 0)),                         # b2
            pl.BlockSpec((1, th, wc, cout_p), lambda n, r: (n, r, 0, 0)),           # residual
        ],
        out_specs=pl.BlockSpec((1, th, wc, cout_p), lambda n, r: (n, r, 0, 0)),
        scratch_shapes=[
            pltpu.VMEM((th + 2, wh, cout_p), jnp.bfloat16),   # conv1 activation tile
        ],
        compiler_params=pltpu.CompilerParams(
            dimension_semantics=("parallel", "parallel"),
            vmem_limit_bytes=64 * 1024 * 1024),
    )(xw, w1, s1, b1, w2, s2, b2, res)

    out = out[:, :, :W, :Cout]                               # drop width/channel padding
    return jnp.transpose(out, (0, 3, 1, 2))                  # NHWC -> NCHW


def init_basic_block_params(key, in_c, out_c):
    """Deterministic synthetic parameters (stride=1, downsample=None, in_c==out_c)."""
    k1, k2, k3, k4 = jax.random.split(key, 4)
    # Conv weights in HWIO layout (PyTorch is OIHW; pure layout choice, no checkpoint).
    w1 = jax.random.normal(k1, (3, 3, in_c, out_c), jnp.float32) * 0.1
    w2 = jax.random.normal(k2, (3, 3, out_c, out_c), jnp.float32) * 0.1

    def bn_params(k):
        ka, kb, kc, kd = jax.random.split(k, 4)
        return dict(
            gamma=1.0 + 0.2 * jax.random.normal(ka, (out_c,), jnp.float32),
            beta=0.3 * jax.random.normal(kb, (out_c,), jnp.float32),
            mean=0.2 * jax.random.normal(kc, (out_c,), jnp.float32),
            var=1.0 + 0.2 * jax.random.uniform(kd, (out_c,), jnp.float32),
        )

    return dict(w1=w1, w2=w2, bn1=bn_params(k3), bn2=bn_params(k4))


def reference_forward(x_nchw, params, eps=1e-5):
    """Pure-JAX (XLA) reference of eval-mode BasicBlock.forward."""
    def conv(x, w):
        return lax.conv_general_dilated(
            x, w, window_strides=(1, 1), padding=((1, 1), (1, 1)),
            dimension_numbers=("NCHW", "HWIO", "NCHW"))

    def bn(x, p):
        s = p["gamma"] / jnp.sqrt(p["var"] + eps)
        b = p["beta"] - p["mean"] * s
        return x * s[None, :, None, None] + b[None, :, None, None]

    h = jax.nn.relu(bn(conv(x_nchw, params["w1"]), params["bn1"]))
    y = bn(conv(h, params["w2"]), params["bn2"]) + x_nchw
    return jax.nn.relu(y)


if __name__ == "__main__":
    key = jax.random.PRNGKey(0)
    kx, kp = jax.random.split(key)
    N, C, H, W = 2, 4, 16, 16                   # in_c == out_c, stride=1
    x = jax.random.normal(kx, (N, C, H, W), jnp.float32)
    params = init_basic_block_params(kp, C, C)

    y = basic_block_forward(x, params)
    jax.block_until_ready(y)
    assert y.shape == (N, C, H, W)

    y_ref = reference_forward(x, params)
    max_err = float(jnp.max(jnp.abs(y - y_ref)))
    assert max_err < 8e-2, f"mismatch vs reference: max abs err = {max_err}"
    assert bool(jnp.all(y >= 0.0))              # final ReLU
    print("KERNEL_OK")
</pallas_src>

<mosaic_0001>
module attributes {stable_mosaic.version = 11 : i64} {
  func.func @_fused_block_kernel(%arg0: i32, %arg1: i32, %arg2: memref<1x1x20x32x128xbf16, #tpu.memory_space<vmem>>, %arg3: memref<3x3x128x128xbf16, #tpu.memory_space<vmem>>, %arg4: memref<1x128xf32, #tpu.memory_space<vmem>>, %arg5: memref<1x128xf32, #tpu.memory_space<vmem>>, %arg6: memref<3x3x128x128xbf16, #tpu.memory_space<vmem>>, %arg7: memref<1x128xf32, #tpu.memory_space<vmem>>, %arg8: memref<1x128xf32, #tpu.memory_space<vmem>>, %arg9: memref<1x16x16x128xf32, #tpu.memory_space<vmem>>, %arg10: memref<1x16x16x128xf32, #tpu.memory_space<vmem>>, %arg11: memref<18x24x128xbf16, #tpu.memory_space<vmem>>) attributes {dimension_semantics = [#tpu.dimension_semantics<parallel>, #tpu.dimension_semantics<parallel>], iteration_bounds = array<i64: 2, 1>, scalar_prefetch = 0 : i64, scratch_operands = 1 : i64, tpu.core_type = #tpu.core_type<tc>, window_params = [{transform_indices = @transform_0, window_bounds = array<i64: 1, 1, 20, 32, 128>}, {pipeline_mode = #tpu.pipeline_mode<synchronous>, transform_indices = @transform_1, window_bounds = array<i64: 3, 3, 128, 128>}, {pipeline_mode = #tpu.pipeline_mode<synchronous>, transform_indices = @transform_2, window_bounds = array<i64: 1, 128>}, {pipeline_mode = #tpu.pipeline_mode<synchronous>, transform_indices = @transform_3, window_bounds = array<i64: 1, 128>}, {pipeline_mode = #tpu.pipeline_mode<synchronous>, transform_indices = @transform_4, window_bounds = array<i64: 3, 3, 128, 128>}, {pipeline_mode = #tpu.pipeline_mode<synchronous>, transform_indices = @transform_5, window_bounds = array<i64: 1, 128>}, {pipeline_mode = #tpu.pipeline_mode<synchronous>, transform_indices = @transform_6, window_bounds = array<i64: 1, 128>}, {transform_indices = @transform_7, window_bounds = array<i64: 1, 16, 16, 128>}, {transform_indices = @transform_8, window_bounds = array<i64: 1, 16, 16, 128>}]} {
    %c0 = arith.constant 0 : index
    %c0_0 = arith.constant 0 : index
    %c0_1 = arith.constant 0 : index
    %c0_2 = arith.constant 0 : index
    %c0_3 = arith.constant 0 : index
    %0 = vector.load %arg2[%c0, %c0_0, %c0_1, %c0_2, %c0_3] : memref<1x1x20x32x128xbf16, #tpu.memory_space<vmem>>, vector<1x1x20x32x128xbf16>
    %1 = vector.shape_cast %0 : vector<1x1x20x32x128xbf16> to vector<20x32x128xbf16>
    %cst = arith.constant 0.000000e+00 : f32
    %2 = vector.broadcast %cst : f32 to vector<432x128xf32>
    %3 = vector.extract_strided_slice %1 {offsets = [0, 0, 0], sizes = [20, 24, 128], strides = [1, 1, 1]} : vector<20x32x128xbf16> to vector<20x24x128xbf16>
    %4 = vector.extract_strided_slice %3 {offsets = [0, 0, 0], sizes = [18, 24, 128], strides = [1, 1, 1]} : vector<20x24x128xbf16> to vector<18x24x128xbf16>
    %5 = vector.shape_cast %4 : vector<18x24x128xbf16> to vector<432x128xbf16>
    %c0_4 = arith.constant 0 : index
    %c0_5 = arith.constant 0 : index
    %c0_6 = arith.constant 0 : index
    %c0_7 = arith.constant 0 : index
    %6 = vector.load %arg3[%c0_4, %c0_5, %c0_6, %c0_7] : memref<3x3x128x128xbf16, #tpu.memory_space<vmem>>, vector<1x1x128x128xbf16>
    %7 = vector.shape_cast %6 : vector<1x1x128x128xbf16> to vector<128x128xbf16>
    %cst_8 = arith.constant dense<0.000000e+00> : vector<432x128xf32>
    %8 = tpu.matmul %5, %7, %cst_8 {dimension_numbers = #tpu.dot_dimension_numbers<[1], [0], [0], [1], [0, 0, 1, 1], [], []>} : vector<432x128xbf16>, vector<128x128xbf16>, vector<432x128xf32> -> vector<432x128xf32>
    %9 = arith.addf %2, %8 : vector<432x128xf32>
    %10 = vector.extract_strided_slice %3 {offsets = [1, 0, 0], sizes = [18, 24, 128], strides = [1, 1, 1]} : vector<20x24x128xbf16> to vector<18x24x128xbf16>
    %11 = vector.shape_cast %10 : vector<18x24x128xbf16> to vector<432x128xbf16>
    %c1 = arith.constant 1 : index
    %c0_9 = arith.constant 0 : index
    %c0_10 = arith.constant 0 : index
    %c0_11 = arith.constant 0 : index
    %12 = vector.load %arg3[%c1, %c0_9, %c0_10, %c0_11] : memref<3x3x128x128xbf16, #tpu.memory_space<vmem>>, vector<1x1x128x128xbf16>
    %13 = vector.shape_cast %12 : vector<1x1x128x128xbf16> to vector<128x128xbf16>
    %cst_12 = arith.constant dense<0.000000e+00> : vector<432x128xf32>
    %14 = tpu.matmul %11, %13, %cst_12 {dimension_numbers = #tpu.dot_dimension_numbers<[1], [0], [0], [1], [0, 0, 1, 1], [], []>} : vector<432x128xbf16>, vector<128x128xbf16>, vector<432x128xf32> -> vector<432x128xf32>
    %15 = arith.addf %9, %14 : vector<432x128xf32>
    %16 = vector.extract_strided_slice %3 {offsets = [2, 0, 0], sizes = [18, 24, 128], strides = [1, 1, 1]} : vector<20x24x128xbf16> to vector<18x24x128xbf16>
    %17 = vector.shape_cast %16 : vector<18x24x128xbf16> to vector<432x128xbf16>
    %c2 = arith.constant 2 : index
    %c0_13 = arith.constant 0 : index
    %c0_14 = arith.constant 0 : index
    %c0_15 = arith.constant 0 : index
    %18 = vector.load %arg3[%c2, %c0_13, %c0_14, %c0_15] : memref<3x3x128x128xbf16, #tpu.memory_space<vmem>>, vector<1x1x128x128xbf16>
    %19 = vector.shape_cast %18 : vector<1x1x128x128xbf16> to vector<128x128xbf16>
    %cst_16 = arith.constant dense<0.000000e+00> : vector<432x128xf32>
    %20 = tpu.matmul %17, %19, %cst_16 {dimension_numbers = #tpu.dot_dimension_numbers<[1], [0], [0], [1], [0, 0, 1, 1], [], []>} : vector<432x128xbf16>, vector<128x128xbf16>, vector<432x128xf32> -> vector<432x128xf32>
    %21 = arith.addf %15, %20 : vector<432x128xf32>
    %22 = vector.extract_strided_slice %1 {offsets = [0, 1, 0], sizes = [20, 24, 128], strides = [1, 1, 1]} : vector<20x32x128xbf16> to vector<20x24x128xbf16>
    %23 = vector.extract_strided_slice %22 {offsets = [0, 0, 0], sizes = [18, 24, 128], strides = [1, 1, 1]} : vector<20x24x128xbf16> to vector<18x24x128xbf16>
    %24 = vector.shape_cast %23 : vector<18x24x128xbf16> to vector<432x128xbf16>
    %c0_17 = arith.constant 0 : index
    %c1_18 = arith.constant 1 : index
    %c0_19 = arith.constant 0 : index
    %c0_20 = arith.constant 0 : index
    %25 = vector.load %arg3[%c0_17, %c1_18, %c0_19, %c0_20] : memref<3x3x128x128xbf16, #tpu.memory_space<vmem>>, vector<1x1x128x128xbf16>
    %26 = vector.shape_cast %25 : vector<1x1x128x128xbf16> to vector<128x128xbf16>
    %cst_21 = arith.constant dense<0.000000e+00> : vector<432x128xf32>
    %27 = tpu.matmul %24, %26, %cst_21 {dimension_numbers = #tpu.dot_dimension_numbers<[1], [0], [0], [1], [0, 0, 1, 1], [], []>} : vector<432x128xbf16>, vector<128x128xbf16>, vector<432x128xf32> -> vector<432x128xf32>
    %28 = arith.addf %21, %27 : vector<432x128xf32>
    %29 = vector.extract_strided_slice %22 {offsets = [1, 0, 0], sizes = [18, 24, 128], strides = [1, 1, 1]} : vector<20x24x128xbf16> to vector<18x24x128xbf16>
    %30 = vector.shape_cast %29 : vector<18x24x128xbf16> to vector<432x128xbf16>
    %c1_22 = arith.constant 1 : index
    %c1_23 = arith.constant 1 : index
    %c0_24 = arith.constant 0 : index
    %c0_25 = arith.constant 0 : index
    %31 = vector.load %arg3[%c1_22, %c1_23, %c0_24, %c0_25] : memref<3x3x128x128xbf16, #tpu.memory_space<vmem>>, vector<1x1x128x128xbf16>
    %32 = vector.shape_cast %31 : vector<1x1x128x128xbf16> to vector<128x128xbf16>
    %cst_26 = arith.constant dense<0.000000e+00> : vector<432x128xf32>
    %33 = tpu.matmul %30, %32, %cst_26 {dimension_numbers = #tpu.dot_dimension_numbers<[1], [0], [0], [1], [0, 0, 1, 1], [], []>} : vector<432x128xbf16>, vector<128x128xbf16>, vector<432x128xf32> -> vector<432x128xf32>
    %34 = arith.addf %28, %33 : vector<432x128xf32>
    %35 = vector.extract_strided_slice %22 {offsets = [2, 0, 0], sizes = [18, 24, 128], strides = [1, 1, 1]} : vector<20x24x128xbf16> to vector<18x24x128xbf16>
    %36 = vector.shape_cast %35 : vector<18x24x128xbf16> to vector<432x128xbf16>
    %c2_27 = arith.constant 2 : index
    %c1_28 = arith.constant 1 : index
    %c0_29 = arith.constant 0 : index
    %c0_30 = arith.constant 0 : index
    %37 = vector.load %arg3[%c2_27, %c1_28, %c0_29, %c0_30] : memref<3x3x128x128xbf16, #tpu.memory_space<vmem>>, vector<1x1x128x128xbf16>
    %38 = vector.shape_cast %37 : vector<1x1x128x128xbf16> to vector<128x128xbf16>
    %cst_31 = arith.constant dense<0.000000e+00> : vector<432x128xf32>
    %39 = tpu.matmul %36, %38, %cst_31 {dimension_numbers = #tpu.dot_dimension_numbers<[1], [0], [0], [1], [0, 0, 1, 1], [], []>} : vector<432x128xbf16>, vector<128x128xbf16>, vector<432x128xf32> -> vector<432x128xf32>
    %40 = arith.addf %34, %39 : vector<432x128xf32>
    %41 = vector.extract_strided_slice %1 {offsets = [0, 2, 0], sizes = [20, 24, 128], strides = [1, 1, 1]} : vector<20x32x128xbf16> to vector<20x24x128xbf16>
    %42 = vector.extract_strided_slice %41 {offsets = [0, 0, 0], sizes = [18, 24, 128], strides = [1, 1, 1]} : vector<20x24x128xbf16> to vector<18x24x128xbf16>
    %43 = vector.shape_cast %42 : vector<18x24x128xbf16> to vector<432x128xbf16>
    %c0_32 = arith.constant 0 : index
    %c2_33 = arith.constant 2 : index
    %c0_34 = arith.constant 0 : index
    %c0_35 = arith.constant 0 : index
    %44 = vector.load %arg3[%c0_32, %c2_33, %c0_34, %c0_35] : memref<3x3x128x128xbf16, #tpu.memory_space<vmem>>, vector<1x1x128x128xbf16>
    %45 = vector.shape_cast %44 : vector<1x1x128x128xbf16> to vector<128x128xbf16>
    %cst_36 = arith.constant dense<0.000000e+00> : vector<432x128xf32>
    %46 = tpu.matmul %43, %45, %cst_36 {dimension_numbers = #tpu.dot_dimension_numbers<[1], [0], [0], [1], [0, 0, 1, 1], [], []>} : vector<432x128xbf16>, vector<128x128xbf16>, vector<432x128xf32> -> vector<432x128xf32>
    %47 = arith.addf %40, %46 : vector<432x128xf32>
    %48 = vector.extract_strided_slice %41 {offsets = [1, 0, 0], sizes = [18, 24, 128], strides = [1, 1, 1]} : vector<20x24x128xbf16> to vector<18x24x128xbf16>
    %49 = vector.shape_cast %48 : vector<18x24x128xbf16> to vector<432x128xbf16>
    %c1_37 = arith.constant 1 : index
    %c2_38 = arith.constant 2 : index
    %c0_39 = arith.constant 0 : index
    %c0_40 = arith.constant 0 : index
    %50 = vector.load %arg3[%c1_37, %c2_38, %c0_39, %c0_40] : memref<3x3x128x128xbf16, #tpu.memory_space<vmem>>, vector<1x1x128x128xbf16>
    %51 = vector.shape_cast %50 : vector<1x1x128x128xbf16> to vector<128x128xbf16>
    %cst_41 = arith.constant dense<0.000000e+00> : vector<432x128xf32>
    %52 = tpu.matmul %49, %51, %cst_41 {dimension_numbers = #tpu.dot_dimension_numbers<[1], [0], [0], [1], [0, 0, 1, 1], [], []>} : vector<432x128xbf16>, vector<128x128xbf16>, vector<432x128xf32> -> vector<432x128xf32>
    %53 = arith.addf %47, %52 : vector<432x128xf32>
    %54 = vector.extract_strided_slice %41 {offsets = [2, 0, 0], sizes = [18, 24, 128], strides = [1, 1, 1]} : vector<20x24x128xbf16> to vector<18x24x128xbf16>
    %55 = vector.shape_cast %54 : vector<18x24x128xbf16> to vector<432x128xbf16>
    %c2_42 = arith.constant 2 : index
    %c2_43 = arith.constant 2 : index
    %c0_44 = arith.constant 0 : index
    %c0_45 = arith.constant 0 : index
    %56 = vector.load %arg3[%c2_42, %c2_43, %c0_44, %c0_45] : memref<3x3x128x128xbf16, #tpu.memory_space<vmem>>, vector<1x1x128x128xbf16>
    %57 = vector.shape_cast %56 : vector<1x1x128x128xbf16> to vector<128x128xbf16>
    %cst_46 = arith.constant dense<0.000000e+00> : vector<432x128xf32>
    %58 = tpu.matmul %55, %57, %cst_46 {dimension_numbers = #tpu.dot_dimension_numbers<[1], [0], [0], [1], [0, 0, 1, 1], [], []>} : vector<432x128xbf16>, vector<128x128xbf16>, vector<432x128xf32> -> vector<432x128xf32>
    %59 = arith.addf %53, %58 : vector<432x128xf32>
    %c0_47 = arith.constant 0 : index
    %c0_48 = arith.constant 0 : index
    %60 = vector.load %arg4[%c0_47, %c0_48] : memref<1x128xf32, #tpu.memory_space<vmem>>, vector<1x128xf32>
    %61 = vector.broadcast %60 : vector<1x128xf32> to vector<432x128xf32>
    %62 = arith.mulf %59, %61 : vector<432x128xf32>
    %c0_49 = arith.constant 0 : index
    %c0_50 = arith.constant 0 : index
    %63 = vector.load %arg5[%c0_49, %c0_50] : memref<1x128xf32, #tpu.memory_space<vmem>>, vector<1x128xf32>
    %64 = vector.broadcast %63 : vector<1x128xf32> to vector<432x128xf32>
    %65 = arith.addf %62, %64 : vector<432x128xf32>
    %cst_51 = arith.constant 0.000000e+00 : f32
    %66 = vector.broadcast %cst_51 : f32 to vector<432x128xf32>
    %67 = arith.maximumf %65, %66 : vector<432x128xf32>
    %68 = vector.shape_cast %67 : vector<432x128xf32> to vector<18x24x128xf32>
    %c16_i32 = arith.constant 16 : i32
    %69 = arith.muli %arg1, %c16_i32 : i32
    %70 = tpu.iota {dimensions = array<i32: 0>} : vector<18x24x128xi32>
    %71 = vector.broadcast %69 : i32 to vector<18x24x128xi32>
    %72 = arith.addi %71, %70 : vector<18x24x128xi32>
    %73 = tpu.iota {dimensions = array<i32: 1>} : vector<18x24x128xi32>
    %c1_i32 = arith.constant 1 : i32
    %74 = vector.broadcast %c1_i32 : i32 to vector<18x24x128xi32>
    %75 = arith.cmpi sge, %72, %74 : vector<18x24x128xi32>
    %c16_i32_52 = arith.constant 16 : i32
    %76 = vector.broadcast %c16_i32_52 : i32 to vector<18x24x128xi32>
    %77 = arith.cmpi sle, %72, %76 : vector<18x24x128xi32>
    %78 = arith.andi %75, %77 : vector<18x24x128xi1>
    %c1_i32_53 = arith.constant 1 : i32
    %79 = vector.broadcast %c1_i32_53 : i32 to vector<18x24x128xi32>
    %80 = arith.cmpi sge, %73, %79 : vector<18x24x128xi32>
    %81 = arith.andi %78, %80 : vector<18x24x128xi1>
    %c16_i32_54 = arith.constant 16 : i32
    %82 = vector.broadcast %c16_i32_54 : i32 to vector<18x24x128xi32>
    %83 = arith.cmpi sle, %73, %82 : vector<18x24x128xi32>
    %84 = arith.andi %81, %83 : vector<18x24x128xi1>
    %cst_55 = arith.constant 0.000000e+00 : f32
    %85 = vector.broadcast %cst_55 : f32 to vector<18x24x128xf32>
    %86 = arith.select %84, %68, %85 : vector<18x24x128xi1>, vector<18x24x128xf32>
    %87 = arith.truncf %86 : vector<18x24x128xf32> to vector<18x24x128xbf16>
    %c0_56 = arith.constant 0 : index
    %c0_57 = arith.constant 0 : index
    %c0_58 = arith.constant 0 : index
    %88 = vector.load %arg11[%c0_56, %c0_57, %c0_58] : memref<18x24x128xbf16, #tpu.memory_space<vmem>>, vector<18x24x128xbf16>
    tpu.vector_store %arg11[%c0_56, %c0_57, %c0_58], %87 {strides = array<i32>} : memref<18x24x128xbf16, #tpu.memory_space<vmem>>, vector<18x24x128xbf16>,
    %cst_59 = arith.constant 0.000000e+00 : f32
    %89 = vector.broadcast %cst_59 : f32 to vector<256x128xf32>
    %c0_60 = arith.constant 0 : index
    %c0_61 = arith.constant 0 : index
    %c0_62 = arith.constant 0 : index
    %90 = vector.load %arg11[%c0_60, %c0_61, %c0_62] : memref<18x24x128xbf16, #tpu.memory_space<vmem>>, vector<16x16x128xbf16>
    %91 = vector.shape_cast %90 : vector<16x16x128xbf16> to vector<256x128xbf16>
    %c0_63 = arith.constant 0 : index
    %c0_64 = arith.constant 0 : index
    %c0_65 = arith.constant 0 : index
    %c0_66 = arith.constant 0 : index
    %92 = vector.load %arg6[%c0_63, %c0_64, %c0_65, %c0_66] : memref<3x3x128x128xbf16, #tpu.memory_space<vmem>>, vector<1x1x128x128xbf16>
    %93 = vector.shape_cast %92 : vector<1x1x128x128xbf16> to vector<128x128xbf16>
    %cst_67 = arith.constant dense<0.000000e+00> : vector<256x128xf32>
    %94 = tpu.matmul %91, %93, %cst_67 {dimension_numbers = #tpu.dot_dimension_numbers<[1], [0], [0], [1], [0, 0, 1, 1], [], []>} : vector<256x128xbf16>, vector<128x128xbf16>, vector<256x128xf32> -> vector<256x128xf32>
    %95 = arith.addf %89, %94 : vector<256x128xf32>
    %c1_68 = arith.constant 1 : index
    %c0_69 = arith.constant 0 : index
    %c0_70 = arith.constant 0 : index
    %96 = vector.load %arg11[%c1_68, %c0_69, %c0_70] : memref<18x24x128xbf16, #tpu.memory_space<vmem>>, vector<16x16x128xbf16>
    %97 = vector.shape_cast %96 : vector<16x16x128xbf16> to vector<256x128xbf16>
    %c1_71 = arith.constant 1 : index
    %c0_72 = arith.constant 0 : index
    %c0_73 = arith.constant 0 : index
    %c0_74 = arith.constant 0 : index
    %98 = vector.load %arg6[%c1_71, %c0_72, %c0_73, %c0_74] : memref<3x3x128x128xbf16, #tpu.memory_space<vmem>>, vector<1x1x128x128xbf16>
    %99 = vector.shape_cast %98 : vector<1x1x128x128xbf16> to vector<128x128xbf16>
    %cst_75 = arith.constant dense<0.000000e+00> : vector<256x128xf32>
    %100 = tpu.matmul %97, %99, %cst_75 {dimension_numbers = #tpu.dot_dimension_numbers<[1], [0], [0], [1], [0, 0, 1, 1], [], []>} : vector<256x128xbf16>, vector<128x128xbf16>, vector<256x128xf32> -> vector<256x128xf32>
    %101 = arith.addf %95, %100 : vector<256x128xf32>
    %c2_76 = arith.constant 2 : index
    %c0_77 = arith.constant 0 : index
    %c0_78 = arith.constant 0 : index
    %102 = vector.load %arg11[%c2_76, %c0_77, %c0_78] : memref<18x24x128xbf16, #tpu.memory_space<vmem>>, vector<16x16x128xbf16>
    %103 = vector.shape_cast %102 : vector<16x16x128xbf16> to vector<256x128xbf16>
    %c2_79 = arith.constant 2 : index
    %c0_80 = arith.constant 0 : index
    %c0_81 = arith.constant 0 : index
    %c0_82 = arith.constant 0 : index
    %104 = vector.load %arg6[%c2_79, %c0_80, %c0_81, %c0_82] : memref<3x3x128x128xbf16, #tpu.memory_space<vmem>>, vector<1x1x128x128xbf16>
    %105 = vector.shape_cast %104 : vector<1x1x128x128xbf16> to vector<128x128xbf16>
    %cst_83 = arith.constant dense<0.000000e+00> : vector<256x128xf32>
    %106 = tpu.matmul %103, %105, %cst_83 {dimension_numbers = #tpu.dot_dimension_numbers<[1], [0], [0], [1], [0, 0, 1, 1], [], []>} : vector<256x128xbf16>, vector<128x128xbf16>, vector<256x128xf32> -> vector<256x128xf32>
    %107 = arith.addf %101, %106 : vector<256x128xf32>
    %c0_84 = arith.constant 0 : index
    %c1_85 = arith.constant 1 : index
    %c0_86 = arith.constant 0 : index
    %108 = vector.load %arg11[%c0_84, %c1_85, %c0_86] : memref<18x24x128xbf16, #tpu.memory_space<vmem>>, vector<16x16x128xbf16>
    %109 = vector.shape_cast %108 : vector<16x16x128xbf16> to vector<256x128xbf16>
    %c0_87 = arith.constant 0 : index
    %c1_88 = arith.constant 1 : index
    %c0_89 = arith.constant 0 : index
    %c0_90 = arith.constant 0 : index
    %110 = vector.load %arg6[%c0_87, %c1_88, %c0_89, %c0_90] : memref<3x3x128x128xbf16, #tpu.memory_space<vmem>>, vector<1x1x128x128xbf16>
    %111 = vector.shape_cast %110 : vector<1x1x128x128xbf16> to vector<128x128xbf16>
    %cst_91 = arith.constant dense<0.000000e+00> : vector<256x128xf32>
    %112 = tpu.matmul %109, %111, %cst_91 {dimension_numbers = #tpu.dot_dimension_numbers<[1], [0], [0], [1], [0, 0, 1, 1], [], []>} : vector<256x128xbf16>, vector<128x128xbf16>, vector<256x128xf32> -> vector<256x128xf32>
    %113 = arith.addf %107, %112 : vector<256x128xf32>
    %c1_92 = arith.constant 1 : index
    %c1_93 = arith.constant 1 : index
    %c0_94 = arith.constant 0 : index
    %114 = vector.load %arg11[%c1_92, %c1_93, %c0_94] : memref<18x24x128xbf16, #tpu.memory_space<vmem>>, vector<16x16x128xbf16>
    %115 = vector.shape_cast %114 : vector<16x16x128xbf16> to vector<256x128xbf16>
    %c1_95 = arith.constant 1 : index
    %c1_96 = arith.constant 1 : index
    %c0_97 = arith.constant 0 : index
    %c0_98 = arith.constant 0 : index
    %116 = vector.load %arg6[%c1_95, %c1_96, %c0_97, %c0_98] : memref<3x3x128x128xbf16, #tpu.memory_space<vmem>>, vector<1x1x128x128xbf16>
    %117 = vector.shape_cast %116 : vector<1x1x128x128xbf16> to vector<128x128xbf16>
    %cst_99 = arith.constant dense<0.000000e+00> : vector<256x128xf32>
    %118 = tpu.matmul %115, %117, %cst_99 {dimension_numbers = #tpu.dot_dimension_numbers<[1], [0], [0], [1], [0, 0, 1, 1], [], []>} : vector<256x128xbf16>, vector<128x128xbf16>, vector<256x128xf32> -> vector<256x128xf32>
    %119 = arith.addf %113, %118 : vector<256x128xf32>
    %c2_100 = arith.constant 2 : index
    %c1_101 = arith.constant 1 : index
    %c0_102 = arith.constant 0 : index
    %120 = vector.load %arg11[%c2_100, %c1_101, %c0_102] : memref<18x24x128xbf16, #tpu.memory_space<vmem>>, vector<16x16x128xbf16>
    %121 = vector.shape_cast %120 : vector<16x16x128xbf16> to vector<256x128xbf16>
    %c2_103 = arith.constant 2 : index
    %c1_104 = arith.constant 1 : index
    %c0_105 = arith.constant 0 : index
    %c0_106 = arith.constant 0 : index
    %122 = vector.load %arg6[%c2_103, %c1_104, %c0_105, %c0_106] : memref<3x3x128x128xbf16, #tpu.memory_space<vmem>>, vector<1x1x128x128xbf16>
    %123 = vector.shape_cast %122 : vector<1x1x128x128xbf16> to vector<128x128xbf16>
    %cst_107 = arith.constant dense<0.000000e+00> : vector<256x128xf32>
    %124 = tpu.matmul %121, %123, %cst_107 {dimension_numbers = #tpu.dot_dimension_numbers<[1], [0], [0], [1], [0, 0, 1, 1], [], []>} : vector<256x128xbf16>, vector<128x128xbf16>, vector<256x128xf32> -> vector<256x128xf32>
    %125 = arith.addf %119, %124 : vector<256x128xf32>
    %c0_108 = arith.constant 0 : index
    %c2_109 = arith.constant 2 : index
    %c0_110 = arith.constant 0 : index
    %126 = vector.load %arg11[%c0_108, %c2_109, %c0_110] : memref<18x24x128xbf16, #tpu.memory_space<vmem>>, vector<16x16x128xbf16>
    %127 = vector.shape_cast %126 : vector<16x16x128xbf16> to vector<256x128xbf16>
    %c0_111 = arith.constant 0 : index
    %c2_112 = arith.constant 2 : index
    %c0_113 = arith.constant 0 : index
    %c0_114 = arith.constant 0 : index
    %128 = vector.load %arg6[%c0_111, %c2_112, %c0_113, %c0_114] : memref<3x3x128x128xbf16, #tpu.memory_space<vmem>>, vector<1x1x128x128xbf16>
    %129 = vector.shape_cast %128 : vector<1x1x128x128xbf16> to vector<128x128xbf16>
    %cst_115 = arith.constant dense<0.000000e+00> : vector<256x128xf32>
    %130 = tpu.matmul %127, %129, %cst_115 {dimension_numbers = #tpu.dot_dimension_numbers<[1], [0], [0], [1], [0, 0, 1, 1], [], []>} : vector<256x128xbf16>, vector<128x128xbf16>, vector<256x128xf32> -> vector<256x128xf32>
    %131 = arith.addf %125, %130 : vector<256x128xf32>
    %c1_116 = arith.constant 1 : index
    %c2_117 = arith.constant 2 : index
    %c0_118 = arith.constant 0 : index
    %132 = vector.load %arg11[%c1_116, %c2_117, %c0_118] : memref<18x24x128xbf16, #tpu.memory_space<vmem>>, vector<16x16x128xbf16>
    %133 = vector.shape_cast %132 : vector<16x16x128xbf16> to vector<256x128xbf16>
    %c1_119 = arith.constant 1 : index
    %c2_120 = arith.constant 2 : index
    %c0_121 = arith.constant 0 : index
    %c0_122 = arith.constant 0 : index
    %134 = vector.load %arg6[%c1_119, %c2_120, %c0_121, %c0_122] : memref<3x3x128x128xbf16, #tpu.memory_space<vmem>>, vector<1x1x128x128xbf16>
    %135 = vector.shape_cast %134 : vector<1x1x128x128xbf16> to vector<128x128xbf16>
    %cst_123 = arith.constant dense<0.000000e+00> : vector<256x128xf32>
    %136 = tpu.matmul %133, %135, %cst_123 {dimension_numbers = #tpu.dot_dimension_numbers<[1], [0], [0], [1], [0, 0, 1, 1], [], []>} : vector<256x128xbf16>, vector<128x128xbf16>, vector<256x128xf32> -> vector<256x128xf32>
    %137 = arith.addf %131, %136 : vector<256x128xf32>
    %c2_124 = arith.constant 2 : index
    %c2_125 = arith.constant 2 : index
    %c0_126 = arith.constant 0 : index
    %138 = vector.load %arg11[%c2_124, %c2_125, %c0_126] : memref<18x24x128xbf16, #tpu.memory_space<vmem>>, vector<16x16x128xbf16>
    %139 = vector.shape_cast %138 : vector<16x16x128xbf16> to vector<256x128xbf16>
    %c2_127 = arith.constant 2 : index
    %c2_128 = arith.constant 2 : index
    %c0_129 = arith.constant 0 : index
    %c0_130 = arith.constant 0 : index
    %140 = vector.load %arg6[%c2_127, %c2_128, %c0_129, %c0_130] : memref<3x3x128x128xbf16, #tpu.memory_space<vmem>>, vector<1x1x128x128xbf16>
    %141 = vector.shape_cast %140 : vector<1x1x128x128xbf16> to vector<128x128xbf16>
    %cst_131 = arith.constant dense<0.000000e+00> : vector<256x128xf32>
    %142 = tpu.matmul %139, %141, %cst_131 {dimension_numbers = #tpu.dot_dimension_numbers<[1], [0], [0], [1], [0, 0, 1, 1], [], []>} : vector<256x128xbf16>, vector<128x128xbf16>, vector<256x128xf32> -> vector<256x128xf32>
    %143 = arith.addf %137, %142 : vector<256x128xf32>
    %c0_132 = arith.constant 0 : index
    %c0_133 = arith.constant 0 : index
    %144 = vector.load %arg7[%c0_132, %c0_133] : memref<1x128xf32, #tpu.memory_space<vmem>>, vector<1x128xf32>
    %145 = vector.broadcast %144 : vector<1x128xf32> to vector<256x128xf32>
    %146 = arith.mulf %143, %145 : vector<256x128xf32>
    %c0_134 = arith.constant 0 : index
    %c0_135 = arith.constant 0 : index
    %147 = vector.load %arg8[%c0_134, %c0_135] : memref<1x128xf32, #tpu.memory_space<vmem>>, vector<1x128xf32>
    %148 = vector.broadcast %147 : vector<1x128xf32> to vector<256x128xf32>
    %149 = arith.addf %146, %148 : vector<256x128xf32>
    %150 = vector.shape_cast %149 : vector<256x128xf32> to vector<16x16x128xf32>
    %c0_136 = arith.constant 0 : index
    %c0_137 = arith.constant 0 : index
    %c0_138 = arith.constant 0 : index
    %c0_139 = arith.constant 0 : index
    %151 = vector.load %arg9[%c0_136, %c0_137, %c0_138, %c0_139] : memref<1x16x16x128xf32, #tpu.memory_space<vmem>>, vector<1x16x16x128xf32>
    %152 = vector.shape_cast %151 : vector<1x16x16x128xf32> to vector<16x16x128xf32>
    %153 = arith.addf %150, %152 : vector<16x16x128xf32>
    %cst_140 = arith.constant 0.000000e+00 : f32
    %154 = vector.broadcast %cst_140 : f32 to vector<16x16x128xf32>
    %155 = arith.maximumf %153, %154 : vector<16x16x128xf32>
    %c0_141 = arith.constant 0 : index
    %c0_142 = arith.constant 0 : index
    %c0_143 = arith.constant 0 : index
    %c0_144 = arith.constant 0 : index
    %156 = vector.load %arg10[%c0_141, %c0_142, %c0_143, %c0_144] : memref<1x16x16x128xf32, #tpu.memory_space<vmem>>, vector<1x16x16x128xf32>
    %157 = vector.shape_cast %156 : vector<1x16x16x128xf32> to vector<16x16x128xf32>
    %158 = vector.shape_cast %155 : vector<16x16x128xf32> to vector<1x16x16x128xf32>
    tpu.vector_store %arg10[%c0_141, %c0_142, %c0_143, %c0_144], %158 {strides = array<i32>} : memref<1x16x16x128xf32, #tpu.memory_space<vmem>>, vector<1x16x16x128xf32>,
    return
  }
  func.func @transform_0(%arg0: i32, %arg1: i32) -> (i32, i32, i32, i32, i32) {
    %c0_i32 = arith.constant 0 : i32
    %c0_i32_0 = arith.constant 0 : i32
    %c0_i32_1 = arith.constant 0 : i32
    %c0_i32_2 = arith.constant 0 : i32
    return %arg0, %arg1, %c0_i32, %c0_i32_0, %c0_i32_1 : i32, i32, i32, i32, i32
  }
  func.func @transform_1(%arg0: i32, %arg1: i32) -> (i32, i32, i32, i32) {
    %c0_i32 = arith.constant 0 : i32
    %c0_i32_0 = arith.constant 0 : i32
    %c0_i32_1 = arith.constant 0 : i32
    %c0_i32_2 = arith.constant 0 : i32
    %c0_i32_3 = arith.constant 0 : i32
    return %c0_i32, %c0_i32_0, %c0_i32_1, %c0_i32_2 : i32, i32, i32, i32
  }
  func.func @transform_2(%arg0: i32, %arg1: i32) -> (i32, i32) {
    %c0_i32 = arith.constant 0 : i32
    %c0_i32_0 = arith.constant 0 : i32
    %c0_i32_1 = arith.constant 0 : i32
    return %c0_i32, %c0_i32_0 : i32, i32
  }
  func.func @transform_3(%arg0: i32, %arg1: i32) -> (i32, i32) {
    %c0_i32 = arith.constant 0 : i32
    %c0_i32_0 = arith.constant 0 : i32
    %c0_i32_1 = arith.constant 0 : i32
    return %c0_i32, %c0_i32_0 : i32, i32
  }
  func.func @transform_4(%arg0: i32, %arg1: i32) -> (i32, i32, i32, i32) {
    %c0_i32 = arith.constant 0 : i32
    %c0_i32_0 = arith.constant 0 : i32
    %c0_i32_1 = arith.constant 0 : i32
    %c0_i32_2 = arith.constant 0 : i32
    %c0_i32_3 = arith.constant 0 : i32
    return %c0_i32, %c0_i32_0, %c0_i32_1, %c0_i32_2 : i32, i32, i32, i32
  }
  func.func @transform_5(%arg0: i32, %arg1: i32) -> (i32, i32) {
    %c0_i32 = arith.constant 0 : i32
    %c0_i32_0 = arith.constant 0 : i32
    %c0_i32_1 = arith.constant 0 : i32
    return %c0_i32, %c0_i32_0 : i32, i32
  }
  func.func @transform_6(%arg0: i32, %arg1: i32) -> (i32, i32) {
    %c0_i32 = arith.constant 0 : i32
    %c0_i32_0 = arith.constant 0 : i32
    %c0_i32_1 = arith.constant 0 : i32
    return %c0_i32, %c0_i32_0 : i32, i32
  }
  func.func @transform_7(%arg0: i32, %arg1: i32) -> (i32, i32, i32, i32) {
    %c0_i32 = arith.constant 0 : i32
    %c0_i32_0 = arith.constant 0 : i32
    %c0_i32_1 = arith.constant 0 : i32
    return %arg0, %arg1, %c0_i32, %c0_i32_0 : i32, i32, i32, i32
  }
  func.func @transform_8(%arg0: i32, %arg1: i32) -> (i32, i32, i32, i32) {
    %c0_i32 = arith.constant 0 : i32
    %c0_i32_0 = arith.constant 0 : i32
    %c0_i32_1 = arith.constant 0 : i32
    return %arg0, %arg1, %c0_i32, %c0_i32_0 : i32, i32, i32, i32
  }
}

</mosaic_0001>

<llo_original>
// kernel: basic_block_forward.1
$region0: #{basic_block_forward.1}
  #allocation0 [shape = 'u32[]', space=smem, size = 0x4, offset = 0x4, fixed_abs, tag = 'smem constant byte address 0x4 - core index']
  #allocation1 [shape = 'u32[144,128]{1,0:T(1,128)}', space=vmem, size = 0x12000, scoped, tag = 'internal scratch']
  #allocation2 [shape = 'bf16[18,24,128]{2,1,0:T(8,128)(2,1)}', space=vmem, size = 0x1b000, scoped, tag = 'scratch operand']
  %s0 = inlined_call_operand.hbm [shape: bf16[2,1,20,32,128], index: 0, kind: input, shape index: {}]
  %s1 = inlined_call_operand.hbm [shape: bf16[3,3,128,128], index: 1, kind: input, shape index: {}]
  %s2 = inlined_call_operand.hbm [shape: f32[1,128], index: 2, kind: input, shape index: {}]
  %s3 = inlined_call_operand.hbm [shape: f32[1,128], index: 3, kind: input, shape index: {}]
  %s4 = inlined_call_operand.hbm [shape: bf16[3,3,128,128], index: 4, kind: input, shape index: {}]
  %s5 = inlined_call_operand.hbm [shape: f32[1,128], index: 5, kind: input, shape index: {}]
  %s6 = inlined_call_operand.hbm [shape: f32[1,128], index: 6, kind: input, shape index: {}]
  %s7 = inlined_call_operand.hbm [shape: f32[2,16,16,128], index: 7, kind: input, shape index: {}]
  %s8 = inlined_call_operand.hbm [shape: f32[2,16,16,128], index: 8, kind: output, shape index: {}]
  %s9 = sld [smem:[#allocation0]]
  $region97: #{basic_block_forward.1} parent=0
    _
  %s11 = ssub.s32 1, %s9
  %s12 = scalar_select 0, %s11, %s9
  $region1: #{basic_block_forward.1} parent=0
    #allocation3 [shape = 'u8[327680]{0}', space=vmem, size = 0x50000, scoped, tag = 'input window, operand 0']
    #allocation4 [shape = 's32[2]{0}', space=sflag, size = 0x8, scoped, tag = 'scoped memory for basic_block_forward.1']
    #allocation5 [shape = 's32[2]{0}', space=sflag, size = 0x8, scoped, tag = 'scoped memory for basic_block_forward.1']
    #allocation6 [shape = 'u8[294912]{0}', space=vmem, size = 0x48000, scoped, tag = 'input window, operand 1, single buffered']
    #allocation7 [shape = 's32[1]{0}', space=sflag, size = 0x4, scoped, tag = 'scoped memory for basic_block_forward.1']
    #allocation8 [shape = 'u8[512]{0}', space=vmem, size = 0x400, scoped, tag = 'input window, operand 2, single buffered']
    #allocation9 [shape = 'u8[512]{0}', space=vmem, size = 0x400, scoped, tag = 'input window, operand 3, single buffered']
    #allocation10 [shape = 's32[1]{0}', space=sflag, size = 0x4, scoped, tag = 'scoped memory for basic_block_forward.1']
    #allocation11 [shape = 'u8[294912]{0}', space=vmem, size = 0x48000, scoped, tag = 'input window, operand 4, single buffered']
    #allocation12 [shape = 'u8[512]{0}', space=vmem, size = 0x400, scoped, tag = 'input window, operand 5, single buffered']
    #allocation13 [shape = 's32[1]{0}', space=sflag, size = 0x4, scoped, tag = 'scoped memory for basic_block_forward.1']
    #allocation14 [shape = 'u8[512]{0}', space=vmem, size = 0x400, scoped, tag = 'input window, operand 6, single buffered']
    #allocation15 [shape = 'u8[262144]{0}', space=vmem, size = 0x40000, scoped, tag = 'input window, operand 7']
    #allocation16 [shape = 's32[2]{0}', space=sflag, size = 0x8, scoped, tag = 'scoped memory for basic_block_forward.1']
    #allocation17 [shape = 'u8[262144]{0}', space=vmem, size = 0x40000, scoped, tag = 'output window, operand 0']
    %13 = vsyncpa [#allocation4], 0
    %s14 = scalar_lea.sflag [#allocation4], 1
    %15 = vsyncpa %s14, 0
    %16 = vsyncpa [#allocation7], 0
    %17 = vsyncpa [#allocation10], 0
    %18 = vsyncpa [#allocation13], 0
    %19 = vsyncpa [#allocation16], 0
    %s20 = scalar_lea.sflag [#allocation16], 1
    %21 = vsyncpa %s20, 0
    %22 = vsyncpa [#allocation5], 0
    %s23 = scalar_lea.sflag [#allocation5], 1
    %24 = vsyncpa %s23, 0
    loop: start=0, step=1, limit=4
    $region2: #{basic_block_forward.1} parent=1 // loop_pre_header
      _
    $region3: #{basic_block_forward.1} parent=1 // loop_header
      %s26 = sphi 0, %s30
      %p27 = scmp.ge.s32.totalorder %s26, 4
      %s33 = sphi 0, %s45
      %s34 = sphi 0, %s41
      %s35 = sphi 0, %s33
      %s36 = sphi 0, %s34
      %s37 = sphi 0, %s35
      %s38 = sphi 0, %s36
      %s50 = sphi 0, %s52
      %s53 = sphi 0, %s50
      %s54 = sphi 0, %s53
      %s70 = sphi 0, %s54
      %s74 = sphi 0, %s74
      %s76 = sphi 0, %s74
      %s77 = sphi 0, %s76
      %s91 = sphi 0, %s77
      %s95 = sphi 0, %s95
      %s97 = sphi 0, %s95
      %s98 = sphi 0, %s97
      %s112 = sphi 0, %s98
      %s116 = sphi 0, %s116
      %s118 = sphi 0, %s116
      %s119 = sphi 0, %s118
      %s133 = sphi 0, %s119
      %s137 = sphi 0, %s137
      %s139 = sphi 0, %s137
      %s140 = sphi 0, %s139
      %s154 = sphi 0, %s140
      %s158 = sphi 0, %s158
      %s160 = sphi 0, %s158
      %s161 = sphi 0, %s160
      %s175 = sphi 0, %s161
      %s179 = sphi 0, %s179
      %s181 = sphi 0, %s179
      %s182 = sphi 0, %s181
      %s196 = sphi 0, %s182
      %s204 = sphi 0, %s206
      %s207 = sphi 0, %s204
      %s208 = sphi 0, %s207
      %s224 = sphi 0, %s208
      %s232 = sphi 0, %s234
      %s235 = sphi 0, %s232
      %s236 = sphi 0, %s235
      %s252 = sphi 0, %s236
    $region4: #{basic_block_forward.1} parent=1 // loop_header_branch
      %29 = sbr.rel (%p27) target = $region8
    $region5: #{basic_block_forward.1} parent=1 // loop_body
      %s31 = ssub.s32 %s26, 1
      %s32 = ssub.s32 %s26, 2
      %s39 = sadd.s32 1, %s34
      %p40 = scmp.ge.s32.totalorder %s39, 1
      %s41 = scalar_select %p40, 0, %s39
      %s42 = sadd.s32 1, %s33
      %s43 = scalar_select %p40, %s42, %s33
      %p44 = scmp.ge.s32.totalorder %s43, 2
      %s45 = scalar_select %p44, 0, %s43
      %s46 = ssub.s32 %s33, %s45
      %s47 = ssub.s32 %s34, %s41
      %s48 = sor.u32 %s46, %s47
      %p49 = scmp.eq.s32.totalorder %s48, 0
      %s51 = sadd.s32 %s50, 1
      %s52 = scalar_select %p49, %s50, %s51
      %p55 = pneg %p49
      %p56 = scmp.eq.s32.totalorder %s26, 1
      %p57 = por %p55, %p56
      %p58 = scmp.ne.s32.totalorder %s50, %s53
      %p59 = scmp.eq.s32.totalorder %s26, 0
      %p60 = por %p58, %p59
      %p61 = scmp.ne.s32.totalorder %s50, %s53
      %p62 = scmp.eq.s32.totalorder %s31, 1
      %p63 = por %p61, %p62
      %p64 = scmp.ne.s32.totalorder %s53, %s54
      %p65 = scmp.eq.s32.totalorder %s31, 0
      %p66 = por %p64, %p65
      %p67 = scmp.ne.s32.totalorder %s53, %s54
      %p68 = scmp.eq.s32.totalorder %s32, 1
      %p69 = por %p67, %p68
      %p71 = scmp.ne.s32.totalorder %s54, %s70
      %p72 = scmp.eq.s32.totalorder %s32, 0
      %p73 = por %p71, %p72
      %s75 = sadd.s32 %s74, 1
      %p78 = scmp.eq.s32.totalorder %s26, 1
      %p79 = scmp.ne.s32.totalorder %s74, %s76
      %p80 = scmp.eq.s32.totalorder %s26, 0
      %p81 = por %p79, %p80
      %p82 = scmp.ne.s32.totalorder %s74, %s76
      %p83 = scmp.eq.s32.totalorder %s31, 1
      %p84 = por %p82, %p83
      %p85 = scmp.ne.s32.totalorder %s76, %s77
      %p86 = scmp.eq.s32.totalorder %s31, 0
      %p87 = por %p85, %p86
      %p88 = scmp.ne.s32.totalorder %s76, %s77
      %p89 = scmp.eq.s32.totalorder %s32, 1
      %p90 = por %p88, %p89
      %p92 = scmp.ne.s32.totalorder %s77, %s91
      %p93 = scmp.eq.s32.totalorder %s32, 0
      %p94 = por %p92, %p93
      %s96 = sadd.s32 %s95, 1
      %p99 = scmp.eq.s32.totalorder %s26, 1
      %p100 = scmp.ne.s32.totalorder %s95, %s97
      %p101 = scmp.eq.s32.totalorder %s26, 0
      %p102 = por %p100, %p101
      %p103 = scmp.ne.s32.totalorder %s95, %s97
      %p104 = scmp.eq.s32.totalorder %s31, 1
      %p105 = por %p103, %p104
      %p106 = scmp.ne.s32.totalorder %s97, %s98
      %p107 = scmp.eq.s32.totalorder %s31, 0
      %p108 = por %p106, %p107
      %p109 = scmp.ne.s32.totalorder %s97, %s98
      %p110 = scmp.eq.s32.totalorder %s32, 1
      %p111 = por %p109, %p110
      %p113 = scmp.ne.s32.totalorder %s98, %s112
      %p114 = scmp.eq.s32.totalorder %s32, 0
      %p115 = por %p113, %p114
      %s117 = sadd.s32 %s116, 1
      %p120 = scmp.eq.s32.totalorder %s26, 1
      %p121 = scmp.ne.s32.totalorder %s116, %s118
      %p122 = scmp.eq.s32.totalorder %s26, 0
      %p123 = por %p121, %p122
      %p124 = scmp.ne.s32.totalorder %s116, %s118
      %p125 = scmp.eq.s32.totalorder %s31, 1
      %p126 = por %p124, %p125
      %p127 = scmp.ne.s32.totalorder %s118, %s119
      %p128 = scmp.eq.s32.totalorder %s31, 0
      %p129 = por %p127, %p128
      %p130 = scmp.ne.s32.totalorder %s118, %s119
      %p131 = scmp.eq.s32.totalorder %s32, 1
      %p132 = por %p130, %p131
      %p134 = scmp.ne.s32.totalorder %s119, %s133
      %p135 = scmp.eq.s32.totalorder %s32, 0
      %p136 = por %p134, %p135
      %s138 = sadd.s32 %s137, 1
      %p141 = scmp.eq.s32.totalorder %s26, 1
      %p142 = scmp.ne.s32.totalorder %s137, %s139
      %p143 = scmp.eq.s32.totalorder %s26, 0
      %p144 = por %p142, %p143
      %p145 = scmp.ne.s32.totalorder %s137, %s139
      %p146 = scmp.eq.s32.totalorder %s31, 1
      %p147 = por %p145, %p146
      %p148 = scmp.ne.s32.totalorder %s139, %s140
      %p149 = scmp.eq.s32.totalorder %s31, 0
      %p150 = por %p148, %p149
      %p151 = scmp.ne.s32.totalorder %s139, %s140
      %p152 = scmp.eq.s32.totalorder %s32, 1
      %p153 = por %p151, %p152
      %p155 = scmp.ne.s32.totalorder %s140, %s154
      %p156 = scmp.eq.s32.totalorder %s32, 0
      %p157 = por %p155, %p156
      %s159 = sadd.s32 %s158, 1
      %p162 = scmp.eq.s32.totalorder %s26, 1
      %p163 = scmp.ne.s32.totalorder %s158, %s160
      %p164 = scmp.eq.s32.totalorder %s26, 0
      %p165 = por %p163, %p164
      %p166 = scmp.ne.s32.totalorder %s158, %s160
      %p167 = scmp.eq.s32.totalorder %s31, 1
      %p168 = por %p166, %p167
      %p169 = scmp.ne.s32.totalorder %s160, %s161
      %p170 = scmp.eq.s32.totalorder %s31, 0
      %p171 = por %p169, %p170
      %p172 = scmp.ne.s32.totalorder %s160, %s161
      %p173 = scmp.eq.s32.totalorder %s32, 1
      %p174 = por %p172, %p173
      %p176 = scmp.ne.s32.totalorder %s161, %s175
      %p177 = scmp.eq.s32.totalorder %s32, 0
      %p178 = por %p176, %p177
      %s180 = sadd.s32 %s179, 1
      %p183 = scmp.eq.s32.totalorder %s26, 1
      %p184 = scmp.ne.s32.totalorder %s179, %s181
      %p185 = scmp.eq.s32.totalorder %s26, 0
      %p186 = por %p184, %p185
      %p187 = scmp.ne.s32.totalorder %s179, %s181
      %p188 = scmp.eq.s32.totalorder %s31, 1
      %p189 = por %p187, %p188
      %p190 = scmp.ne.s32.totalorder %s181, %s182
      %p191 = scmp.eq.s32.totalorder %s31, 0
      %p192 = por %p190, %p191
      %p193 = scmp.ne.s32.totalorder %s181, %s182
      %p194 = scmp.eq.s32.totalorder %s32, 1
      %p195 = por %p193, %p194
      %p197 = scmp.ne.s32.totalorder %s182, %s196
      %p198 = scmp.eq.s32.totalorder %s32, 0
      %p199 = por %p197, %p198
      %s200 = ssub.s32 %s33, %s45
      %s201 = ssub.s32 %s34, %s41
      %s202 = sor.u32 %s200, %s201
      %p203 = scmp.eq.s32.totalorder %s202, 0
      %s205 = sadd.s32 %s204, 1
      %s206 = scalar_select %p203, %s204, %s205
      %p209 = pneg %p203
      %p210 = scmp.eq.s32.totalorder %s26, 1
      %p211 = por %p209, %p210
      %p212 = scmp.ne.s32.totalorder %s204, %s207
      %p213 = scmp.eq.s32.totalorder %s26, 0
      %p214 = por %p212, %p213
      %p215 = scmp.ne.s32.totalorder %s204, %s207
      %p216 = scmp.eq.s32.totalorder %s31, 1
      %p217 = por %p215, %p216
      %p218 = scmp.ne.s32.totalorder %s207, %s208
      %p219 = scmp.eq.s32.totalorder %s31, 0
      %p220 = por %p218, %p219
      %p221 = scmp.ne.s32.totalorder %s207, %s208
      %p222 = scmp.eq.s32.totalorder %s32, 1
      %p223 = por %p221, %p222
      %p225 = scmp.ne.s32.totalorder %s208, %s224
      %p226 = scmp.eq.s32.totalorder %s32, 0
      %p227 = por %p225, %p226
      %s228 = ssub.s32 %s33, %s45
      %s229 = ssub.s32 %s34, %s41
      %s230 = sor.u32 %s228, %s229
      %p231 = scmp.eq.s32.totalorder %s230, 0
      %s233 = sadd.s32 %s232, 1
      %s234 = scalar_select %p231, %s232, %s233
      %p237 = pneg %p231
      %p238 = scmp.eq.s32.totalorder %s26, 1
      %p239 = por %p237, %p238
      %p240 = scmp.ne.s32.totalorder %s232, %s235
      %p241 = scmp.eq.s32.totalorder %s26, 0
      %p242 = por %p240, %p241
      %p243 = scmp.ne.s32.totalorder %s232, %s235
      %p244 = scmp.eq.s32.totalorder %s31, 1
      %p245 = por %p243, %p244
      %p246 = scmp.ne.s32.totalorder %s235, %s236
      %p247 = scmp.eq.s32.totalorder %s31, 0
      %p248 = por %p246, %p247
      %p249 = scmp.ne.s32.totalorder %s235, %s236
      %p250 = scmp.eq.s32.totalorder %s32, 1
      %p251 = por %p249, %p250
      %p253 = scmp.ne.s32.totalorder %s236, %s252
      %p254 = scmp.eq.s32.totalorder %s32, 0
      %p255 = por %p253, %p254
      %p256 = scmp.le.s32.totalorder 1, %s26
      %p257 = scmp.lt.s32.totalorder %s26, 3
      %p258 = pnand %p256, %p257
      %p259 = pneg %p258
      // Predicated region
      $region9: #{basic_block_forward.1} parent=5 // pred_check
        _
      $region10: #{basic_block_forward.1} parent=5 // pred_check_branch
        %261 = sbr.rel (%p258) target = $region12
      $region11: #{basic_block_forward.1} parent=5 // pred_region
        %s262 = ssub.s32 %s26, 1
        // Predicated region
        $region13: #{basic_block_forward.1} parent=11 // pred_check
          %p263 = pneg %p87
        $region14: #{basic_block_forward.1} parent=11 // pred_check_branch
          %265 = sbr.rel (%p263) target = $region16
        $region15: #{basic_block_forward.1} parent=11 // pred_region
          %s267 = ssub.s32 9216, 9216
          %268 = vsyncadd [#allocation7], %s267
          %s269 = sshll.u32 [#allocation6], 4
          %s270 = int_to_ptr.vmem [resolvable:$true] %s269
          %275 = dma.hbm_to_vmem [thread:$0]  %s1, 9216, %s270, [#allocation7], 64, 64, 4
        $region16: #{basic_block_forward.1} parent=11 // pred_fallthru
          _
        // Predicated region
        $region17: #{basic_block_forward.1} parent=11 // pred_check
          %p276 = pneg %p108
        $region18: #{basic_block_forward.1} parent=11 // pred_check_branch
          %278 = sbr.rel (%p276) target = $region20
        $region19: #{basic_block_forward.1} parent=11 // pred_region
          %s280 = ssub.s32 16, 16
          %281 = vsyncadd [#allocation7], %s280
          %s283 = sshll.u32 [#allocation8], 4
          %s284 = int_to_ptr.vmem [resolvable:$true] %s283
          %286 = dma.hbm_to_vmem [thread:$0]  %s2, 16, %s284, [#allocation7]
        $region20: #{basic_block_forward.1} parent=11 // pred_fallthru
          _
        // Predicated region
        $region21: #{basic_block_forward.1} parent=11 // pred_check
          %p287 = pneg %p129
        $region22: #{basic_block_forward.1} parent=11 // pred_check_branch
          %289 = sbr.rel (%p287) target = $region24
        $region23: #{basic_block_forward.1} parent=11 // pred_region
          %s291 = ssub.s32 16, 16
          %292 = vsyncadd [#allocation10], %s291
          %s294 = sshll.u32 [#allocation9], 4
          %s295 = int_to_ptr.vmem [resolvable:$true] %s294
          %297 = dma.hbm_to_vmem [thread:$0]  %s3, 16, %s295, [#allocation10]
        $region24: #{basic_block_forward.1} parent=11 // pred_fallthru
          _
        // Predicated region
        $region25: #{basic_block_forward.1} parent=11 // pred_check
          %p298 = pneg %p150
        $region26: #{basic_block_forward.1} parent=11 // pred_check_branch
          %300 = sbr.rel (%p298) target = $region28
        $region27: #{basic_block_forward.1} parent=11 // pred_region
          %s302 = ssub.s32 9216, 9216
          %303 = vsyncadd [#allocation10], %s302
          %s304 = sshll.u32 [#allocation11], 4
          %s305 = int_to_ptr.vmem [resolvable:$true] %s304
          %310 = dma.hbm_to_vmem [thread:$0]  %s4, 9216, %s305, [#allocation10], 64, 64, 4
        $region28: #{basic_block_forward.1} parent=11 // pred_fallthru
          _
        // Predicated region
        $region29: #{basic_block_forward.1} parent=11 // pred_check
          %p311 = pneg %p171
        $region30: #{basic_block_forward.1} parent=11 // pred_check_branch
          %313 = sbr.rel (%p311) target = $region32
        $region31: #{basic_block_forward.1} parent=11 // pred_region
          %s315 = ssub.s32 16, 16
          %316 = vsyncadd [#allocation13], %s315
          %s318 = sshll.u32 [#allocation12], 4
          %s319 = int_to_ptr.vmem [resolvable:$true] %s318
          %321 = dma.hbm_to_vmem [thread:$0]  %s5, 16, %s319, [#allocation13]
        $region32: #{basic_block_forward.1} parent=11 // pred_fallthru
          _
        // Predicated region
        $region33: #{basic_block_forward.1} parent=11 // pred_check
          %p322 = pneg %p192
        $region34: #{basic_block_forward.1} parent=11 // pred_check_branch
          %324 = sbr.rel (%p322) target = $region36
        $region35: #{basic_block_forward.1} parent=11 // pred_region
          %s326 = ssub.s32 16, 16
          %327 = vsyncadd [#allocation13], %s326
          %s329 = sshll.u32 [#allocation14], 4
          %s330 = int_to_ptr.vmem [resolvable:$true] %s329
          %332 = dma.hbm_to_vmem [thread:$0]  %s6, 16, %s330, [#allocation13]
        $region36: #{basic_block_forward.1} parent=11 // pred_fallthru
          _
      $region12: #{basic_block_forward.1} parent=5 // pred_fallthru
        _
      %p333 = scmp.lt.s32.totalorder %s26, 2
      // Predicated region
      $region37: #{basic_block_forward.1} parent=5 // pred_check
        %p334 = pneg %p333
      $region38: #{basic_block_forward.1} parent=5 // pred_check_branch
        %336 = sbr.rel (%p334) target = $region40
      $region39: #{basic_block_forward.1} parent=5 // pred_region
        // Predicated region
        $region41: #{basic_block_forward.1} parent=39 // pred_check
          %p337 = pneg %p60
        $region42: #{basic_block_forward.1} parent=39 // pred_check_branch
          %339 = sbr.rel (%p337) target = $region44
        $region43: #{basic_block_forward.1} parent=39 // pred_region
          %s340 = sand.u32 %s50, 1
          %s341 = scalar_lea.sflag [#allocation4], %s340
          %s342 = sand.u32 %s50, 1
          %s343 = smul.addr %s342, 320
          %s344 = scalar_lea.vmem [#allocation3], %s343
          %s346 = ssub.s32 5120, 5120
          %347 = vsyncadd %s341, %s346
          %s348 = smul.addr %s34, 80
          %s349 = smul.addr %s33, 80
          %s350 = sadd.s32 %s348, %s349
          %s351 = smul.addr %s350, 64
          %s352 = scalar_lea.hbm %s0, %s351
          %s353 = sshll.u32 %s344, 4
          %s354 = int_to_ptr.vmem [resolvable:$true] %s353
          %359 = dma.hbm_to_vmem [thread:$0]  %s352, 5120, %s354, %s341, 64, 64, 4
        $region44: #{basic_block_forward.1} parent=39 // pred_fallthru
          _
        // Predicated region
        $region45: #{basic_block_forward.1} parent=39 // pred_check
          %p360 = pneg %p214
        $region46: #{basic_block_forward.1} parent=39 // pred_check_branch
          %362 = sbr.rel (%p360) target = $region48
        $region47: #{basic_block_forward.1} parent=39 // pred_region
          %s363 = sand.u32 %s204, 1
          %s364 = scalar_lea.sflag [#allocation16], %s363
          %s365 = sand.u32 %s204, 1
          %s366 = smul.addr %s365, 256
          %s367 = scalar_lea.vmem [#allocation15], %s366
          %s368 = smul.u32 16, %s34
          %s370 = ssub.s32 4096, 4096
          %371 = vsyncadd %s364, %s370
          %s372 = smul.addr %s368, 2
          %s373 = smul.addr %s33, 32
          %s374 = sadd.s32 %s372, %s373
          %s375 = smul.addr %s374, 128
          %s376 = scalar_lea.hbm %s7, %s375
          %s377 = sshll.u32 %s367, 4
          %s378 = int_to_ptr.vmem [resolvable:$true] %s377
          %383 = dma.hbm_to_vmem [thread:$0]  %s376, 4096, %s378, %s364, 128, 128, 8
        $region48: #{basic_block_forward.1} parent=39 // pred_fallthru
          _
      $region40: #{basic_block_forward.1} parent=5 // pred_fallthru
        _
      %p384 = scmp.le.s32.totalorder 1, %s26
      %p385 = scmp.lt.s32.totalorder %s26, 3
      %p386 = pnand %p384, %p385
      %p387 = pneg %p386
      // Predicated region
      $region49: #{basic_block_forward.1} parent=5 // pred_check
        _
      $region50: #{basic_block_forward.1} parent=5 // pred_check_branch
        %389 = sbr.rel (%p386) target = $region52
      $region51: #{basic_block_forward.1} parent=5 // pred_region
        %s390 = ssub.s32 %s26, 1
        %s391 = sand.u32 %s53, 1
        %s392 = scalar_lea.sflag [#allocation4], %s391
        %s393 = sand.u32 %s53, 1
        %s394 = smul.addr %s393, 320
        %s395 = scalar_lea.vmem [#allocation3], %s394
        // Predicated region
        $region53: #{basic_block_forward.1} parent=51 // pred_check
          %p396 = pneg %p66
        $region54: #{basic_block_forward.1} parent=51 // pred_check_branch
          %398 = sbr.rel (%p396) target = $region56
        $region55: #{basic_block_forward.1} parent=51 // pred_region
          %399 = dma.done %s392, 5120
        $region56: #{basic_block_forward.1} parent=51 // pred_fallthru
          _
        // Predicated region
        $region57: #{basic_block_forward.1} parent=51 // pred_check
          %p400 = pneg %p87
        $region58: #{basic_block_forward.1} parent=51 // pred_check_branch
          %402 = sbr.rel (%p400) target = $region60
        $region59: #{basic_block_forward.1} parent=51 // pred_region
          %403 = dma.done [#allocation7], 9216
        $region60: #{basic_block_forward.1} parent=51 // pred_fallthru
          _
        // Predicated region
        $region61: #{basic_block_forward.1} parent=51 // pred_check
          %p404 = pneg %p108
        $region62: #{basic_block_forward.1} parent=51 // pred_check_branch
          %406 = sbr.rel (%p404) target = $region64
        $region63: #{basic_block_forward.1} parent=51 // pred_region
          %407 = dma.done [#allocation7], 16
        $region64: #{basic_block_forward.1} parent=51 // pred_fallthru
          _
        // Predicated region
        $region65: #{basic_block_forward.1} parent=51 // pred_check
          %p408 = pneg %p129
        $region66: #{basic_block_forward.1} parent=51 // pred_check_branch
          %410 = sbr.rel (%p408) target = $region68
        $region67: #{basic_block_forward.1} parent=51 // pred_region
          %411 = dma.done [#allocation10], 16
        $region68: #{basic_block_forward.1} parent=51 // pred_fallthru
          _
        // Predicated region
        $region69: #{basic_block_forward.1} parent=51 // pred_check
          %p412 = pneg %p150
        $region70: #{basic_block_forward.1} parent=51 // pred_check_branch
          %414 = sbr.rel (%p412) target = $region72
        $region71: #{basic_block_forward.1} parent=51 // pred_region
          %415 = dma.done [#allocation10], 9216
        $region72: #{basic_block_forward.1} parent=51 // pred_fallthru
          _
        // Predicated region
        $region73: #{basic_block_forward.1} parent=51 // pred_check
          %p416 = pneg %p171
        $region74: #{basic_block_forward.1} parent=51 // pred_check_branch
          %418 = sbr.rel (%p416) target = $region76
        $region75: #{basic_block_forward.1} parent=51 // pred_region
          %419 = dma.done [#allocation13], 16
        $region76: #{basic_block_forward.1} parent=51 // pred_fallthru
          _
        // Predicated region
        $region77: #{basic_block_forward.1} parent=51 // pred_check
          %p420 = pneg %p192
        $region78: #{basic_block_forward.1} parent=51 // pred_check_branch
          %422 = sbr.rel (%p420) target = $region80
        $region79: #{basic_block_forward.1} parent=51 // pred_region
          %423 = dma.done [#allocation13], 16
        $region80: #{basic_block_forward.1} parent=51 // pred_fallthru
          _
        %s424 = sand.u32 %s207, 1
        %s425 = scalar_lea.sflag [#allocation16], %s424
        %s426 = sand.u32 %s207, 1
        %s427 = smul.addr %s426, 256
        %s428 = scalar_lea.vmem [#allocation15], %s427
        // Predicated region
        $region81: #{basic_block_forward.1} parent=51 // pred_check
          %p429 = pneg %p220
        $region82: #{basic_block_forward.1} parent=51 // pred_check_branch
          %431 = sbr.rel (%p429) target = $region84
        $region83: #{basic_block_forward.1} parent=51 // pred_region
          %432 = dma.done %s425, 4096
        $region84: #{basic_block_forward.1} parent=51 // pred_fallthru
          _
        %s433 = sand.u32 %s53, 1
        %s434 = scalar_lea.sflag [#allocation4], %s433
        %s435 = sand.u32 %s53, 1
        %s436 = smul.addr %s435, 320
        %s437 = scalar_lea.vmem [#allocation3], %s436
        %p438 = pneg %p66
        %p439 = pneg %p63
        %p440 = pneg %p87
        %p441 = pneg %p84
        %p442 = pneg %p108
        %p443 = pneg %p105
        %p444 = pneg %p129
        %p445 = pneg %p126
        %p446 = pneg %p150
        %p447 = pneg %p147
        %p448 = pneg %p171
        %p449 = pneg %p168
        %p450 = pneg %p192
        %p451 = pneg %p189
        %s452 = sand.u32 %s207, 1
        %s453 = scalar_lea.sflag [#allocation16], %s452
        %s454 = sand.u32 %s207, 1
        %s455 = smul.addr %s454, 256
        %s456 = scalar_lea.vmem [#allocation15], %s455
        %p457 = pneg %p220
        %p458 = pneg %p217
        %p459 = pneg %p248
        %p460 = pneg %p245
        %s461 = sand.u32 %s235, 1
        %s462 = scalar_lea.sflag [#allocation5], %s461
        %s463 = sand.u32 %s235, 1
        %s464 = smul.addr %s463, 256
        %s465 = scalar_lea.vmem [#allocation17], %s464
        %s466 = smul.u32 16, %s36
        %s467 = smul.u32 16, %s36
        %v469 = vld [vmem:[%s395] sm:$0xf]
        %v470 = vld [vmem:[%s395 + $0x4] sm:$0xf]
        %v471 = vld [vmem:[%s395 + $0x8] sm:$0xf]
        %v472 = vld [vmem:[%s395 + $0xc] sm:$0xf]
        %v473 = vld [vmem:[%s395 + $0x10] sm:$0xf]
        %v474 = vld [vmem:[%s395 + $0x14] sm:$0xf]
        %v475 = vld [vmem:[%s395 + $0x18] sm:$0xf]
        %v476 = vld [vmem:[%s395 + $0x1c] sm:$0xf]
        %v477 = vld [vmem:[%s395 + $0x20] sm:$0xf]
        %v478 = vld [vmem:[%s395 + $0x24] sm:$0xf]
        %v479 = vld [vmem:[%s395 + $0x28] sm:$0xf]
        %v480 = vld [vmem:[%s395 + $0x2c] sm:$0xf]
        %v481 = vld [vmem:[%s395 + $0x30] sm:$0xf]
        %v482 = vld [vmem:[%s395 + $0x34] sm:$0xf]
        %v483 = vld [vmem:[%s395 + $0x38] sm:$0xf]
        %v484 = vld [vmem:[%s395 + $0x3c] sm:$0xf]
        %v485 = vld [vmem:[%s395 + $0x40] sm:$0xf]
        %v486 = vld [vmem:[%s395 + $0x44] sm:$0xf]
        %v487 = vld [vmem:[%s395 + $0x48] sm:$0xf]
        %v488 = vld [vmem:[%s395 + $0x4c] sm:$0xf]
        %v489 = vld [vmem:[%s395 + $0x50] sm:$0xf]
        %v490 = vld [vmem:[%s395 + $0x54] sm:$0xf]
        %v491 = vld [vmem:[%s395 + $0x58] sm:$0xf]
        %v492 = vld [vmem:[%s395 + $0x5c] sm:$0xf]
        %v493 = vld [vmem:[%s395 + $0x60] sm:$0xf]
        %v494 = vld [vmem:[%s395 + $0x64] sm:$0xf]
        %v495 = vld [vmem:[%s395 + $0x68] sm:$0xf]
        %v496 = vld [vmem:[%s395 + $0x6c] sm:$0xf]
        %v497 = vld [vmem:[%s395 + $0x70] sm:$0xf]
        %v498 = vld [vmem:[%s395 + $0x74] sm:$0xf]
        %v499 = vld [vmem:[%s395 + $0x78] sm:$0xf]
        %v500 = vld [vmem:[%s395 + $0x7c] sm:$0xf]
        %v501 = vld [vmem:[%s395 + $0x80] sm:$0xf]
        %v502 = vld [vmem:[%s395 + $0x84] sm:$0xf]
        %v503 = vld [vmem:[%s395 + $0x88] sm:$0xf]
        %v504 = vld [vmem:[%s395 + $0x8c] sm:$0xf]
        %v505 = vld [vmem:[%s395 + $0x90] sm:$0xf]
        %v506 = vld [vmem:[%s395 + $0x94] sm:$0xf]
        %v507 = vld [vmem:[%s395 + $0x98] sm:$0xf]
        %v508 = vld [vmem:[%s395 + $0x9c] sm:$0xf]
        %v509 = vld [vmem:[%s395 + $0xa0] sm:$0xf]
        %v510 = vld [vmem:[%s395 + $0xa4] sm:$0xf]
        %v511 = vld [vmem:[%s395 + $0xa8] sm:$0xf]
        %v512 = vld [vmem:[%s395 + $0xac] sm:$0xf]
        %v513 = vld [vmem:[%s395 + $0xb0] sm:$0xf]
        %v514 = vld [vmem:[%s395 + $0xb4] sm:$0xf]
        %v515 = vld [vmem:[%s395 + $0xb8] sm:$0xf]
        %v516 = vld [vmem:[%s395 + $0xbc] sm:$0xf]
        %v517 = vld [vmem:[%s395 + $0xc0] sm:$0xf]
        %v518 = vld [vmem:[%s395 + $0xc4] sm:$0xf]
        %v519 = vld [vmem:[%s395 + $0xc8] sm:$0xf]
        %v520 = vld [vmem:[%s395 + $0xcc] sm:$0xf]
        %v521 = vld [vmem:[%s395 + $0xd0] sm:$0xf]
        %v522 = vld [vmem:[%s395 + $0xd4] sm:$0xf]
        %v523 = vld [vmem:[%s395 + $0xd8] sm:$0xf]
        %v524 = vld [vmem:[%s395 + $0xdc] sm:$0xf]
        %v525 = vld [vmem:[%s395 + $0xe0] sm:$0xf]
        %v526 = vld [vmem:[%s395 + $0xe4] sm:$0xf]
        %v527 = vld [vmem:[%s395 + $0xe8] sm:$0xf]
        %v528 = vld [vmem:[%s395 + $0xec] sm:$0xf]
        %v529 = vld [vmem:[%s395 + $0xf0] sm:$0xf]
        %v530 = vld [vmem:[%s395 + $0xf4] sm:$0xf]
        %v531 = vld [vmem:[%s395 + $0xf8] sm:$0xf]
        %v532 = vld [vmem:[%s395 + $0xfc] sm:$0xf]
        %v533 = vld [vmem:[%s395 + $0x100] sm:$0xf]
        %v534 = vld [vmem:[%s395 + $0x104] sm:$0xf]
        %v535 = vld [vmem:[%s395 + $0x108] sm:$0xf]
        %v536 = vld [vmem:[%s395 + $0x10c] sm:$0xf]
        %v537 = vld [vmem:[%s395 + $0x110] sm:$0xf]
        %v538 = vld [vmem:[%s395 + $0x114] sm:$0xf]
        %v539 = vld [vmem:[%s395 + $0x118] sm:$0xf]
        %v540 = vld [vmem:[%s395 + $0x11c] sm:$0xf]
        %v541 = vld [vmem:[%s395 + $0x120] sm:$0xf]
        %v542 = vld [vmem:[%s395 + $0x124] sm:$0xf]
        %v543 = vld [vmem:[%s395 + $0x128] sm:$0xf]
        %v544 = vld [vmem:[%s395 + $0x12c] sm:$0xf]
        %v545 = vld [vmem:[%s395 + $0x130] sm:$0xf]
        %v546 = vld [vmem:[%s395 + $0x134] sm:$0xf]
        %v547 = vld [vmem:[%s395 + $0x138] sm:$0xf]
        %v548 = vld [vmem:[%s395 + $0x13c] sm:$0xf]
        %v549 = vld [vmem:[#allocation6] sm:$0xf]
        %v550 = vld [vmem:[#allocation6 + $0x4] sm:$0xf]
        %v551 = vld [vmem:[#allocation6 + $0x8] sm:$0xf]
        %v552 = vld [vmem:[#allocation6 + $0xc] sm:$0xf]
        %v553 = vld [vmem:[#allocation6 + $0x10] sm:$0xf]
        %v554 = vld [vmem:[#allocation6 + $0x14] sm:$0xf]
        %v555 = vld [vmem:[#allocation6 + $0x18] sm:$0xf]
        %v556 = vld [vmem:[#allocation6 + $0x1c] sm:$0xf]
        %v557 = vld [vmem:[#allocation6 + $0x20] sm:$0xf]
        %v558 = vld [vmem:[#allocation6 + $0x24] sm:$0xf]
        %v559 = vld [vmem:[#allocation6 + $0x28] sm:$0xf]
        %v560 = vld [vmem:[#allocation6 + $0x2c] sm:$0xf]
        %v561 = vld [vmem:[#allocation6 + $0x30] sm:$0xf]
        %v562 = vld [vmem:[#allocation6 + $0x34] sm:$0xf]
        %v563 = vld [vmem:[#allocation6 + $0x38] sm:$0xf]
        %v564 = vld [vmem:[#allocation6 + $0x3c] sm:$0xf]
        %s565 = scalar_lea.vmem [#allocation6], 192
        %v566 = vld [vmem:[%s565] sm:$0xf]
        %v567 = vld [vmem:[%s565 + $0x4] sm:$0xf]
        %v568 = vld [vmem:[%s565 + $0x8] sm:$0xf]
        %v569 = vld [vmem:[%s565 + $0xc] sm:$0xf]
        %v570 = vld [vmem:[%s565 + $0x10] sm:$0xf]
        %v571 = vld [vmem:[%s565 + $0x14] sm:$0xf]
        %v572 = vld [vmem:[%s565 + $0x18] sm:$0xf]
        %v573 = vld [vmem:[%s565 + $0x1c] sm:$0xf]
        %v574 = vld [vmem:[%s565 + $0x20] sm:$0xf]
        %v575 = vld [vmem:[%s565 + $0x24] sm:$0xf]
        %v576 = vld [vmem:[%s565 + $0x28] sm:$0xf]
        %v577 = vld [vmem:[%s565 + $0x2c] sm:$0xf]
        %v578 = vld [vmem:[%s565 + $0x30] sm:$0xf]
        %v579 = vld [vmem:[%s565 + $0x34] sm:$0xf]
        %v580 = vld [vmem:[%s565 + $0x38] sm:$0xf]
        %v581 = vld [vmem:[%s565 + $0x3c] sm:$0xf]
        %v636 = vunpack.c.l.b16 %v473
        %v637 = vunpack.c.l.b16 %v474
        %v638 = vunpack.c.l.b16 %v475
        %v639 = vunpack.c.l.b16 %v477
        %v640 = vunpack.c.l.b16 %v478
        %v641 = vunpack.c.l.b16 %v479
        %v642 = vunpack.c.l.b16 %v481
        %v643 = vunpack.c.l.b16 %v482
        %v644 = vunpack.c.l.b16 %v483
        %v645 = vunpack.c.l.b16 %v485
        %v646 = vunpack.c.l.b16 %v486
        %v647 = vunpack.c.l.b16 %v487
        %v648 = vunpack.c.l.b16 %v489
        %v649 = vunpack.c.l.b16 %v490
        %v650 = vunpack.c.l.b16 %v491
        %v651 = vunpack.c.l.b16 %v493
        %v652 = vunpack.c.l.b16 %v494
        %v653 = vunpack.c.l.b16 %v495
        %v654 = vunpack.c.l.b16 %v497
        %v655 = vunpack.c.l.b16 %v498
        %v656 = vunpack.c.l.b16 %v499
        %v657 = vunpack.c.l.b16 %v501
        %v658 = vunpack.c.l.b16 %v502
        %v659 = vunpack.c.l.b16 %v503
        %v660 = vunpack.c.l.b16 %v505
        %v661 = vunpack.c.l.b16 %v506
        %v662 = vunpack.c.l.b16 %v507
        %v663 = vunpack.c.l.b16 %v509
        %v664 = vunpack.c.l.b16 %v510
        %v665 = vunpack.c.l.b16 %v511
        %v666 = vunpack.c.l.b16 %v513
        %v667 = vunpack.c.l.b16 %v514
        %v668 = vunpack.c.l.b16 %v515
        %v669 = vunpack.c.l.b16 %v517
        %v670 = vunpack.c.l.b16 %v518
        %v671 = vunpack.c.l.b16 %v519
        %v672 = vunpack.c.l.b16 %v521
        %v673 = vunpack.c.l.b16 %v522
        %v674 = vunpack.c.l.b16 %v523
        %v675 = vunpack.c.l.b16 %v525
        %v676 = vunpack.c.l.b16 %v526
        %v677 = vunpack.c.l.b16 %v527
        %v678 = vunpack.c.l.b16 %v529
        %v679 = vunpack.c.l.b16 %v530
        %v680 = vunpack.c.l.b16 %v531
        %v681 = vunpack.c.l.b16 %v533
        %v682 = vunpack.c.l.b16 %v534
        %v683 = vunpack.c.l.b16 %v535
        %v684 = vunpack.c.l.b16 %v537
        %v685 = vunpack.c.l.b16 %v538
        %v686 = vunpack.c.l.b16 %v539
        %v687 = vunpack.c.l.b16 %v541
        %v688 = vunpack.c.l.b16 %v542
        %v689 = vunpack.c.l.b16 %v543
        %v690 = vpack.c.b16 %v637, %v636
        %v691 = vpack.c.b16 %v639, %v638
        %v692 = vpack.c.b16 %v641, %v640
        %v693 = vpack.c.b16 %v643, %v642
        %v694 = vpack.c.b16 %v645, %v644
        %v695 = vpack.c.b16 %v647, %v646
        %v696 = vpack.c.b16 %v649, %v648
        %v697 = vpack.c.b16 %v651, %v650
        %v698 = vpack.c.b16 %v653, %v652
        %v699 = vpack.c.b16 %v655, %v654
        %v700 = vpack.c.b16 %v657, %v656
        %v701 = vpack.c.b16 %v659, %v658
        %v702 = vpack.c.b16 %v661, %v660
        %v703 = vpack.c.b16 %v663, %v662
        %v704 = vpack.c.b16 %v665, %v664
        %v705 = vpack.c.b16 %v667, %v666
        %v706 = vpack.c.b16 %v669, %v668
        %v707 = vpack.c.b16 %v671, %v670
        %v708 = vpack.c.b16 %v673, %v672
        %v709 = vpack.c.b16 %v675, %v674
        %v710 = vpack.c.b16 %v677, %v676
        %v711 = vpack.c.b16 %v679, %v678
        %v712 = vpack.c.b16 %v681, %v680
        %v713 = vpack.c.b16 %v683, %v682
        %v714 = vpack.c.b16 %v685, %v684
        %v715 = vpack.c.b16 %v687, %v686
        %v716 = vpack.c.b16 %v689, %v688
        %v760 = vunpack.c.l.b16 %v566
        %v761 = vunpack.c.l.b16 %v567
        %v762 = vunpack.c.l.b16 %v568
        %v763 = vunpack.c.l.b16 %v569
        %v764 = vunpack.c.l.b16 %v570
        %v765 = vunpack.c.l.b16 %v571
        %v766 = vunpack.c.l.b16 %v572
        %v767 = vunpack.c.l.b16 %v573
        %v768 = vunpack.c.l.b16 %v574
        %v769 = vunpack.c.l.b16 %v575
        %v770 = vunpack.c.l.b16 %v576
        %v771 = vunpack.c.l.b16 %v577
        %v772 = vunpack.c.l.b16 %v578
        %v773 = vunpack.c.l.b16 %v579
        %v774 = vunpack.c.l.b16 %v580
        %v775 = vunpack.c.l.b16 %v581
        %v776 = vpack.c.b16 %v761, %v760
        %v777 = vpack.c.b16 %v763, %v762
        %v778 = vpack.c.b16 %v765, %v764
        %v779 = vpack.c.b16 %v767, %v766
        %v780 = vpack.c.b16 %v769, %v768
        %v781 = vpack.c.b16 %v771, %v770
        %v782 = vpack.c.b16 %v773, %v772
        %v783 = vpack.c.b16 %v775, %v774
        %792 = vmatprep.subr.bf16.mxu0 0
        %793 = vmatpush1.bf16.msra.mxu0 %v776
        %794 = vmatprep.subr.bf16.mxu0 0
        %795 = vmatpush1.bf16.msra.mxu0 %v777
        %796 = vmatprep.subr.bf16.mxu0 0
        %797 = vmatpush1.bf16.msra.mxu0 %v778
        %798 = vmatprep.subr.bf16.mxu0 0
        %799 = vmatpush1.bf16.msra.mxu0 %v779
        %800 = vmatprep.subr.bf16.mxu0 0
        %801 = vmatpush1.bf16.msra.mxu0 %v780
        %802 = vmatprep.subr.bf16.mxu0 0
        %803 = vmatpush1.bf16.msra.mxu0 %v781
        %804 = vmatprep.subr.bf16.mxu0 0
        %805 = vmatpush1.bf16.msra.mxu0 %v782
        %806 = vmatprep.subr.bf16.mxu0 0
        %807 = vmatpush1.bf16.msra.mxu0 %v783
        %808 = vmatprep.subr.bf16.mxu0 0
        %809 = vmatpush1.bf16.msra.mxu0 0
        %810 = vmatprep.subr.bf16.mxu0 0
        %811 = vmatpush1.bf16.msra.mxu0 0
        %812 = vmatprep.subr.bf16.mxu0 0
        %813 = vmatpush1.bf16.msra.mxu0 0
        %814 = vmatprep.subr.bf16.mxu0 0
        %815 = vmatpush1.bf16.msra.mxu0 0
        %816 = vmatprep.subr.bf16.mxu0 0
        %817 = vmatpush1.bf16.msra.mxu0 0
        %818 = vmatprep.subr.bf16.mxu0 0
        %819 = vmatpush1.bf16.msra.mxu0 0
        %820 = vmatprep.subr.bf16.mxu0 0
        %821 = vmatpush1.bf16.msra.mxu0 0
        %822 = vmatprep.subr.bf16.mxu0 0
        %823 = vmatpush1.bf16.msra.mxu0 0
        %824 = vmatprep.mubr.bf16.mxu0 0
        %825 = vmatmul.mubr.bf16.gmra.mrb[0].mxu0 %v690
        %v826 = vpop.f32.mrb[0].mxu0
        %v827 = vadd.f32 0.0, %v826
        %v828 = vpop.f32.mrb[0].mxu0
        %v829 = vpop.f32.mrb[0].mxu0
        %v830 = vadd.f32 0.0, %v829
        %v831 = vpop.f32.mrb[0].mxu0
        %832 = vmatprep.mubr.bf16.mxu0 0
        %833 = vmatmul.mubr.bf16.gmra.mrb[0].mxu0 %v691
        %v834 = vpop.f32.mrb[0].mxu0
        %v835 = vadd.f32 0.0, %v834
        %v836 = vpop.f32.mrb[0].mxu0
        %v837 = vpop.f32.mrb[0].mxu0
        %v838 = vadd.f32 0.0, %v837
        %v839 = vpop.f32.mrb[0].mxu0
        %840 = vmatprep.mubr.bf16.mxu0 0
        %841 = vmatmul.mubr.bf16.gmra.mrb[0].mxu0 %v692
        %v842 = vpop.f32.mrb[0].mxu0
        %v843 = vadd.f32 0.0, %v842
        %v844 = vpop.f32.mrb[0].mxu0
        %v845 = vpop.f32.mrb[0].mxu0
        %v846 = vadd.f32 0.0, %v845
        %v847 = vpop.f32.mrb[0].mxu0
        %848 = vmatprep.mubr.bf16.mxu0 0
        %849 = vmatmul.mubr.bf16.gmra.mrb[0].mxu0 %v693
        %v850 = vpop.f32.mrb[0].mxu0
        %v851 = vadd.f32 0.0, %v850
        %v852 = vpop.f32.mrb[0].mxu0
        %v853 = vpop.f32.mrb[0].mxu0
        %v854 = vadd.f32 0.0, %v853
        %v855 = vpop.f32.mrb[0].mxu0
        %856 = vmatprep.mubr.bf16.mxu0 0
        %857 = vmatmul.mubr.bf16.gmra.mrb[0].mxu0 %v694
        %v858 = vpop.f32.mrb[0].mxu0
        %v859 = vadd.f32 0.0, %v858
        %v860 = vpop.f32.mrb[0].mxu0
        %v861 = vpop.f32.mrb[0].mxu0
        %v862 = vadd.f32 0.0, %v861
        %v863 = vpop.f32.mrb[0].mxu0
        %864 = vmatprep.mubr.bf16.mxu0 0
        %865 = vmatmul.mubr.bf16.gmra.mrb[0].mxu0 %v695
        %v866 = vpop.f32.mrb[0].mxu0
        %v867 = vadd.f32 0.0, %v866
        %v868 = vpop.f32.mrb[0].mxu0
        %v869 = vpop.f32.mrb[0].mxu0
        %v870 = vadd.f32 0.0, %v869
        %v871 = vpop.f32.mrb[0].mxu0
        %872 = vmatprep.mubr.bf16.mxu0 0
        %873 = vmatmul.mubr.bf16.gmra.mrb[0].mxu0 %v696
        %v874 = vpop.f32.mrb[0].mxu0
        %v875 = vadd.f32 0.0, %v874
        %v876 = vpop.f32.mrb[0].mxu0
        %v877 = vpop.f32.mrb[0].mxu0
        %v878 = vadd.f32 0.0, %v877
        %v879 = vpop.f32.mrb[0].mxu0
        %880 = vmatprep.mubr.bf16.mxu0 0
        %881 = vmatmul.mubr.bf16.gmra.mrb[0].mxu0 %v697
        %v882 = vpop.f32.mrb[0].mxu0
        %v883 = vadd.f32 0.0, %v882
        %v884 = vpop.f32.mrb[0].mxu0
        %v885 = vpop.f32.mrb[0].mxu0
        %v886 = vadd.f32 0.0, %v885
        %v887 = vpop.f32.mrb[0].mxu0
        %888 = vmatprep.mubr.bf16.mxu0 0
        %889 = vmatmul.mubr.bf16.gmra.mrb[0].mxu0 %v698
        %v890 = vpop.f32.mrb[0].mxu0
        %v891 = vadd.f32 0.0, %v890
        %v892 = vpop.f32.mrb[0].mxu0
        %v893 = vpop.f32.mrb[0].mxu0
        %v894 = vadd.f32 0.0, %v893
        %v895 = vpop.f32.mrb[0].mxu0
        %896 = vmatprep.mubr.bf16.mxu0 0
        %897 = vmatmul.mubr.bf16.gmra.mrb[0].mxu0 %v699
        %v898 = vpop.f32.mrb[0].mxu0
        %v899 = vadd.f32 0.0, %v898
        %v900 = vpop.f32.mrb[0].mxu0
        %v901 = vpop.f32.mrb[0].mxu0
        %v902 = vadd.f32 0.0, %v901
        %v903 = vpop.f32.mrb[0].mxu0
        %904 = vmatprep.mubr.bf16.mxu0 0
        %905 = vmatmul.mubr.bf16.gmra.mrb[0].mxu0 %v700
        %v906 = vpop.f32.mrb[0].mxu0
        %v907 = vadd.f32 0.0, %v906
        %v908 = vpop.f32.mrb[0].mxu0
        %v909 = vpop.f32.mrb[0].mxu0
        %v910 = vadd.f32 0.0, %v909
        %v911 = vpop.f32.mrb[0].mxu0
        %912 = vmatprep.mubr.bf16.mxu0 0
        %913 = vmatmul.mubr.bf16.gmra.mrb[0].mxu0 %v701
        %v914 = vpop.f32.mrb[0].mxu0
        %v915 = vadd.f32 0.0, %v914
        %v916 = vpop.f32.mrb[0].mxu0
        %v917 = vpop.f32.mrb[0].mxu0
        %v918 = vadd.f32 0.0, %v917
        %v919 = vpop.f32.mrb[0].mxu0
        %920 = vmatprep.mubr.bf16.mxu0 0
        %921 = vmatmul.mubr.bf16.gmra.mrb[0].mxu0 %v702
        %v922 = vpop.f32.mrb[0].mxu0
        %v923 = vadd.f32 0.0, %v922
        %v924 = vpop.f32.mrb[0].mxu0
        %v925 = vpop.f32.mrb[0].mxu0
        %v926 = vadd.f32 0.0, %v925
        %v927 = vpop.f32.mrb[0].mxu0
        %928 = vmatprep.mubr.bf16.mxu0 0
        %929 = vmatmul.mubr.bf16.gmra.mrb[0].mxu0 %v703
        %v930 = vpop.f32.mrb[0].mxu0
        %v931 = vadd.f32 0.0, %v930
        %v932 = vpop.f32.mrb[0].mxu0
        %v933 = vpop.f32.mrb[0].mxu0
        %v934 = vadd.f32 0.0, %v933
        %v935 = vpop.f32.mrb[0].mxu0
        %936 = vmatprep.mubr.bf16.mxu0 0
        %937 = vmatmul.mubr.bf16.gmra.mrb[0].mxu0 %v704
        %v938 = vpop.f32.mrb[0].mxu0
        %v939 = vadd.f32 0.0, %v938
        %v940 = vpop.f32.mrb[0].mxu0
        %v941 = vpop.f32.mrb[0].mxu0
        %v942 = vadd.f32 0.0, %v941
        %v943 = vpop.f32.mrb[0].mxu0
        %944 = vmatprep.mubr.bf16.mxu0 0
        %945 = vmatmul.mubr.bf16.gmra.mrb[0].mxu0 %v705
        %v946 = vpop.f32.mrb[0].mxu0
        %v947 = vadd.f32 0.0, %v946
        %v948 = vpop.f32.mrb[0].mxu0
        %v949 = vpop.f32.mrb[0].mxu0
        %v950 = vadd.f32 0.0, %v949
        %v951 = vpop.f32.mrb[0].mxu0
        %952 = vmatprep.mubr.bf16.mxu0 0
        %953 = vmatmul.mubr.bf16.gmra.mrb[0].mxu0 %v706
        %v954 = vpop.f32.mrb[0].mxu0
        %v955 = vadd.f32 0.0, %v954
        %v956 = vpop.f32.mrb[0].mxu0
        %v957 = vpop.f32.mrb[0].mxu0
        %v958 = vadd.f32 0.0, %v957
        %v959 = vpop.f32.mrb[0].mxu0
        %960 = vmatprep.mubr.bf16.mxu0 0
        %961 = vmatmul.mubr.bf16.gmra.mrb[0].mxu0 %v707
        %v962 = vpop.f32.mrb[0].mxu0
        %v963 = vadd.f32 0.0, %v962
        %v964 = vpop.f32.mrb[0].mxu0
        %v965 = vpop.f32.mrb[0].mxu0
        %v966 = vadd.f32 0.0, %v965
        %v967 = vpop.f32.mrb[0].mxu0
        %968 = vmatprep.mubr.bf16.mxu0 0
        %969 = vmatmul.mubr.bf16.gmra.mrb[0].mxu0 %v708
        %v970 = vpop.f32.mrb[0].mxu0
        %v971 = vadd.f32 0.0, %v970
        %v972 = vpop.f32.mrb[0].mxu0
        %v973 = vpop.f32.mrb[0].mxu0
        %v974 = vadd.f32 0.0, %v973
        %v975 = vpop.f32.mrb[0].mxu0
        %976 = vmatprep.mubr.bf16.mxu0 0
        %977 = vmatmul.mubr.bf16.gmra.mrb[0].mxu0 %v709
        %v978 = vpop.f32.mrb[0].mxu0
        %v979 = vadd.f32 0.0, %v978
        %v980 = vpop.f32.mrb[0].mxu0
        %v981 = vpop.f32.mrb[0].mxu0
        %v982 = vadd.f32 0.0, %v981
        %v983 = vpop.f32.mrb[0].mxu0
        %984 = vmatprep.mubr.bf16.mxu0 0
        %985 = vmatmul.mubr.bf16.gmra.mrb[0].mxu0 %v710
        %v986 = vpop.f32.mrb[0].mxu0
        %v987 = vadd.f32 0.0, %v986
        %v988 = vpop.f32.mrb[0].mxu0
        %v989 = vpop.f32.mrb[0].mxu0
        %v990 = vadd.f32 0.0, %v989
        %v991 = vpop.f32.mrb[0].mxu0
        %992 = vmatprep.mubr.bf16.mxu0 0
        %993 = vmatmul.mubr.bf16.gmra.mrb[0].mxu0 %v711
        %v994 = vpop.f32.mrb[0].mxu0
        %v995 = vadd.f32 0.0, %v994
        %v996 = vpop.f32.mrb[0].mxu0
        %v997 = vpop.f32.mrb[0].mxu0
        %v998 = vadd.f32 0.0, %v997
        %v999 = vpop.f32.mrb[0].mxu0
        %1000 = vmatprep.mubr.bf16.mxu0 0
        %1001 = vmatmul.mubr.bf16.gmra.mrb[0].mxu0 %v712
        %v1002 = vpop.f32.mrb[0].mxu0
        %v1003 = vadd.f32 0.0, %v1002
        %v1004 = vpop.f32.mrb[0].mxu0
        %v1005 = vpop.f32.mrb[0].mxu0
        %v1006 = vadd.f32 0.0, %v1005
        %v1007 = vpop.f32.mrb[0].mxu0
        %1008 = vmatprep.mubr.bf16.mxu0 0
        %1009 = vmatmul.mubr.bf16.gmra.mrb[0].mxu0 %v713
        %v1010 = vpop.f32.mrb[0].mxu0
        %v1011 = vadd.f32 0.0, %v1010
        %v1012 = vpop.f32.mrb[0].mxu0
        %v1013 = vpop.f32.mrb[0].mxu0
        %v1014 = vadd.f32 0.0, %v1013
        %v1015 = vpop.f32.mrb[0].mxu0
        %1016 = vmatprep.mubr.bf16.mxu0 0
        %1017 = vmatmul.mubr.bf16.gmra.mrb[0].mxu0 %v714
        %v1018 = vpop.f32.mrb[0].mxu0
        %v1019 = vadd.f32 0.0, %v1018
        %v1020 = vpop.f32.mrb[0].mxu0
        %v1021 = vpop.f32.mrb[0].mxu0
        %v1022 = vadd.f32 0.0, %v1021
        %v1023 = vpop.f32.mrb[0].mxu0
        %1024 = vmatprep.mubr.bf16.mxu0 0
        %1025 = vmatmul.mubr.bf16.gmra.mrb[0].mxu0 %v715
        %v1026 = vpop.f32.mrb[0].mxu0
        %v1027 = vadd.f32 0.0, %v1026
        %v1028 = vpop.f32.mrb[0].mxu0
        %v1029 = vpop.f32.mrb[0].mxu0
        %v1030 = vadd.f32 0.0, %v1029
        %v1031 = vpop.f32.mrb[0].mxu0
        %1032 = vmatprep.mubr.bf16.mxu0 0
        %1033 = vmatmul.mubr.bf16.gmra.mrb[0].mxu0 %v716
        %v1034 = vpop.f32.mrb[0].mxu0
        %v1035 = vadd.f32 0.0, %v1034
        %v1036 = vpop.f32.mrb[0].mxu0
        %v1037 = vpop.f32.mrb[0].mxu0
        %v1038 = vadd.f32 0.0, %v1037
        %v1039 = vpop.f32.mrb[0].mxu0
        %1040 = vdwg.mxu0
        %v1044 = vunpack.c.l.b16 %v469
        %v1045 = vunpack.c.l.b16 %v470
        %v1046 = vunpack.c.l.b16 %v471
        %v1047 = vpack.c.b16 %v1045, %v1044
        %v1048 = vpack.c.b16 %v636, %v1046
        %v1049 = vpack.c.b16 %v638, %v637
        %v1050 = vpack.c.b16 %v640, %v639
        %v1051 = vpack.c.b16 %v642, %v641
        %v1052 = vpack.c.b16 %v644, %v643
        %v1053 = vpack.c.b16 %v646, %v645
        %v1054 = vpack.c.b16 %v648, %v647
        %v1055 = vpack.c.b16 %v650, %v649
        %v1056 = vpack.c.b16 %v652, %v651
        %v1057 = vpack.c.b16 %v654, %v653
        %v1058 = vpack.c.b16 %v656, %v655
        %v1059 = vpack.c.b16 %v658, %v657
        %v1060 = vpack.c.b16 %v660, %v659
        %v1061 = vpack.c.b16 %v662, %v661
        %v1062 = vpack.c.b16 %v664, %v663
        %v1063 = vpack.c.b16 %v666, %v665
        %v1064 = vpack.c.b16 %v668, %v667
        %v1065 = vpack.c.b16 %v670, %v669
        %v1066 = vpack.c.b16 %v672, %v671
        %v1067 = vpack.c.b16 %v674, %v673
        %v1068 = vpack.c.b16 %v676, %v675
        %v1069 = vpack.c.b16 %v678, %v677
        %v1070 = vpack.c.b16 %v680, %v679
        %v1071 = vpack.c.b16 %v682, %v681
        %v1072 = vpack.c.b16 %v684, %v683
        %v1073 = vpack.c.b16 %v686, %v685
        %v1117 = vunpack.c.l.b16 %v549
        %v1118 = vunpack.c.l.b16 %v550
        %v1119 = vunpack.c.l.b16 %v551
        %v1120 = vunpack.c.l.b16 %v552
        %v1121 = vunpack.c.l.b16 %v553
        %v1122 = vunpack.c.l.b16 %v554
        %v1123 = vunpack.c.l.b16 %v555
        %v1124 = vunpack.c.l.b16 %v556
        %v1125 = vunpack.c.l.b16 %v557
        %v1126 = vunpack.c.l.b16 %v558
        %v1127 = vunpack.c.l.b16 %v559
        %v1128 = vunpack.c.l.b16 %v560
        %v1129 = vunpack.c.l.b16 %v561
        %v1130 = vunpack.c.l.b16 %v562
        %v1131 = vunpack.c.l.b16 %v563
        %v1132 = vunpack.c.l.b16 %v564
        %v1133 = vpack.c.b16 %v1118, %v1117
        %v1134 = vpack.c.b16 %v1120, %v1119
        %v1135 = vpack.c.b16 %v1122, %v1121
        %v1136 = vpack.c.b16 %v1124, %v1123
        %v1137 = vpack.c.b16 %v1126, %v1125
        %v1138 = vpack.c.b16 %v1128, %v1127
        %v1139 = vpack.c.b16 %v1130, %v1129
        %v1140 = vpack.c.b16 %v1132, %v1131
        %1149 = vmatprep.subr.bf16.mxu0 0
        %1150 = vmatpush1.bf16.msra.mxu0 %v1133
        %1151 = vmatprep.subr.bf16.mxu0 0
        %1152 = vmatpush1.bf16.msra.mxu0 %v1134
        %1153 = vmatprep.subr.bf16.mxu0 0
        %1154 = vmatpush1.bf16.msra.mxu0 %v1135
        %1155 = vmatprep.subr.bf16.mxu0 0
        %1156 = vmatpush1.bf16.msra.mxu0 %v1136
        %1157 = vmatprep.subr.bf16.mxu0 0
        %1158 = vmatpush1.bf16.msra.mxu0 %v1137
        %1159 = vmatprep.subr.bf16.mxu0 0
        %1160 = vmatpush1.bf16.msra.mxu0 %v1138
        %1161 = vmatprep.subr.bf16.mxu0 0
        %1162 = vmatpush1.bf16.msra.mxu0 %v1139
        %1163 = vmatprep.subr.bf16.mxu0 0
        %1164 = vmatpush1.bf16.msra.mxu0 %v1140
        %1165 = vmatprep.subr.bf16.mxu0 0
        %1166 = vmatpush1.bf16.msra.mxu0 0
        %1167 = vmatprep.subr.bf16.mxu0 0
        %1168 = vmatpush1.bf16.msra.mxu0 0
        %1169 = vmatprep.subr.bf16.mxu0 0
        %1170 = vmatpush1.bf16.msra.mxu0 0
        %1171 = vmatprep.subr.bf16.mxu0 0
        %1172 = vmatpush1.bf16.msra.mxu0 0
        %1173 = vmatprep.subr.bf16.mxu0 0
        %1174 = vmatpush1.bf16.msra.mxu0 0
        %1175 = vmatprep.subr.bf16.mxu0 0
        %1176 = vmatpush1.bf16.msra.mxu0 0
        %1177 = vmatprep.subr.bf16.mxu0 0
        %1178 = vmatpush1.bf16.msra.mxu0 0
        %1179 = vmatprep.subr.bf16.mxu0 0
        %1180 = vmatpush1.bf16.msra.mxu0 0
        %1181 = vmatprep.mubr.bf16.mxu0 0
        %1182 = vmatmul.mubr.bf16.gmra.mrb[0].mxu0 %v1047
        %v1183 = vpop.f32.mrb[0].mxu0
        %v1184 = vadd.f32 %v827, %v1183
        %v1185 = vpop.f32.mrb[0].mxu0
        %v1186 = vpop.f32.mrb[0].mxu0
        %v1187 = vadd.f32 %v830, %v1186
        %v1188 = vpop.f32.mrb[0].mxu0
        %1189 = vmatprep.mubr.bf16.mxu0 0
        %1190 = vmatmul.mubr.bf16.gmra.mrb[0].mxu0 %v1048
        %v1191 = vpop.f32.mrb[0].mxu0
        %v1192 = vadd.f32 %v835, %v1191
        %v1193 = vpop.f32.mrb[0].mxu0
        %v1194 = vpop.f32.mrb[0].mxu0
        %v1195 = vadd.f32 %v838, %v1194
        %v1196 = vpop.f32.mrb[0].mxu0
        %1197 = vmatprep.mubr.bf16.mxu0 0
        %1198 = vmatmul.mubr.bf16.gmra.mrb[0].mxu0 %v1049
        %v1199 = vpop.f32.mrb[0].mxu0
        %v1200 = vadd.f32 %v843, %v1199
        %v1201 = vpop.f32.mrb[0].mxu0
        %v1202 = vpop.f32.mrb[0].mxu0
        %v1203 = vadd.f32 %v846, %v1202
        %v1204 = vpop.f32.mrb[0].mxu0
        %1205 = vmatprep.mubr.bf16.mxu0 0
        %1206 = vmatmul.mubr.bf16.gmra.mrb[0].mxu0 %v1050
        %v1207 = vpop.f32.mrb[0].mxu0
        %v1208 = vadd.f32 %v851, %v1207
        %v1209 = vpop.f32.mrb[0].mxu0
        %v1210 = vpop.f32.mrb[0].mxu0
        %v1211 = vadd.f32 %v854, %v1210
        %v1212 = vpop.f32.mrb[0].mxu0
        %1213 = vmatprep.mubr.bf16.mxu0 0
        %1214 = vmatmul.mubr.bf16.gmra.mrb[0].mxu0 %v1051
        %v1215 = vpop.f32.mrb[0].mxu0
        %v1216 = vadd.f32 %v859, %v1215
        %v1217 = vpop.f32.mrb[0].mxu0
        %v1218 = vpop.f32.mrb[0].mxu0
        %v1219 = vadd.f32 %v862, %v1218
        %v1220 = vpop.f32.mrb[0].mxu0
        %1221 = vmatprep.mubr.bf16.mxu0 0
        %1222 = vmatmul.mubr.bf16.gmra.mrb[0].mxu0 %v1052
        %v1223 = vpop.f32.mrb[0].mxu0
        %v1224 = vadd.f32 %v867, %v1223
        %v1225 = vpop.f32.mrb[0].mxu0
        %v1226 = vpop.f32.mrb[0].mxu0
        %v1227 = vadd.f32 %v870, %v1226
        %v1228 = vpop.f32.mrb[0].mxu0
        %1229 = vmatprep.mubr.bf16.mxu0 0
        %1230 = vmatmul.mubr.bf16.gmra.mrb[0].mxu0 %v1053
        %v1231 = vpop.f32.mrb[0].mxu0
        %v1232 = vadd.f32 %v875, %v1231
        %v1233 = vpop.f32.mrb[0].mxu0
        %v1234 = vpop.f32.mrb[0].mxu0
        %v1235 = vadd.f32 %v878, %v1234
        %v1236 = vpop.f32.mrb[0].mxu0
        %1237 = vmatprep.mubr.bf16.mxu0 0
        %1238 = vmatmul.mubr.bf16.gmra.mrb[0].mxu0 %v1054
        %v1239 = vpop.f32.mrb[0].mxu0
        %v1240 = vadd.f32 %v883, %v1239
        %v1241 = vpop.f32.mrb[0].mxu0
        %v1242 = vpop.f32.mrb[0].mxu0
        %v1243 = vadd.f32 %v886, %v1242
        %v1244 = vpop.f32.mrb[0].mxu0
        %1245 = vmatprep.mubr.bf16.mxu0 0
        %1246 = vmatmul.mubr.bf16.gmra.mrb[0].mxu0 %v1055
        %v1247 = vpop.f32.mrb[0].mxu0
        %v1248 = vadd.f32 %v891, %v1247
        %v1249 = vpop.f32.mrb[0].mxu0
        %v1250 = vpop.f32.mrb[0].mxu0
        %v1251 = vadd.f32 %v894, %v1250
        %v1252 = vpop.f32.mrb[0].mxu0
        %1253 = vmatprep.mubr.bf16.mxu0 0
        %1254 = vmatmul.mubr.bf16.gmra.mrb[0].mxu0 %v1056
        %v1255 = vpop.f32.mrb[0].mxu0
        %v1256 = vadd.f32 %v899, %v1255
        %v1257 = vpop.f32.mrb[0].mxu0
        %v1258 = vpop.f32.mrb[0].mxu0
        %v1259 = vadd.f32 %v902, %v1258
        %v1260 = vpop.f32.mrb[0].mxu0
        %1261 = vmatprep.mubr.bf16.mxu0 0
        %1262 = vmatmul.mubr.bf16.gmra.mrb[0].mxu0 %v1057
        %v1263 = vpop.f32.mrb[0].mxu0
        %v1264 = vadd.f32 %v907, %v1263
        %v1265 = vpop.f32.mrb[0].mxu0
        %v1266 = vpop.f32.mrb[0].mxu0
        %v1267 = vadd.f32 %v910, %v1266
        %v1268 = vpop.f32.mrb[0].mxu0
        %1269 = vmatprep.mubr.bf16.mxu0 0
        %1270 = vmatmul.mubr.bf16.gmra.mrb[0].mxu0 %v1058
        %v1271 = vpop.f32.mrb[0].mxu0
        %v1272 = vadd.f32 %v915, %v1271
        %v1273 = vpop.f32.mrb[0].mxu0
        %v1274 = vpop.f32.mrb[0].mxu0
        %v1275 = vadd.f32 %v918, %v1274
        %v1276 = vpop.f32.mrb[0].mxu0
        %1277 = vmatprep.mubr.bf16.mxu0 0
        %1278 = vmatmul.mubr.bf16.gmra.mrb[0].mxu0 %v1059
        %v1279 = vpop.f32.mrb[0].mxu0
        %v1280 = vadd.f32 %v923, %v1279
        %v1281 = vpop.f32.mrb[0].mxu0
        %v1282 = vpop.f32.mrb[0].mxu0
        %v1283 = vadd.f32 %v926, %v1282
        %v1284 = vpop.f32.mrb[0].mxu0
        %1285 = vmatprep.mubr.bf16.mxu0 0
        %1286 = vmatmul.mubr.bf16.gmra.mrb[0].mxu0 %v1060
        %v1287 = vpop.f32.mrb[0].mxu0
        %v1288 = vadd.f32 %v931, %v1287
        %v1289 = vpop.f32.mrb[0].mxu0
        %v1290 = vpop.f32.mrb[0].mxu0
        %v1291 = vadd.f32 %v934, %v1290
        %v1292 = vpop.f32.mrb[0].mxu0
        %1293 = vmatprep.mubr.bf16.mxu0 0
        %1294 = vmatmul.mubr.bf16.gmra.mrb[0].mxu0 %v1061
        %v1295 = vpop.f32.mrb[0].mxu0
        %v1296 = vadd.f32 %v939, %v1295
        %v1297 = vpop.f32.mrb[0].mxu0
        %v1298 = vpop.f32.mrb[0].mxu0
        %v1299 = vadd.f32 %v942, %v1298
        %v1300 = vpop.f32.mrb[0].mxu0
        %1301 = vmatprep.mubr.bf16.mxu0 0
        %1302 = vmatmul.mubr.bf16.gmra.mrb[0].mxu0 %v1062
        %v1303 = vpop.f32.mrb[0].mxu0
        %v1304 = vadd.f32 %v947, %v1303
        %v1305 = vpop.f32.mrb[0].mxu0
        %v1306 = vpop.f32.mrb[0].mxu0
        %v1307 = vadd.f32 %v950, %v1306
        %v1308 = vpop.f32.mrb[0].mxu0
        %1309 = vmatprep.mubr.bf16.mxu0 0
        %1310 = vmatmul.mubr.bf16.gmra.mrb[0].mxu0 %v1063
        %v1311 = vpop.f32.mrb[0].mxu0
        %v1312 = vadd.f32 %v955, %v1311
        %v1313 = vpop.f32.mrb[0].mxu0
        %v1314 = vpop.f32.mrb[0].mxu0
        %v1315 = vadd.f32 %v958, %v1314
        %v1316 = vpop.f32.mrb[0].mxu0
        %1317 = vmatprep.mubr.bf16.mxu0 0
        %1318 = vmatmul.mubr.bf16.gmra.mrb[0].mxu0 %v1064
        %v1319 = vpop.f32.mrb[0].mxu0
        %v1320 = vadd.f32 %v963, %v1319
        %v1321 = vpop.f32.mrb[0].mxu0
        %v1322 = vpop.f32.mrb[0].mxu0
        %v1323 = vadd.f32 %v966, %v1322
        %v1324 = vpop.f32.mrb[0].mxu0
        %1325 = vmatprep.mubr.bf16.mxu0 0
        %1326 = vmatmul.mubr.bf16.gmra.mrb[0].mxu0 %v1065
        %v1327 = vpop.f32.mrb[0].mxu0
        %v1328 = vadd.f32 %v971, %v1327
        %v1329 = vpop.f32.mrb[0].mxu0
        %v1330 = vpop.f32.mrb[0].mxu0
        %v1331 = vadd.f32 %v974, %v1330
        %v1332 = vpop.f32.mrb[0].mxu0
        %1333 = vmatprep.mubr.bf16.mxu0 0
        %1334 = vmatmul.mubr.bf16.gmra.mrb[0].mxu0 %v1066
        %v1335 = vpop.f32.mrb[0].mxu0
        %v1336 = vadd.f32 %v979, %v1335
        %v1337 = vpop.f32.mrb[0].mxu0
        %v1338 = vpop.f32.mrb[0].mxu0
        %v1339 = vadd.f32 %v982, %v1338
        %v1340 = vpop.f32.mrb[0].mxu0
        %1341 = vmatprep.mubr.bf16.mxu0 0
        %1342 = vmatmul.mubr.bf16.gmra.mrb[0].mxu0 %v1067
        %v1343 = vpop.f32.mrb[0].mxu0
        %v1344 = vadd.f32 %v987, %v1343
        %v1345 = vpop.f32.mrb[0].mxu0
        %v1346 = vpop.f32.mrb[0].mxu0
        %v1347 = vadd.f32 %v990, %v1346
        %v1348 = vpop.f32.mrb[0].mxu0
        %1349 = vmatprep.mubr.bf16.mxu0 0
        %1350 = vmatmul.mubr.bf16.gmra.mrb[0].mxu0 %v1068
        %v1351 = vpop.f32.mrb[0].mxu0
        %v1352 = vadd.f32 %v995, %v1351
        %v1353 = vpop.f32.mrb[0].mxu0
        %v1354 = vpop.f32.mrb[0].mxu0
        %v1355 = vadd.f32 %v998, %v1354
        %v1356 = vpop.f32.mrb[0].mxu0
        %1357 = vmatprep.mubr.bf16.mxu0 0
        %1358 = vmatmul.mubr.bf16.gmra.mrb[0].mxu0 %v1069
        %v1359 = vpop.f32.mrb[0].mxu0
        %v1360 = vadd.f32 %v1003, %v1359
        %v1361 = vpop.f32.mrb[0].mxu0
        %v1362 = vpop.f32.mrb[0].mxu0
        %v1363 = vadd.f32 %v1006, %v1362
        %v1364 = vpop.f32.mrb[0].mxu0
        %1365 = vmatprep.mubr.bf16.mxu0 0
        %1366 = vmatmul.mubr.bf16.gmra.mrb[0].mxu0 %v1070
        %v1367 = vpop.f32.mrb[0].mxu0
        %v1368 = vadd.f32 %v1011, %v1367
        %v1369 = vpop.f32.mrb[0].mxu0
        %v1370 = vpop.f32.mrb[0].mxu0
        %v1371 = vadd.f32 %v1014, %v1370
        %v1372 = vpop.f32.mrb[0].mxu0
        %1373 = vmatprep.mubr.bf16.mxu0 0
        %1374 = vmatmul.mubr.bf16.gmra.mrb[0].mxu0 %v1071
        %v1375 = vpop.f32.mrb[0].mxu0
        %v1376 = vadd.f32 %v1019, %v1375
        %v1377 = vpop.f32.mrb[0].mxu0
        %v1378 = vpop.f32.mrb[0].mxu0
        %v1379 = vadd.f32 %v1022, %v1378
        %v1380 = vpop.f32.mrb[0].mxu0
        %1381 = vmatprep.mubr.bf16.mxu0 0
        %1382 = vmatmul.mubr.bf16.gmra.mrb[0].mxu0 %v1072
        %v1383 = vpop.f32.mrb[0].mxu0
        %v1384 = vadd.f32 %v1027, %v1383
        %v1385 = vpop.f32.mrb[0].mxu0
        %v1386 = vpop.f32.mrb[0].mxu0
        %v1387 = vadd.f32 %v1030, %v1386
        %v1388 = vpop.f32.mrb[0].mxu0
        %1389 = vmatprep.mubr.bf16.mxu0 0
        %1390 = vmatmul.mubr.bf16.gmra.mrb[0].mxu0 %v1073
        %v1391 = vpop.f32.mrb[0].mxu0
        %v1392 = vadd.f32 %v1035, %v1391
        %v1393 = vpop.f32.mrb[0].mxu0
        %v1394 = vpop.f32.mrb[0].mxu0
        %v1395 = vadd.f32 %v1038, %v1394
        %v1396 = vpop.f32.mrb[0].mxu0
        %1397 = vdwg.mxu0
        %s1398 = scalar_lea.vmem [#allocation6], 384
        %v1399 = vld [vmem:[%s1398] sm:$0xf]
        %v1400 = vld [vmem:[%s1398 + $0x4] sm:$0xf]
        %v1401 = vld [vmem:[%s1398 + $0x8] sm:$0xf]
        %v1402 = vld [vmem:[%s1398 + $0xc] sm:$0xf]
        %v1403 = vld [vmem:[%s1398 + $0x10] sm:$0xf]
        %v1404 = vld [vmem:[%s1398 + $0x14] sm:$0xf]
        %v1405 = vld [vmem:[%s1398 + $0x18] sm:$0xf]
        %v1406 = vld [vmem:[%s1398 + $0x1c] sm:$0xf]
        %v1407 = vld [vmem:[%s1398 + $0x20] sm:$0xf]
        %v1408 = vld [vmem:[%s1398 + $0x24] sm:$0xf]
        %v1409 = vld [vmem:[%s1398 + $0x28] sm:$0xf]
        %v1410 = vld [vmem:[%s1398 + $0x2c] sm:$0xf]
        %v1411 = vld [vmem:[%s1398 + $0x30] sm:$0xf]
        %v1412 = vld [vmem:[%s1398 + $0x34] sm:$0xf]
        %v1413 = vld [vmem:[%s1398 + $0x38] sm:$0xf]
        %v1414 = vld [vmem:[%s1398 + $0x3c] sm:$0xf]
        %v1418 = vunpack.c.l.b16 %v545
        %v1419 = vunpack.c.l.b16 %v546
        %v1420 = vunpack.c.l.b16 %v547
        %v1421 = vpack.c.b16 %v688, %v687
        %v1422 = vpack.c.b16 %v1418, %v689
        %v1423 = vpack.c.b16 %v1420, %v1419
        %v1443 = vunpack.c.l.b16 %v1399
        %v1444 = vunpack.c.l.b16 %v1400
        %v1445 = vunpack.c.l.b16 %v1401
        %v1446 = vunpack.c.l.b16 %v1402
        %v1447 = vunpack.c.l.b16 %v1403
        %v1448 = vunpack.c.l.b16 %v1404
        %v1449 = vunpack.c.l.b16 %v1405
        %v1450 = vunpack.c.l.b16 %v1406
        %v1451 = vunpack.c.l.b16 %v1407
        %v1452 = vunpack.c.l.b16 %v1408
        %v1453 = vunpack.c.l.b16 %v1409
        %v1454 = vunpack.c.l.b16 %v1410
        %v1455 = vunpack.c.l.b16 %v1411
        %v1456 = vunpack.c.l.b16 %v1412
        %v1457 = vunpack.c.l.b16 %v1413
        %v1458 = vunpack.c.l.b16 %v1414
        %v1459 = vpack.c.b16 %v1444, %v1443
        %v1460 = vpack.c.b16 %v1446, %v1445
        %v1461 = vpack.c.b16 %v1448, %v1447
        %v1462 = vpack.c.b16 %v1450, %v1449
        %v1463 = vpack.c.b16 %v1452, %v1451
        %v1464 = vpack.c.b16 %v1454, %v1453
        %v1465 = vpack.c.b16 %v1456, %v1455
        %v1466 = vpack.c.b16 %v1458, %v1457
        %1475 = vmatprep.subr.bf16.mxu0 0
        %1476 = vmatpush1.bf16.msra.mxu0 %v1459
        %1477 = vmatprep.subr.bf16.mxu0 0
        %1478 = vmatpush1.bf16.msra.mxu0 %v1460
        %1479 = vmatprep.subr.bf16.mxu0 0
        %1480 = vmatpush1.bf16.msra.mxu0 %v1461
        %1481 = vmatprep.subr.bf16.mxu0 0
        %1482 = vmatpush1.bf16.msra.mxu0 %v1462
        %1483 = vmatprep.subr.bf16.mxu0 0
        %1484 = vmatpush1.bf16.msra.mxu0 %v1463
        %1485 = vmatprep.subr.bf16.mxu0 0
        %1486 = vmatpush1.bf16.msra.mxu0 %v1464
        %1487 = vmatprep.subr.bf16.mxu0 0
        %1488 = vmatpush1.bf16.msra.mxu0 %v1465
        %1489 = vmatprep.subr.bf16.mxu0 0
        %1490 = vmatpush1.bf16.msra.mxu0 %v1466
        %1491 = vmatprep.subr.bf16.mxu0 0
        %1492 = vmatpush1.bf16.msra.mxu0 0
        %1493 = vmatprep.subr.bf16.mxu0 0
        %1494 = vmatpush1.bf16.msra.mxu0 0
        %1495 = vmatprep.subr.bf16.mxu0 0
        %1496 = vmatpush1.bf16.msra.mxu0 0
        %1497 = vmatprep.subr.bf16.mxu0 0
        %1498 = vmatpush1.bf16.msra.mxu0 0
        %1499 = vmatprep.subr.bf16.mxu0 0
        %1500 = vmatpush1.bf16.msra.mxu0 0
        %1501 = vmatprep.subr.bf16.mxu0 0
        %1502 = vmatpush1.bf16.msra.mxu0 0
        %1503 = vmatprep.subr.bf16.mxu0 0
        %1504 = vmatpush1.bf16.msra.mxu0 0
        %1505 = vmatprep.subr.bf16.mxu0 0
        %1506 = vmatpush1.bf16.msra.mxu0 0
        %1507 = vmatprep.mubr.bf16.mxu0 0
        %1508 = vmatmul.mubr.bf16.gmra.mrb[0].mxu0 %v1050
        %v1509 = vpop.f32.mrb[0].mxu0
        %v1510 = vadd.f32 0.0, %v1509
        %v1511 = vpop.f32.mrb[0].mxu0
        %v1512 = vpop.f32.mrb[0].mxu0
        %v1513 = vadd.f32 0.0, %v1512
        %v1514 = vpop.f32.mrb[0].mxu0
        %1515 = vmatprep.mubr.bf16.mxu0 0
        %1516 = vmatmul.mubr.bf16.gmra.mrb[0].mxu0 %v1051
        %v1517 = vpop.f32.mrb[0].mxu0
        %v1518 = vadd.f32 0.0, %v1517
        %v1519 = vpop.f32.mrb[0].mxu0
        %v1520 = vpop.f32.mrb[0].mxu0
        %v1521 = vadd.f32 0.0, %v1520
        %v1522 = vpop.f32.mrb[0].mxu0
        %1523 = vmatprep.mubr.bf16.mxu0 0
        %1524 = vmatmul.mubr.bf16.gmra.mrb[0].mxu0 %v1052
        %v1525 = vpop.f32.mrb[0].mxu0
        %v1526 = vadd.f32 0.0, %v1525
        %v1527 = vpop.f32.mrb[0].mxu0
        %v1528 = vpop.f32.mrb[0].mxu0
        %v1529 = vadd.f32 0.0, %v1528
        %v1530 = vpop.f32.mrb[0].mxu0
        %1531 = vmatprep.mubr.bf16.mxu0 0
        %1532 = vmatmul.mubr.bf16.gmra.mrb[0].mxu0 %v1053
        %v1533 = vpop.f32.mrb[0].mxu0
        %v1534 = vadd.f32 0.0, %v1533
        %v1535 = vpop.f32.mrb[0].mxu0
        %v1536 = vpop.f32.mrb[0].mxu0
        %v1537 = vadd.f32 0.0, %v1536
        %v1538 = vpop.f32.mrb[0].mxu0
        %1539 = vmatprep.mubr.bf16.mxu0 0
        %1540 = vmatmul.mubr.bf16.gmra.mrb[0].mxu0 %v1054
        %v1541 = vpop.f32.mrb[0].mxu0
        %v1542 = vadd.f32 0.0, %v1541
        %v1543 = vpop.f32.mrb[0].mxu0
        %v1544 = vpop.f32.mrb[0].mxu0
        %v1545 = vadd.f32 0.0, %v1544
        %v1546 = vpop.f32.mrb[0].mxu0
        %1547 = vmatprep.mubr.bf16.mxu0 0
        %1548 = vmatmul.mubr.bf16.gmra.mrb[0].mxu0 %v1055
        %v1549 = vpop.f32.mrb[0].mxu0
        %v1550 = vadd.f32 0.0, %v1549
        %v1551 = vpop.f32.mrb[0].mxu0
        %v1552 = vpop.f32.mrb[0].mxu0
        %v1553 = vadd.f32 0.0, %v1552
        %v1554 = vpop.f32.mrb[0].mxu0
        %1555 = vmatprep.mubr.bf16.mxu0 0
        %1556 = vmatmul.mubr.bf16.gmra.mrb[0].mxu0 %v1056
        %v1557 = vpop.f32.mrb[0].mxu0
        %v1558 = vadd.f32 0.0, %v1557
        %v1559 = vpop.f32.mrb[0].mxu0
        %v1560 = vpop.f32.mrb[0].mxu0
        %v1561 = vadd.f32 0.0, %v1560
        %v1562 = vpop.f32.mrb[0].mxu0
        %1563 = vmatprep.mubr.bf16.mxu0 0
        %1564 = vmatmul.mubr.bf16.gmra.mrb[0].mxu0 %v1057
        %v1565 = vpop.f32.mrb[0].mxu0
        %v1566 = vadd.f32 0.0, %v1565
        %v1567 = vpop.f32.mrb[0].mxu0
        %v1568 = vpop.f32.mrb[0].mxu0
        %v1569 = vadd.f32 0.0, %v1568
        %v1570 = vpop.f32.mrb[0].mxu0
        %1571 = vmatprep.mubr.bf16.mxu0 0
        %1572 = vmatmul.mubr.bf16.gmra.mrb[0].mxu0 %v1058
        %v1573 = vpop.f32.mrb[0].mxu0
        %v1574 = vadd.f32 0.0, %v1573
        %v1575 = vpop.f32.mrb[0].mxu0
        %v1576 = vpop.f32.mrb[0].mxu0
        %v1577 = vadd.f32 0.0, %v1576
        %v1578 = vpop.f32.mrb[0].mxu0
        %1579 = vmatprep.mubr.bf16.mxu0 0
        %1580 = vmatmul.mubr.bf16.gmra.mrb[0].mxu0 %v1059
        %v1581 = vpop.f32.mrb[0].mxu0
        %v1582 = vadd.f32 0.0, %v1581
        %v1583 = vpop.f32.mrb[0].mxu0
        %v1584 = vpop.f32.mrb[0].mxu0
        %v1585 = vadd.f32 0.0, %v1584
        %v1586 = vpop.f32.mrb[0].mxu0
        %1587 = vmatprep.mubr.bf16.mxu0 0
        %1588 = vmatmul.mubr.bf16.gmra.mrb[0].mxu0 %v1060
        %v1589 = vpop.f32.mrb[0].mxu0
        %v1590 = vadd.f32 0.0, %v1589
        %v1591 = vpop.f32.mrb[0].mxu0
        %v1592 = vpop.f32.mrb[0].mxu0
        %v1593 = vadd.f32 0.0, %v1592
        %v1594 = vpop.f32.mrb[0].mxu0
        %1595 = vmatprep.mubr.bf16.mxu0 0
        %1596 = vmatmul.mubr.bf16.gmra.mrb[0].mxu0 %v1061
        %v1597 = vpop.f32.mrb[0].mxu0
        %v1598 = vadd.f32 0.0, %v1597
        %v1599 = vpop.f32.mrb[0].mxu0
        %v1600 = vpop.f32.mrb[0].mxu0
        %v1601 = vadd.f32 0.0, %v1600
        %v1602 = vpop.f32.mrb[0].mxu0
        %1603 = vmatprep.mubr.bf16.mxu0 0
        %1604 = vmatmul.mubr.bf16.gmra.mrb[0].mxu0 %v1062
        %v1605 = vpop.f32.mrb[0].mxu0
        %v1606 = vadd.f32 0.0, %v1605
        %v1607 = vpop.f32.mrb[0].mxu0
        %v1608 = vpop.f32.mrb[0].mxu0
        %v1609 = vadd.f32 0.0, %v1608
        %v1610 = vpop.f32.mrb[0].mxu0
        %1611 = vmatprep.mubr.bf16.mxu0 0
        %1612 = vmatmul.mubr.bf16.gmra.mrb[0].mxu0 %v1063
        %v1613 = vpop.f32.mrb[0].mxu0
        %v1614 = vadd.f32 0.0, %v1613
        %v1615 = vpop.f32.mrb[0].mxu0
        %v1616 = vpop.f32.mrb[0].mxu0
        %v1617 = vadd.f32 0.0, %v1616
        %v1618 = vpop.f32.mrb[0].mxu0
        %1619 = vmatprep.mubr.bf16.mxu0 0
        %1620 = vmatmul.mubr.bf16.gmra.mrb[0].mxu0 %v1064
        %v1621 = vpop.f32.mrb[0].mxu0
        %v1622 = vadd.f32 0.0, %v1621
        %v1623 = vpop.f32.mrb[0].mxu0
        %v1624 = vpop.f32.mrb[0].mxu0
        %v1625 = vadd.f32 0.0, %v1624
        %v1626 = vpop.f32.mrb[0].mxu0
        %1627 = vmatprep.mubr.bf16.mxu0 0
        %1628 = vmatmul.mubr.bf16.gmra.mrb[0].mxu0 %v1065
        %v1629 = vpop.f32.mrb[0].mxu0
        %v1630 = vadd.f32 0.0, %v1629
        %v1631 = vpop.f32.mrb[0].mxu0
        %v1632 = vpop.f32.mrb[0].mxu0
        %v1633 = vadd.f32 0.0, %v1632
        %v1634 = vpop.f32.mrb[0].mxu0
        %1635 = vmatprep.mubr.bf16.mxu0 0
        %1636 = vmatmul.mubr.bf16.gmra.mrb[0].mxu0 %v1066
        %v1637 = vpop.f32.mrb[0].mxu0
        %v1638 = vadd.f32 0.0, %v1637
        %v1639 = vpop.f32.mrb[0].mxu0
        %v1640 = vpop.f32.mrb[0].mxu0
        %v1641 = vadd.f32 0.0, %v1640
        %v1642 = vpop.f32.mrb[0].mxu0
        %1643 = vmatprep.mubr.bf16.mxu0 0
        %1644 = vmatmul.mubr.bf16.gmra.mrb[0].mxu0 %v1067
        %v1645 = vpop.f32.mrb[0].mxu0
        %v1646 = vadd.f32 0.0, %v1645
        %v1647 = vpop.f32.mrb[0].mxu0
        %v1648 = vpop.f32.mrb[0].mxu0
        %v1649 = vadd.f32 0.0, %v1648
        %v1650 = vpop.f32.mrb[0].mxu0
        %1651 = vmatprep.mubr.bf16.mxu0 0
        %1652 = vmatmul.mubr.bf16.gmra.mrb[0].mxu0 %v1068
        %v1653 = vpop.f32.mrb[0].mxu0
        %v1654 = vadd.f32 0.0, %v1653
        %v1655 = vpop.f32.mrb[0].mxu0
        %v1656 = vpop.f32.mrb[0].mxu0
        %v1657 = vadd.f32 0.0, %v1656
        %v1658 = vpop.f32.mrb[0].mxu0
        %1659 = vmatprep.mubr.bf16.mxu0 0
        %1660 = vmatmul.mubr.bf16.gmra.mrb[0].mxu0 %v1069
        %v1661 = vpop.f32.mrb[0].mxu0
        %v1662 = vadd.f32 0.0, %v1661
        %v1663 = vpop.f32.mrb[0].mxu0
        %v1664 = vpop.f32.mrb[0].mxu0
        %v1665 = vadd.f32 0.0, %v1664
        %v1666 = vpop.f32.mrb[0].mxu0
        %1667 = vmatprep.mubr.bf16.mxu0 0
        %1668 = vmatmul.mubr.bf16.gmra.mrb[0].mxu0 %v1070
        %v1669 = vpop.f32.mrb[0].mxu0
        %v1670 = vadd.f32 0.0, %v1669
        %v1671 = vpop.f32.mrb[0].mxu0
        %v1672 = vpop.f32.mrb[0].mxu0
        %v1673 = vadd.f32 0.0, %v1672
        %v1674 = vpop.f32.mrb[0].mxu0
        %1675 = vmatprep.mubr.bf16.mxu0 0
        %1676 = vmatmul.mubr.bf16.gmra.mrb[0].mxu0 %v1071
        %v1677 = vpop.f32.mrb[0].mxu0
        %v1678 = vadd.f32 0.0, %v1677
        %v1679 = vpop.f32.mrb[0].mxu0
        %v1680 = vpop.f32.mrb[0].mxu0
        %v1681 = vadd.f32 0.0, %v1680
        %v1682 = vpop.f32.mrb[0].mxu0
        %1683 = vmatprep.mubr.bf16.mxu0 0
        %1684 = vmatmul.mubr.bf16.gmra.mrb[0].mxu0 %v1072
        %v1685 = vpop.f32.mrb[0].mxu0
        %v1686 = vadd.f32 0.0, %v1685
        %v1687 = vpop.f32.mrb[0].mxu0
        %v1688 = vpop.f32.mrb[0].mxu0
        %v1689 = vadd.f32 0.0, %v1688
        %v1690 = vpop.f32.mrb[0].mxu0
        %1691 = vmatprep.mubr.bf16.mxu0 0
        %1692 = vmatmul.mubr.bf16.gmra.mrb[0].mxu0 %v1073
        %v1693 = vpop.f32.mrb[0].mxu0
        %v1694 = vadd.f32 0.0, %v1693
        %v1695 = vpop.f32.mrb[0].mxu0
        %v1696 = vpop.f32.mrb[0].mxu0
        %v1697 = vadd.f32 0.0, %v1696
        %v1698 = vpop.f32.mrb[0].mxu0
        %1699 = vmatprep.mubr.bf16.mxu0 0
        %1700 = vmatmul.mubr.bf16.gmra.mrb[0].mxu0 %v1421
        %v1701 = vpop.f32.mrb[0].mxu0
        %v1702 = vadd.f32 0.0, %v1701
        %v1703 = vpop.f32.mrb[0].mxu0
        %v1704 = vpop.f32.mrb[0].mxu0
        %v1705 = vadd.f32 0.0, %v1704
        %v1706 = vpop.f32.mrb[0].mxu0
        %1707 = vmatprep.mubr.bf16.mxu0 0
        %1708 = vmatmul.mubr.bf16.gmra.mrb[0].mxu0 %v1422
        %v1709 = vpop.f32.mrb[0].mxu0
        %v1710 = vadd.f32 0.0, %v1709
        %v1711 = vpop.f32.mrb[0].mxu0
        %v1712 = vpop.f32.mrb[0].mxu0
        %v1713 = vadd.f32 0.0, %v1712
        %v1714 = vpop.f32.mrb[0].mxu0
        %1715 = vmatprep.mubr.bf16.mxu0 0
        %1716 = vmatmul.mubr.bf16.gmra.mrb[0].mxu0 %v1423
        %v1717 = vpop.f32.mrb[0].mxu0
        %v1718 = vadd.f32 0.0, %v1717
        %v1719 = vpop.f32.mrb[0].mxu0
        %v1720 = vpop.f32.mrb[0].mxu0
        %v1721 = vadd.f32 0.0, %v1720
        %v1722 = vpop.f32.mrb[0].mxu0
        %1723 = vdwg.mxu0
        %v1724 = vadd.f32 %v1184, %v1510
        %v1725 = vadd.f32 %v1187, %v1513
        %v1726 = vadd.f32 %v1192, %v1518
        %v1727 = vadd.f32 %v1195, %v1521
        %v1728 = vadd.f32 %v1200, %v1526
        %v1729 = vadd.f32 %v1203, %v1529
        %v1730 = vadd.f32 %v1208, %v1534
        %v1731 = vadd.f32 %v1211, %v1537
        %v1732 = vadd.f32 %v1216, %v1542
        %v1733 = vadd.f32 %v1219, %v1545
        %v1734 = vadd.f32 %v1224, %v1550
        %v1735 = vadd.f32 %v1227, %v1553
        %v1736 = vadd.f32 %v1232, %v1558
        %v1737 = vadd.f32 %v1235, %v1561
        %v1738 = vadd.f32 %v1240, %v1566
        %v1739 = vadd.f32 %v1243, %v1569
        %v1740 = vadd.f32 %v1248, %v1574
        %v1741 = vadd.f32 %v1251, %v1577
        %v1742 = vadd.f32 %v1256, %v1582
        %v1743 = vadd.f32 %v1259, %v1585
        %v1744 = vadd.f32 %v1264, %v1590
        %v1745 = vadd.f32 %v1267, %v1593
        %v1746 = vadd.f32 %v1272, %v1598
        %v1747 = vadd.f32 %v1275, %v1601
        %v1748 = vadd.f32 %v1280, %v1606
        %v1749 = vadd.f32 %v1283, %v1609
        %v1750 = vadd.f32 %v1288, %v1614
        %v1751 = vadd.f32 %v1291, %v1617
        %v1752 = vadd.f32 %v1296, %v1622
        %v1753 = vadd.f32 %v1299, %v1625
        %v1754 = vadd.f32 %v1304, %v1630
        %v1755 = vadd.f32 %v1307, %v1633
        %v1756 = vadd.f32 %v1312, %v1638
        %v1757 = vadd.f32 %v1315, %v1641
        %v1758 = vadd.f32 %v1320, %v1646
        %v1759 = vadd.f32 %v1323, %v1649
        %v1760 = vadd.f32 %v1328, %v1654
        %v1761 = vadd.f32 %v1331, %v1657
        %v1762 = vadd.f32 %v1336, %v1662
        %v1763 = vadd.f32 %v1339, %v1665
        %v1764 = vadd.f32 %v1344, %v1670
        %v1765 = vadd.f32 %v1347, %v1673
        %v1766 = vadd.f32 %v1352, %v1678
        %v1767 = vadd.f32 %v1355, %v1681
        %v1768 = vadd.f32 %v1360, %v1686
        %v1769 = vadd.f32 %v1363, %v1689
        %v1770 = vadd.f32 %v1368, %v1694
        %v1771 = vadd.f32 %v1371, %v1697
        %v1772 = vadd.f32 %v1376, %v1702
        %v1773 = vadd.f32 %v1379, %v1705
        %v1774 = vadd.f32 %v1384, %v1710
        %v1775 = vadd.f32 %v1387, %v1713
        %v1776 = vadd.f32 %v1392, %v1718
        %v1777 = vadd.f32 %v1395, %v1721
        %vm1778 = vsmask.f32 3328
        %vm1779 = vsmask.f32 7440
        %vm1780 = vmor %vm1778, %vm1779
        %v1782 = vshrl.u32 %v469, 16
        %v1784 = vrot.slane %v1782, 4
        %v1785 = vshll.u32 %v469, 16
        %v1787 = vrot.slane %v1785, 5
        %v1788 = vor.u32 %v1784, %v1787
        %v1789 = vrot.slane %v1788, 4
        %v1791 = vshll.u32 %v470, 16
        %v1793 = vrot.slane %v1791, 5
        %v1794 = vsel %vm1780, %v1789, %v1793
        %v1795 = vshrl.u32 %v470, 16
        %v1797 = vrot.slane %v1795, 4
        %v1798 = vor.u32 %v1797, %v1793
        %v1799 = vrot.slane %v1798, 4
        %v1801 = vshll.u32 %v471, 16
        %v1803 = vrot.slane %v1801, 5
        %v1804 = vsel %vm1780, %v1799, %v1803
        %v1805 = vshrl.u32 %v471, 16
        %v1807 = vrot.slane %v1805, 4
        %v1808 = vor.u32 %v1807, %v1803
        %v1809 = vrot.slane %v1808, 4
        %v1811 = vshll.u32 %v472, 16
        %v1813 = vrot.slane %v1811, 5
        %v1814 = vsel %vm1780, %v1809, %v1813
        %v1816 = vshrl.u32 %v473, 16
        %v1818 = vrot.slane %v1816, 4
        %v1819 = vshll.u32 %v473, 16
        %v1821 = vrot.slane %v1819, 5
        %v1822 = vor.u32 %v1818, %v1821
        %v1823 = vrot.slane %v1822, 4
        %v1825 = vshll.u32 %v474, 16
        %v1827 = vrot.slane %v1825, 5
        %v1828 = vsel %vm1780, %v1823, %v1827
        %v1829 = vshrl.u32 %v474, 16
        %v1831 = vrot.slane %v1829, 4
        %v1832 = vor.u32 %v1831, %v1827
        %v1833 = vrot.slane %v1832, 4
        %v1835 = vshll.u32 %v475, 16
        %v1837 = vrot.slane %v1835, 5
        %v1838 = vsel %vm1780, %v1833, %v1837
        %v1839 = vshrl.u32 %v475, 16
        %v1841 = vrot.slane %v1839, 4
        %v1842 = vor.u32 %v1841, %v1837
        %v1843 = vrot.slane %v1842, 4
        %v1845 = vshll.u32 %v476, 16
        %v1847 = vrot.slane %v1845, 5
        %v1848 = vsel %vm1780, %v1843, %v1847
        %v1850 = vshrl.u32 %v477, 16
        %v1852 = vrot.slane %v1850, 4
        %v1853 = vshll.u32 %v477, 16
        %v1855 = vrot.slane %v1853, 5
        %v1856 = vor.u32 %v1852, %v1855
        %v1857 = vrot.slane %v1856, 4
        %v1859 = vshll.u32 %v478, 16
        %v1861 = vrot.slane %v1859, 5
        %v1862 = vsel %vm1780, %v1857, %v1861
        %v1863 = vshrl.u32 %v478, 16
        %v1865 = vrot.slane %v1863, 4
        %v1866 = vor.u32 %v1865, %v1861
        %v1867 = vrot.slane %v1866, 4
        %v1869 = vshll.u32 %v479, 16
        %v1871 = vrot.slane %v1869, 5
        %v1872 = vsel %vm1780, %v1867, %v1871
        %v1873 = vshrl.u32 %v479, 16
        %v1875 = vrot.slane %v1873, 4
        %v1876 = vor.u32 %v1875, %v1871
        %v1877 = vrot.slane %v1876, 4
        %v1879 = vshll.u32 %v480, 16
        %v1881 = vrot.slane %v1879, 5
        %v1882 = vsel %vm1780, %v1877, %v1881
        %v1884 = vshrl.u32 %v481, 16
        %v1886 = vrot.slane %v1884, 4
        %v1887 = vshll.u32 %v481, 16
        %v1889 = vrot.slane %v1887, 5
        %v1890 = vor.u32 %v1886, %v1889
        %v1891 = vrot.slane %v1890, 4
        %v1893 = vshll.u32 %v482, 16
        %v1895 = vrot.slane %v1893, 5
        %v1896 = vsel %vm1780, %v1891, %v1895
        %v1897 = vshrl.u32 %v482, 16
        %v1899 = vrot.slane %v1897, 4
        %v1900 = vor.u32 %v1899, %v1895
        %v1901 = vrot.slane %v1900, 4
        %v1903 = vshll.u32 %v483, 16
        %v1905 = vrot.slane %v1903, 5
        %v1906 = vsel %vm1780, %v1901, %v1905
        %v1907 = vshrl.u32 %v483, 16
        %v1909 = vrot.slane %v1907, 4
        %v1910 = vor.u32 %v1909, %v1905
        %v1911 = vrot.slane %v1910, 4
        %v1913 = vshll.u32 %v484, 16
        %v1915 = vrot.slane %v1913, 5
        %v1916 = vsel %vm1780, %v1911, %v1915
        %v1918 = vshrl.u32 %v485, 16
        %v1920 = vrot.slane %v1918, 4
        %v1921 = vshll.u32 %v485, 16
        %v1923 = vrot.slane %v1921, 5
        %v1924 = vor.u32 %v1920, %v1923
        %v1925 = vrot.slane %v1924, 4
        %v1927 = vshll.u32 %v486, 16
        %v1929 = vrot.slane %v1927, 5
        %v1930 = vsel %vm1780, %v1925, %v1929
        %v1931 = vshrl.u32 %v486, 16
        %v1933 = vrot.slane %v1931, 4
        %v1934 = vor.u32 %v1933, %v1929
        %v1935 = vrot.slane %v1934, 4
        %v1937 = vshll.u32 %v487, 16
        %v1939 = vrot.slane %v1937, 5
        %v1940 = vsel %vm1780, %v1935, %v1939
        %v1941 = vshrl.u32 %v487, 16
        %v1943 = vrot.slane %v1941, 4
        %v1944 = vor.u32 %v1943, %v1939
        %v1945 = vrot.slane %v1944, 4
        %v1947 = vshll.u32 %v488, 16
        %v1949 = vrot.slane %v1947, 5
        %v1950 = vsel %vm1780, %v1945, %v1949
        %v1952 = vshrl.u32 %v489, 16
        %v1954 = vrot.slane %v1952, 4
        %v1955 = vshll.u32 %v489, 16
        %v1957 = vrot.slane %v1955, 5
        %v1958 = vor.u32 %v1954, %v1957
        %v1959 = vrot.slane %v1958, 4
        %v1961 = vshll.u32 %v490, 16
        %v1963 = vrot.slane %v1961, 5
        %v1964 = vsel %vm1780, %v1959, %v1963
        %v1965 = vshrl.u32 %v490, 16
        %v1967 = vrot.slane %v1965, 4
        %v1968 = vor.u32 %v1967, %v1963
        %v1969 = vrot.slane %v1968, 4
        %v1971 = vshll.u32 %v491, 16
        %v1973 = vrot.slane %v1971, 5
        %v1974 = vsel %vm1780, %v1969, %v1973
        %v1975 = vshrl.u32 %v491, 16
        %v1977 = vrot.slane %v1975, 4
        %v1978 = vor.u32 %v1977, %v1973
        %v1979 = vrot.slane %v1978, 4
        %v1981 = vshll.u32 %v492, 16
        %v1983 = vrot.slane %v1981, 5
        %v1984 = vsel %vm1780, %v1979, %v1983
        %v1986 = vshrl.u32 %v493, 16
        %v1988 = vrot.slane %v1986, 4
        %v1989 = vshll.u32 %v493, 16
        %v1991 = vrot.slane %v1989, 5
        %v1992 = vor.u32 %v1988, %v1991
        %v1993 = vrot.slane %v1992, 4
        %v1995 = vshll.u32 %v494, 16
        %v1997 = vrot.slane %v1995, 5
        %v1998 = vsel %vm1780, %v1993, %v1997
        %v1999 = vshrl.u32 %v494, 16
        %v2001 = vrot.slane %v1999, 4
        %v2002 = vor.u32 %v2001, %v1997
        %v2003 = vrot.slane %v2002, 4
        %v2005 = vshll.u32 %v495, 16
        %v2007 = vrot.slane %v2005, 5
        %v2008 = vsel %vm1780, %v2003, %v2007
        %v2009 = vshrl.u32 %v495, 16
        %v2011 = vrot.slane %v2009, 4
        %v2012 = vor.u32 %v2011, %v2007
        %v2013 = vrot.slane %v2012, 4
        %v2015 = vshll.u32 %v496, 16
        %v2017 = vrot.slane %v2015, 5
        %v2018 = vsel %vm1780, %v2013, %v2017
        %v2020 = vshrl.u32 %v497, 16
        %v2022 = vrot.slane %v2020, 4
        %v2023 = vshll.u32 %v497, 16
        %v2025 = vrot.slane %v2023, 5
        %v2026 = vor.u32 %v2022, %v2025
        %v2027 = vrot.slane %v2026, 4
        %v2029 = vshll.u32 %v498, 16
        %v2031 = vrot.slane %v2029, 5
        %v2032 = vsel %vm1780, %v2027, %v2031
        %v2033 = vshrl.u32 %v498, 16
        %v2035 = vrot.slane %v2033, 4
        %v2036 = vor.u32 %v2035, %v2031
        %v2037 = vrot.slane %v2036, 4
        %v2039 = vshll.u32 %v499, 16
        %v2041 = vrot.slane %v2039, 5
        %v2042 = vsel %vm1780, %v2037, %v2041
        %v2043 = vshrl.u32 %v499, 16
        %v2045 = vrot.slane %v2043, 4
        %v2046 = vor.u32 %v2045, %v2041
        %v2047 = vrot.slane %v2046, 4
        %v2049 = vshll.u32 %v500, 16
        %v2051 = vrot.slane %v2049, 5
        %v2052 = vsel %vm1780, %v2047, %v2051
        %v2054 = vshrl.u32 %v501, 16
        %v2056 = vrot.slane %v2054, 4
        %v2057 = vshll.u32 %v501, 16
        %v2059 = vrot.slane %v2057, 5
        %v2060 = vor.u32 %v2056, %v2059
        %v2061 = vrot.slane %v2060, 4
        %v2063 = vshll.u32 %v502, 16
        %v2065 = vrot.slane %v2063, 5
        %v2066 = vsel %vm1780, %v2061, %v2065
        %v2067 = vshrl.u32 %v502, 16
        %v2069 = vrot.slane %v2067, 4
        %v2070 = vor.u32 %v2069, %v2065
        %v2071 = vrot.slane %v2070, 4
        %v2073 = vshll.u32 %v503, 16
        %v2075 = vrot.slane %v2073, 5
        %v2076 = vsel %vm1780, %v2071, %v2075
        %v2077 = vshrl.u32 %v503, 16
        %v2079 = vrot.slane %v2077, 4
        %v2080 = vor.u32 %v2079, %v2075
        %v2081 = vrot.slane %v2080, 4
        %v2083 = vshll.u32 %v504, 16
        %v2085 = vrot.slane %v2083, 5
        %v2086 = vsel %vm1780, %v2081, %v2085
        %v2088 = vshrl.u32 %v505, 16
        %v2090 = vrot.slane %v2088, 4
        %v2091 = vshll.u32 %v505, 16
        %v2093 = vrot.slane %v2091, 5
        %v2094 = vor.u32 %v2090, %v2093
        %v2095 = vrot.slane %v2094, 4
        %v2097 = vshll.u32 %v506, 16
        %v2099 = vrot.slane %v2097, 5
        %v2100 = vsel %vm1780, %v2095, %v2099
        %v2101 = vshrl.u32 %v506, 16
        %v2103 = vrot.slane %v2101, 4
        %v2104 = vor.u32 %v2103, %v2099
        %v2105 = vrot.slane %v2104, 4
        %v2107 = vshll.u32 %v507, 16
        %v2109 = vrot.slane %v2107, 5
        %v2110 = vsel %vm1780, %v2105, %v2109
        %v2111 = vshrl.u32 %v507, 16
        %v2113 = vrot.slane %v2111, 4
        %v2114 = vor.u32 %v2113, %v2109
        %v2115 = vrot.slane %v2114, 4
        %v2117 = vshll.u32 %v508, 16
        %v2119 = vrot.slane %v2117, 5
        %v2120 = vsel %vm1780, %v2115, %v2119
        %v2122 = vshrl.u32 %v509, 16
        %v2124 = vrot.slane %v2122, 4
        %v2125 = vshll.u32 %v509, 16
        %v2127 = vrot.slane %v2125, 5
        %v2128 = vor.u32 %v2124, %v2127
        %v2129 = vrot.slane %v2128, 4
        %v2131 = vshll.u32 %v510, 16
        %v2133 = vrot.slane %v2131, 5
        %v2134 = vsel %vm1780, %v2129, %v2133
        %v2135 = vshrl.u32 %v510, 16
        %v2137 = vrot.slane %v2135, 4
        %v2138 = vor.u32 %v2137, %v2133
        %v2139 = vrot.slane %v2138, 4
        %v2141 = vshll.u32 %v511, 16
        %v2143 = vrot.slane %v2141, 5
        %v2144 = vsel %vm1780, %v2139, %v2143
        %v2145 = vshrl.u32 %v511, 16
        %v2147 = vrot.slane %v2145, 4
        %v2148 = vor.u32 %v2147, %v2143
        %v2149 = vrot.slane %v2148, 4
        %v2151 = vshll.u32 %v512, 16
        %v2153 = vrot.slane %v2151, 5
        %v2154 = vsel %vm1780, %v2149, %v2153
        %v2156 = vshrl.u32 %v513, 16
        %v2158 = vrot.slane %v2156, 4
        %v2159 = vshll.u32 %v513, 16
        %v2161 = vrot.slane %v2159, 5
        %v2162 = vor.u32 %v2158, %v2161
        %v2163 = vrot.slane %v2162, 4
        %v2165 = vshll.u32 %v514, 16
        %v2167 = vrot.slane %v2165, 5
        %v2168 = vsel %vm1780, %v2163, %v2167
        %v2169 = vshrl.u32 %v514, 16
        %v2171 = vrot.slane %v2169, 4
        %v2172 = vor.u32 %v2171, %v2167
        %v2173 = vrot.slane %v2172, 4
        %v2175 = vshll.u32 %v515, 16
        %v2177 = vrot.slane %v2175, 5
        %v2178 = vsel %vm1780, %v2173, %v2177
        %v2179 = vshrl.u32 %v515, 16
        %v2181 = vrot.slane %v2179, 4
        %v2182 = vor.u32 %v2181, %v2177
        %v2183 = vrot.slane %v2182, 4
        %v2185 = vshll.u32 %v516, 16
        %v2187 = vrot.slane %v2185, 5
        %v2188 = vsel %vm1780, %v2183, %v2187
        %v2190 = vshrl.u32 %v517, 16
        %v2192 = vrot.slane %v2190, 4
        %v2193 = vshll.u32 %v517, 16
        %v2195 = vrot.slane %v2193, 5
        %v2196 = vor.u32 %v2192, %v2195
        %v2197 = vrot.slane %v2196, 4
        %v2199 = vshll.u32 %v518, 16
        %v2201 = vrot.slane %v2199, 5
        %v2202 = vsel %vm1780, %v2197, %v2201
        %v2203 = vshrl.u32 %v518, 16
        %v2205 = vrot.slane %v2203, 4
        %v2206 = vor.u32 %v2205, %v2201
        %v2207 = vrot.slane %v2206, 4
        %v2209 = vshll.u32 %v519, 16
        %v2211 = vrot.slane %v2209, 5
        %v2212 = vsel %vm1780, %v2207, %v2211
        %v2213 = vshrl.u32 %v519, 16
        %v2215 = vrot.slane %v2213, 4
        %v2216 = vor.u32 %v2215, %v2211
        %v2217 = vrot.slane %v2216, 4
        %v2219 = vshll.u32 %v520, 16
        %v2221 = vrot.slane %v2219, 5
        %v2222 = vsel %vm1780, %v2217, %v2221
        %v2224 = vshrl.u32 %v521, 16
        %v2226 = vrot.slane %v2224, 4
        %v2227 = vshll.u32 %v521, 16
        %v2229 = vrot.slane %v2227, 5
        %v2230 = vor.u32 %v2226, %v2229
        %v2231 = vrot.slane %v2230, 4
        %v2233 = vshll.u32 %v522, 16
        %v2235 = vrot.slane %v2233, 5
        %v2236 = vsel %vm1780, %v2231, %v2235
        %v2237 = vshrl.u32 %v522, 16
        %v2239 = vrot.slane %v2237, 4
        %v2240 = vor.u32 %v2239, %v2235
        %v2241 = vrot.slane %v2240, 4
        %v2243 = vshll.u32 %v523, 16
        %v2245 = vrot.slane %v2243, 5
        %v2246 = vsel %vm1780, %v2241, %v2245
        %v2247 = vshrl.u32 %v523, 16
        %v2249 = vrot.slane %v2247, 4
        %v2250 = vor.u32 %v2249, %v2245
        %v2251 = vrot.slane %v2250, 4
        %v2253 = vshll.u32 %v524, 16
        %v2255 = vrot.slane %v2253, 5
        %v2256 = vsel %vm1780, %v2251, %v2255
        %v2258 = vshrl.u32 %v525, 16
        %v2260 = vrot.slane %v2258, 4
        %v2261 = vshll.u32 %v525, 16
        %v2263 = vrot.slane %v2261, 5
        %v2264 = vor.u32 %v2260, %v2263
        %v2265 = vrot.slane %v2264, 4
        %v2267 = vshll.u32 %v526, 16
        %v2269 = vrot.slane %v2267, 5
        %v2270 = vsel %vm1780, %v2265, %v2269
        %v2271 = vshrl.u32 %v526, 16
        %v2273 = vrot.slane %v2271, 4
        %v2274 = vor.u32 %v2273, %v2269
        %v2275 = vrot.slane %v2274, 4
        %v2277 = vshll.u32 %v527, 16
        %v2279 = vrot.slane %v2277, 5
        %v2280 = vsel %vm1780, %v2275, %v2279
        %v2281 = vshrl.u32 %v527, 16
        %v2283 = vrot.slane %v2281, 4
        %v2284 = vor.u32 %v2283, %v2279
        %v2285 = vrot.slane %v2284, 4
        %v2287 = vshll.u32 %v528, 16
        %v2289 = vrot.slane %v2287, 5
        %v2290 = vsel %vm1780, %v2285, %v2289
        %v2292 = vshrl.u32 %v529, 16
        %v2294 = vrot.slane %v2292, 4
        %v2295 = vshll.u32 %v529, 16
        %v2297 = vrot.slane %v2295, 5
        %v2298 = vor.u32 %v2294, %v2297
        %v2299 = vrot.slane %v2298, 4
        %v2301 = vshll.u32 %v530, 16
        %v2303 = vrot.slane %v2301, 5
        %v2304 = vsel %vm1780, %v2299, %v2303
        %v2305 = vshrl.u32 %v530, 16
        %v2307 = vrot.slane %v2305, 4
        %v2308 = vor.u32 %v2307, %v2303
        %v2309 = vrot.slane %v2308, 4
        %v2311 = vshll.u32 %v531, 16
        %v2313 = vrot.slane %v2311, 5
        %v2314 = vsel %vm1780, %v2309, %v2313
        %v2315 = vshrl.u32 %v531, 16
        %v2317 = vrot.slane %v2315, 4
        %v2318 = vor.u32 %v2317, %v2313
        %v2319 = vrot.slane %v2318, 4
        %v2321 = vshll.u32 %v532, 16
        %v2323 = vrot.slane %v2321, 5
        %v2324 = vsel %vm1780, %v2319, %v2323
        %v2326 = vshrl.u32 %v533, 16
        %v2328 = vrot.slane %v2326, 4
        %v2329 = vshll.u32 %v533, 16
        %v2331 = vrot.slane %v2329, 5
        %v2332 = vor.u32 %v2328, %v2331
        %v2333 = vrot.slane %v2332, 4
        %v2335 = vshll.u32 %v534, 16
        %v2337 = vrot.slane %v2335, 5
        %v2338 = vsel %vm1780, %v2333, %v2337
        %v2339 = vshrl.u32 %v534, 16
        %v2341 = vrot.slane %v2339, 4
        %v2342 = vor.u32 %v2341, %v2337
        %v2343 = vrot.slane %v2342, 4
        %v2345 = vshll.u32 %v535, 16
        %v2347 = vrot.slane %v2345, 5
        %v2348 = vsel %vm1780, %v2343, %v2347
        %v2349 = vshrl.u32 %v535, 16
        %v2351 = vrot.slane %v2349, 4
        %v2352 = vor.u32 %v2351, %v2347
        %v2353 = vrot.slane %v2352, 4
        %v2355 = vshll.u32 %v536, 16
        %v2357 = vrot.slane %v2355, 5
        %v2358 = vsel %vm1780, %v2353, %v2357
        %v2360 = vshrl.u32 %v537, 16
        %v2362 = vrot.slane %v2360, 4
        %v2363 = vshll.u32 %v537, 16
        %v2365 = vrot.slane %v2363, 5
        %v2366 = vor.u32 %v2362, %v2365
        %v2367 = vrot.slane %v2366, 4
        %v2369 = vshll.u32 %v538, 16
        %v2371 = vrot.slane %v2369, 5
        %v2372 = vsel %vm1780, %v2367, %v2371
        %v2373 = vshrl.u32 %v538, 16
        %v2375 = vrot.slane %v2373, 4
        %v2376 = vor.u32 %v2375, %v2371
        %v2377 = vrot.slane %v2376, 4
        %v2379 = vshll.u32 %v539, 16
        %v2381 = vrot.slane %v2379, 5
        %v2382 = vsel %vm1780, %v2377, %v2381
        %v2383 = vshrl.u32 %v539, 16
        %v2385 = vrot.slane %v2383, 4
        %v2386 = vor.u32 %v2385, %v2381
        %v2387 = vrot.slane %v2386, 4
        %v2389 = vshll.u32 %v540, 16
        %v2391 = vrot.slane %v2389, 5
        %v2392 = vsel %vm1780, %v2387, %v2391
        %s2393 = scalar_lea.vmem [#allocation6], 64
        %v2394 = vld [vmem:[%s2393] sm:$0xf]
        %v2395 = vld [vmem:[%s2393 + $0x4] sm:$0xf]
        %v2396 = vld [vmem:[%s2393 + $0x8] sm:$0xf]
        %v2397 = vld [vmem:[%s2393 + $0xc] sm:$0xf]
        %v2398 = vld [vmem:[%s2393 + $0x10] sm:$0xf]
        %v2399 = vld [vmem:[%s2393 + $0x14] sm:$0xf]
        %v2400 = vld [vmem:[%s2393 + $0x18] sm:$0xf]
        %v2401 = vld [vmem:[%s2393 + $0x1c] sm:$0xf]
        %v2402 = vld [vmem:[%s2393 + $0x20] sm:$0xf]
        %v2403 = vld [vmem:[%s2393 + $0x24] sm:$0xf]
        %v2404 = vld [vmem:[%s2393 + $0x28] sm:$0xf]
        %v2405 = vld [vmem:[%s2393 + $0x2c] sm:$0xf]
        %v2406 = vld [vmem:[%s2393 + $0x30] sm:$0xf]
        %v2407 = vld [vmem:[%s2393 + $0x34] sm:$0xf]
        %v2408 = vld [vmem:[%s2393 + $0x38] sm:$0xf]
        %v2409 = vld [vmem:[%s2393 + $0x3c] sm:$0xf]
        %v2410 = vunpack.c.l.b16 %v1794
        %v2411 = vunpack.c.l.b16 %v1804
        %v2412 = vunpack.c.l.b16 %v1814
        %v2413 = vunpack.c.l.b16 %v1828
        %v2414 = vunpack.c.l.b16 %v1838
        %v2415 = vunpack.c.l.b16 %v1848
        %v2416 = vunpack.c.l.b16 %v1862
        %v2417 = vunpack.c.l.b16 %v1872
        %v2418 = vunpack.c.l.b16 %v1882
        %v2419 = vunpack.c.l.b16 %v1896
        %v2420 = vunpack.c.l.b16 %v1906
        %v2421 = vunpack.c.l.b16 %v1916
        %v2422 = vunpack.c.l.b16 %v1930
        %v2423 = vunpack.c.l.b16 %v1940
        %v2424 = vunpack.c.l.b16 %v1950
        %v2425 = vunpack.c.l.b16 %v1964
        %v2426 = vunpack.c.l.b16 %v1974
        %v2427 = vunpack.c.l.b16 %v1984
        %v2428 = vunpack.c.l.b16 %v1998
        %v2429 = vunpack.c.l.b16 %v2008
        %v2430 = vunpack.c.l.b16 %v2018
        %v2431 = vunpack.c.l.b16 %v2032
        %v2432 = vunpack.c.l.b16 %v2042
        %v2433 = vunpack.c.l.b16 %v2052
        %v2434 = vunpack.c.l.b16 %v2066
        %v2435 = vunpack.c.l.b16 %v2076
        %v2436 = vunpack.c.l.b16 %v2086
        %v2437 = vunpack.c.l.b16 %v2100
        %v2438 = vunpack.c.l.b16 %v2110
        %v2439 = vunpack.c.l.b16 %v2120
        %v2440 = vunpack.c.l.b16 %v2134
        %v2441 = vunpack.c.l.b16 %v2144
        %v2442 = vunpack.c.l.b16 %v2154
        %v2443 = vunpack.c.l.b16 %v2168
        %v2444 = vunpack.c.l.b16 %v2178
        %v2445 = vunpack.c.l.b16 %v2188
        %v2446 = vunpack.c.l.b16 %v2202
        %v2447 = vunpack.c.l.b16 %v2212
        %v2448 = vunpack.c.l.b16 %v2222
        %v2449 = vunpack.c.l.b16 %v2236
        %v2450 = vunpack.c.l.b16 %v2246
        %v2451 = vunpack.c.l.b16 %v2256
        %v2452 = vunpack.c.l.b16 %v2270
        %v2453 = vunpack.c.l.b16 %v2280
        %v2454 = vunpack.c.l.b16 %v2290
        %v2455 = vunpack.c.l.b16 %v2304
        %v2456 = vunpack.c.l.b16 %v2314
        %v2457 = vunpack.c.l.b16 %v2324
        %v2458 = vunpack.c.l.b16 %v2338
        %v2459 = vunpack.c.l.b16 %v2348
        %v2460 = vunpack.c.l.b16 %v2358
        %v2461 = vunpack.c.l.b16 %v2372
        %v2462 = vunpack.c.l.b16 %v2382
        %v2463 = vunpack.c.l.b16 %v2392
        %v2464 = vpack.c.b16 %v2411, %v2410
        %v2465 = vpack.c.b16 %v2413, %v2412
        %v2466 = vpack.c.b16 %v2415, %v2414
        %v2467 = vpack.c.b16 %v2417, %v2416
        %v2468 = vpack.c.b16 %v2419, %v2418
        %v2469 = vpack.c.b16 %v2421, %v2420
        %v2470 = vpack.c.b16 %v2423, %v2422
        %v2471 = vpack.c.b16 %v2425, %v2424
        %v2472 = vpack.c.b16 %v2427, %v2426
        %v2473 = vpack.c.b16 %v2429, %v2428
        %v2474 = vpack.c.b16 %v2431, %v2430
        %v2475 = vpack.c.b16 %v2433, %v2432
        %v2476 = vpack.c.b16 %v2435, %v2434
        %v2477 = vpack.c.b16 %v2437, %v2436
        %v2478 = vpack.c.b16 %v2439, %v2438
        %v2479 = vpack.c.b16 %v2441, %v2440
        %v2480 = vpack.c.b16 %v2443, %v2442
        %v2481 = vpack.c.b16 %v2445, %v2444
        %v2482 = vpack.c.b16 %v2447, %v2446
        %v2483 = vpack.c.b16 %v2449, %v2448
        %v2484 = vpack.c.b16 %v2451, %v2450
        %v2485 = vpack.c.b16 %v2453, %v2452
        %v2486 = vpack.c.b16 %v2455, %v2454
        %v2487 = vpack.c.b16 %v2457, %v2456
        %v2488 = vpack.c.b16 %v2459, %v2458
        %v2489 = vpack.c.b16 %v2461, %v2460
        %v2490 = vpack.c.b16 %v2463, %v2462
        %v2534 = vunpack.c.l.b16 %v2394
        %v2535 = vunpack.c.l.b16 %v2395
        %v2536 = vunpack.c.l.b16 %v2396
        %v2537 = vunpack.c.l.b16 %v2397
        %v2538 = vunpack.c.l.b16 %v2398
        %v2539 = vunpack.c.l.b16 %v2399
        %v2540 = vunpack.c.l.b16 %v2400
        %v2541 = vunpack.c.l.b16 %v2401
        %v2542 = vunpack.c.l.b16 %v2402
        %v2543 = vunpack.c.l.b16 %v2403
        %v2544 = vunpack.c.l.b16 %v2404
        %v2545 = vunpack.c.l.b16 %v2405
        %v2546 = vunpack.c.l.b16 %v2406
        %v2547 = vunpack.c.l.b16 %v2407
        %v2548 = vunpack.c.l.b16 %v2408
        %v2549 = vunpack.c.l.b16 %v2409
        %v2550 = vpack.c.b16 %v2535, %v2534
        %v2551 = vpack.c.b16 %v2537, %v2536
        %v2552 = vpack.c.b16 %v2539, %v2538
        %v2553 = vpack.c.b16 %v2541, %v2540
        %v2554 = vpack.c.b16 %v2543, %v2542
        %v2555 = vpack.c.b16 %v2545, %v2544
        %v2556 = vpack.c.b16 %v2547, %v2546
        %v2557 = vpack.c.b16 %v2549, %v2548
        %2566 = vmatprep.subr.bf16.mxu0 0
        %2567 = vmatpush1.bf16.msra.mxu0 %v2550
        %2568 = vmatprep.subr.bf16.mxu0 0
        %2569 = vmatpush1.bf16.msra.mxu0 %v2551
        %2570 = vmatprep.subr.bf16.mxu0 0
        %2571 = vmatpush1.bf16.msra.mxu0 %v2552
        %2572 = vmatprep.subr.bf16.mxu0 0
        %2573 = vmatpush1.bf16.msra.mxu0 %v2553
        %2574 = vmatprep.subr.bf16.mxu0 0
        %2575 = vmatpush1.bf16.msra.mxu0 %v2554
        %2576 = vmatprep.subr.bf16.mxu0 0
        %2577 = vmatpush1.bf16.msra.mxu0 %v2555
        %2578 = vmatprep.subr.bf16.mxu0 0
        %2579 = vmatpush1.bf16.msra.mxu0 %v2556
        %2580 = vmatprep.subr.bf16.mxu0 0
        %2581 = vmatpush1.bf16.msra.mxu0 %v2557
        %2582 = vmatprep.subr.bf16.mxu0 0
        %2583 = vmatpush1.bf16.msra.mxu0 0
        %2584 = vmatprep.subr.bf16.mxu0 0
        %2585 = vmatpush1.bf16.msra.mxu0 0
        %2586 = vmatprep.subr.bf16.mxu0 0
        %2587 = vmatpush1.bf16.msra.mxu0 0
        %2588 = vmatprep.subr.bf16.mxu0 0
        %2589 = vmatpush1.bf16.msra.mxu0 0
        %2590 = vmatprep.subr.bf16.mxu0 0
        %2591 = vmatpush1.bf16.msra.mxu0 0
        %2592 = vmatprep.subr.bf16.mxu0 0
        %2593 = vmatpush1.bf16.msra.mxu0 0
        %2594 = vmatprep.subr.bf16.mxu0 0
        %2595 = vmatpush1.bf16.msra.mxu0 0
        %2596 = vmatprep.subr.bf16.mxu0 0
        %2597 = vmatpush1.bf16.msra.mxu0 0
        %2598 = vmatprep.mubr.bf16.mxu0 0
        %2599 = vmatmul.mubr.bf16.gmra.mrb[0].mxu0 %v2464
        %v2600 = vpop.f32.mrb[0].mxu0
        %v2601 = vadd.f32 0.0, %v2600
        %v2602 = vpop.f32.mrb[0].mxu0
        %v2603 = vpop.f32.mrb[0].mxu0
        %v2604 = vadd.f32 0.0, %v2603
        %v2605 = vpop.f32.mrb[0].mxu0
        %2606 = vmatprep.mubr.bf16.mxu0 0
        %2607 = vmatmul.mubr.bf16.gmra.mrb[0].mxu0 %v2465
        %v2608 = vpop.f32.mrb[0].mxu0
        %v2609 = vadd.f32 0.0, %v2608
        %v2610 = vpop.f32.mrb[0].mxu0
        %v2611 = vpop.f32.mrb[0].mxu0
        %v2612 = vadd.f32 0.0, %v2611
        %v2613 = vpop.f32.mrb[0].mxu0
        %2614 = vmatprep.mubr.bf16.mxu0 0
        %2615 = vmatmul.mubr.bf16.gmra.mrb[0].mxu0 %v2466
        %v2616 = vpop.f32.mrb[0].mxu0
        %v2617 = vadd.f32 0.0, %v2616
        %v2618 = vpop.f32.mrb[0].mxu0
        %v2619 = vpop.f32.mrb[0].mxu0
        %v2620 = vadd.f32 0.0, %v2619
        %v2621 = vpop.f32.mrb[0].mxu0
        %2622 = vmatprep.mubr.bf16.mxu0 0
        %2623 = vmatmul.mubr.bf16.gmra.mrb[0].mxu0 %v2467
        %v2624 = vpop.f32.mrb[0].mxu0
        %v2625 = vadd.f32 0.0, %v2624
        %v2626 = vpop.f32.mrb[0].mxu0
        %v2627 = vpop.f32.mrb[0].mxu0
        %v2628 = vadd.f32 0.0, %v2627
        %v2629 = vpop.f32.mrb[0].mxu0
        %2630 = vmatprep.mubr.bf16.mxu0 0
        %2631 = vmatmul.mubr.bf16.gmra.mrb[0].mxu0 %v2468
        %v2632 = vpop.f32.mrb[0].mxu0
        %v2633 = vadd.f32 0.0, %v2632
        %v2634 = vpop.f32.mrb[0].mxu0
        %v2635 = vpop.f32.mrb[0].mxu0
        %v2636 = vadd.f32 0.0, %v2635
        %v2637 = vpop.f32.mrb[0].mxu0
        %2638 = vmatprep.mubr.bf16.mxu0 0
        %2639 = vmatmul.mubr.bf16.gmra.mrb[0].mxu0 %v2469
        %v2640 = vpop.f32.mrb[0].mxu0
        %v2641 = vadd.f32 0.0, %v2640
        %v2642 = vpop.f32.mrb[0].mxu0
        %v2643 = vpop.f32.mrb[0].mxu0
        %v2644 = vadd.f32 0.0, %v2643
        %v2645 = vpop.f32.mrb[0].mxu0
        %2646 = vmatprep.mubr.bf16.mxu0 0
        %2647 = vmatmul.mubr.bf16.gmra.mrb[0].mxu0 %v2470
        %v2648 = vpop.f32.mrb[0].mxu0
        %v2649 = vadd.f32 0.0, %v2648
        %v2650 = vpop.f32.mrb[0].mxu0
        %v2651 = vpop.f32.mrb[0].mxu0
        %v2652 = vadd.f32 0.0, %v2651
        %v2653 = vpop.f32.mrb[0].mxu0
        %2654 = vmatprep.mubr.bf16.mxu0 0
        %2655 = vmatmul.mubr.bf16.gmra.mrb[0].mxu0 %v2471
        %v2656 = vpop.f32.mrb[0].mxu0
        %v2657 = vadd.f32 0.0, %v2656
        %v2658 = vpop.f32.mrb[0].mxu0
        %v2659 = vpop.f32.mrb[0].mxu0
        %v2660 = vadd.f32 0.0, %v2659
        %v2661 = vpop.f32.mrb[0].mxu0
        %2662 = vmatprep.mubr.bf16.mxu0 0
        %2663 = vmatmul.mubr.bf16.gmra.mrb[0].mxu0 %v2472
        %v2664 = vpop.f32.mrb[0].mxu0
        %v2665 = vadd.f32 0.0, %v2664
        %v2666 = vpop.f32.mrb[0].mxu0
        %v2667 = vpop.f32.mrb[0].mxu0
        %v2668 = vadd.f32 0.0, %v2667
        %v2669 = vpop.f32.mrb[0].mxu0
        %2670 = vmatprep.mubr.bf16.mxu0 0
        %2671 = vmatmul.mubr.bf16.gmra.mrb[0].mxu0 %v2473
        %v2672 = vpop.f32.mrb[0].mxu0
        %v2673 = vadd.f32 0.0, %v2672
        %v2674 = vpop.f32.mrb[0].mxu0
        %v2675 = vpop.f32.mrb[0].mxu0
        %v2676 = vadd.f32 0.0, %v2675
        %v2677 = vpop.f32.mrb[0].mxu0
        %2678 = vmatprep.mubr.bf16.mxu0 0
        %2679 = vmatmul.mubr.bf16.gmra.mrb[0].mxu0 %v2474
        %v2680 = vpop.f32.mrb[0].mxu0
        %v2681 = vadd.f32 0.0, %v2680
        %v2682 = vpop.f32.mrb[0].mxu0
        %v2683 = vpop.f32.mrb[0].mxu0
        %v2684 = vadd.f32 0.0, %v2683
        %v2685 = vpop.f32.mrb[0].mxu0
        %2686 = vmatprep.mubr.bf16.mxu0 0
        %2687 = vmatmul.mubr.bf16.gmra.mrb[0].mxu0 %v2475
        %v2688 = vpop.f32.mrb[0].mxu0
        %v2689 = vadd.f32 0.0, %v2688
        %v2690 = vpop.f32.mrb[0].mxu0
        %v2691 = vpop.f32.mrb[0].mxu0
        %v2692 = vadd.f32 0.0, %v2691
        %v2693 = vpop.f32.mrb[0].mxu0
        %2694 = vmatprep.mubr.bf16.mxu0 0
        %2695 = vmatmul.mubr.bf16.gmra.mrb[0].mxu0 %v2476
        %v2696 = vpop.f32.mrb[0].mxu0
        %v2697 = vadd.f32 0.0, %v2696
        %v2698 = vpop.f32.mrb[0].mxu0
        %v2699 = vpop.f32.mrb[0].mxu0
        %v2700 = vadd.f32 0.0, %v2699
        %v2701 = vpop.f32.mrb[0].mxu0
        %2702 = vmatprep.mubr.bf16.mxu0 0
        %2703 = vmatmul.mubr.bf16.gmra.mrb[0].mxu0 %v2477
        %v2704 = vpop.f32.mrb[0].mxu0
        %v2705 = vadd.f32 0.0, %v2704
        %v2706 = vpop.f32.mrb[0].mxu0
        %v2707 = vpop.f32.mrb[0].mxu0
        %v2708 = vadd.f32 0.0, %v2707
        %v2709 = vpop.f32.mrb[0].mxu0
        %2710 = vmatprep.mubr.bf16.mxu0 0
        %2711 = vmatmul.mubr.bf16.gmra.mrb[0].mxu0 %v2478
        %v2712 = vpop.f32.mrb[0].mxu0
        %v2713 = vadd.f32 0.0, %v2712
        %v2714 = vpop.f32.mrb[0].mxu0
        %v2715 = vpop.f32.mrb[0].mxu0
        %v2716 = vadd.f32 0.0, %v2715
        %v2717 = vpop.f32.mrb[0].mxu0
        %2718 = vmatprep.mubr.bf16.mxu0 0
        %2719 = vmatmul.mubr.bf16.gmra.mrb[0].mxu0 %v2479
        %v2720 = vpop.f32.mrb[0].mxu0
        %v2721 = vadd.f32 0.0, %v2720
        %v2722 = vpop.f32.mrb[0].mxu0
        %v2723 = vpop.f32.mrb[0].mxu0
        %v2724 = vadd.f32 0.0, %v2723
        %v2725 = vpop.f32.mrb[0].mxu0
        %2726 = vmatprep.mubr.bf16.mxu0 0
        %2727 = vmatmul.mubr.bf16.gmra.mrb[0].mxu0 %v2480
        %v2728 = vpop.f32.mrb[0].mxu0
        %v2729 = vadd.f32 0.0, %v2728
        %v2730 = vpop.f32.mrb[0].mxu0
        %v2731 = vpop.f32.mrb[0].mxu0
        %v2732 = vadd.f32 0.0, %v2731
        %v2733 = vpop.f32.mrb[0].mxu0
        %2734 = vmatprep.mubr.bf16.mxu0 0
        %2735 = vmatmul.mubr.bf16.gmra.mrb[0].mxu0 %v2481
        %v2736 = vpop.f32.mrb[0].mxu0
        %v2737 = vadd.f32 0.0, %v2736
        %v2738 = vpop.f32.mrb[0].mxu0
        %v2739 = vpop.f32.mrb[0].mxu0
        %v2740 = vadd.f32 0.0, %v2739
        %v2741 = vpop.f32.mrb[0].mxu0
        %2742 = vmatprep.mubr.bf16.mxu0 0
        %2743 = vmatmul.mubr.bf16.gmra.mrb[0].mxu0 %v2482
        %v2744 = vpop.f32.mrb[0].mxu0
        %v2745 = vadd.f32 0.0, %v2744
        %v2746 = vpop.f32.mrb[0].mxu0
        %v2747 = vpop.f32.mrb[0].mxu0
        %v2748 = vadd.f32 0.0, %v2747
        %v2749 = vpop.f32.mrb[0].mxu0
        %2750 = vmatprep.mubr.bf16.mxu0 0
        %2751 = vmatmul.mubr.bf16.gmra.mrb[0].mxu0 %v2483
        %v2752 = vpop.f32.mrb[0].mxu0
        %v2753 = vadd.f32 0.0, %v2752
        %v2754 = vpop.f32.mrb[0].mxu0
        %v2755 = vpop.f32.mrb[0].mxu0
        %v2756 = vadd.f32 0.0, %v2755
        %v2757 = vpop.f32.mrb[0].mxu0
        %2758 = vmatprep.mubr.bf16.mxu0 0
        %2759 = vmatmul.mubr.bf16.gmra.mrb[0].mxu0 %v2484
        %v2760 = vpop.f32.mrb[0].mxu0
        %v2761 = vadd.f32 0.0, %v2760
        %v2762 = vpop.f32.mrb[0].mxu0
        %v2763 = vpop.f32.mrb[0].mxu0
        %v2764 = vadd.f32 0.0, %v2763
        %v2765 = vpop.f32.mrb[0].mxu0
        %2766 = vmatprep.mubr.bf16.mxu0 0
        %2767 = vmatmul.mubr.bf16.gmra.mrb[0].mxu0 %v2485
        %v2768 = vpop.f32.mrb[0].mxu0
        %v2769 = vadd.f32 0.0, %v2768
        %v2770 = vpop.f32.mrb[0].mxu0
        %v2771 = vpop.f32.mrb[0].mxu0
        %v2772 = vadd.f32 0.0, %v2771
        %v2773 = vpop.f32.mrb[0].mxu0
        %2774 = vmatprep.mubr.bf16.mxu0 0
        %2775 = vmatmul.mubr.bf16.gmra.mrb[0].mxu0 %v2486
        %v2776 = vpop.f32.mrb[0].mxu0
        %v2777 = vadd.f32 0.0, %v2776
        %v2778 = vpop.f32.mrb[0].mxu0
        %v2779 = vpop.f32.mrb[0].mxu0
        %v2780 = vadd.f32 0.0, %v2779
        %v2781 = vpop.f32.mrb[0].mxu0
        %2782 = vmatprep.mubr.bf16.mxu0 0
        %2783 = vmatmul.mubr.bf16.gmra.mrb[0].mxu0 %v2487
        %v2784 = vpop.f32.mrb[0].mxu0
        %v2785 = vadd.f32 0.0, %v2784
        %v2786 = vpop.f32.mrb[0].mxu0
        %v2787 = vpop.f32.mrb[0].mxu0
        %v2788 = vadd.f32 0.0, %v2787
        %v2789 = vpop.f32.mrb[0].mxu0
        %2790 = vmatprep.mubr.bf16.mxu0 0
        %2791 = vmatmul.mubr.bf16.gmra.mrb[0].mxu0 %v2488
        %v2792 = vpop.f32.mrb[0].mxu0
        %v2793 = vadd.f32 0.0, %v2792
        %v2794 = vpop.f32.mrb[0].mxu0
        %v2795 = vpop.f32.mrb[0].mxu0
        %v2796 = vadd.f32 0.0, %v2795
        %v2797 = vpop.f32.mrb[0].mxu0
        %2798 = vmatprep.mubr.bf16.mxu0 0
        %2799 = vmatmul.mubr.bf16.gmra.mrb[0].mxu0 %v2489
        %v2800 = vpop.f32.mrb[0].mxu0
        %v2801 = vadd.f32 0.0, %v2800
        %v2802 = vpop.f32.mrb[0].mxu0
        %v2803 = vpop.f32.mrb[0].mxu0
        %v2804 = vadd.f32 0.0, %v2803
        %v2805 = vpop.f32.mrb[0].mxu0
        %2806 = vmatprep.mubr.bf16.mxu0 0
        %2807 = vmatmul.mubr.bf16.gmra.mrb[0].mxu0 %v2490
        %v2808 = vpop.f32.mrb[0].mxu0
        %v2809 = vadd.f32 0.0, %v2808
        %v2810 = vpop.f32.mrb[0].mxu0
        %v2811 = vpop.f32.mrb[0].mxu0
        %v2812 = vadd.f32 0.0, %v2811
        %v2813 = vpop.f32.mrb[0].mxu0
        %2814 = vdwg.mxu0
        %v2815 = vadd.f32 %v1724, %v2601
        %v2816 = vadd.f32 %v1725, %v2604
        %v2817 = vadd.f32 %v1726, %v2609
        %v2818 = vadd.f32 %v1727, %v2612
        %v2819 = vadd.f32 %v1728, %v2617
        %v2820 = vadd.f32 %v1729, %v2620
        %v2821 = vadd.f32 %v1730, %v2625
        %v2822 = vadd.f32 %v1731, %v2628
        %v2823 = vadd.f32 %v1732, %v2633
        %v2824 = vadd.f32 %v1733, %v2636
        %v2825 = vadd.f32 %v1734, %v2641
        %v2826 = vadd.f32 %v1735, %v2644
        %v2827 = vadd.f32 %v1736, %v2649
        %v2828 = vadd.f32 %v1737, %v2652
        %v2829 = vadd.f32 %v1738, %v2657
        %v2830 = vadd.f32 %v1739, %v2660
        %v2831 = vadd.f32 %v1740, %v2665
        %v2832 = vadd.f32 %v1741, %v2668
        %v2833 = vadd.f32 %v1742, %v2673
        %v2834 = vadd.f32 %v1743, %v2676
        %v2835 = vadd.f32 %v1744, %v2681
        %v2836 = vadd.f32 %v1745, %v2684
        %v2837 = vadd.f32 %v1746, %v2689
        %v2838 = vadd.f32 %v1747, %v2692
        %v2839 = vadd.f32 %v1748, %v2697
        %v2840 = vadd.f32 %v1749, %v2700
        %v2841 = vadd.f32 %v1750, %v2705
        %v2842 = vadd.f32 %v1751, %v2708
        %v2843 = vadd.f32 %v1752, %v2713
        %v2844 = vadd.f32 %v1753, %v2716
        %v2845 = vadd.f32 %v1754, %v2721
        %v2846 = vadd.f32 %v1755, %v2724
        %v2847 = vadd.f32 %v1756, %v2729
        %v2848 = vadd.f32 %v1757, %v2732
        %v2849 = vadd.f32 %v1758, %v2737
        %v2850 = vadd.f32 %v1759, %v2740
        %v2851 = vadd.f32 %v1760, %v2745
        %v2852 = vadd.f32 %v1761, %v2748
        %v2853 = vadd.f32 %v1762, %v2753
        %v2854 = vadd.f32 %v1763, %v2756
        %v2855 = vadd.f32 %v1764, %v2761
        %v2856 = vadd.f32 %v1765, %v2764
        %v2857 = vadd.f32 %v1766, %v2769
        %v2858 = vadd.f32 %v1767, %v2772
        %v2859 = vadd.f32 %v1768, %v2777
        %v2860 = vadd.f32 %v1769, %v2780
        %v2861 = vadd.f32 %v1770, %v2785
        %v2862 = vadd.f32 %v1771, %v2788
        %v2863 = vadd.f32 %v1772, %v2793
        %v2864 = vadd.f32 %v1773, %v2796
        %v2865 = vadd.f32 %v1774, %v2801
        %v2866 = vadd.f32 %v1775, %v2804
        %v2867 = vadd.f32 %v1776, %v2809
        %v2868 = vadd.f32 %v1777, %v2812
        %v2870 = vshrl.u32 %v541, 16
        %v2872 = vrot.slane %v2870, 4
        %v2873 = vshll.u32 %v541, 16
        %v2875 = vrot.slane %v2873, 5
        %v2876 = vor.u32 %v2872, %v2875
        %v2877 = vrot.slane %v2876, 4
        %v2879 = vshll.u32 %v542, 16
        %v2881 = vrot.slane %v2879, 5
        %v2882 = vsel %vm1780, %v2877, %v2881
        %v2883 = vshrl.u32 %v542, 16
        %v2885 = vrot.slane %v2883, 4
        %v2886 = vor.u32 %v2885, %v2881
        %v2887 = vrot.slane %v2886, 4
        %v2889 = vshll.u32 %v543, 16
        %v2891 = vrot.slane %v2889, 5
        %v2892 = vsel %vm1780, %v2887, %v2891
        %v2893 = vshrl.u32 %v543, 16
        %v2895 = vrot.slane %v2893, 4
        %v2896 = vor.u32 %v2895, %v2891
        %v2897 = vrot.slane %v2896, 4
        %v2899 = vshll.u32 %v544, 16
        %v2901 = vrot.slane %v2899, 5
        %v2902 = vsel %vm1780, %v2897, %v2901
        %s2903 = scalar_lea.vmem [#allocation6], 256
        %v2904 = vld [vmem:[%s2903] sm:$0xf]
        %v2905 = vld [vmem:[%s2903 + $0x4] sm:$0xf]
        %v2906 = vld [vmem:[%s2903 + $0x8] sm:$0xf]
        %v2907 = vld [vmem:[%s2903 + $0xc] sm:$0xf]
        %v2908 = vld [vmem:[%s2903 + $0x10] sm:$0xf]
        %v2909 = vld [vmem:[%s2903 + $0x14] sm:$0xf]
        %v2910 = vld [vmem:[%s2903 + $0x18] sm:$0xf]
        %v2911 = vld [vmem:[%s2903 + $0x1c] sm:$0xf]
        %v2912 = vld [vmem:[%s2903 + $0x20] sm:$0xf]
        %v2913 = vld [vmem:[%s2903 + $0x24] sm:$0xf]
        %v2914 = vld [vmem:[%s2903 + $0x28] sm:$0xf]
        %v2915 = vld [vmem:[%s2903 + $0x2c] sm:$0xf]
        %v2916 = vld [vmem:[%s2903 + $0x30] sm:$0xf]
        %v2917 = vld [vmem:[%s2903 + $0x34] sm:$0xf]
        %v2918 = vld [vmem:[%s2903 + $0x38] sm:$0xf]
        %v2919 = vld [vmem:[%s2903 + $0x3c] sm:$0xf]
        %v2920 = vunpack.c.l.b16 %v2882
        %v2921 = vunpack.c.l.b16 %v2892
        %v2922 = vunpack.c.l.b16 %v2902
        %v2923 = vpack.c.b16 %v2414, %v2413
        %v2924 = vpack.c.b16 %v2416, %v2415
        %v2925 = vpack.c.b16 %v2418, %v2417
        %v2926 = vpack.c.b16 %v2420, %v2419
        %v2927 = vpack.c.b16 %v2422, %v2421
        %v2928 = vpack.c.b16 %v2424, %v2423
        %v2929 = vpack.c.b16 %v2426, %v2425
        %v2930 = vpack.c.b16 %v2428, %v2427
        %v2931 = vpack.c.b16 %v2430, %v2429
        %v2932 = vpack.c.b16 %v2432, %v2431
        %v2933 = vpack.c.b16 %v2434, %v2433
        %v2934 = vpack.c.b16 %v2436, %v2435
        %v2935 = vpack.c.b16 %v2438, %v2437
        %v2936 = vpack.c.b16 %v2440, %v2439
        %v2937 = vpack.c.b16 %v2442, %v2441
        %v2938 = vpack.c.b16 %v2444, %v2443
        %v2939 = vpack.c.b16 %v2446, %v2445
        %v2940 = vpack.c.b16 %v2448, %v2447
        %v2941 = vpack.c.b16 %v2450, %v2449
        %v2942 = vpack.c.b16 %v2452, %v2451
        %v2943 = vpack.c.b16 %v2454, %v2453
        %v2944 = vpack.c.b16 %v2456, %v2455
        %v2945 = vpack.c.b16 %v2458, %v2457
        %v2946 = vpack.c.b16 %v2460, %v2459
        %v2947 = vpack.c.b16 %v2462, %v2461
        %v2948 = vpack.c.b16 %v2920, %v2463
        %v2949 = vpack.c.b16 %v2922, %v2921
        %v2993 = vunpack.c.l.b16 %v2904
        %v2994 = vunpack.c.l.b16 %v2905
        %v2995 = vunpack.c.l.b16 %v2906
        %v2996 = vunpack.c.l.b16 %v2907
        %v2997 = vunpack.c.l.b16 %v2908
        %v2998 = vunpack.c.l.b16 %v2909
        %v2999 = vunpack.c.l.b16 %v2910
        %v3000 = vunpack.c.l.b16 %v2911
        %v3001 = vunpack.c.l.b16 %v2912
        %v3002 = vunpack.c.l.b16 %v2913
        %v3003 = vunpack.c.l.b16 %v2914
        %v3004 = vunpack.c.l.b16 %v2915
        %v3005 = vunpack.c.l.b16 %v2916
        %v3006 = vunpack.c.l.b16 %v2917
        %v3007 = vunpack.c.l.b16 %v2918
        %v3008 = vunpack.c.l.b16 %v2919
        %v3009 = vpack.c.b16 %v2994, %v2993
        %v3010 = vpack.c.b16 %v2996, %v2995
        %v3011 = vpack.c.b16 %v2998, %v2997
        %v3012 = vpack.c.b16 %v3000, %v2999
        %v3013 = vpack.c.b16 %v3002, %v3001
        %v3014 = vpack.c.b16 %v3004, %v3003
        %v3015 = vpack.c.b16 %v3006, %v3005
        %v3016 = vpack.c.b16 %v3008, %v3007
        %3025 = vmatprep.subr.bf16.mxu0 0
        %3026 = vmatpush1.bf16.msra.mxu0 %v3009
        %3027 = vmatprep.subr.bf16.mxu0 0
        %3028 = vmatpush1.bf16.msra.mxu0 %v3010
        %3029 = vmatprep.subr.bf16.mxu0 0
        %3030 = vmatpush1.bf16.msra.mxu0 %v3011
        %3031 = vmatprep.subr.bf16.mxu0 0
        %3032 = vmatpush1.bf16.msra.mxu0 %v3012
        %3033 = vmatprep.subr.bf16.mxu0 0
        %3034 = vmatpush1.bf16.msra.mxu0 %v3013
        %3035 = vmatprep.subr.bf16.mxu0 0
        %3036 = vmatpush1.bf16.msra.mxu0 %v3014
        %3037 = vmatprep.subr.bf16.mxu0 0
        %3038 = vmatpush1.bf16.msra.mxu0 %v3015
        %3039 = vmatprep.subr.bf16.mxu0 0
        %3040 = vmatpush1.bf16.msra.mxu0 %v3016
        %3041 = vmatprep.subr.bf16.mxu0 0
        %3042 = vmatpush1.bf16.msra.mxu0 0
        %3043 = vmatprep.subr.bf16.mxu0 0
        %3044 = vmatpush1.bf16.msra.mxu0 0
        %3045 = vmatprep.subr.bf16.mxu0 0
        %3046 = vmatpush1.bf16.msra.mxu0 0
        %3047 = vmatprep.subr.bf16.mxu0 0
        %3048 = vmatpush1.bf16.msra.mxu0 0
        %3049 = vmatprep.subr.bf16.mxu0 0
        %3050 = vmatpush1.bf16.msra.mxu0 0
        %3051 = vmatprep.subr.bf16.mxu0 0
        %3052 = vmatpush1.bf16.msra.mxu0 0
        %3053 = vmatprep.subr.bf16.mxu0 0
        %3054 = vmatpush1.bf16.msra.mxu0 0
        %3055 = vmatprep.subr.bf16.mxu0 0
        %3056 = vmatpush1.bf16.msra.mxu0 0
        %3057 = vmatprep.mubr.bf16.mxu0 0
        %3058 = vmatmul.mubr.bf16.gmra.mrb[0].mxu0 %v2923
        %v3059 = vpop.f32.mrb[0].mxu0
        %v3060 = vadd.f32 0.0, %v3059
        %v3061 = vpop.f32.mrb[0].mxu0
        %v3062 = vpop.f32.mrb[0].mxu0
        %v3063 = vadd.f32 0.0, %v3062
        %v3064 = vpop.f32.mrb[0].mxu0
        %3065 = vmatprep.mubr.bf16.mxu0 0
        %3066 = vmatmul.mubr.bf16.gmra.mrb[0].mxu0 %v2924
        %v3067 = vpop.f32.mrb[0].mxu0
        %v3068 = vadd.f32 0.0, %v3067
        %v3069 = vpop.f32.mrb[0].mxu0
        %v3070 = vpop.f32.mrb[0].mxu0
        %v3071 = vadd.f32 0.0, %v3070
        %v3072 = vpop.f32.mrb[0].mxu0
        %3073 = vmatprep.mubr.bf16.mxu0 0
        %3074 = vmatmul.mubr.bf16.gmra.mrb[0].mxu0 %v2925
        %v3075 = vpop.f32.mrb[0].mxu0
        %v3076 = vadd.f32 0.0, %v3075
        %v3077 = vpop.f32.mrb[0].mxu0
        %v3078 = vpop.f32.mrb[0].mxu0
        %v3079 = vadd.f32 0.0, %v3078
        %v3080 = vpop.f32.mrb[0].mxu0
        %3081 = vmatprep.mubr.bf16.mxu0 0
        %3082 = vmatmul.mubr.bf16.gmra.mrb[0].mxu0 %v2926
        %v3083 = vpop.f32.mrb[0].mxu0
        %v3084 = vadd.f32 0.0, %v3083
        %v3085 = vpop.f32.mrb[0].mxu0
        %v3086 = vpop.f32.mrb[0].mxu0
        %v3087 = vadd.f32 0.0, %v3086
        %v3088 = vpop.f32.mrb[0].mxu0
        %3089 = vmatprep.mubr.bf16.mxu0 0
        %3090 = vmatmul.mubr.bf16.gmra.mrb[0].mxu0 %v2927
        %v3091 = vpop.f32.mrb[0].mxu0
        %v3092 = vadd.f32 0.0, %v3091
        %v3093 = vpop.f32.mrb[0].mxu0
        %v3094 = vpop.f32.mrb[0].mxu0
        %v3095 = vadd.f32 0.0, %v3094
        %v3096 = vpop.f32.mrb[0].mxu0
        %3097 = vmatprep.mubr.bf16.mxu0 0
        %3098 = vmatmul.mubr.bf16.gmra.mrb[0].mxu0 %v2928
        %v3099 = vpop.f32.mrb[0].mxu0
        %v3100 = vadd.f32 0.0, %v3099
        %v3101 = vpop.f32.mrb[0].mxu0
        %v3102 = vpop.f32.mrb[0].mxu0
        %v3103 = vadd.f32 0.0, %v3102
        %v3104 = vpop.f32.mrb[0].mxu0
        %3105 = vmatprep.mubr.bf16.mxu0 0
        %3106 = vmatmul.mubr.bf16.gmra.mrb[0].mxu0 %v2929
        %v3107 = vpop.f32.mrb[0].mxu0
        %v3108 = vadd.f32 0.0, %v3107
        %v3109 = vpop.f32.mrb[0].mxu0
        %v3110 = vpop.f32.mrb[0].mxu0
        %v3111 = vadd.f32 0.0, %v3110
        %v3112 = vpop.f32.mrb[0].mxu0
        %3113 = vmatprep.mubr.bf16.mxu0 0
        %3114 = vmatmul.mubr.bf16.gmra.mrb[0].mxu0 %v2930
        %v3115 = vpop.f32.mrb[0].mxu0
        %v3116 = vadd.f32 0.0, %v3115
        %v3117 = vpop.f32.mrb[0].mxu0
        %v3118 = vpop.f32.mrb[0].mxu0
        %v3119 = vadd.f32 0.0, %v3118
        %v3120 = vpop.f32.mrb[0].mxu0
        %3121 = vmatprep.mubr.bf16.mxu0 0
        %3122 = vmatmul.mubr.bf16.gmra.mrb[0].mxu0 %v2931
        %v3123 = vpop.f32.mrb[0].mxu0
        %v3124 = vadd.f32 0.0, %v3123
        %v3125 = vpop.f32.mrb[0].mxu0
        %v3126 = vpop.f32.mrb[0].mxu0
        %v3127 = vadd.f32 0.0, %v3126
        %v3128 = vpop.f32.mrb[0].mxu0
        %3129 = vmatprep.mubr.bf16.mxu0 0
        %3130 = vmatmul.mubr.bf16.gmra.mrb[0].mxu0 %v2932
        %v3131 = vpop.f32.mrb[0].mxu0
        %v3132 = vadd.f32 0.0, %v3131
        %v3133 = vpop.f32.mrb[0].mxu0
        %v3134 = vpop.f32.mrb[0].mxu0
        %v3135 = vadd.f32 0.0, %v3134
        %v3136 = vpop.f32.mrb[0].mxu0
        %3137 = vmatprep.mubr.bf16.mxu0 0
        %3138 = vmatmul.mubr.bf16.gmra.mrb[0].mxu0 %v2933
        %v3139 = vpop.f32.mrb[0].mxu0
        %v3140 = vadd.f32 0.0, %v3139
        %v3141 = vpop.f32.mrb[0].mxu0
        %v3142 = vpop.f32.mrb[0].mxu0
        %v3143 = vadd.f32 0.0, %v3142
        %v3144 = vpop.f32.mrb[0].mxu0
        %3145 = vmatprep.mubr.bf16.mxu0 0
        %3146 = vmatmul.mubr.bf16.gmra.mrb[0].mxu0 %v2934
        %v3147 = vpop.f32.mrb[0].mxu0
        %v3148 = vadd.f32 0.0, %v3147
        %v3149 = vpop.f32.mrb[0].mxu0
        %v3150 = vpop.f32.mrb[0].mxu0
        %v3151 = vadd.f32 0.0, %v3150
        %v3152 = vpop.f32.mrb[0].mxu0
        %3153 = vmatprep.mubr.bf16.mxu0 0
        %3154 = vmatmul.mubr.bf16.gmra.mrb[0].mxu0 %v2935
        %v3155 = vpop.f32.mrb[0].mxu0
        %v3156 = vadd.f32 0.0, %v3155
        %v3157 = vpop.f32.mrb[0].mxu0
        %v3158 = vpop.f32.mrb[0].mxu0
        %v3159 = vadd.f32 0.0, %v3158
        %v3160 = vpop.f32.mrb[0].mxu0
        %3161 = vmatprep.mubr.bf16.mxu0 0
        %3162 = vmatmul.mubr.bf16.gmra.mrb[0].mxu0 %v2936
        %v3163 = vpop.f32.mrb[0].mxu0
        %v3164 = vadd.f32 0.0, %v3163
        %v3165 = vpop.f32.mrb[0].mxu0
        %v3166 = vpop.f32.mrb[0].mxu0
        %v3167 = vadd.f32 0.0, %v3166
        %v3168 = vpop.f32.mrb[0].mxu0
        %3169 = vmatprep.mubr.bf16.mxu0 0
        %3170 = vmatmul.mubr.bf16.gmra.mrb[0].mxu0 %v2937
        %v3171 = vpop.f32.mrb[0].mxu0
        %v3172 = vadd.f32 0.0, %v3171
        %v3173 = vpop.f32.mrb[0].mxu0
        %v3174 = vpop.f32.mrb[0].mxu0
        %v3175 = vadd.f32 0.0, %v3174
        %v3176 = vpop.f32.mrb[0].mxu0
        %3177 = vmatprep.mubr.bf16.mxu0 0
        %3178 = vmatmul.mubr.bf16.gmra.mrb[0].mxu0 %v2938
        %v3179 = vpop.f32.mrb[0].mxu0
        %v3180 = vadd.f32 0.0, %v3179
        %v3181 = vpop.f32.mrb[0].mxu0
        %v3182 = vpop.f32.mrb[0].mxu0
        %v3183 = vadd.f32 0.0, %v3182
        %v3184 = vpop.f32.mrb[0].mxu0
        %3185 = vmatprep.mubr.bf16.mxu0 0
        %3186 = vmatmul.mubr.bf16.gmra.mrb[0].mxu0 %v2939
        %v3187 = vpop.f32.mrb[0].mxu0
        %v3188 = vadd.f32 0.0, %v3187
        %v3189 = vpop.f32.mrb[0].mxu0
        %v3190 = vpop.f32.mrb[0].mxu0
        %v3191 = vadd.f32 0.0, %v3190
        %v3192 = vpop.f32.mrb[0].mxu0
        %3193 = vmatprep.mubr.bf16.mxu0 0
        %3194 = vmatmul.mubr.bf16.gmra.mrb[0].mxu0 %v2940
        %v3195 = vpop.f32.mrb[0].mxu0
        %v3196 = vadd.f32 0.0, %v3195
        %v3197 = vpop.f32.mrb[0].mxu0
        %v3198 = vpop.f32.mrb[0].mxu0
        %v3199 = vadd.f32 0.0, %v3198
        %v3200 = vpop.f32.mrb[0].mxu0
        %3201 = vmatprep.mubr.bf16.mxu0 0
        %3202 = vmatmul.mubr.bf16.gmra.mrb[0].mxu0 %v2941
        %v3203 = vpop.f32.mrb[0].mxu0
        %v3204 = vadd.f32 0.0, %v3203
        %v3205 = vpop.f32.mrb[0].mxu0
        %v3206 = vpop.f32.mrb[0].mxu0
        %v3207 = vadd.f32 0.0, %v3206
        %v3208 = vpop.f32.mrb[0].mxu0
        %3209 = vmatprep.mubr.bf16.mxu0 0
        %3210 = vmatmul.mubr.bf16.gmra.mrb[0].mxu0 %v2942
        %v3211 = vpop.f32.mrb[0].mxu0
        %v3212 = vadd.f32 0.0, %v3211
        %v3213 = vpop.f32.mrb[0].mxu0
        %v3214 = vpop.f32.mrb[0].mxu0
        %v3215 = vadd.f32 0.0, %v3214
        %v3216 = vpop.f32.mrb[0].mxu0
        %3217 = vmatprep.mubr.bf16.mxu0 0
        %3218 = vmatmul.mubr.bf16.gmra.mrb[0].mxu0 %v2943
        %v3219 = vpop.f32.mrb[0].mxu0
        %v3220 = vadd.f32 0.0, %v3219
        %v3221 = vpop.f32.mrb[0].mxu0
        %v3222 = vpop.f32.mrb[0].mxu0
        %v3223 = vadd.f32 0.0, %v3222
        %v3224 = vpop.f32.mrb[0].mxu0
        %3225 = vmatprep.mubr.bf16.mxu0 0
        %3226 = vmatmul.mubr.bf16.gmra.mrb[0].mxu0 %v2944
        %v3227 = vpop.f32.mrb[0].mxu0
        %v3228 = vadd.f32 0.0, %v3227
        %v3229 = vpop.f32.mrb[0].mxu0
        %v3230 = vpop.f32.mrb[0].mxu0
        %v3231 = vadd.f32 0.0, %v3230
        %v3232 = vpop.f32.mrb[0].mxu0
        %3233 = vmatprep.mubr.bf16.mxu0 0
        %3234 = vmatmul.mubr.bf16.gmra.mrb[0].mxu0 %v2945
        %v3235 = vpop.f32.mrb[0].mxu0
        %v3236 = vadd.f32 0.0, %v3235
        %v3237 = vpop.f32.mrb[0].mxu0
        %v3238 = vpop.f32.mrb[0].mxu0
        %v3239 = vadd.f32 0.0, %v3238
        %v3240 = vpop.f32.mrb[0].mxu0
        %3241 = vmatprep.mubr.bf16.mxu0 0
        %3242 = vmatmul.mubr.bf16.gmra.mrb[0].mxu0 %v2946
        %v3243 = vpop.f32.mrb[0].mxu0
        %v3244 = vadd.f32 0.0, %v3243
        %v3245 = vpop.f32.mrb[0].mxu0
        %v3246 = vpop.f32.mrb[0].mxu0
        %v3247 = vadd.f32 0.0, %v3246
        %v3248 = vpop.f32.mrb[0].mxu0
        %3249 = vmatprep.mubr.bf16.mxu0 0
        %3250 = vmatmul.mubr.bf16.gmra.mrb[0].mxu0 %v2947
        %v3251 = vpop.f32.mrb[0].mxu0
        %v3252 = vadd.f32 0.0, %v3251
        %v3253 = vpop.f32.mrb[0].mxu0
        %v3254 = vpop.f32.mrb[0].mxu0
        %v3255 = vadd.f32 0.0, %v3254
        %v3256 = vpop.f32.mrb[0].mxu0
        %3257 = vmatprep.mubr.bf16.mxu0 0
        %3258 = vmatmul.mubr.bf16.gmra.mrb[0].mxu0 %v2948
        %v3259 = vpop.f32.mrb[0].mxu0
        %v3260 = vadd.f32 0.0, %v3259
        %v3261 = vpop.f32.mrb[0].mxu0
        %v3262 = vpop.f32.mrb[0].mxu0
        %v3263 = vadd.f32 0.0, %v3262
        %v3264 = vpop.f32.mrb[0].mxu0
        %3265 = vmatprep.mubr.bf16.mxu0 0
        %3266 = vmatmul.mubr.bf16.gmra.mrb[0].mxu0 %v2949
        %v3267 = vpop.f32.mrb[0].mxu0
        %v3268 = vadd.f32 0.0, %v3267
        %v3269 = vpop.f32.mrb[0].mxu0
        %v3270 = vpop.f32.mrb[0].mxu0
        %v3271 = vadd.f32 0.0, %v3270
        %v3272 = vpop.f32.mrb[0].mxu0
        %3273 = vdwg.mxu0
        %v3274 = vadd.f32 %v2815, %v3060
        %v3275 = vadd.f32 %v2816, %v3063
        %v3276 = vadd.f32 %v2817, %v3068
        %v3277 = vadd.f32 %v2818, %v3071
        %v3278 = vadd.f32 %v2819, %v3076
        %v3279 = vadd.f32 %v2820, %v3079
        %v3280 = vadd.f32 %v2821, %v3084
        %v3281 = vadd.f32 %v2822, %v3087
        %v3282 = vadd.f32 %v2823, %v3092
        %v3283 = vadd.f32 %v2824, %v3095
        %v3284 = vadd.f32 %v2825, %v3100
        %v3285 = vadd.f32 %v2826, %v3103
        %v3286 = vadd.f32 %v2827, %v3108
        %v3287 = vadd.f32 %v2828, %v3111
        %v3288 = vadd.f32 %v2829, %v3116
        %v3289 = vadd.f32 %v2830, %v3119
        %v3290 = vadd.f32 %v2831, %v3124
        %v3291 = vadd.f32 %v2832, %v3127
        %v3292 = vadd.f32 %v2833, %v3132
        %v3293 = vadd.f32 %v2834, %v3135
        %v3294 = vadd.f32 %v2835, %v3140
        %v3295 = vadd.f32 %v2836, %v3143
        %v3296 = vadd.f32 %v2837, %v3148
        %v3297 = vadd.f32 %v2838, %v3151
        %v3298 = vadd.f32 %v2839, %v3156
        %v3299 = vadd.f32 %v2840, %v3159
        %v3300 = vadd.f32 %v2841, %v3164
        %v3301 = vadd.f32 %v2842, %v3167
        %v3302 = vadd.f32 %v2843, %v3172
        %v3303 = vadd.f32 %v2844, %v3175
        %v3304 = vadd.f32 %v2845, %v3180
        %v3305 = vadd.f32 %v2846, %v3183
        %v3306 = vadd.f32 %v2847, %v3188
        %v3307 = vadd.f32 %v2848, %v3191
        %v3308 = vadd.f32 %v2849, %v3196
        %v3309 = vadd.f32 %v2850, %v3199
        %v3310 = vadd.f32 %v2851, %v3204
        %v3311 = vadd.f32 %v2852, %v3207
        %v3312 = vadd.f32 %v2853, %v3212
        %v3313 = vadd.f32 %v2854, %v3215
        %v3314 = vadd.f32 %v2855, %v3220
        %v3315 = vadd.f32 %v2856, %v3223
        %v3316 = vadd.f32 %v2857, %v3228
        %v3317 = vadd.f32 %v2858, %v3231
        %v3318 = vadd.f32 %v2859, %v3236
        %v3319 = vadd.f32 %v2860, %v3239
        %v3320 = vadd.f32 %v2861, %v3244
        %v3321 = vadd.f32 %v2862, %v3247
        %v3322 = vadd.f32 %v2863, %v3252
        %v3323 = vadd.f32 %v2864, %v3255
        %v3324 = vadd.f32 %v2865, %v3260
        %v3325 = vadd.f32 %v2866, %v3263
        %v3326 = vadd.f32 %v2867, %v3268
        %v3327 = vadd.f32 %v2868, %v3271
        %v3329 = vshrl.u32 %v545, 16
        %v3331 = vrot.slane %v3329, 4
        %v3332 = vshll.u32 %v545, 16
        %v3334 = vrot.slane %v3332, 5
        %v3335 = vor.u32 %v3331, %v3334
        %v3336 = vrot.slane %v3335, 4
        %v3338 = vshll.u32 %v546, 16
        %v3340 = vrot.slane %v3338, 5
        %v3341 = vsel %vm1780, %v3336, %v3340
        %v3342 = vshrl.u32 %v546, 16
        %v3344 = vrot.slane %v3342, 4
        %v3345 = vor.u32 %v3344, %v3340
        %v3346 = vrot.slane %v3345, 4
        %v3348 = vshll.u32 %v547, 16
        %v3350 = vrot.slane %v3348, 5
        %v3351 = vsel %vm1780, %v3346, %v3350
        %v3352 = vshrl.u32 %v547, 16
        %v3354 = vrot.slane %v3352, 4
        %v3355 = vor.u32 %v3354, %v3350
        %v3356 = vrot.slane %v3355, 4
        %v3358 = vshll.u32 %v548, 16
        %v3360 = vrot.slane %v3358, 5
        %v3361 = vsel %vm1780, %v3356, %v3360
        %s3362 = scalar_lea.vmem [#allocation6], 448
        %v3363 = vld [vmem:[%s3362] sm:$0xf]
        %v3364 = vld [vmem:[%s3362 + $0x4] sm:$0xf]
        %v3365 = vld [vmem:[%s3362 + $0x8] sm:$0xf]
        %v3366 = vld [vmem:[%s3362 + $0xc] sm:$0xf]
        %v3367 = vld [vmem:[%s3362 + $0x10] sm:$0xf]
        %v3368 = vld [vmem:[%s3362 + $0x14] sm:$0xf]
        %v3369 = vld [vmem:[%s3362 + $0x18] sm:$0xf]
        %v3370 = vld [vmem:[%s3362 + $0x1c] sm:$0xf]
        %v3371 = vld [vmem:[%s3362 + $0x20] sm:$0xf]
        %v3372 = vld [vmem:[%s3362 + $0x24] sm:$0xf]
        %v3373 = vld [vmem:[%s3362 + $0x28] sm:$0xf]
        %v3374 = vld [vmem:[%s3362 + $0x2c] sm:$0xf]
        %v3375 = vld [vmem:[%s3362 + $0x30] sm:$0xf]
        %v3376 = vld [vmem:[%s3362 + $0x34] sm:$0xf]
        %v3377 = vld [vmem:[%s3362 + $0x38] sm:$0xf]
        %v3378 = vld [vmem:[%s3362 + $0x3c] sm:$0xf]
        %v3379 = vunpack.c.l.b16 %v3341
        %v3380 = vunpack.c.l.b16 %v3351
        %v3381 = vunpack.c.l.b16 %v3361
        %v3382 = vpack.c.b16 %v2921, %v2920
        %v3383 = vpack.c.b16 %v3379, %v2922
        %v3384 = vpack.c.b16 %v3381, %v3380
        %v3404 = vunpack.c.l.b16 %v3363
        %v3405 = vunpack.c.l.b16 %v3364
        %v3406 = vunpack.c.l.b16 %v3365
        %v3407 = vunpack.c.l.b16 %v3366
        %v3408 = vunpack.c.l.b16 %v3367
        %v3409 = vunpack.c.l.b16 %v3368
        %v3410 = vunpack.c.l.b16 %v3369
        %v3411 = vunpack.c.l.b16 %v3370
        %v3412 = vunpack.c.l.b16 %v3371
        %v3413 = vunpack.c.l.b16 %v3372
        %v3414 = vunpack.c.l.b16 %v3373
        %v3415 = vunpack.c.l.b16 %v3374
        %v3416 = vunpack.c.l.b16 %v3375
        %v3417 = vunpack.c.l.b16 %v3376
        %v3418 = vunpack.c.l.b16 %v3377
        %v3419 = vunpack.c.l.b16 %v3378
        %v3420 = vpack.c.b16 %v3405, %v3404
        %v3421 = vpack.c.b16 %v3407, %v3406
        %v3422 = vpack.c.b16 %v3409, %v3408
        %v3423 = vpack.c.b16 %v3411, %v3410
        %v3424 = vpack.c.b16 %v3413, %v3412
        %v3425 = vpack.c.b16 %v3415, %v3414
        %v3426 = vpack.c.b16 %v3417, %v3416
        %v3427 = vpack.c.b16 %v3419, %v3418
        %3436 = vmatprep.subr.bf16.mxu0 0
        %3437 = vmatpush1.bf16.msra.mxu0 %v3420
        %3438 = vmatprep.subr.bf16.mxu0 0
        %3439 = vmatpush1.bf16.msra.mxu0 %v3421
        %3440 = vmatprep.subr.bf16.mxu0 0
        %3441 = vmatpush1.bf16.msra.mxu0 %v3422
        %3442 = vmatprep.subr.bf16.mxu0 0
        %3443 = vmatpush1.bf16.msra.mxu0 %v3423
        %3444 = vmatprep.subr.bf16.mxu0 0
        %3445 = vmatpush1.bf16.msra.mxu0 %v3424
        %3446 = vmatprep.subr.bf16.mxu0 0
        %3447 = vmatpush1.bf16.msra.mxu0 %v3425
        %3448 = vmatprep.subr.bf16.mxu0 0
        %3449 = vmatpush1.bf16.msra.mxu0 %v3426
        %3450 = vmatprep.subr.bf16.mxu0 0
        %3451 = vmatpush1.bf16.msra.mxu0 %v3427
        %3452 = vmatprep.subr.bf16.mxu0 0
        %3453 = vmatpush1.bf16.msra.mxu0 0
        %3454 = vmatprep.subr.bf16.mxu0 0
        %3455 = vmatpush1.bf16.msra.mxu0 0
        %3456 = vmatprep.subr.bf16.mxu0 0
        %3457 = vmatpush1.bf16.msra.mxu0 0
        %3458 = vmatprep.subr.bf16.mxu0 0
        %3459 = vmatpush1.bf16.msra.mxu0 0
        %3460 = vmatprep.subr.bf16.mxu0 0
        %3461 = vmatpush1.bf16.msra.mxu0 0
        %3462 = vmatprep.subr.bf16.mxu0 0
        %3463 = vmatpush1.bf16.msra.mxu0 0
        %3464 = vmatprep.subr.bf16.mxu0 0
        %3465 = vmatpush1.bf16.msra.mxu0 0
        %3466 = vmatprep.subr.bf16.mxu0 0
        %3467 = vmatpush1.bf16.msra.mxu0 0
        %3468 = vmatprep.mubr.bf16.mxu0 0
        %3469 = vmatmul.mubr.bf16.gmra.mrb[0].mxu0 %v2467
        %v3470 = vpop.f32.mrb[0].mxu0
        %v3471 = vadd.f32 0.0, %v3470
        %v3472 = vpop.f32.mrb[0].mxu0
        %v3473 = vpop.f32.mrb[0].mxu0
        %v3474 = vadd.f32 0.0, %v3473
        %v3475 = vpop.f32.mrb[0].mxu0
        %3476 = vmatprep.mubr.bf16.mxu0 0
        %3477 = vmatmul.mubr.bf16.gmra.mrb[0].mxu0 %v2468
        %v3478 = vpop.f32.mrb[0].mxu0
        %v3479 = vadd.f32 0.0, %v3478
        %v3480 = vpop.f32.mrb[0].mxu0
        %v3481 = vpop.f32.mrb[0].mxu0
        %v3482 = vadd.f32 0.0, %v3481
        %v3483 = vpop.f32.mrb[0].mxu0
        %3484 = vmatprep.mubr.bf16.mxu0 0
        %3485 = vmatmul.mubr.bf16.gmra.mrb[0].mxu0 %v2469
        %v3486 = vpop.f32.mrb[0].mxu0
        %v3487 = vadd.f32 0.0, %v3486
        %v3488 = vpop.f32.mrb[0].mxu0
        %v3489 = vpop.f32.mrb[0].mxu0
        %v3490 = vadd.f32 0.0, %v3489
        %v3491 = vpop.f32.mrb[0].mxu0
        %3492 = vmatprep.mubr.bf16.mxu0 0
        %3493 = vmatmul.mubr.bf16.gmra.mrb[0].mxu0 %v2470
        %v3494 = vpop.f32.mrb[0].mxu0
        %v3495 = vadd.f32 0.0, %v3494
        %v3496 = vpop.f32.mrb[0].mxu0
        %v3497 = vpop.f32.mrb[0].mxu0
        %v3498 = vadd.f32 0.0, %v3497
        %v3499 = vpop.f32.mrb[0].mxu0
        %3500 = vmatprep.mubr.bf16.mxu0 0
        %3501 = vmatmul.mubr.bf16.gmra.mrb[0].mxu0 %v2471
        %v3502 = vpop.f32.mrb[0].mxu0
        %v3503 = vadd.f32 0.0, %v3502
        %v3504 = vpop.f32.mrb[0].mxu0
        %v3505 = vpop.f32.mrb[0].mxu0
        %v3506 = vadd.f32 0.0, %v3505
        %v3507 = vpop.f32.mrb[0].mxu0
        %3508 = vmatprep.mubr.bf16.mxu0 0
        %3509 = vmatmul.mubr.bf16.gmra.mrb[0].mxu0 %v2472
        %v3510 = vpop.f32.mrb[0].mxu0
        %v3511 = vadd.f32 0.0, %v3510
        %v3512 = vpop.f32.mrb[0].mxu0
        %v3513 = vpop.f32.mrb[0].mxu0
        %v3514 = vadd.f32 0.0, %v3513
        %v3515 = vpop.f32.mrb[0].mxu0
        %3516 = vmatprep.mubr.bf16.mxu0 0
        %3517 = vmatmul.mubr.bf16.gmra.mrb[0].mxu0 %v2473
        %v3518 = vpop.f32.mrb[0].mxu0
        %v3519 = vadd.f32 0.0, %v3518
        %v3520 = vpop.f32.mrb[0].mxu0
        %v3521 = vpop.f32.mrb[0].mxu0
        %v3522 = vadd.f32 0.0, %v3521
        %v3523 = vpop.f32.mrb[0].mxu0
        %3524 = vmatprep.mubr.bf16.mxu0 0
        %3525 = vmatmul.mubr.bf16.gmra.mrb[0].mxu0 %v2474
        %v3526 = vpop.f32.mrb[0].mxu0
        %v3527 = vadd.f32 0.0, %v3526
        %v3528 = vpop.f32.mrb[0].mxu0
        %v3529 = vpop.f32.mrb[0].mxu0
        %v3530 = vadd.f32 0.0, %v3529
        %v3531 = vpop.f32.mrb[0].mxu0
        %3532 = vmatprep.mubr.bf16.mxu0 0
        %3533 = vmatmul.mubr.bf16.gmra.mrb[0].mxu0 %v2475
        %v3534 = vpop.f32.mrb[0].mxu0
        %v3535 = vadd.f32 0.0, %v3534
        %v3536 = vpop.f32.mrb[0].mxu0
        %v3537 = vpop.f32.mrb[0].mxu0
        %v3538 = vadd.f32 0.0, %v3537
        %v3539 = vpop.f32.mrb[0].mxu0
        %3540 = vmatprep.mubr.bf16.mxu0 0
        %3541 = vmatmul.mubr.bf16.gmra.mrb[0].mxu0 %v2476
        %v3542 = vpop.f32.mrb[0].mxu0
        %v3543 = vadd.f32 0.0, %v3542
        %v3544 = vpop.f32.mrb[0].mxu0
        %v3545 = vpop.f32.mrb[0].mxu0
        %v3546 = vadd.f32 0.0, %v3545
        %v3547 = vpop.f32.mrb[0].mxu0
        %3548 = vmatprep.mubr.bf16.mxu0 0
        %3549 = vmatmul.mubr.bf16.gmra.mrb[0].mxu0 %v2477
        %v3550 = vpop.f32.mrb[0].mxu0
        %v3551 = vadd.f32 0.0, %v3550
        %v3552 = vpop.f32.mrb[0].mxu0
        %v3553 = vpop.f32.mrb[0].mxu0
        %v3554 = vadd.f32 0.0, %v3553
        %v3555 = vpop.f32.mrb[0].mxu0
        %3556 = vmatprep.mubr.bf16.mxu0 0
        %3557 = vmatmul.mubr.bf16.gmra.mrb[0].mxu0 %v2478
        %v3558 = vpop.f32.mrb[0].mxu0
        %v3559 = vadd.f32 0.0, %v3558
        %v3560 = vpop.f32.mrb[0].mxu0
        %v3561 = vpop.f32.mrb[0].mxu0
        %v3562 = vadd.f32 0.0, %v3561
        %v3563 = vpop.f32.mrb[0].mxu0
        %3564 = vmatprep.mubr.bf16.mxu0 0
        %3565 = vmatmul.mubr.bf16.gmra.mrb[0].mxu0 %v2479
        %v3566 = vpop.f32.mrb[0].mxu0
        %v3567 = vadd.f32 0.0, %v3566
        %v3568 = vpop.f32.mrb[0].mxu0
        %v3569 = vpop.f32.mrb[0].mxu0
        %v3570 = vadd.f32 0.0, %v3569
        %v3571 = vpop.f32.mrb[0].mxu0
        %3572 = vmatprep.mubr.bf16.mxu0 0
        %3573 = vmatmul.mubr.bf16.gmra.mrb[0].mxu0 %v2480
        %v3574 = vpop.f32.mrb[0].mxu0
        %v3575 = vadd.f32 0.0, %v3574
        %v3576 = vpop.f32.mrb[0].mxu0
        %v3577 = vpop.f32.mrb[0].mxu0
        %v3578 = vadd.f32 0.0, %v3577
        %v3579 = vpop.f32.mrb[0].mxu0
        %3580 = vmatprep.mubr.bf16.mxu0 0
        %3581 = vmatmul.mubr.bf16.gmra.mrb[0].mxu0 %v2481
        %v3582 = vpop.f32.mrb[0].mxu0
        %v3583 = vadd.f32 0.0, %v3582
        %v3584 = vpop.f32.mrb[0].mxu0
        %v3585 = vpop.f32.mrb[0].mxu0
        %v3586 = vadd.f32 0.0, %v3585
        %v3587 = vpop.f32.mrb[0].mxu0
        %3588 = vmatprep.mubr.bf16.mxu0 0
        %3589 = vmatmul.mubr.bf16.gmra.mrb[0].mxu0 %v2482
        %v3590 = vpop.f32.mrb[0].mxu0
        %v3591 = vadd.f32 0.0, %v3590
        %v3592 = vpop.f32.mrb[0].mxu0
        %v3593 = vpop.f32.mrb[0].mxu0
        %v3594 = vadd.f32 0.0, %v3593
        %v3595 = vpop.f32.mrb[0].mxu0
        %3596 = vmatprep.mubr.bf16.mxu0 0
        %3597 = vmatmul.mubr.bf16.gmra.mrb[0].mxu0 %v2483
        %v3598 = vpop.f32.mrb[0].mxu0
        %v3599 = vadd.f32 0.0, %v3598
        %v3600 = vpop.f32.mrb[0].mxu0
        %v3601 = vpop.f32.mrb[0].mxu0
        %v3602 = vadd.f32 0.0, %v3601
        %v3603 = vpop.f32.mrb[0].mxu0
        %3604 = vmatprep.mubr.bf16.mxu0 0
        %3605 = vmatmul.mubr.bf16.gmra.mrb[0].mxu0 %v2484
        %v3606 = vpop.f32.mrb[0].mxu0
        %v3607 = vadd.f32 0.0, %v3606
        %v3608 = vpop.f32.mrb[0].mxu0
        %v3609 = vpop.f32.mrb[0].mxu0
        %v3610 = vadd.f32 0.0, %v3609
        %v3611 = vpop.f32.mrb[0].mxu0
        %3612 = vmatprep.mubr.bf16.mxu0 0
        %3613 = vmatmul.mubr.bf16.gmra.mrb[0].mxu0 %v2485
        %v3614 = vpop.f32.mrb[0].mxu0
        %v3615 = vadd.f32 0.0, %v3614
        %v3616 = vpop.f32.mrb[0].mxu0
        %v3617 = vpop.f32.mrb[0].mxu0
        %v3618 = vadd.f32 0.0, %v3617
        %v3619 = vpop.f32.mrb[0].mxu0
        %3620 = vmatprep.mubr.bf16.mxu0 0
        %3621 = vmatmul.mubr.bf16.gmra.mrb[0].mxu0 %v2486
        %v3622 = vpop.f32.mrb[0].mxu0
        %v3623 = vadd.f32 0.0, %v3622
        %v3624 = vpop.f32.mrb[0].mxu0
        %v3625 = vpop.f32.mrb[0].mxu0
        %v3626 = vadd.f32 0.0, %v3625
        %v3627 = vpop.f32.mrb[0].mxu0
        %3628 = vmatprep.mubr.bf16.mxu0 0
        %3629 = vmatmul.mubr.bf16.gmra.mrb[0].mxu0 %v2487
        %v3630 = vpop.f32.mrb[0].mxu0
        %v3631 = vadd.f32 0.0, %v3630
        %v3632 = vpop.f32.mrb[0].mxu0
        %v3633 = vpop.f32.mrb[0].mxu0
        %v3634 = vadd.f32 0.0, %v3633
        %v3635 = vpop.f32.mrb[0].mxu0
        %3636 = vmatprep.mubr.bf16.mxu0 0
        %3637 = vmatmul.mubr.bf16.gmra.mrb[0].mxu0 %v2488
        %v3638 = vpop.f32.mrb[0].mxu0
        %v3639 = vadd.f32 0.0, %v3638
        %v3640 = vpop.f32.mrb[0].mxu0
        %v3641 = vpop.f32.mrb[0].mxu0
        %v3642 = vadd.f32 0.0, %v3641
        %v3643 = vpop.f32.mrb[0].mxu0
        %3644 = vmatprep.mubr.bf16.mxu0 0
        %3645 = vmatmul.mubr.bf16.gmra.mrb[0].mxu0 %v2489
        %v3646 = vpop.f32.mrb[0].mxu0
        %v3647 = vadd.f32 0.0, %v3646
        %v3648 = vpop.f32.mrb[0].mxu0
        %v3649 = vpop.f32.mrb[0].mxu0
        %v3650 = vadd.f32 0.0, %v3649
        %v3651 = vpop.f32.mrb[0].mxu0
        %3652 = vmatprep.mubr.bf16.mxu0 0
        %3653 = vmatmul.mubr.bf16.gmra.mrb[0].mxu0 %v2490
        %v3654 = vpop.f32.mrb[0].mxu0
        %v3655 = vadd.f32 0.0, %v3654
        %v3656 = vpop.f32.mrb[0].mxu0
        %v3657 = vpop.f32.mrb[0].mxu0
        %v3658 = vadd.f32 0.0, %v3657
        %v3659 = vpop.f32.mrb[0].mxu0
        %3660 = vmatprep.mubr.bf16.mxu0 0
        %3661 = vmatmul.mubr.bf16.gmra.mrb[0].mxu0 %v3382
        %v3662 = vpop.f32.mrb[0].mxu0
        %v3663 = vadd.f32 0.0, %v3662
        %v3664 = vpop.f32.mrb[0].mxu0
        %v3665 = vpop.f32.mrb[0].mxu0
        %v3666 = vadd.f32 0.0, %v3665
        %v3667 = vpop.f32.mrb[0].mxu0
        %3668 = vmatprep.mubr.bf16.mxu0 0
        %3669 = vmatmul.mubr.bf16.gmra.mrb[0].mxu0 %v3383
        %v3670 = vpop.f32.mrb[0].mxu0
        %v3671 = vadd.f32 0.0, %v3670
        %v3672 = vpop.f32.mrb[0].mxu0
        %v3673 = vpop.f32.mrb[0].mxu0
        %v3674 = vadd.f32 0.0, %v3673
        %v3675 = vpop.f32.mrb[0].mxu0
        %3676 = vmatprep.mubr.bf16.mxu0 0
        %3677 = vmatmul.mubr.bf16.gmra.mrb[0].mxu0 %v3384
        %v3678 = vpop.f32.mrb[0].mxu0
        %v3679 = vadd.f32 0.0, %v3678
        %v3680 = vpop.f32.mrb[0].mxu0
        %v3681 = vpop.f32.mrb[0].mxu0
        %v3682 = vadd.f32 0.0, %v3681
        %v3683 = vpop.f32.mrb[0].mxu0
        %3684 = vdwg.mxu0
        %v3685 = vadd.f32 %v3274, %v3471
        %v3686 = vadd.f32 %v3275, %v3474
        %v3687 = vadd.f32 %v3276, %v3479
        %v3688 = vadd.f32 %v3277, %v3482
        %v3689 = vadd.f32 %v3278, %v3487
        %v3690 = vadd.f32 %v3279, %v3490
        %v3691 = vadd.f32 %v3280, %v3495
        %v3692 = vadd.f32 %v3281, %v3498
        %v3693 = vadd.f32 %v3282, %v3503
        %v3694 = vadd.f32 %v3283, %v3506
        %v3695 = vadd.f32 %v3284, %v3511
        %v3696 = vadd.f32 %v3285, %v3514
        %v3697 = vadd.f32 %v3286, %v3519
        %v3698 = vadd.f32 %v3287, %v3522
        %v3699 = vadd.f32 %v3288, %v3527
        %v3700 = vadd.f32 %v3289, %v3530
        %v3701 = vadd.f32 %v3290, %v3535
        %v3702 = vadd.f32 %v3291, %v3538
        %v3703 = vadd.f32 %v3292, %v3543
        %v3704 = vadd.f32 %v3293, %v3546
        %v3705 = vadd.f32 %v3294, %v3551
        %v3706 = vadd.f32 %v3295, %v3554
        %v3707 = vadd.f32 %v3296, %v3559
        %v3708 = vadd.f32 %v3297, %v3562
        %v3709 = vadd.f32 %v3298, %v3567
        %v3710 = vadd.f32 %v3299, %v3570
        %v3711 = vadd.f32 %v3300, %v3575
        %v3712 = vadd.f32 %v3301, %v3578
        %v3713 = vadd.f32 %v3302, %v3583
        %v3714 = vadd.f32 %v3303, %v3586
        %v3715 = vadd.f32 %v3304, %v3591
        %v3716 = vadd.f32 %v3305, %v3594
        %v3717 = vadd.f32 %v3306, %v3599
        %v3718 = vadd.f32 %v3307, %v3602
        %v3719 = vadd.f32 %v3308, %v3607
        %v3720 = vadd.f32 %v3309, %v3610
        %v3721 = vadd.f32 %v3310, %v3615
        %v3722 = vadd.f32 %v3311, %v3618
        %v3723 = vadd.f32 %v3312, %v3623
        %v3724 = vadd.f32 %v3313, %v3626
        %v3725 = vadd.f32 %v3314, %v3631
        %v3726 = vadd.f32 %v3315, %v3634
        %v3727 = vadd.f32 %v3316, %v3639
        %v3728 = vadd.f32 %v3317, %v3642
        %v3729 = vadd.f32 %v3318, %v3647
        %v3730 = vadd.f32 %v3319, %v3650
        %v3731 = vadd.f32 %v3320, %v3655
        %v3732 = vadd.f32 %v3321, %v3658
        %v3733 = vadd.f32 %v3322, %v3663
        %v3734 = vadd.f32 %v3323, %v3666
        %v3735 = vadd.f32 %v3324, %v3671
        %v3736 = vadd.f32 %v3325, %v3674
        %v3737 = vadd.f32 %v3326, %v3679
        %v3738 = vadd.f32 %v3327, %v3682
        %vm3757 = vcmask 1042432
        %vm3758 = vcmask 1046532
        %vm3759 = vmor %vm3757, %vm3758
        %v3760 = vrot.slane %v469, 5
        %v3761 = vrot.slane %v3760, 4
        %v3762 = vrot.slane %v470, 5
        %v3763 = vsel %vm3759, %v3761, %v3762
        %v3764 = vrot.slane %v3762, 4
        %v3765 = vrot.slane %v471, 5
        %v3766 = vsel %vm3759, %v3764, %v3765
        %v3767 = vrot.slane %v3765, 4
        %v3768 = vrot.slane %v472, 5
        %v3769 = vsel %vm3759, %v3767, %v3768
        %v3770 = vrot.slane %v473, 5
        %v3771 = vrot.slane %v3770, 4
        %v3772 = vrot.slane %v474, 5
        %v3773 = vsel %vm3759, %v3771, %v3772
        %v3774 = vrot.slane %v3772, 4
        %v3775 = vrot.slane %v475, 5
        %v3776 = vsel %vm3759, %v3774, %v3775
        %v3777 = vrot.slane %v3775, 4
        %v3778 = vrot.slane %v476, 5
        %v3779 = vsel %vm3759, %v3777, %v3778
        %v3780 = vrot.slane %v477, 5
        %v3781 = vrot.slane %v3780, 4
        %v3782 = vrot.slane %v478, 5
        %v3783 = vsel %vm3759, %v3781, %v3782
        %v3784 = vrot.slane %v3782, 4
        %v3785 = vrot.slane %v479, 5
        %v3786 = vsel %vm3759, %v3784, %v3785
        %v3787 = vrot.slane %v3785, 4
        %v3788 = vrot.slane %v480, 5
        %v3789 = vsel %vm3759, %v3787, %v3788
        %v3790 = vrot.slane %v481, 5
        %v3791 = vrot.slane %v3790, 4
        %v3792 = vrot.slane %v482, 5
        %v3793 = vsel %vm3759, %v3791, %v3792
        %v3794 = vrot.slane %v3792, 4
        %v3795 = vrot.slane %v483, 5
        %v3796 = vsel %vm3759, %v3794, %v3795
        %v3797 = vrot.slane %v3795, 4
        %v3798 = vrot.slane %v484, 5
        %v3799 = vsel %vm3759, %v3797, %v3798
        %v3800 = vrot.slane %v485, 5
        %v3801 = vrot.slane %v3800, 4
        %v3802 = vrot.slane %v486, 5
        %v3803 = vsel %vm3759, %v3801, %v3802
        %v3804 = vrot.slane %v3802, 4
        %v3805 = vrot.slane %v487, 5
        %v3806 = vsel %vm3759, %v3804, %v3805
        %v3807 = vrot.slane %v3805, 4
        %v3808 = vrot.slane %v488, 5
        %v3809 = vsel %vm3759, %v3807, %v3808
        %v3810 = vrot.slane %v489, 5
        %v3811 = vrot.slane %v3810, 4
        %v3812 = vrot.slane %v490, 5
        %v3813 = vsel %vm3759, %v3811, %v3812
        %v3814 = vrot.slane %v3812, 4
        %v3815 = vrot.slane %v491, 5
        %v3816 = vsel %vm3759, %v3814, %v3815
        %v3817 = vrot.slane %v3815, 4
        %v3818 = vrot.slane %v492, 5
        %v3819 = vsel %vm3759, %v3817, %v3818
        %v3820 = vrot.slane %v493, 5
        %v3821 = vrot.slane %v3820, 4
        %v3822 = vrot.slane %v494, 5
        %v3823 = vsel %vm3759, %v3821, %v3822
        %v3824 = vrot.slane %v3822, 4
        %v3825 = vrot.slane %v495, 5
        %v3826 = vsel %vm3759, %v3824, %v3825
        %v3827 = vrot.slane %v3825, 4
        %v3828 = vrot.slane %v496, 5
        %v3829 = vsel %vm3759, %v3827, %v3828
        %v3830 = vrot.slane %v497, 5
        %v3831 = vrot.slane %v3830, 4
        %v3832 = vrot.slane %v498, 5
        %v3833 = vsel %vm3759, %v3831, %v3832
        %v3834 = vrot.slane %v3832, 4
        %v3835 = vrot.slane %v499, 5
        %v3836 = vsel %vm3759, %v3834, %v3835
        %v3837 = vrot.slane %v3835, 4
        %v3838 = vrot.slane %v500, 5
        %v3839 = vsel %vm3759, %v3837, %v3838
        %v3840 = vrot.slane %v501, 5
        %v3841 = vrot.slane %v3840, 4
        %v3842 = vrot.slane %v502, 5
        %v3843 = vsel %vm3759, %v3841, %v3842
        %v3844 = vrot.slane %v3842, 4
        %v3845 = vrot.slane %v503, 5
        %v3846 = vsel %vm3759, %v3844, %v3845
        %v3847 = vrot.slane %v3845, 4
        %v3848 = vrot.slane %v504, 5
        %v3849 = vsel %vm3759, %v3847, %v3848
        %v3850 = vrot.slane %v505, 5
        %v3851 = vrot.slane %v3850, 4
        %v3852 = vrot.slane %v506, 5
        %v3853 = vsel %vm3759, %v3851, %v3852
        %v3854 = vrot.slane %v3852, 4
        %v3855 = vrot.slane %v507, 5
        %v3856 = vsel %vm3759, %v3854, %v3855
        %v3857 = vrot.slane %v3855, 4
        %v3858 = vrot.slane %v508, 5
        %v3859 = vsel %vm3759, %v3857, %v3858
        %v3860 = vrot.slane %v509, 5
        %v3861 = vrot.slane %v3860, 4
        %v3862 = vrot.slane %v510, 5
        %v3863 = vsel %vm3759, %v3861, %v3862
        %v3864 = vrot.slane %v3862, 4
        %v3865 = vrot.slane %v511, 5
        %v3866 = vsel %vm3759, %v3864, %v3865
        %v3867 = vrot.slane %v3865, 4
        %v3868 = vrot.slane %v512, 5
        %v3869 = vsel %vm3759, %v3867, %v3868
        %v3870 = vrot.slane %v513, 5
        %v3871 = vrot.slane %v3870, 4
        %v3872 = vrot.slane %v514, 5
        %v3873 = vsel %vm3759, %v3871, %v3872
        %v3874 = vrot.slane %v3872, 4
        %v3875 = vrot.slane %v515, 5
        %v3876 = vsel %vm3759, %v3874, %v3875
        %v3877 = vrot.slane %v3875, 4
        %v3878 = vrot.slane %v516, 5
        %v3879 = vsel %vm3759, %v3877, %v3878
        %v3880 = vrot.slane %v517, 5
        %v3881 = vrot.slane %v3880, 4
        %v3882 = vrot.slane %v518, 5
        %v3883 = vsel %vm3759, %v3881, %v3882
        %v3884 = vrot.slane %v3882, 4
        %v3885 = vrot.slane %v519, 5
        %v3886 = vsel %vm3759, %v3884, %v3885
        %v3887 = vrot.slane %v3885, 4
        %v3888 = vrot.slane %v520, 5
        %v3889 = vsel %vm3759, %v3887, %v3888
        %v3890 = vrot.slane %v521, 5
        %v3891 = vrot.slane %v3890, 4
        %v3892 = vrot.slane %v522, 5
        %v3893 = vsel %vm3759, %v3891, %v3892
        %v3894 = vrot.slane %v3892, 4
        %v3895 = vrot.slane %v523, 5
        %v3896 = vsel %vm3759, %v3894, %v3895
        %v3897 = vrot.slane %v3895, 4
        %v3898 = vrot.slane %v524, 5
        %v3899 = vsel %vm3759, %v3897, %v3898
        %v3900 = vrot.slane %v525, 5
        %v3901 = vrot.slane %v3900, 4
        %v3902 = vrot.slane %v526, 5
        %v3903 = vsel %vm3759, %v3901, %v3902
        %v3904 = vrot.slane %v3902, 4
        %v3905 = vrot.slane %v527, 5
        %v3906 = vsel %vm3759, %v3904, %v3905
        %v3907 = vrot.slane %v3905, 4
        %v3908 = vrot.slane %v528, 5
        %v3909 = vsel %vm3759, %v3907, %v3908
        %v3910 = vrot.slane %v529, 5
        %v3911 = vrot.slane %v3910, 4
        %v3912 = vrot.slane %v530, 5
        %v3913 = vsel %vm3759, %v3911, %v3912
        %v3914 = vrot.slane %v3912, 4
        %v3915 = vrot.slane %v531, 5
        %v3916 = vsel %vm3759, %v3914, %v3915
        %v3917 = vrot.slane %v3915, 4
        %v3918 = vrot.slane %v532, 5
        %v3919 = vsel %vm3759, %v3917, %v3918
        %v3920 = vrot.slane %v533, 5
        %v3921 = vrot.slane %v3920, 4
        %v3922 = vrot.slane %v534, 5
        %v3923 = vsel %vm3759, %v3921, %v3922
        %v3924 = vrot.slane %v3922, 4
        %v3925 = vrot.slane %v535, 5
        %v3926 = vsel %vm3759, %v3924, %v3925
        %v3927 = vrot.slane %v3925, 4
        %v3928 = vrot.slane %v536, 5
        %v3929 = vsel %vm3759, %v3927, %v3928
        %v3930 = vrot.slane %v537, 5
        %v3931 = vrot.slane %v3930, 4
        %v3932 = vrot.slane %v538, 5
        %v3933 = vsel %vm3759, %v3931, %v3932
        %v3934 = vrot.slane %v3932, 4
        %v3935 = vrot.slane %v539, 5
        %v3936 = vsel %vm3759, %v3934, %v3935
        %v3937 = vrot.slane %v3935, 4
        %v3938 = vrot.slane %v540, 5
        %v3939 = vsel %vm3759, %v3937, %v3938
        %s3940 = scalar_lea.vmem [#allocation6], 128
        %v3941 = vld [vmem:[%s3940] sm:$0xf]
        %v3942 = vld [vmem:[%s3940 + $0x4] sm:$0xf]
        %v3943 = vld [vmem:[%s3940 + $0x8] sm:$0xf]
        %v3944 = vld [vmem:[%s3940 + $0xc] sm:$0xf]
        %v3945 = vld [vmem:[%s3940 + $0x10] sm:$0xf]
        %v3946 = vld [vmem:[%s3940 + $0x14] sm:$0xf]
        %v3947 = vld [vmem:[%s3940 + $0x18] sm:$0xf]
        %v3948 = vld [vmem:[%s3940 + $0x1c] sm:$0xf]
        %v3949 = vld [vmem:[%s3940 + $0x20] sm:$0xf]
        %v3950 = vld [vmem:[%s3940 + $0x24] sm:$0xf]
        %v3951 = vld [vmem:[%s3940 + $0x28] sm:$0xf]
        %v3952 = vld [vmem:[%s3940 + $0x2c] sm:$0xf]
        %v3953 = vld [vmem:[%s3940 + $0x30] sm:$0xf]
        %v3954 = vld [vmem:[%s3940 + $0x34] sm:$0xf]
        %v3955 = vld [vmem:[%s3940 + $0x38] sm:$0xf]
        %v3956 = vld [vmem:[%s3940 + $0x3c] sm:$0xf]
        %v3957 = vunpack.c.l.b16 %v3763
        %v3958 = vunpack.c.l.b16 %v3766
        %v3959 = vunpack.c.l.b16 %v3769
        %v3960 = vunpack.c.l.b16 %v3773
        %v3961 = vunpack.c.l.b16 %v3776
        %v3962 = vunpack.c.l.b16 %v3779
        %v3963 = vunpack.c.l.b16 %v3783
        %v3964 = vunpack.c.l.b16 %v3786
        %v3965 = vunpack.c.l.b16 %v3789
        %v3966 = vunpack.c.l.b16 %v3793
        %v3967 = vunpack.c.l.b16 %v3796
        %v3968 = vunpack.c.l.b16 %v3799
        %v3969 = vunpack.c.l.b16 %v3803
        %v3970 = vunpack.c.l.b16 %v3806
        %v3971 = vunpack.c.l.b16 %v3809
        %v3972 = vunpack.c.l.b16 %v3813
        %v3973 = vunpack.c.l.b16 %v3816
        %v3974 = vunpack.c.l.b16 %v3819
        %v3975 = vunpack.c.l.b16 %v3823
        %v3976 = vunpack.c.l.b16 %v3826
        %v3977 = vunpack.c.l.b16 %v3829
        %v3978 = vunpack.c.l.b16 %v3833
        %v3979 = vunpack.c.l.b16 %v3836
        %v3980 = vunpack.c.l.b16 %v3839
        %v3981 = vunpack.c.l.b16 %v3843
        %v3982 = vunpack.c.l.b16 %v3846
        %v3983 = vunpack.c.l.b16 %v3849
        %v3984 = vunpack.c.l.b16 %v3853
        %v3985 = vunpack.c.l.b16 %v3856
        %v3986 = vunpack.c.l.b16 %v3859
        %v3987 = vunpack.c.l.b16 %v3863
        %v3988 = vunpack.c.l.b16 %v3866
        %v3989 = vunpack.c.l.b16 %v3869
        %v3990 = vunpack.c.l.b16 %v3873
        %v3991 = vunpack.c.l.b16 %v3876
        %v3992 = vunpack.c.l.b16 %v3879
        %v3993 = vunpack.c.l.b16 %v3883
        %v3994 = vunpack.c.l.b16 %v3886
        %v3995 = vunpack.c.l.b16 %v3889
        %v3996 = vunpack.c.l.b16 %v3893
        %v3997 = vunpack.c.l.b16 %v3896
        %v3998 = vunpack.c.l.b16 %v3899
        %v3999 = vunpack.c.l.b16 %v3903
        %v4000 = vunpack.c.l.b16 %v3906
        %v4001 = vunpack.c.l.b16 %v3909
        %v4002 = vunpack.c.l.b16 %v3913
        %v4003 = vunpack.c.l.b16 %v3916
        %v4004 = vunpack.c.l.b16 %v3919
        %v4005 = vunpack.c.l.b16 %v3923
        %v4006 = vunpack.c.l.b16 %v3926
        %v4007 = vunpack.c.l.b16 %v3929
        %v4008 = vunpack.c.l.b16 %v3933
        %v4009 = vunpack.c.l.b16 %v3936
        %v4010 = vunpack.c.l.b16 %v3939
        %v4011 = vpack.c.b16 %v3958, %v3957
        %v4012 = vpack.c.b16 %v3960, %v3959
        %v4013 = vpack.c.b16 %v3962, %v3961
        %v4014 = vpack.c.b16 %v3964, %v3963
        %v4015 = vpack.c.b16 %v3966, %v3965
        %v4016 = vpack.c.b16 %v3968, %v3967
        %v4017 = vpack.c.b16 %v3970, %v3969
        %v4018 = vpack.c.b16 %v3972, %v3971
        %v4019 = vpack.c.b16 %v3974, %v3973
        %v4020 = vpack.c.b16 %v3976, %v3975
        %v4021 = vpack.c.b16 %v3978, %v3977
        %v4022 = vpack.c.b16 %v3980, %v3979
        %v4023 = vpack.c.b16 %v3982, %v3981
        %v4024 = vpack.c.b16 %v3984, %v3983
        %v4025 = vpack.c.b16 %v3986, %v3985
        %v4026 = vpack.c.b16 %v3988, %v3987
        %v4027 = vpack.c.b16 %v3990, %v3989
        %v4028 = vpack.c.b16 %v3992, %v3991
        %v4029 = vpack.c.b16 %v3994, %v3993
        %v4030 = vpack.c.b16 %v3996, %v3995
        %v4031 = vpack.c.b16 %v3998, %v3997
        %v4032 = vpack.c.b16 %v4000, %v3999
        %v4033 = vpack.c.b16 %v4002, %v4001
        %v4034 = vpack.c.b16 %v4004, %v4003
        %v4035 = vpack.c.b16 %v4006, %v4005
        %v4036 = vpack.c.b16 %v4008, %v4007
        %v4037 = vpack.c.b16 %v4010, %v4009
        %v4081 = vunpack.c.l.b16 %v3941
        %v4082 = vunpack.c.l.b16 %v3942
        %v4083 = vunpack.c.l.b16 %v3943
        %v4084 = vunpack.c.l.b16 %v3944
        %v4085 = vunpack.c.l.b16 %v3945
        %v4086 = vunpack.c.l.b16 %v3946
        %v4087 = vunpack.c.l.b16 %v3947
        %v4088 = vunpack.c.l.b16 %v3948
        %v4089 = vunpack.c.l.b16 %v3949
        %v4090 = vunpack.c.l.b16 %v3950
        %v4091 = vunpack.c.l.b16 %v3951
        %v4092 = vunpack.c.l.b16 %v3952
        %v4093 = vunpack.c.l.b16 %v3953
        %v4094 = vunpack.c.l.b16 %v3954
        %v4095 = vunpack.c.l.b16 %v3955
        %v4096 = vunpack.c.l.b16 %v3956
        %v4097 = vpack.c.b16 %v4082, %v4081
        %v4098 = vpack.c.b16 %v4084, %v4083
        %v4099 = vpack.c.b16 %v4086, %v4085
        %v4100 = vpack.c.b16 %v4088, %v4087
        %v4101 = vpack.c.b16 %v4090, %v4089
        %v4102 = vpack.c.b16 %v4092, %v4091
        %v4103 = vpack.c.b16 %v4094, %v4093
        %v4104 = vpack.c.b16 %v4096, %v4095
        %4113 = vmatprep.subr.bf16.mxu0 0
        %4114 = vmatpush1.bf16.msra.mxu0 %v4097
        %4115 = vmatprep.subr.bf16.mxu0 0
        %4116 = vmatpush1.bf16.msra.mxu0 %v4098
        %4117 = vmatprep.subr.bf16.mxu0 0
        %4118 = vmatpush1.bf16.msra.mxu0 %v4099
        %4119 = vmatprep.subr.bf16.mxu0 0
        %4120 = vmatpush1.bf16.msra.mxu0 %v4100
        %4121 = vmatprep.subr.bf16.mxu0 0
        %4122 = vmatpush1.bf16.msra.mxu0 %v4101
        %4123 = vmatprep.subr.bf16.mxu0 0
        %4124 = vmatpush1.bf16.msra.mxu0 %v4102
        %4125 = vmatprep.subr.bf16.mxu0 0
        %4126 = vmatpush1.bf16.msra.mxu0 %v4103
        %4127 = vmatprep.subr.bf16.mxu0 0
        %4128 = vmatpush1.bf16.msra.mxu0 %v4104
        %4129 = vmatprep.subr.bf16.mxu0 0
        %4130 = vmatpush1.bf16.msra.mxu0 0
        %4131 = vmatprep.subr.bf16.mxu0 0
        %4132 = vmatpush1.bf16.msra.mxu0 0
        %4133 = vmatprep.subr.bf16.mxu0 0
        %4134 = vmatpush1.bf16.msra.mxu0 0
        %4135 = vmatprep.subr.bf16.mxu0 0
        %4136 = vmatpush1.bf16.msra.mxu0 0
        %4137 = vmatprep.subr.bf16.mxu0 0
        %4138 = vmatpush1.bf16.msra.mxu0 0
        %4139 = vmatprep.subr.bf16.mxu0 0
        %4140 = vmatpush1.bf16.msra.mxu0 0
        %4141 = vmatprep.subr.bf16.mxu0 0
        %4142 = vmatpush1.bf16.msra.mxu0 0
        %4143 = vmatprep.subr.bf16.mxu0 0
        %4144 = vmatpush1.bf16.msra.mxu0 0
        %4145 = vmatprep.mubr.bf16.mxu0 0
        %4146 = vmatmul.mubr.bf16.gmra.mrb[0].mxu0 %v4011
        %v4147 = vpop.f32.mrb[0].mxu0
        %v4148 = vadd.f32 0.0, %v4147
        %v4149 = vpop.f32.mrb[0].mxu0
        %v4150 = vpop.f32.mrb[0].mxu0
        %v4151 = vadd.f32 0.0, %v4150
        %v4152 = vpop.f32.mrb[0].mxu0
        %4153 = vmatprep.mubr.bf16.mxu0 0
        %4154 = vmatmul.mubr.bf16.gmra.mrb[0].mxu0 %v4012
        %v4155 = vpop.f32.mrb[0].mxu0
        %v4156 = vadd.f32 0.0, %v4155
        %v4157 = vpop.f32.mrb[0].mxu0
        %v4158 = vpop.f32.mrb[0].mxu0
        %v4159 = vadd.f32 0.0, %v4158
        %v4160 = vpop.f32.mrb[0].mxu0
        %4161 = vmatprep.mubr.bf16.mxu0 0
        %4162 = vmatmul.mubr.bf16.gmra.mrb[0].mxu0 %v4013
        %v4163 = vpop.f32.mrb[0].mxu0
        %v4164 = vadd.f32 0.0, %v4163
        %v4165 = vpop.f32.mrb[0].mxu0
        %v4166 = vpop.f32.mrb[0].mxu0
        %v4167 = vadd.f32 0.0, %v4166
        %v4168 = vpop.f32.mrb[0].mxu0
        %4169 = vmatprep.mubr.bf16.mxu0 0
        %4170 = vmatmul.mubr.bf16.gmra.mrb[0].mxu0 %v4014
        %v4171 = vpop.f32.mrb[0].mxu0
        %v4172 = vadd.f32 0.0, %v4171
        %v4173 = vpop.f32.mrb[0].mxu0
        %v4174 = vpop.f32.mrb[0].mxu0
        %v4175 = vadd.f32 0.0, %v4174
        %v4176 = vpop.f32.mrb[0].mxu0
        %4177 = vmatprep.mubr.bf16.mxu0 0
        %4178 = vmatmul.mubr.bf16.gmra.mrb[0].mxu0 %v4015
        %v4179 = vpop.f32.mrb[0].mxu0
        %v4180 = vadd.f32 0.0, %v4179
        %v4181 = vpop.f32.mrb[0].mxu0
        %v4182 = vpop.f32.mrb[0].mxu0
        %v4183 = vadd.f32 0.0, %v4182
        %v4184 = vpop.f32.mrb[0].mxu0
        %4185 = vmatprep.mubr.bf16.mxu0 0
        %4186 = vmatmul.mubr.bf16.gmra.mrb[0].mxu0 %v4016
        %v4187 = vpop.f32.mrb[0].mxu0
        %v4188 = vadd.f32 0.0, %v4187
        %v4189 = vpop.f32.mrb[0].mxu0
        %v4190 = vpop.f32.mrb[0].mxu0
        %v4191 = vadd.f32 0.0, %v4190
        %v4192 = vpop.f32.mrb[0].mxu0
        %4193 = vmatprep.mubr.bf16.mxu0 0
        %4194 = vmatmul.mubr.bf16.gmra.mrb[0].mxu0 %v4017
        %v4195 = vpop.f32.mrb[0].mxu0
        %v4196 = vadd.f32 0.0, %v4195
        %v4197 = vpop.f32.mrb[0].mxu0
        %v4198 = vpop.f32.mrb[0].mxu0
        %v4199 = vadd.f32 0.0, %v4198
        %v4200 = vpop.f32.mrb[0].mxu0
        %4201 = vmatprep.mubr.bf16.mxu0 0
        %4202 = vmatmul.mubr.bf16.gmra.mrb[0].mxu0 %v4018
        %v4203 = vpop.f32.mrb[0].mxu0
        %v4204 = vadd.f32 0.0, %v4203
        %v4205 = vpop.f32.mrb[0].mxu0
        %v4206 = vpop.f32.mrb[0].mxu0
        %v4207 = vadd.f32 0.0, %v4206
        %v4208 = vpop.f32.mrb[0].mxu0
        %4209 = vmatprep.mubr.bf16.mxu0 0
        %4210 = vmatmul.mubr.bf16.gmra.mrb[0].mxu0 %v4019
        %v4211 = vpop.f32.mrb[0].mxu0
        %v4212 = vadd.f32 0.0, %v4211
        %v4213 = vpop.f32.mrb[0].mxu0
        %v4214 = vpop.f32.mrb[0].mxu0
        %v4215 = vadd.f32 0.0, %v4214
        %v4216 = vpop.f32.mrb[0].mxu0
        %4217 = vmatprep.mubr.bf16.mxu0 0
        %4218 = vmatmul.mubr.bf16.gmra.mrb[0].mxu0 %v4020
        %v4219 = vpop.f32.mrb[0].mxu0
        %v4220 = vadd.f32 0.0, %v4219
        %v4221 = vpop.f32.mrb[0].mxu0
        %v4222 = vpop.f32.mrb[0].mxu0
        %v4223 = vadd.f32 0.0, %v4222
        %v4224 = vpop.f32.mrb[0].mxu0
        %4225 = vmatprep.mubr.bf16.mxu0 0
        %4226 = vmatmul.mubr.bf16.gmra.mrb[0].mxu0 %v4021
        %v4227 = vpop.f32.mrb[0].mxu0
        %v4228 = vadd.f32 0.0, %v4227
        %v4229 = vpop.f32.mrb[0].mxu0
        %v4230 = vpop.f32.mrb[0].mxu0
        %v4231 = vadd.f32 0.0, %v4230
        %v4232 = vpop.f32.mrb[0].mxu0
        %4233 = vmatprep.mubr.bf16.mxu0 0
        %4234 = vmatmul.mubr.bf16.gmra.mrb[0].mxu0 %v4022
        %v4235 = vpop.f32.mrb[0].mxu0
        %v4236 = vadd.f32 0.0, %v4235
        %v4237 = vpop.f32.mrb[0].mxu0
        %v4238 = vpop.f32.mrb[0].mxu0
        %v4239 = vadd.f32 0.0, %v4238
        %v4240 = vpop.f32.mrb[0].mxu0
        %4241 = vmatprep.mubr.bf16.mxu0 0
        %4242 = vmatmul.mubr.bf16.gmra.mrb[0].mxu0 %v4023
        %v4243 = vpop.f32.mrb[0].mxu0
        %v4244 = vadd.f32 0.0, %v4243
        %v4245 = vpop.f32.mrb[0].mxu0
        %v4246 = vpop.f32.mrb[0].mxu0
        %v4247 = vadd.f32 0.0, %v4246
        %v4248 = vpop.f32.mrb[0].mxu0
        %4249 = vmatprep.mubr.bf16.mxu0 0
        %4250 = vmatmul.mubr.bf16.gmra.mrb[0].mxu0 %v4024
        %v4251 = vpop.f32.mrb[0].mxu0
        %v4252 = vadd.f32 0.0, %v4251
        %v4253 = vpop.f32.mrb[0].mxu0
        %v4254 = vpop.f32.mrb[0].mxu0
        %v4255 = vadd.f32 0.0, %v4254
        %v4256 = vpop.f32.mrb[0].mxu0
        %4257 = vmatprep.mubr.bf16.mxu0 0
        %4258 = vmatmul.mubr.bf16.gmra.mrb[0].mxu0 %v4025
        %v4259 = vpop.f32.mrb[0].mxu0
        %v4260 = vadd.f32 0.0, %v4259
        %v4261 = vpop.f32.mrb[0].mxu0
        %v4262 = vpop.f32.mrb[0].mxu0
        %v4263 = vadd.f32 0.0, %v4262
        %v4264 = vpop.f32.mrb[0].mxu0
        %4265 = vmatprep.mubr.bf16.mxu0 0
        %4266 = vmatmul.mubr.bf16.gmra.mrb[0].mxu0 %v4026
        %v4267 = vpop.f32.mrb[0].mxu0
        %v4268 = vadd.f32 0.0, %v4267
        %v4269 = vpop.f32.mrb[0].mxu0
        %v4270 = vpop.f32.mrb[0].mxu0
        %v4271 = vadd.f32 0.0, %v4270
        %v4272 = vpop.f32.mrb[0].mxu0
        %4273 = vmatprep.mubr.bf16.mxu0 0
        %4274 = vmatmul.mubr.bf16.gmra.mrb[0].mxu0 %v4027
        %v4275 = vpop.f32.mrb[0].mxu0
        %v4276 = vadd.f32 0.0, %v4275
        %v4277 = vpop.f32.mrb[0].mxu0
        %v4278 = vpop.f32.mrb[0].mxu0
        %v4279 = vadd.f32 0.0, %v4278
        %v4280 = vpop.f32.mrb[0].mxu0
        %4281 = vmatprep.mubr.bf16.mxu0 0
        %4282 = vmatmul.mubr.bf16.gmra.mrb[0].mxu0 %v4028
        %v4283 = vpop.f32.mrb[0].mxu0
        %v4284 = vadd.f32 0.0, %v4283
        %v4285 = vpop.f32.mrb[0].mxu0
        %v4286 = vpop.f32.mrb[0].mxu0
        %v4287 = vadd.f32 0.0, %v4286
        %v4288 = vpop.f32.mrb[0].mxu0
        %4289 = vmatprep.mubr.bf16.mxu0 0
        %4290 = vmatmul.mubr.bf16.gmra.mrb[0].mxu0 %v4029
        %v4291 = vpop.f32.mrb[0].mxu0
        %v4292 = vadd.f32 0.0, %v4291
        %v4293 = vpop.f32.mrb[0].mxu0
        %v4294 = vpop.f32.mrb[0].mxu0
        %v4295 = vadd.f32 0.0, %v4294
        %v4296 = vpop.f32.mrb[0].mxu0
        %4297 = vmatprep.mubr.bf16.mxu0 0
        %4298 = vmatmul.mubr.bf16.gmra.mrb[0].mxu0 %v4030
        %v4299 = vpop.f32.mrb[0].mxu0
        %v4300 = vadd.f32 0.0, %v4299
        %v4301 = vpop.f32.mrb[0].mxu0
        %v4302 = vpop.f32.mrb[0].mxu0
        %v4303 = vadd.f32 0.0, %v4302
        %v4304 = vpop.f32.mrb[0].mxu0
        %4305 = vmatprep.mubr.bf16.mxu0 0
        %4306 = vmatmul.mubr.bf16.gmra.mrb[0].mxu0 %v4031
        %v4307 = vpop.f32.mrb[0].mxu0
        %v4308 = vadd.f32 0.0, %v4307
        %v4309 = vpop.f32.mrb[0].mxu0
        %v4310 = vpop.f32.mrb[0].mxu0
        %v4311 = vadd.f32 0.0, %v4310
        %v4312 = vpop.f32.mrb[0].mxu0
        %4313 = vmatprep.mubr.bf16.mxu0 0
        %4314 = vmatmul.mubr.bf16.gmra.mrb[0].mxu0 %v4032
        %v4315 = vpop.f32.mrb[0].mxu0
        %v4316 = vadd.f32 0.0, %v4315
        %v4317 = vpop.f32.mrb[0].mxu0
        %v4318 = vpop.f32.mrb[0].mxu0
        %v4319 = vadd.f32 0.0, %v4318
        %v4320 = vpop.f32.mrb[0].mxu0
        %4321 = vmatprep.mubr.bf16.mxu0 0
        %4322 = vmatmul.mubr.bf16.gmra.mrb[0].mxu0 %v4033
        %v4323 = vpop.f32.mrb[0].mxu0
        %v4324 = vadd.f32 0.0, %v4323
        %v4325 = vpop.f32.mrb[0].mxu0
        %v4326 = vpop.f32.mrb[0].mxu0
        %v4327 = vadd.f32 0.0, %v4326
        %v4328 = vpop.f32.mrb[0].mxu0
        %4329 = vmatprep.mubr.bf16.mxu0 0
        %4330 = vmatmul.mubr.bf16.gmra.mrb[0].mxu0 %v4034
        %v4331 = vpop.f32.mrb[0].mxu0
        %v4332 = vadd.f32 0.0, %v4331
        %v4333 = vpop.f32.mrb[0].mxu0
        %v4334 = vpop.f32.mrb[0].mxu0
        %v4335 = vadd.f32 0.0, %v4334
        %v4336 = vpop.f32.mrb[0].mxu0
        %4337 = vmatprep.mubr.bf16.mxu0 0
        %4338 = vmatmul.mubr.bf16.gmra.mrb[0].mxu0 %v4035
        %v4339 = vpop.f32.mrb[0].mxu0
        %v4340 = vadd.f32 0.0, %v4339
        %v4341 = vpop.f32.mrb[0].mxu0
        %v4342 = vpop.f32.mrb[0].mxu0
        %v4343 = vadd.f32 0.0, %v4342
        %v4344 = vpop.f32.mrb[0].mxu0
        %4345 = vmatprep.mubr.bf16.mxu0 0
        %4346 = vmatmul.mubr.bf16.gmra.mrb[0].mxu0 %v4036
        %v4347 = vpop.f32.mrb[0].mxu0
        %v4348 = vadd.f32 0.0, %v4347
        %v4349 = vpop.f32.mrb[0].mxu0
        %v4350 = vpop.f32.mrb[0].mxu0
        %v4351 = vadd.f32 0.0, %v4350
        %v4352 = vpop.f32.mrb[0].mxu0
        %4353 = vmatprep.mubr.bf16.mxu0 0
        %4354 = vmatmul.mubr.bf16.gmra.mrb[0].mxu0 %v4037
        %v4355 = vpop.f32.mrb[0].mxu0
        %v4356 = vadd.f32 0.0, %v4355
        %v4357 = vpop.f32.mrb[0].mxu0
        %v4358 = vpop.f32.mrb[0].mxu0
        %v4359 = vadd.f32 0.0, %v4358
        %v4360 = vpop.f32.mrb[0].mxu0
        %4361 = vdwg.mxu0
        %v4362 = vadd.f32 %v3685, %v4148
        %v4363 = vadd.f32 %v3686, %v4151
        %v4364 = vadd.f32 %v3687, %v4156
        %v4365 = vadd.f32 %v3688, %v4159
        %v4366 = vadd.f32 %v3689, %v4164
        %v4367 = vadd.f32 %v3690, %v4167
        %v4368 = vadd.f32 %v3691, %v4172
        %v4369 = vadd.f32 %v3692, %v4175
        %v4370 = vadd.f32 %v3693, %v4180
        %v4371 = vadd.f32 %v3694, %v4183
        %v4372 = vadd.f32 %v3695, %v4188
        %v4373 = vadd.f32 %v3696, %v4191
        %v4374 = vadd.f32 %v3697, %v4196
        %v4375 = vadd.f32 %v3698, %v4199
        %v4376 = vadd.f32 %v3699, %v4204
        %v4377 = vadd.f32 %v3700, %v4207
        %v4378 = vadd.f32 %v3701, %v4212
        %v4379 = vadd.f32 %v3702, %v4215
        %v4380 = vadd.f32 %v3703, %v4220
        %v4381 = vadd.f32 %v3704, %v4223
        %v4382 = vadd.f32 %v3705, %v4228
        %v4383 = vadd.f32 %v3706, %v4231
        %v4384 = vadd.f32 %v3707, %v4236
        %v4385 = vadd.f32 %v3708, %v4239
        %v4386 = vadd.f32 %v3709, %v4244
        %v4387 = vadd.f32 %v3710, %v4247
        %v4388 = vadd.f32 %v3711, %v4252
        %v4389 = vadd.f32 %v3712, %v4255
        %v4390 = vadd.f32 %v3713, %v4260
        %v4391 = vadd.f32 %v3714, %v4263
        %v4392 = vadd.f32 %v3715, %v4268
        %v4393 = vadd.f32 %v3716, %v4271
        %v4394 = vadd.f32 %v3717, %v4276
        %v4395 = vadd.f32 %v3718, %v4279
        %v4396 = vadd.f32 %v3719, %v4284
        %v4397 = vadd.f32 %v3720, %v4287
        %v4398 = vadd.f32 %v3721, %v4292
        %v4399 = vadd.f32 %v3722, %v4295
        %v4400 = vadd.f32 %v3723, %v4300
        %v4401 = vadd.f32 %v3724, %v4303
        %v4402 = vadd.f32 %v3725, %v4308
        %v4403 = vadd.f32 %v3726, %v4311
        %v4404 = vadd.f32 %v3727, %v4316
        %v4405 = vadd.f32 %v3728, %v4319
        %v4406 = vadd.f32 %v3729, %v4324
        %v4407 = vadd.f32 %v3730, %v4327
        %v4408 = vadd.f32 %v3731, %v4332
        %v4409 = vadd.f32 %v3732, %v4335
        %v4410 = vadd.f32 %v3733, %v4340
        %v4411 = vadd.f32 %v3734, %v4343
        %v4412 = vadd.f32 %v3735, %v4348
        %v4413 = vadd.f32 %v3736, %v4351
        %v4414 = vadd.f32 %v3737, %v4356
        %v4415 = vadd.f32 %v3738, %v4359
        %v4417 = vrot.slane %v541, 5
        %v4418 = vrot.slane %v4417, 4
        %v4419 = vrot.slane %v542, 5
        %v4420 = vsel %vm3759, %v4418, %v4419
        %v4421 = vrot.slane %v4419, 4
        %v4422 = vrot.slane %v543, 5
        %v4423 = vsel %vm3759, %v4421, %v4422
        %v4424 = vrot.slane %v4422, 4
        %v4425 = vrot.slane %v544, 5
        %v4426 = vsel %vm3759, %v4424, %v4425
        %s4427 = scalar_lea.vmem [#allocation6], 320
        %v4428 = vld [vmem:[%s4427] sm:$0xf]
        %v4429 = vld [vmem:[%s4427 + $0x4] sm:$0xf]
        %v4430 = vld [vmem:[%s4427 + $0x8] sm:$0xf]
        %v4431 = vld [vmem:[%s4427 + $0xc] sm:$0xf]
        %v4432 = vld [vmem:[%s4427 + $0x10] sm:$0xf]
        %v4433 = vld [vmem:[%s4427 + $0x14] sm:$0xf]
        %v4434 = vld [vmem:[%s4427 + $0x18] sm:$0xf]
        %v4435 = vld [vmem:[%s4427 + $0x1c] sm:$0xf]
        %v4436 = vld [vmem:[%s4427 + $0x20] sm:$0xf]
        %v4437 = vld [vmem:[%s4427 + $0x24] sm:$0xf]
        %v4438 = vld [vmem:[%s4427 + $0x28] sm:$0xf]
        %v4439 = vld [vmem:[%s4427 + $0x2c] sm:$0xf]
        %v4440 = vld [vmem:[%s4427 + $0x30] sm:$0xf]
        %v4441 = vld [vmem:[%s4427 + $0x34] sm:$0xf]
        %v4442 = vld [vmem:[%s4427 + $0x38] sm:$0xf]
        %v4443 = vld [vmem:[%s4427 + $0x3c] sm:$0xf]
        %v4444 = vunpack.c.l.b16 %v4420
        %v4445 = vunpack.c.l.b16 %v4423
        %v4446 = vunpack.c.l.b16 %v4426
        %v4447 = vpack.c.b16 %v3961, %v3960
        %v4448 = vpack.c.b16 %v3963, %v3962
        %v4449 = vpack.c.b16 %v3965, %v3964
        %v4450 = vpack.c.b16 %v3967, %v3966
        %v4451 = vpack.c.b16 %v3969, %v3968
        %v4452 = vpack.c.b16 %v3971, %v3970
        %v4453 = vpack.c.b16 %v3973, %v3972
        %v4454 = vpack.c.b16 %v3975, %v3974
        %v4455 = vpack.c.b16 %v3977, %v3976
        %v4456 = vpack.c.b16 %v3979, %v3978
        %v4457 = vpack.c.b16 %v3981, %v3980
        %v4458 = vpack.c.b16 %v3983, %v3982
        %v4459 = vpack.c.b16 %v3985, %v3984
        %v4460 = vpack.c.b16 %v3987, %v3986
        %v4461 = vpack.c.b16 %v3989, %v3988
        %v4462 = vpack.c.b16 %v3991, %v3990
        %v4463 = vpack.c.b16 %v3993, %v3992
        %v4464 = vpack.c.b16 %v3995, %v3994
        %v4465 = vpack.c.b16 %v3997, %v3996
        %v4466 = vpack.c.b16 %v3999, %v3998
        %v4467 = vpack.c.b16 %v4001, %v4000
        %v4468 = vpack.c.b16 %v4003, %v4002
        %v4469 = vpack.c.b16 %v4005, %v4004
        %v4470 = vpack.c.b16 %v4007, %v4006
        %v4471 = vpack.c.b16 %v4009, %v4008
        %v4472 = vpack.c.b16 %v4444, %v4010
        %v4473 = vpack.c.b16 %v4446, %v4445
        %v4517 = vunpack.c.l.b16 %v4428
        %v4518 = vunpack.c.l.b16 %v4429
        %v4519 = vunpack.c.l.b16 %v4430
        %v4520 = vunpack.c.l.b16 %v4431
        %v4521 = vunpack.c.l.b16 %v4432
        %v4522 = vunpack.c.l.b16 %v4433
        %v4523 = vunpack.c.l.b16 %v4434
        %v4524 = vunpack.c.l.b16 %v4435
        %v4525 = vunpack.c.l.b16 %v4436
        %v4526 = vunpack.c.l.b16 %v4437
        %v4527 = vunpack.c.l.b16 %v4438
        %v4528 = vunpack.c.l.b16 %v4439
        %v4529 = vunpack.c.l.b16 %v4440
        %v4530 = vunpack.c.l.b16 %v4441
        %v4531 = vunpack.c.l.b16 %v4442
        %v4532 = vunpack.c.l.b16 %v4443
        %v4533 = vpack.c.b16 %v4518, %v4517
        %v4534 = vpack.c.b16 %v4520, %v4519
        %v4535 = vpack.c.b16 %v4522, %v4521
        %v4536 = vpack.c.b16 %v4524, %v4523
        %v4537 = vpack.c.b16 %v4526, %v4525
        %v4538 = vpack.c.b16 %v4528, %v4527
        %v4539 = vpack.c.b16 %v4530, %v4529
        %v4540 = vpack.c.b16 %v4532, %v4531
        %4549 = vmatprep.subr.bf16.mxu0 0
        %4550 = vmatpush1.bf16.msra.mxu0 %v4533
        %4551 = vmatprep.subr.bf16.mxu0 0
        %4552 = vmatpush1.bf16.msra.mxu0 %v4534
        %4553 = vmatprep.subr.bf16.mxu0 0
        %4554 = vmatpush1.bf16.msra.mxu0 %v4535
        %4555 = vmatprep.subr.bf16.mxu0 0
        %4556 = vmatpush1.bf16.msra.mxu0 %v4536
        %4557 = vmatprep.subr.bf16.mxu0 0
        %4558 = vmatpush1.bf16.msra.mxu0 %v4537
        %4559 = vmatprep.subr.bf16.mxu0 0
        %4560 = vmatpush1.bf16.msra.mxu0 %v4538
        %4561 = vmatprep.subr.bf16.mxu0 0
        %4562 = vmatpush1.bf16.msra.mxu0 %v4539
        %4563 = vmatprep.subr.bf16.mxu0 0
        %4564 = vmatpush1.bf16.msra.mxu0 %v4540
        %4565 = vmatprep.subr.bf16.mxu0 0
        %4566 = vmatpush1.bf16.msra.mxu0 0
        %4567 = vmatprep.subr.bf16.mxu0 0
        %4568 = vmatpush1.bf16.msra.mxu0 0
        %4569 = vmatprep.subr.bf16.mxu0 0
        %4570 = vmatpush1.bf16.msra.mxu0 0
        %4571 = vmatprep.subr.bf16.mxu0 0
        %4572 = vmatpush1.bf16.msra.mxu0 0
        %4573 = vmatprep.subr.bf16.mxu0 0
        %4574 = vmatpush1.bf16.msra.mxu0 0
        %4575 = vmatprep.subr.bf16.mxu0 0
        %4576 = vmatpush1.bf16.msra.mxu0 0
        %4577 = vmatprep.subr.bf16.mxu0 0
        %4578 = vmatpush1.bf16.msra.mxu0 0
        %4579 = vmatprep.subr.bf16.mxu0 0
        %4580 = vmatpush1.bf16.msra.mxu0 0
        %4581 = vmatprep.mubr.bf16.mxu0 0
        %4582 = vmatmul.mubr.bf16.gmra.mrb[0].mxu0 %v4447
        %v4583 = vpop.f32.mrb[0].mxu0
        %v4584 = vadd.f32 0.0, %v4583
        %v4585 = vpop.f32.mrb[0].mxu0
        %v4586 = vpop.f32.mrb[0].mxu0
        %v4587 = vadd.f32 0.0, %v4586
        %v4588 = vpop.f32.mrb[0].mxu0
        %4589 = vmatprep.mubr.bf16.mxu0 0
        %4590 = vmatmul.mubr.bf16.gmra.mrb[0].mxu0 %v4448
        %v4591 = vpop.f32.mrb[0].mxu0
        %v4592 = vadd.f32 0.0, %v4591
        %v4593 = vpop.f32.mrb[0].mxu0
        %v4594 = vpop.f32.mrb[0].mxu0
        %v4595 = vadd.f32 0.0, %v4594
        %v4596 = vpop.f32.mrb[0].mxu0
        %4597 = vmatprep.mubr.bf16.mxu0 0
        %4598 = vmatmul.mubr.bf16.gmra.mrb[0].mxu0 %v4449
        %v4599 = vpop.f32.mrb[0].mxu0
        %v4600 = vadd.f32 0.0, %v4599
        %v4601 = vpop.f32.mrb[0].mxu0
        %v4602 = vpop.f32.mrb[0].mxu0
        %v4603 = vadd.f32 0.0, %v4602
        %v4604 = vpop.f32.mrb[0].mxu0
        %4605 = vmatprep.mubr.bf16.mxu0 0
        %4606 = vmatmul.mubr.bf16.gmra.mrb[0].mxu0 %v4450
        %v4607 = vpop.f32.mrb[0].mxu0
        %v4608 = vadd.f32 0.0, %v4607
        %v4609 = vpop.f32.mrb[0].mxu0
        %v4610 = vpop.f32.mrb[0].mxu0
        %v4611 = vadd.f32 0.0, %v4610
        %v4612 = vpop.f32.mrb[0].mxu0
        %4613 = vmatprep.mubr.bf16.mxu0 0
        %4614 = vmatmul.mubr.bf16.gmra.mrb[0].mxu0 %v4451
        %v4615 = vpop.f32.mrb[0].mxu0
        %v4616 = vadd.f32 0.0, %v4615
        %v4617 = vpop.f32.mrb[0].mxu0
        %v4618 = vpop.f32.mrb[0].mxu0
        %v4619 = vadd.f32 0.0, %v4618
        %v4620 = vpop.f32.mrb[0].mxu0
        %4621 = vmatprep.mubr.bf16.mxu0 0
        %4622 = vmatmul.mubr.bf16.gmra.mrb[0].mxu0 %v4452
        %v4623 = vpop.f32.mrb[0].mxu0
        %v4624 = vadd.f32 0.0, %v4623
        %v4625 = vpop.f32.mrb[0].mxu0
        %v4626 = vpop.f32.mrb[0].mxu0
        %v4627 = vadd.f32 0.0, %v4626
        %v4628 = vpop.f32.mrb[0].mxu0
        %4629 = vmatprep.mubr.bf16.mxu0 0
        %4630 = vmatmul.mubr.bf16.gmra.mrb[0].mxu0 %v4453
        %v4631 = vpop.f32.mrb[0].mxu0
        %v4632 = vadd.f32 0.0, %v4631
        %v4633 = vpop.f32.mrb[0].mxu0
        %v4634 = vpop.f32.mrb[0].mxu0
        %v4635 = vadd.f32 0.0, %v4634
        %v4636 = vpop.f32.mrb[0].mxu0
        %4637 = vmatprep.mubr.bf16.mxu0 0
        %4638 = vmatmul.mubr.bf16.gmra.mrb[0].mxu0 %v4454
        %v4639 = vpop.f32.mrb[0].mxu0
        %v4640 = vadd.f32 0.0, %v4639
        %v4641 = vpop.f32.mrb[0].mxu0
        %v4642 = vpop.f32.mrb[0].mxu0
        %v4643 = vadd.f32 0.0, %v4642
        %v4644 = vpop.f32.mrb[0].mxu0
        %4645 = vmatprep.mubr.bf16.mxu0 0
        %4646 = vmatmul.mubr.bf16.gmra.mrb[0].mxu0 %v4455
        %v4647 = vpop.f32.mrb[0].mxu0
        %v4648 = vadd.f32 0.0, %v4647
        %v4649 = vpop.f32.mrb[0].mxu0
        %v4650 = vpop.f32.mrb[0].mxu0
        %v4651 = vadd.f32 0.0, %v4650
        %v4652 = vpop.f32.mrb[0].mxu0
        %4653 = vmatprep.mubr.bf16.mxu0 0
        %4654 = vmatmul.mubr.bf16.gmra.mrb[0].mxu0 %v4456
        %v4655 = vpop.f32.mrb[0].mxu0
        %v4656 = vadd.f32 0.0, %v4655
        %v4657 = vpop.f32.mrb[0].mxu0
        %v4658 = vpop.f32.mrb[0].mxu0
        %v4659 = vadd.f32 0.0, %v4658
        %v4660 = vpop.f32.mrb[0].mxu0
        %4661 = vmatprep.mubr.bf16.mxu0 0
        %4662 = vmatmul.mubr.bf16.gmra.mrb[0].mxu0 %v4457
        %v4663 = vpop.f32.mrb[0].mxu0
        %v4664 = vadd.f32 0.0, %v4663
        %v4665 = vpop.f32.mrb[0].mxu0
        %v4666 = vpop.f32.mrb[0].mxu0
        %v4667 = vadd.f32 0.0, %v4666
        %v4668 = vpop.f32.mrb[0].mxu0
        %4669 = vmatprep.mubr.bf16.mxu0 0
        %4670 = vmatmul.mubr.bf16.gmra.mrb[0].mxu0 %v4458
        %v4671 = vpop.f32.mrb[0].mxu0
        %v4672 = vadd.f32 0.0, %v4671
        %v4673 = vpop.f32.mrb[0].mxu0
        %v4674 = vpop.f32.mrb[0].mxu0
        %v4675 = vadd.f32 0.0, %v4674
        %v4676 = vpop.f32.mrb[0].mxu0
        %4677 = vmatprep.mubr.bf16.mxu0 0
        %4678 = vmatmul.mubr.bf16.gmra.mrb[0].mxu0 %v4459
        %v4679 = vpop.f32.mrb[0].mxu0
        %v4680 = vadd.f32 0.0, %v4679
        %v4681 = vpop.f32.mrb[0].mxu0
        %v4682 = vpop.f32.mrb[0].mxu0
        %v4683 = vadd.f32 0.0, %v4682
        %v4684 = vpop.f32.mrb[0].mxu0
        %4685 = vmatprep.mubr.bf16.mxu0 0
        %4686 = vmatmul.mubr.bf16.gmra.mrb[0].mxu0 %v4460
        %v4687 = vpop.f32.mrb[0].mxu0
        %v4688 = vadd.f32 0.0, %v4687
        %v4689 = vpop.f32.mrb[0].mxu0
        %v4690 = vpop.f32.mrb[0].mxu0
        %v4691 = vadd.f32 0.0, %v4690
        %v4692 = vpop.f32.mrb[0].mxu0
        %4693 = vmatprep.mubr.bf16.mxu0 0
        %4694 = vmatmul.mubr.bf16.gmra.mrb[0].mxu0 %v4461
        %v4695 = vpop.f32.mrb[0].mxu0
        %v4696 = vadd.f32 0.0, %v4695
        %v4697 = vpop.f32.mrb[0].mxu0
        %v4698 = vpop.f32.mrb[0].mxu0
        %v4699 = vadd.f32 0.0, %v4698
        %v4700 = vpop.f32.mrb[0].mxu0
        %4701 = vmatprep.mubr.bf16.mxu0 0
        %4702 = vmatmul.mubr.bf16.gmra.mrb[0].mxu0 %v4462
        %v4703 = vpop.f32.mrb[0].mxu0
        %v4704 = vadd.f32 0.0, %v4703
        %v4705 = vpop.f32.mrb[0].mxu0
        %v4706 = vpop.f32.mrb[0].mxu0
        %v4707 = vadd.f32 0.0, %v4706
        %v4708 = vpop.f32.mrb[0].mxu0
        %4709 = vmatprep.mubr.bf16.mxu0 0
        %4710 = vmatmul.mubr.bf16.gmra.mrb[0].mxu0 %v4463
        %v4711 = vpop.f32.mrb[0].mxu0
        %v4712 = vadd.f32 0.0, %v4711
        %v4713 = vpop.f32.mrb[0].mxu0
        %v4714 = vpop.f32.mrb[0].mxu0
        %v4715 = vadd.f32 0.0, %v4714
        %v4716 = vpop.f32.mrb[0].mxu0
        %4717 = vmatprep.mubr.bf16.mxu0 0
        %4718 = vmatmul.mubr.bf16.gmra.mrb[0].mxu0 %v4464
        %v4719 = vpop.f32.mrb[0].mxu0
        %v4720 = vadd.f32 0.0, %v4719
        %v4721 = vpop.f32.mrb[0].mxu0
        %v4722 = vpop.f32.mrb[0].mxu0
        %v4723 = vadd.f32 0.0, %v4722
        %v4724 = vpop.f32.mrb[0].mxu0
        %4725 = vmatprep.mubr.bf16.mxu0 0
        %4726 = vmatmul.mubr.bf16.gmra.mrb[0].mxu0 %v4465
        %v4727 = vpop.f32.mrb[0].mxu0
        %v4728 = vadd.f32 0.0, %v4727
        %v4729 = vpop.f32.mrb[0].mxu0
        %v4730 = vpop.f32.mrb[0].mxu0
        %v4731 = vadd.f32 0.0, %v4730
        %v4732 = vpop.f32.mrb[0].mxu0
        %4733 = vmatprep.mubr.bf16.mxu0 0
        %4734 = vmatmul.mubr.bf16.gmra.mrb[0].mxu0 %v4466
        %v4735 = vpop.f32.mrb[0].mxu0
        %v4736 = vadd.f32 0.0, %v4735
        %v4737 = vpop.f32.mrb[0].mxu0
        %v4738 = vpop.f32.mrb[0].mxu0
        %v4739 = vadd.f32 0.0, %v4738
        %v4740 = vpop.f32.mrb[0].mxu0
        %4741 = vmatprep.mubr.bf16.mxu0 0
        %4742 = vmatmul.mubr.bf16.gmra.mrb[0].mxu0 %v4467
        %v4743 = vpop.f32.mrb[0].mxu0
        %v4744 = vadd.f32 0.0, %v4743
        %v4745 = vpop.f32.mrb[0].mxu0
        %v4746 = vpop.f32.mrb[0].mxu0
        %v4747 = vadd.f32 0.0, %v4746
        %v4748 = vpop.f32.mrb[0].mxu0
        %4749 = vmatprep.mubr.bf16.mxu0 0
        %4750 = vmatmul.mubr.bf16.gmra.mrb[0].mxu0 %v4468
        %v4751 = vpop.f32.mrb[0].mxu0
        %v4752 = vadd.f32 0.0, %v4751
        %v4753 = vpop.f32.mrb[0].mxu0
        %v4754 = vpop.f32.mrb[0].mxu0
        %v4755 = vadd.f32 0.0, %v4754
        %v4756 = vpop.f32.mrb[0].mxu0
        %4757 = vmatprep.mubr.bf16.mxu0 0
        %4758 = vmatmul.mubr.bf16.gmra.mrb[0].mxu0 %v4469
        %v4759 = vpop.f32.mrb[0].mxu0
        %v4760 = vadd.f32 0.0, %v4759
        %v4761 = vpop.f32.mrb[0].mxu0
        %v4762 = vpop.f32.mrb[0].mxu0
        %v4763 = vadd.f32 0.0, %v4762
        %v4764 = vpop.f32.mrb[0].mxu0
        %4765 = vmatprep.mubr.bf16.mxu0 0
        %4766 = vmatmul.mubr.bf16.gmra.mrb[0].mxu0 %v4470
        %v4767 = vpop.f32.mrb[0].mxu0
        %v4768 = vadd.f32 0.0, %v4767
        %v4769 = vpop.f32.mrb[0].mxu0
        %v4770 = vpop.f32.mrb[0].mxu0
        %v4771 = vadd.f32 0.0, %v4770
        %v4772 = vpop.f32.mrb[0].mxu0
        %4773 = vmatprep.mubr.bf16.mxu0 0
        %4774 = vmatmul.mubr.bf16.gmra.mrb[0].mxu0 %v4471
        %v4775 = vpop.f32.mrb[0].mxu0
        %v4776 = vadd.f32 0.0, %v4775
        %v4777 = vpop.f32.mrb[0].mxu0
        %v4778 = vpop.f32.mrb[0].mxu0
        %v4779 = vadd.f32 0.0, %v4778
        %v4780 = vpop.f32.mrb[0].mxu0
        %4781 = vmatprep.mubr.bf16.mxu0 0
        %4782 = vmatmul.mubr.bf16.gmra.mrb[0].mxu0 %v4472
        %v4783 = vpop.f32.mrb[0].mxu0
        %v4784 = vadd.f32 0.0, %v4783
        %v4785 = vpop.f32.mrb[0].mxu0
        %v4786 = vpop.f32.mrb[0].mxu0
        %v4787 = vadd.f32 0.0, %v4786
        %v4788 = vpop.f32.mrb[0].mxu0
        %4789 = vmatprep.mubr.bf16.mxu0 0
        %4790 = vmatmul.mubr.bf16.gmra.mrb[0].mxu0 %v4473
        %v4791 = vpop.f32.mrb[0].mxu0
        %v4792 = vadd.f32 0.0, %v4791
        %v4793 = vpop.f32.mrb[0].mxu0
        %v4794 = vpop.f32.mrb[0].mxu0
        %v4795 = vadd.f32 0.0, %v4794
        %v4796 = vpop.f32.mrb[0].mxu0
        %4797 = vdwg.mxu0
        %v4798 = vadd.f32 %v4362, %v4584
        %v4799 = vadd.f32 %v4363, %v4587
        %v4800 = vadd.f32 %v4364, %v4592
        %v4801 = vadd.f32 %v4365, %v4595
        %v4802 = vadd.f32 %v4366, %v4600
        %v4803 = vadd.f32 %v4367, %v4603
        %v4804 = vadd.f32 %v4368, %v4608
        %v4805 = vadd.f32 %v4369, %v4611
        %v4806 = vadd.f32 %v4370, %v4616
        %v4807 = vadd.f32 %v4371, %v4619
        %v4808 = vadd.f32 %v4372, %v4624
        %v4809 = vadd.f32 %v4373, %v4627
        %v4810 = vadd.f32 %v4374, %v4632
        %v4811 = vadd.f32 %v4375, %v4635
        %v4812 = vadd.f32 %v4376, %v4640
        %v4813 = vadd.f32 %v4377, %v4643
        %v4814 = vadd.f32 %v4378, %v4648
        %v4815 = vadd.f32 %v4379, %v4651
        %v4816 = vadd.f32 %v4380, %v4656
        %v4817 = vadd.f32 %v4381, %v4659
        %v4818 = vadd.f32 %v4382, %v4664
        %v4819 = vadd.f32 %v4383, %v4667
        %v4820 = vadd.f32 %v4384, %v4672
        %v4821 = vadd.f32 %v4385, %v4675
        %v4822 = vadd.f32 %v4386, %v4680
        %v4823 = vadd.f32 %v4387, %v4683
        %v4824 = vadd.f32 %v4388, %v4688
        %v4825 = vadd.f32 %v4389, %v4691
        %v4826 = vadd.f32 %v4390, %v4696
        %v4827 = vadd.f32 %v4391, %v4699
        %v4828 = vadd.f32 %v4392, %v4704
        %v4829 = vadd.f32 %v4393, %v4707
        %v4830 = vadd.f32 %v4394, %v4712
        %v4831 = vadd.f32 %v4395, %v4715
        %v4832 = vadd.f32 %v4396, %v4720
        %v4833 = vadd.f32 %v4397, %v4723
        %v4834 = vadd.f32 %v4398, %v4728
        %v4835 = vadd.f32 %v4399, %v4731
        %v4836 = vadd.f32 %v4400, %v4736
        %v4837 = vadd.f32 %v4401, %v4739
        %v4838 = vadd.f32 %v4402, %v4744
        %v4839 = vadd.f32 %v4403, %v4747
        %v4840 = vadd.f32 %v4404, %v4752
        %v4841 = vadd.f32 %v4405, %v4755
        %v4842 = vadd.f32 %v4406, %v4760
        %v4843 = vadd.f32 %v4407, %v4763
        %v4844 = vadd.f32 %v4408, %v4768
        %v4845 = vadd.f32 %v4409, %v4771
        %v4846 = vadd.f32 %v4410, %v4776
        %v4847 = vadd.f32 %v4411, %v4779
        %v4848 = vadd.f32 %v4412, %v4784
        %v4849 = vadd.f32 %v4413, %v4787
        %v4850 = vadd.f32 %v4414, %v4792
        %v4851 = vadd.f32 %v4415, %v4795
        %v4853 = vrot.slane %v545, 5
        %v4854 = vrot.slane %v4853, 4
        %v4855 = vrot.slane %v546, 5
        %v4856 = vsel %vm3759, %v4854, %v4855
        %v4857 = vrot.slane %v4855, 4
        %v4858 = vrot.slane %v547, 5
        %v4859 = vsel %vm3759, %v4857, %v4858
        %v4860 = vrot.slane %v4858, 4
        %v4861 = vrot.slane %v548, 5
        %v4862 = vsel %vm3759, %v4860, %v4861
        %s4863 = scalar_lea.vmem [#allocation6], 512
        %v4864 = vld [vmem:[%s4863] sm:$0xf]
        %v4865 = vld [vmem:[%s4863 + $0x4] sm:$0xf]
        %v4866 = vld [vmem:[%s4863 + $0x8] sm:$0xf]
        %v4867 = vld [vmem:[%s4863 + $0xc] sm:$0xf]
        %v4868 = vld [vmem:[%s4863 + $0x10] sm:$0xf]
        %v4869 = vld [vmem:[%s4863 + $0x14] sm:$0xf]
        %v4870 = vld [vmem:[%s4863 + $0x18] sm:$0xf]
        %v4871 = vld [vmem:[%s4863 + $0x1c] sm:$0xf]
        %v4872 = vld [vmem:[%s4863 + $0x20] sm:$0xf]
        %v4873 = vld [vmem:[%s4863 + $0x24] sm:$0xf]
        %v4874 = vld [vmem:[%s4863 + $0x28] sm:$0xf]
        %v4875 = vld [vmem:[%s4863 + $0x2c] sm:$0xf]
        %v4876 = vld [vmem:[%s4863 + $0x30] sm:$0xf]
        %v4877 = vld [vmem:[%s4863 + $0x34] sm:$0xf]
        %v4878 = vld [vmem:[%s4863 + $0x38] sm:$0xf]
        %v4879 = vld [vmem:[%s4863 + $0x3c] sm:$0xf]
        %v4880 = vunpack.c.l.b16 %v4856
        %v4881 = vunpack.c.l.b16 %v4859
        %v4882 = vunpack.c.l.b16 %v4862
        %v4883 = vpack.c.b16 %v4445, %v4444
        %v4884 = vpack.c.b16 %v4880, %v4446
        %v4885 = vpack.c.b16 %v4882, %v4881
        %v4905 = vunpack.c.l.b16 %v4864
        %v4906 = vunpack.c.l.b16 %v4865
        %v4907 = vunpack.c.l.b16 %v4866
        %v4908 = vunpack.c.l.b16 %v4867
        %v4909 = vunpack.c.l.b16 %v4868
        %v4910 = vunpack.c.l.b16 %v4869
        %v4911 = vunpack.c.l.b16 %v4870
        %v4912 = vunpack.c.l.b16 %v4871
        %v4913 = vunpack.c.l.b16 %v4872
        %v4914 = vunpack.c.l.b16 %v4873
        %v4915 = vunpack.c.l.b16 %v4874
        %v4916 = vunpack.c.l.b16 %v4875
        %v4917 = vunpack.c.l.b16 %v4876
        %v4918 = vunpack.c.l.b16 %v4877
        %v4919 = vunpack.c.l.b16 %v4878
        %v4920 = vunpack.c.l.b16 %v4879
        %v4921 = vpack.c.b16 %v4906, %v4905
        %v4922 = vpack.c.b16 %v4908, %v4907
        %v4923 = vpack.c.b16 %v4910, %v4909
        %v4924 = vpack.c.b16 %v4912, %v4911
        %v4925 = vpack.c.b16 %v4914, %v4913
        %v4926 = vpack.c.b16 %v4916, %v4915
        %v4927 = vpack.c.b16 %v4918, %v4917
        %v4928 = vpack.c.b16 %v4920, %v4919
        %4937 = vmatprep.subr.bf16.mxu0 0
        %4938 = vmatpush1.bf16.msra.mxu0 %v4921
        %4939 = vmatprep.subr.bf16.mxu0 0
        %4940 = vmatpush1.bf16.msra.mxu0 %v4922
        %4941 = vmatprep.subr.bf16.mxu0 0
        %4942 = vmatpush1.bf16.msra.mxu0 %v4923
        %4943 = vmatprep.subr.bf16.mxu0 0
        %4944 = vmatpush1.bf16.msra.mxu0 %v4924
        %4945 = vmatprep.subr.bf16.mxu0 0
        %4946 = vmatpush1.bf16.msra.mxu0 %v4925
        %4947 = vmatprep.subr.bf16.mxu0 0
        %4948 = vmatpush1.bf16.msra.mxu0 %v4926
        %4949 = vmatprep.subr.bf16.mxu0 0
        %4950 = vmatpush1.bf16.msra.mxu0 %v4927
        %4951 = vmatprep.subr.bf16.mxu0 0
        %4952 = vmatpush1.bf16.msra.mxu0 %v4928
        %4953 = vmatprep.subr.bf16.mxu0 0
        %4954 = vmatpush1.bf16.msra.mxu0 0
        %4955 = vmatprep.subr.bf16.mxu0 0
        %4956 = vmatpush1.bf16.msra.mxu0 0
        %4957 = vmatprep.subr.bf16.mxu0 0
        %4958 = vmatpush1.bf16.msra.mxu0 0
        %4959 = vmatprep.subr.bf16.mxu0 0
        %4960 = vmatpush1.bf16.msra.mxu0 0
        %4961 = vmatprep.subr.bf16.mxu0 0
        %4962 = vmatpush1.bf16.msra.mxu0 0
        %4963 = vmatprep.subr.bf16.mxu0 0
        %4964 = vmatpush1.bf16.msra.mxu0 0
        %4965 = vmatprep.subr.bf16.mxu0 0
        %4966 = vmatpush1.bf16.msra.mxu0 0
        %4967 = vmatprep.subr.bf16.mxu0 0
        %4968 = vmatpush1.bf16.msra.mxu0 0
        %4969 = vmatprep.mubr.bf16.mxu0 0
        %4970 = vmatmul.mubr.bf16.gmra.mrb[0].mxu0 %v4014
        %v4971 = vpop.f32.mrb[0].mxu0
        %v4972 = vadd.f32 0.0, %v4971
        %v4973 = vpop.f32.mrb[0].mxu0
        %v4974 = vpop.f32.mrb[0].mxu0
        %v4975 = vadd.f32 0.0, %v4974
        %v4976 = vpop.f32.mrb[0].mxu0
        %4977 = vmatprep.mubr.bf16.mxu0 0
        %4978 = vmatmul.mubr.bf16.gmra.mrb[0].mxu0 %v4015
        %v4979 = vpop.f32.mrb[0].mxu0
        %v4980 = vadd.f32 0.0, %v4979
        %v4981 = vpop.f32.mrb[0].mxu0
        %v4982 = vpop.f32.mrb[0].mxu0
        %v4983 = vadd.f32 0.0, %v4982
        %v4984 = vpop.f32.mrb[0].mxu0
        %4985 = vmatprep.mubr.bf16.mxu0 0
        %4986 = vmatmul.mubr.bf16.gmra.mrb[0].mxu0 %v4016
        %v4987 = vpop.f32.mrb[0].mxu0
        %v4988 = vadd.f32 0.0, %v4987
        %v4989 = vpop.f32.mrb[0].mxu0
        %v4990 = vpop.f32.mrb[0].mxu0
        %v4991 = vadd.f32 0.0, %v4990
        %v4992 = vpop.f32.mrb[0].mxu0
        %4993 = vmatprep.mubr.bf16.mxu0 0
        %4994 = vmatmul.mubr.bf16.gmra.mrb[0].mxu0 %v4017
        %v4995 = vpop.f32.mrb[0].mxu0
        %v4996 = vadd.f32 0.0, %v4995
        %v4997 = vpop.f32.mrb[0].mxu0
        %v4998 = vpop.f32.mrb[0].mxu0
        %v4999 = vadd.f32 0.0, %v4998
        %v5000 = vpop.f32.mrb[0].mxu0
        %5001 = vmatprep.mubr.bf16.mxu0 0
        %5002 = vmatmul.mubr.bf16.gmra.mrb[0].mxu0 %v4018
        %v5003 = vpop.f32.mrb[0].mxu0
        %v5004 = vadd.f32 0.0, %v5003
        %v5005 = vpop.f32.mrb[0].mxu0
        %v5006 = vpop.f32.mrb[0].mxu0
        %v5007 = vadd.f32 0.0, %v5006
        %v5008 = vpop.f32.mrb[0].mxu0
        %5009 = vmatprep.mubr.bf16.mxu0 0
        %5010 = vmatmul.mubr.bf16.gmra.mrb[0].mxu0 %v4019
        %v5011 = vpop.f32.mrb[0].mxu0
        %v5012 = vadd.f32 0.0, %v5011
        %v5013 = vpop.f32.mrb[0].mxu0
        %v5014 = vpop.f32.mrb[0].mxu0
        %v5015 = vadd.f32 0.0, %v5014
        %v5016 = vpop.f32.mrb[0].mxu0
        %5017 = vmatprep.mubr.bf16.mxu0 0
        %5018 = vmatmul.mubr.bf16.gmra.mrb[0].mxu0 %v4020
        %v5019 = vpop.f32.mrb[0].mxu0
        %v5020 = vadd.f32 0.0, %v5019
        %v5021 = vpop.f32.mrb[0].mxu0
        %v5022 = vpop.f32.mrb[0].mxu0
        %v5023 = vadd.f32 0.0, %v5022
        %v5024 = vpop.f32.mrb[0].mxu0
        %5025 = vmatprep.mubr.bf16.mxu0 0
        %5026 = vmatmul.mubr.bf16.gmra.mrb[0].mxu0 %v4021
        %v5027 = vpop.f32.mrb[0].mxu0
        %v5028 = vadd.f32 0.0, %v5027
        %v5029 = vpop.f32.mrb[0].mxu0
        %v5030 = vpop.f32.mrb[0].mxu0
        %v5031 = vadd.f32 0.0, %v5030
        %v5032 = vpop.f32.mrb[0].mxu0
        %5033 = vmatprep.mubr.bf16.mxu0 0
        %5034 = vmatmul.mubr.bf16.gmra.mrb[0].mxu0 %v4022
        %v5035 = vpop.f32.mrb[0].mxu0
        %v5036 = vadd.f32 0.0, %v5035
        %v5037 = vpop.f32.mrb[0].mxu0
        %v5038 = vpop.f32.mrb[0].mxu0
        %v5039 = vadd.f32 0.0, %v5038
        %v5040 = vpop.f32.mrb[0].mxu0
        %5041 = vmatprep.mubr.bf16.mxu0 0
        %5042 = vmatmul.mubr.bf16.gmra.mrb[0].mxu0 %v4023
        %v5043 = vpop.f32.mrb[0].mxu0
        %v5044 = vadd.f32 0.0, %v5043
        %v5045 = vpop.f32.mrb[0].mxu0
        %v5046 = vpop.f32.mrb[0].mxu0
        %v5047 = vadd.f32 0.0, %v5046
        %v5048 = vpop.f32.mrb[0].mxu0
        %5049 = vmatprep.mubr.bf16.mxu0 0
        %5050 = vmatmul.mubr.bf16.gmra.mrb[0].mxu0 %v4024
        %v5051 = vpop.f32.mrb[0].mxu0
        %v5052 = vadd.f32 0.0, %v5051
        %v5053 = vpop.f32.mrb[0].mxu0
        %v5054 = vpop.f32.mrb[0].mxu0
        %v5055 = vadd.f32 0.0, %v5054
        %v5056 = vpop.f32.mrb[0].mxu0
        %5057 = vmatprep.mubr.bf16.mxu0 0
        %5058 = vmatmul.mubr.bf16.gmra.mrb[0].mxu0 %v4025
        %v5059 = vpop.f32.mrb[0].mxu0
        %v5060 = vadd.f32 0.0, %v5059
        %v5061 = vpop.f32.mrb[0].mxu0
        %v5062 = vpop.f32.mrb[0].mxu0
        %v5063 = vadd.f32 0.0, %v5062
        %v5064 = vpop.f32.mrb[0].mxu0
        %5065 = vmatprep.mubr.bf16.mxu0 0
        %5066 = vmatmul.mubr.bf16.gmra.mrb[0].mxu0 %v4026
        %v5067 = vpop.f32.mrb[0].mxu0
        %v5068 = vadd.f32 0.0, %v5067
        %v5069 = vpop.f32.mrb[0].mxu0
        %v5070 = vpop.f32.mrb[0].mxu0
        %v5071 = vadd.f32 0.0, %v5070
        %v5072 = vpop.f32.mrb[0].mxu0
        %5073 = vmatprep.mubr.bf16.mxu0 0
        %5074 = vmatmul.mubr.bf16.gmra.mrb[0].mxu0 %v4027
        %v5075 = vpop.f32.mrb[0].mxu0
        %v5076 = vadd.f32 0.0, %v5075
        %v5077 = vpop.f32.mrb[0].mxu0
        %v5078 = vpop.f32.mrb[0].mxu0
        %v5079 = vadd.f32 0.0, %v5078
        %v5080 = vpop.f32.mrb[0].mxu0
        %5081 = vmatprep.mubr.bf16.mxu0 0
        %5082 = vmatmul.mubr.bf16.gmra.mrb[0].mxu0 %v4028
        %v5083 = vpop.f32.mrb[0].mxu0
        %v5084 = vadd.f32 0.0, %v5083
        %v5085 = vpop.f32.mrb[0].mxu0
        %v5086 = vpop.f32.mrb[0].mxu0
        %v5087 = vadd.f32 0.0, %v5086
        %v5088 = vpop.f32.mrb[0].mxu0
        %5089 = vmatprep.mubr.bf16.mxu0 0
        %5090 = vmatmul.mubr.bf16.gmra.mrb[0].mxu0 %v4029
        %v5091 = vpop.f32.mrb[0].mxu0
        %v5092 = vadd.f32 0.0, %v5091
        %v5093 = vpop.f32.mrb[0].mxu0
        %v5094 = vpop.f32.mrb[0].mxu0
        %v5095 = vadd.f32 0.0, %v5094
        %v5096 = vpop.f32.mrb[0].mxu0
        %5097 = vmatprep.mubr.bf16.mxu0 0
        %5098 = vmatmul.mubr.bf16.gmra.mrb[0].mxu0 %v4030
        %v5099 = vpop.f32.mrb[0].mxu0
        %v5100 = vadd.f32 0.0, %v5099
        %v5101 = vpop.f32.mrb[0].mxu0
        %v5102 = vpop.f32.mrb[0].mxu0
        %v5103 = vadd.f32 0.0, %v5102
        %v5104 = vpop.f32.mrb[0].mxu0
        %5105 = vmatprep.mubr.bf16.mxu0 0
        %5106 = vmatmul.mubr.bf16.gmra.mrb[0].mxu0 %v4031
        %v5107 = vpop.f32.mrb[0].mxu0
        %v5108 = vadd.f32 0.0, %v5107
        %v5109 = vpop.f32.mrb[0].mxu0
        %v5110 = vpop.f32.mrb[0].mxu0
        %v5111 = vadd.f32 0.0, %v5110
        %v5112 = vpop.f32.mrb[0].mxu0
        %5113 = vmatprep.mubr.bf16.mxu0 0
        %5114 = vmatmul.mubr.bf16.gmra.mrb[0].mxu0 %v4032
        %v5115 = vpop.f32.mrb[0].mxu0
        %v5116 = vadd.f32 0.0, %v5115
        %v5117 = vpop.f32.mrb[0].mxu0
        %v5118 = vpop.f32.mrb[0].mxu0
        %v5119 = vadd.f32 0.0, %v5118
        %v5120 = vpop.f32.mrb[0].mxu0
        %5121 = vmatprep.mubr.bf16.mxu0 0
        %5122 = vmatmul.mubr.bf16.gmra.mrb[0].mxu0 %v4033
        %v5123 = vpop.f32.mrb[0].mxu0
        %v5124 = vadd.f32 0.0, %v5123
        %v5125 = vpop.f32.mrb[0].mxu0
        %v5126 = vpop.f32.mrb[0].mxu0
        %v5127 = vadd.f32 0.0, %v5126
        %v5128 = vpop.f32.mrb[0].mxu0
        %5129 = vmatprep.mubr.bf16.mxu0 0
        %5130 = vmatmul.mubr.bf16.gmra.mrb[0].mxu0 %v4034
        %v5131 = vpop.f32.mrb[0].mxu0
        %v5132 = vadd.f32 0.0, %v5131
        %v5133 = vpop.f32.mrb[0].mxu0
        %v5134 = vpop.f32.mrb[0].mxu0
        %v5135 = vadd.f32 0.0, %v5134
        %v5136 = vpop.f32.mrb[0].mxu0
        %5137 = vmatprep.mubr.bf16.mxu0 0
        %5138 = vmatmul.mubr.bf16.gmra.mrb[0].mxu0 %v4035
        %v5139 = vpop.f32.mrb[0].mxu0
        %v5140 = vadd.f32 0.0, %v5139
        %v5141 = vpop.f32.mrb[0].mxu0
        %v5142 = vpop.f32.mrb[0].mxu0
        %v5143 = vadd.f32 0.0, %v5142
        %v5144 = vpop.f32.mrb[0].mxu0
        %5145 = vmatprep.mubr.bf16.mxu0 0
        %5146 = vmatmul.mubr.bf16.gmra.mrb[0].mxu0 %v4036
        %v5147 = vpop.f32.mrb[0].mxu0
        %v5148 = vadd.f32 0.0, %v5147
        %v5149 = vpop.f32.mrb[0].mxu0
        %v5150 = vpop.f32.mrb[0].mxu0
        %v5151 = vadd.f32 0.0, %v5150
        %v5152 = vpop.f32.mrb[0].mxu0
        %5153 = vmatprep.mubr.bf16.mxu0 0
        %5154 = vmatmul.mubr.bf16.gmra.mrb[0].mxu0 %v4037
        %v5155 = vpop.f32.mrb[0].mxu0
        %v5156 = vadd.f32 0.0, %v5155
        %v5157 = vpop.f32.mrb[0].mxu0
        %v5158 = vpop.f32.mrb[0].mxu0
        %v5159 = vadd.f32 0.0, %v5158
        %v5160 = vpop.f32.mrb[0].mxu0
        %5161 = vmatprep.mubr.bf16.mxu0 0
        %5162 = vmatmul.mubr.bf16.gmra.mrb[0].mxu0 %v4883
        %v5163 = vpop.f32.mrb[0].mxu0
        %v5164 = vadd.f32 0.0, %v5163
        %v5165 = vpop.f32.mrb[0].mxu0
        %v5166 = vpop.f32.mrb[0].mxu0
        %v5167 = vadd.f32 0.0, %v5166
        %v5168 = vpop.f32.mrb[0].mxu0
        %5169 = vmatprep.mubr.bf16.mxu0 0
        %5170 = vmatmul.mubr.bf16.gmra.mrb[0].mxu0 %v4884
        %v5171 = vpop.f32.mrb[0].mxu0
        %v5172 = vadd.f32 0.0, %v5171
        %v5173 = vpop.f32.mrb[0].mxu0
        %v5174 = vpop.f32.mrb[0].mxu0
        %v5175 = vadd.f32 0.0, %v5174
        %v5176 = vpop.f32.mrb[0].mxu0
        %5177 = vmatprep.mubr.bf16.mxu0 0
        %5178 = vmatmul.mubr.bf16.gmra.mrb[0].mxu0 %v4885
        %v5179 = vpop.f32.mrb[0].mxu0
        %v5180 = vadd.f32 0.0, %v5179
        %v5181 = vpop.f32.mrb[0].mxu0
        %v5182 = vpop.f32.mrb[0].mxu0
        %v5183 = vadd.f32 0.0, %v5182
        %v5184 = vpop.f32.mrb[0].mxu0
        %5185 = vdwg.mxu0
        %v5186 = vadd.f32 %v4798, %v4972
        %v5187 = vadd.f32 %v4799, %v4975
        %v5188 = vadd.f32 %v4800, %v4980
        %v5189 = vadd.f32 %v4801, %v4983
        %v5190 = vadd.f32 %v4802, %v4988
        %v5191 = vadd.f32 %v4803, %v4991
        %v5192 = vadd.f32 %v4804, %v4996
        %v5193 = vadd.f32 %v4805, %v4999
        %v5194 = vadd.f32 %v4806, %v5004
        %v5195 = vadd.f32 %v4807, %v5007
        %v5196 = vadd.f32 %v4808, %v5012
        %v5197 = vadd.f32 %v4809, %v5015
        %v5198 = vadd.f32 %v4810, %v5020
        %v5199 = vadd.f32 %v4811, %v5023
        %v5200 = vadd.f32 %v4812, %v5028
        %v5201 = vadd.f32 %v4813, %v5031
        %v5202 = vadd.f32 %v4814, %v5036
        %v5203 = vadd.f32 %v4815, %v5039
        %v5204 = vadd.f32 %v4816, %v5044
        %v5205 = vadd.f32 %v4817, %v5047
        %v5206 = vadd.f32 %v4818, %v5052
        %v5207 = vadd.f32 %v4819, %v5055
        %v5208 = vadd.f32 %v4820, %v5060
        %v5209 = vadd.f32 %v4821, %v5063
        %v5210 = vadd.f32 %v4822, %v5068
        %v5211 = vadd.f32 %v4823, %v5071
        %v5212 = vadd.f32 %v4824, %v5076
        %v5213 = vadd.f32 %v4825, %v5079
        %v5214 = vadd.f32 %v4826, %v5084
        %v5215 = vadd.f32 %v4827, %v5087
        %v5216 = vadd.f32 %v4828, %v5092
        %v5217 = vadd.f32 %v4829, %v5095
        %v5218 = vadd.f32 %v4830, %v5100
        %v5219 = vadd.f32 %v4831, %v5103
        %v5220 = vadd.f32 %v4832, %v5108
        %v5221 = vadd.f32 %v4833, %v5111
        %v5222 = vadd.f32 %v4834, %v5116
        %v5223 = vadd.f32 %v4835, %v5119
        %v5224 = vadd.f32 %v4836, %v5124
        %v5225 = vadd.f32 %v4837, %v5127
        %v5226 = vadd.f32 %v4838, %v5132
        %v5227 = vadd.f32 %v4839, %v5135
        %v5228 = vadd.f32 %v4840, %v5140
        %v5229 = vadd.f32 %v4841, %v5143
        %v5230 = vadd.f32 %v4842, %v5148
        %v5231 = vadd.f32 %v4843, %v5151
        %v5232 = vadd.f32 %v4844, %v5156
        %v5233 = vadd.f32 %v4845, %v5159
        %v5234 = vadd.f32 %v4846, %v5164
        %v5235 = vadd.f32 %v4847, %v5167
        %v5236 = vadd.f32 %v4848, %v5172
        %v5237 = vadd.f32 %v4849, %v5175
        %v5238 = vadd.f32 %v4850, %v5180
        %v5239 = vadd.f32 %v4851, %v5183
        %v5240 = vld [vmem:[#allocation8] sm:$0x1]
        %v5242 = vlaneseq
        %v5243 = vshrl.u32 %v5242, 7
        %v5244 = vsub.s32 0, %v5243
        %v5245 = vrot.slane %v5240, %v5244
        %v5247 = vmul.f32 %v5186, %v5245
        %v5248 = vmul.f32 %v5187, %v5245
        %v5249 = vmul.f32 %v5188, %v5245
        %v5250 = vmul.f32 %v5189, %v5245
        %v5251 = vmul.f32 %v5190, %v5245
        %v5252 = vmul.f32 %v5191, %v5245
        %v5253 = vmul.f32 %v5192, %v5245
        %v5254 = vmul.f32 %v5193, %v5245
        %v5255 = vmul.f32 %v5194, %v5245
        %v5256 = vmul.f32 %v5195, %v5245
        %v5257 = vmul.f32 %v5196, %v5245
        %v5258 = vmul.f32 %v5197, %v5245
        %v5259 = vmul.f32 %v5198, %v5245
        %v5260 = vmul.f32 %v5199, %v5245
        %v5261 = vmul.f32 %v5200, %v5245
        %v5262 = vmul.f32 %v5201, %v5245
        %v5263 = vmul.f32 %v5202, %v5245
        %v5264 = vmul.f32 %v5203, %v5245
        %v5265 = vmul.f32 %v5204, %v5245
        %v5266 = vmul.f32 %v5205, %v5245
        %v5267 = vmul.f32 %v5206, %v5245
        %v5268 = vmul.f32 %v5207, %v5245
        %v5269 = vmul.f32 %v5208, %v5245
        %v5270 = vmul.f32 %v5209, %v5245
        %v5271 = vmul.f32 %v5210, %v5245
        %v5272 = vmul.f32 %v5211, %v5245
        %v5273 = vmul.f32 %v5212, %v5245
        %v5274 = vmul.f32 %v5213, %v5245
        %v5275 = vmul.f32 %v5214, %v5245
        %v5276 = vmul.f32 %v5215, %v5245
        %v5277 = vmul.f32 %v5216, %v5245
        %v5278 = vmul.f32 %v5217, %v5245
        %v5279 = vmul.f32 %v5218, %v5245
        %v5280 = vmul.f32 %v5219, %v5245
        %v5281 = vmul.f32 %v5220, %v5245
        %v5282 = vmul.f32 %v5221, %v5245
        %v5283 = vmul.f32 %v5222, %v5245
        %v5284 = vmul.f32 %v5223, %v5245
        %v5285 = vmul.f32 %v5224, %v5245
        %v5286 = vmul.f32 %v5225, %v5245
        %v5287 = vmul.f32 %v5226, %v5245
        %v5288 = vmul.f32 %v5227, %v5245
        %v5289 = vmul.f32 %v5228, %v5245
        %v5290 = vmul.f32 %v5229, %v5245
        %v5291 = vmul.f32 %v5230, %v5245
        %v5292 = vmul.f32 %v5231, %v5245
        %v5293 = vmul.f32 %v5232, %v5245
        %v5294 = vmul.f32 %v5233, %v5245
        %v5295 = vmul.f32 %v5234, %v5245
        %v5296 = vmul.f32 %v5235, %v5245
        %v5297 = vmul.f32 %v5236, %v5245
        %v5298 = vmul.f32 %v5237, %v5245
        %v5299 = vmul.f32 %v5238, %v5245
        %v5300 = vmul.f32 %v5239, %v5245
        %v5301 = vld [vmem:[#allocation9] sm:$0x1]
        %v5303 = vlaneseq
        %v5304 = vshrl.u32 %v5303, 7
        %v5305 = vsub.s32 0, %v5304
        %v5306 = vrot.slane %v5301, %v5305
        %v5308 = vadd.f32 %v5247, %v5306
        %v5309 = vadd.f32 %v5248, %v5306
        %v5310 = vadd.f32 %v5249, %v5306
        %v5311 = vadd.f32 %v5250, %v5306
        %v5312 = vadd.f32 %v5251, %v5306
        %v5313 = vadd.f32 %v5252, %v5306
        %v5314 = vadd.f32 %v5253, %v5306
        %v5315 = vadd.f32 %v5254, %v5306
        %v5316 = vadd.f32 %v5255, %v5306
        %v5317 = vadd.f32 %v5256, %v5306
        %v5318 = vadd.f32 %v5257, %v5306
        %v5319 = vadd.f32 %v5258, %v5306
        %v5320 = vadd.f32 %v5259, %v5306
        %v5321 = vadd.f32 %v5260, %v5306
        %v5322 = vadd.f32 %v5261, %v5306
        %v5323 = vadd.f32 %v5262, %v5306
        %v5324 = vadd.f32 %v5263, %v5306
        %v5325 = vadd.f32 %v5264, %v5306
        %v5326 = vadd.f32 %v5265, %v5306
        %v5327 = vadd.f32 %v5266, %v5306
        %v5328 = vadd.f32 %v5267, %v5306
        %v5329 = vadd.f32 %v5268, %v5306
        %v5330 = vadd.f32 %v5269, %v5306
        %v5331 = vadd.f32 %v5270, %v5306
        %v5332 = vadd.f32 %v5271, %v5306
        %v5333 = vadd.f32 %v5272, %v5306
        %v5334 = vadd.f32 %v5273, %v5306
        %v5335 = vadd.f32 %v5274, %v5306
        %v5336 = vadd.f32 %v5275, %v5306
        %v5337 = vadd.f32 %v5276, %v5306
        %v5338 = vadd.f32 %v5277, %v5306
        %v5339 = vadd.f32 %v5278, %v5306
        %v5340 = vadd.f32 %v5279, %v5306
        %v5341 = vadd.f32 %v5280, %v5306
        %v5342 = vadd.f32 %v5281, %v5306
        %v5343 = vadd.f32 %v5282, %v5306
        %v5344 = vadd.f32 %v5283, %v5306
        %v5345 = vadd.f32 %v5284, %v5306
        %v5346 = vadd.f32 %v5285, %v5306
        %v5347 = vadd.f32 %v5286, %v5306
        %v5348 = vadd.f32 %v5287, %v5306
        %v5349 = vadd.f32 %v5288, %v5306
        %v5350 = vadd.f32 %v5289, %v5306
        %v5351 = vadd.f32 %v5290, %v5306
        %v5352 = vadd.f32 %v5291, %v5306
        %v5353 = vadd.f32 %v5292, %v5306
        %v5354 = vadd.f32 %v5293, %v5306
        %v5355 = vadd.f32 %v5294, %v5306
        %v5356 = vadd.f32 %v5295, %v5306
        %v5357 = vadd.f32 %v5296, %v5306
        %v5358 = vadd.f32 %v5297, %v5306
        %v5359 = vadd.f32 %v5298, %v5306
        %v5360 = vadd.f32 %v5299, %v5306
        %v5361 = vadd.f32 %v5300, %v5306
        %v5362 = vmax.f32 %v5308, 0.0
        %v5363 = vmax.f32 %v5309, 0.0
        %v5364 = vmax.f32 %v5310, 0.0
        %v5365 = vmax.f32 %v5311, 0.0
        %v5366 = vmax.f32 %v5312, 0.0
        %v5367 = vmax.f32 %v5313, 0.0
        %v5368 = vmax.f32 %v5314, 0.0
        %v5369 = vmax.f32 %v5315, 0.0
        %v5370 = vmax.f32 %v5316, 0.0
        %v5371 = vmax.f32 %v5317, 0.0
        %v5372 = vmax.f32 %v5318, 0.0
        %v5373 = vmax.f32 %v5319, 0.0
        %v5374 = vmax.f32 %v5320, 0.0
        %v5375 = vmax.f32 %v5321, 0.0
        %v5376 = vmax.f32 %v5322, 0.0
        %v5377 = vmax.f32 %v5323, 0.0
        %v5378 = vmax.f32 %v5324, 0.0
        %v5379 = vmax.f32 %v5325, 0.0
        %v5380 = vmax.f32 %v5326, 0.0
        %v5381 = vmax.f32 %v5327, 0.0
        %v5382 = vmax.f32 %v5328, 0.0
        %v5383 = vmax.f32 %v5329, 0.0
        %v5384 = vmax.f32 %v5330, 0.0
        %v5385 = vmax.f32 %v5331, 0.0
        %v5386 = vmax.f32 %v5332, 0.0
        %v5387 = vmax.f32 %v5333, 0.0
        %v5388 = vmax.f32 %v5334, 0.0
        %v5389 = vmax.f32 %v5335, 0.0
        %v5390 = vmax.f32 %v5336, 0.0
        %v5391 = vmax.f32 %v5337, 0.0
        %v5392 = vmax.f32 %v5338, 0.0
        %v5393 = vmax.f32 %v5339, 0.0
        %v5394 = vmax.f32 %v5340, 0.0
        %v5395 = vmax.f32 %v5341, 0.0
        %v5396 = vmax.f32 %v5342, 0.0
        %v5397 = vmax.f32 %v5343, 0.0
        %v5398 = vmax.f32 %v5344, 0.0
        %v5399 = vmax.f32 %v5345, 0.0
        %v5400 = vmax.f32 %v5346, 0.0
        %v5401 = vmax.f32 %v5347, 0.0
        %v5402 = vmax.f32 %v5348, 0.0
        %v5403 = vmax.f32 %v5349, 0.0
        %v5404 = vmax.f32 %v5350, 0.0
        %v5405 = vmax.f32 %v5351, 0.0
        %v5406 = vmax.f32 %v5352, 0.0
        %v5407 = vmax.f32 %v5353, 0.0
        %v5408 = vmax.f32 %v5354, 0.0
        %v5409 = vmax.f32 %v5355, 0.0
        %v5410 = vmax.f32 %v5356, 0.0
        %v5411 = vmax.f32 %v5357, 0.0
        %v5412 = vmax.f32 %v5358, 0.0
        %v5413 = vmax.f32 %v5359, 0.0
        %v5414 = vmax.f32 %v5360, 0.0
        %v5415 = vmax.f32 %v5361, 0.0
        %s5416 = smul.u32 %s36, 16
        %v5417 = vstv %s5416
        %v5418 = vadd.s32 %v5417, 1
        %v5419 = vadd.s32 %v5417, 2
        %v5420 = vadd.s32 %v5417, 3
        %v5421 = vadd.s32 %v5417, 4
        %v5422 = vadd.s32 %v5417, 5
        %v5423 = vadd.s32 %v5417, 6
        %v5424 = vadd.s32 %v5417, 7
        %v5425 = vadd.s32 %v5417, 8
        %v5426 = vadd.s32 %v5417, 9
        %v5427 = vadd.s32 %v5417, 10
        %v5428 = vadd.s32 %v5417, 11
        %v5429 = vadd.s32 %v5417, 12
        %v5430 = vadd.s32 %v5417, 13
        %v5431 = vadd.s32 %v5417, 14
        %v5432 = vadd.s32 %v5417, 15
        %v5433 = vadd.s32 %v5417, 16
        %v5434 = vadd.s32 %v5417, 17
        %v5435 = vlaneseq
        %v5436 = vshrl.u32 %v5435, 7
        %v5437 = vadd.s32 %v5436, 8
        %v5438 = vadd.s32 %v5436, 16
        %vm5439 = vcmp.ge.s32.totalorder %v5417, 1
        %vm5440 = vcmp.ge.s32.totalorder %v5418, 1
        %vm5441 = vcmp.ge.s32.totalorder %v5419, 1
        %vm5442 = vcmp.ge.s32.totalorder %v5420, 1
        %vm5443 = vcmp.ge.s32.totalorder %v5421, 1
        %vm5444 = vcmp.ge.s32.totalorder %v5422, 1
        %vm5445 = vcmp.ge.s32.totalorder %v5423, 1
        %vm5446 = vcmp.ge.s32.totalorder %v5424, 1
        %vm5447 = vcmp.ge.s32.totalorder %v5425, 1
        %vm5448 = vcmp.ge.s32.totalorder %v5426, 1
        %vm5449 = vcmp.ge.s32.totalorder %v5427, 1
        %vm5450 = vcmp.ge.s32.totalorder %v5428, 1
        %vm5451 = vcmp.ge.s32.totalorder %v5429, 1
        %vm5452 = vcmp.ge.s32.totalorder %v5430, 1
        %vm5453 = vcmp.ge.s32.totalorder %v5431, 1
        %vm5454 = vcmp.ge.s32.totalorder %v5432, 1
        %vm5455 = vcmp.ge.s32.totalorder %v5433, 1
        %vm5456 = vcmp.ge.s32.totalorder %v5434, 1
        %vm5457 = vcmp.le.s32.totalorder %v5417, 16
        %vm5458 = vcmp.le.s32.totalorder %v5418, 16
        %vm5459 = vcmp.le.s32.totalorder %v5419, 16
        %vm5460 = vcmp.le.s32.totalorder %v5420, 16
        %vm5461 = vcmp.le.s32.totalorder %v5421, 16
        %vm5462 = vcmp.le.s32.totalorder %v5422, 16
        %vm5463 = vcmp.le.s32.totalorder %v5423, 16
        %vm5464 = vcmp.le.s32.totalorder %v5424, 16
        %vm5465 = vcmp.le.s32.totalorder %v5425, 16
        %vm5466 = vcmp.le.s32.totalorder %v5426, 16
        %vm5467 = vcmp.le.s32.totalorder %v5427, 16
        %vm5468 = vcmp.le.s32.totalorder %v5428, 16
        %vm5469 = vcmp.le.s32.totalorder %v5429, 16
        %vm5470 = vcmp.le.s32.totalorder %v5430, 16
        %vm5471 = vcmp.le.s32.totalorder %v5431, 16
        %vm5472 = vcmp.le.s32.totalorder %v5432, 16
        %vm5473 = vcmp.le.s32.totalorder %v5433, 16
        %vm5474 = vcmp.le.s32.totalorder %v5434, 16
        %vm5475 = vmand %vm5439, %vm5457
        %vm5476 = vmand %vm5440, %vm5458
        %vm5477 = vmand %vm5441, %vm5459
        %vm5478 = vmand %vm5442, %vm5460
        %vm5479 = vmand %vm5443, %vm5461
        %vm5480 = vmand %vm5444, %vm5462
        %vm5481 = vmand %vm5445, %vm5463
        %vm5482 = vmand %vm5446, %vm5464
        %vm5483 = vmand %vm5447, %vm5465
        %vm5484 = vmand %vm5448, %vm5466
        %vm5485 = vmand %vm5449, %vm5467
        %vm5486 = vmand %vm5450, %vm5468
        %vm5487 = vmand %vm5451, %vm5469
        %vm5488 = vmand %vm5452, %vm5470
        %vm5489 = vmand %vm5453, %vm5471
        %vm5490 = vmand %vm5454, %vm5472
        %vm5491 = vmand %vm5455, %vm5473
        %vm5492 = vmand %vm5456, %vm5474
        %vm5493 = vcmp.ge.s32.totalorder %v5436, 1
        %vm5494 = vcmp.ge.s32.totalorder %v5437, 1
        %vm5495 = vcmp.ge.s32.totalorder %v5438, 1
        %vm5496 = vmand %vm5475, %vm5493
        %vm5497 = vmand %vm5475, %vm5494
        %vm5498 = vmand %vm5475, %vm5495
        %vm5499 = vmand %vm5476, %vm5493
        %vm5500 = vmand %vm5476, %vm5494
        %vm5501 = vmand %vm5476, %vm5495
        %vm5502 = vmand %vm5477, %vm5493
        %vm5503 = vmand %vm5477, %vm5494
        %vm5504 = vmand %vm5477, %vm5495
        %vm5505 = vmand %vm5478, %vm5493
        %vm5506 = vmand %vm5478, %vm5494
        %vm5507 = vmand %vm5478, %vm5495
        %vm5508 = vmand %vm5479, %vm5493
        %vm5509 = vmand %vm5479, %vm5494
        %vm5510 = vmand %vm5479, %vm5495
        %vm5511 = vmand %vm5480, %vm5493
        %vm5512 = vmand %vm5480, %vm5494
        %vm5513 = vmand %vm5480, %vm5495
        %vm5514 = vmand %vm5481, %vm5493
        %vm5515 = vmand %vm5481, %vm5494
        %vm5516 = vmand %vm5481, %vm5495
        %vm5517 = vmand %vm5482, %vm5493
        %vm5518 = vmand %vm5482, %vm5494
        %vm5519 = vmand %vm5482, %vm5495
        %vm5520 = vmand %vm5483, %vm5493
        %vm5521 = vmand %vm5483, %vm5494
        %vm5522 = vmand %vm5483, %vm5495
        %vm5523 = vmand %vm5484, %vm5493
        %vm5524 = vmand %vm5484, %vm5494
        %vm5525 = vmand %vm5484, %vm5495
        %vm5526 = vmand %vm5485, %vm5493
        %vm5527 = vmand %vm5485, %vm5494
        %vm5528 = vmand %vm5485, %vm5495
        %vm5529 = vmand %vm5486, %vm5493
        %vm5530 = vmand %vm5486, %vm5494
        %vm5531 = vmand %vm5486, %vm5495
        %vm5532 = vmand %vm5487, %vm5493
        %vm5533 = vmand %vm5487, %vm5494
        %vm5534 = vmand %vm5487, %vm5495
        %vm5535 = vmand %vm5488, %vm5493
        %vm5536 = vmand %vm5488, %vm5494
        %vm5537 = vmand %vm5488, %vm5495
        %vm5538 = vmand %vm5489, %vm5493
        %vm5539 = vmand %vm5489, %vm5494
        %vm5540 = vmand %vm5489, %vm5495
        %vm5541 = vmand %vm5490, %vm5493
        %vm5542 = vmand %vm5490, %vm5494
        %vm5543 = vmand %vm5490, %vm5495
        %vm5544 = vmand %vm5491, %vm5493
        %vm5545 = vmand %vm5491, %vm5494
        %vm5546 = vmand %vm5491, %vm5495
        %vm5547 = vmand %vm5492, %vm5493
        %vm5548 = vmand %vm5492, %vm5494
        %vm5549 = vmand %vm5492, %vm5495
        %vm5550 = vcmp.le.s32.totalorder %v5436, 16
        %vm5551 = vcmp.le.s32.totalorder %v5437, 16
        %vm5552 = vcmp.le.s32.totalorder %v5438, 16
        %vm5553 = vmand %vm5496, %vm5550
        %vm5554 = vmand %vm5497, %vm5551
        %vm5555 = vmand %vm5498, %vm5552
        %vm5556 = vmand %vm5499, %vm5550
        %vm5557 = vmand %vm5500, %vm5551
        %vm5558 = vmand %vm5501, %vm5552
        %vm5559 = vmand %vm5502, %vm5550
        %vm5560 = vmand %vm5503, %vm5551
        %vm5561 = vmand %vm5504, %vm5552
        %vm5562 = vmand %vm5505, %vm5550
        %vm5563 = vmand %vm5506, %vm5551
        %vm5564 = vmand %vm5507, %vm5552
        %vm5565 = vmand %vm5508, %vm5550
        %vm5566 = vmand %vm5509, %vm5551
        %vm5567 = vmand %vm5510, %vm5552
        %vm5568 = vmand %vm5511, %vm5550
        %vm5569 = vmand %vm5512, %vm5551
        %vm5570 = vmand %vm5513, %vm5552
        %vm5571 = vmand %vm5514, %vm5550
        %vm5572 = vmand %vm5515, %vm5551
        %vm5573 = vmand %vm5516, %vm5552
        %vm5574 = vmand %vm5517, %vm5550
        %vm5575 = vmand %vm5518, %vm5551
        %vm5576 = vmand %vm5519, %vm5552
        %vm5577 = vmand %vm5520, %vm5550
        %vm5578 = vmand %vm5521, %vm5551
        %vm5579 = vmand %vm5522, %vm5552
        %vm5580 = vmand %vm5523, %vm5550
        %vm5581 = vmand %vm5524, %vm5551
        %vm5582 = vmand %vm5525, %vm5552
        %vm5583 = vmand %vm5526, %vm5550
        %vm5584 = vmand %vm5527, %vm5551
        %vm5585 = vmand %vm5528, %vm5552
        %vm5586 = vmand %vm5529, %vm5550
        %vm5587 = vmand %vm5530, %vm5551
        %vm5588 = vmand %vm5531, %vm5552
        %vm5589 = vmand %vm5532, %vm5550
        %vm5590 = vmand %vm5533, %vm5551
        %vm5591 = vmand %vm5534, %vm5552
        %vm5592 = vmand %vm5535, %vm5550
        %vm5593 = vmand %vm5536, %vm5551
        %vm5594 = vmand %vm5537, %vm5552
        %vm5595 = vmand %vm5538, %vm5550
        %vm5596 = vmand %vm5539, %vm5551
        %vm5597 = vmand %vm5540, %vm5552
        %vm5598 = vmand %vm5541, %vm5550
        %vm5599 = vmand %vm5542, %vm5551
        %vm5600 = vmand %vm5543, %vm5552
        %vm5601 = vmand %vm5544, %vm5550
        %vm5602 = vmand %vm5545, %vm5551
        %vm5603 = vmand %vm5546, %vm5552
        %vm5604 = vmand %vm5547, %vm5550
        %vm5605 = vmand %vm5548, %vm5551
        %vm5606 = vmand %vm5549, %vm5552
        %v5607 = vsel %vm5553, %v5362, 0.0
        %v5608 = vsel %vm5554, %v5363, 0.0
        %v5609 = vsel %vm5555, %v5364, 0.0
        %v5610 = vsel %vm5556, %v5365, 0.0
        %v5611 = vsel %vm5557, %v5366, 0.0
        %v5612 = vsel %vm5558, %v5367, 0.0
        %v5613 = vsel %vm5559, %v5368, 0.0
        %v5614 = vsel %vm5560, %v5369, 0.0
        %v5615 = vsel %vm5561, %v5370, 0.0
        %v5616 = vsel %vm5562, %v5371, 0.0
        %v5617 = vsel %vm5563, %v5372, 0.0
        %v5618 = vsel %vm5564, %v5373, 0.0
        %v5619 = vsel %vm5565, %v5374, 0.0
        %v5620 = vsel %vm5566, %v5375, 0.0
        %v5621 = vsel %vm5567, %v5376, 0.0
        %v5622 = vsel %vm5568, %v5377, 0.0
        %v5623 = vsel %vm5569, %v5378, 0.0
        %v5624 = vsel %vm5570, %v5379, 0.0
        %v5625 = vsel %vm5571, %v5380, 0.0
        %v5626 = vsel %vm5572, %v5381, 0.0
        %v5627 = vsel %vm5573, %v5382, 0.0
        %v5628 = vsel %vm5574, %v5383, 0.0
        %v5629 = vsel %vm5575, %v5384, 0.0
        %v5630 = vsel %vm5576, %v5385, 0.0
        %v5631 = vsel %vm5577, %v5386, 0.0
        %v5632 = vsel %vm5578, %v5387, 0.0
        %v5633 = vsel %vm5579, %v5388, 0.0
        %v5634 = vsel %vm5580, %v5389, 0.0
        %v5635 = vsel %vm5581, %v5390, 0.0
        %v5636 = vsel %vm5582, %v5391, 0.0
        %v5637 = vsel %vm5583, %v5392, 0.0
        %v5638 = vsel %vm5584, %v5393, 0.0
        %v5639 = vsel %vm5585, %v5394, 0.0
        %v5640 = vsel %vm5586, %v5395, 0.0
        %v5641 = vsel %vm5587, %v5396, 0.0
        %v5642 = vsel %vm5588, %v5397, 0.0
        %v5643 = vsel %vm5589, %v5398, 0.0
        %v5644 = vsel %vm5590, %v5399, 0.0
        %v5645 = vsel %vm5591, %v5400, 0.0
        %v5646 = vsel %vm5592, %v5401, 0.0
        %v5647 = vsel %vm5593, %v5402, 0.0
        %v5648 = vsel %vm5594, %v5403, 0.0
        %v5649 = vsel %vm5595, %v5404, 0.0
        %v5650 = vsel %vm5596, %v5405, 0.0
        %v5651 = vsel %vm5597, %v5406, 0.0
        %v5652 = vsel %vm5598, %v5407, 0.0
        %v5653 = vsel %vm5599, %v5408, 0.0
        %v5654 = vsel %vm5600, %v5409, 0.0
        %v5655 = vsel %vm5601, %v5410, 0.0
        %v5656 = vsel %vm5602, %v5411, 0.0
        %v5657 = vsel %vm5603, %v5412, 0.0
        %v5658 = vsel %vm5604, %v5413, 0.0
        %v5659 = vsel %vm5605, %v5414, 0.0
        %v5660 = vsel %vm5606, %v5415, 0.0
        %v5661 = vpack.c.bf16 %v5608, %v5607
        %v5662 = vpack.c.bf16 %v5609, %v5609
        %v5663 = vpack.c.bf16 %v5611, %v5610
        %v5664 = vpack.c.bf16 %v5612, %v5612
        %v5665 = vpack.c.bf16 %v5614, %v5613
        %v5666 = vpack.c.bf16 %v5615, %v5615
        %v5667 = vpack.c.bf16 %v5617, %v5616
        %v5668 = vpack.c.bf16 %v5618, %v5618
        %v5669 = vpack.c.bf16 %v5620, %v5619
        %v5670 = vpack.c.bf16 %v5621, %v5621
        %v5671 = vpack.c.bf16 %v5623, %v5622
        %v5672 = vpack.c.bf16 %v5624, %v5624
        %v5673 = vpack.c.bf16 %v5626, %v5625
        %v5674 = vpack.c.bf16 %v5627, %v5627
        %v5675 = vpack.c.bf16 %v5629, %v5628
        %v5676 = vpack.c.bf16 %v5630, %v5630
        %v5677 = vpack.c.bf16 %v5632, %v5631
        %v5678 = vpack.c.bf16 %v5633, %v5633
        %v5679 = vpack.c.bf16 %v5635, %v5634
        %v5680 = vpack.c.bf16 %v5636, %v5636
        %v5681 = vpack.c.bf16 %v5638, %v5637
        %v5682 = vpack.c.bf16 %v5639, %v5639
        %v5683 = vpack.c.bf16 %v5641, %v5640
        %v5684 = vpack.c.bf16 %v5642, %v5642
        %v5685 = vpack.c.bf16 %v5644, %v5643
        %v5686 = vpack.c.bf16 %v5645, %v5645
        %v5687 = vpack.c.bf16 %v5647, %v5646
        %v5688 = vpack.c.bf16 %v5648, %v5648
        %v5689 = vpack.c.bf16 %v5650, %v5649
        %v5690 = vpack.c.bf16 %v5651, %v5651
        %v5691 = vpack.c.bf16 %v5653, %v5652
        %v5692 = vpack.c.bf16 %v5654, %v5654
        %v5693 = vpack.c.bf16 %v5656, %v5655
        %v5694 = vpack.c.bf16 %v5657, %v5657
        %v5695 = vpack.c.bf16 %v5659, %v5658
        %v5696 = vpack.c.bf16 %v5660, %v5660
        %v5733 = vunpack.c.l.b16 %v5661
        %v5734 = vunpack.c.h.b16 %v5661
        %v5735 = vunpack.c.l.b16 %v5662
        %v5736 = vunpack.c.l.b16 %v5663
        %v5737 = vunpack.c.h.b16 %v5663
        %v5738 = vunpack.c.l.b16 %v5664
        %v5739 = vunpack.c.l.b16 %v5665
        %v5740 = vunpack.c.h.b16 %v5665
        %v5741 = vunpack.c.l.b16 %v5666
        %v5742 = vunpack.c.l.b16 %v5667
        %v5743 = vunpack.c.h.b16 %v5667
        %v5744 = vunpack.c.l.b16 %v5668
        %v5745 = vunpack.c.l.b16 %v5669
        %v5746 = vunpack.c.h.b16 %v5669
        %v5747 = vunpack.c.l.b16 %v5670
        %v5748 = vunpack.c.l.b16 %v5671
        %v5749 = vunpack.c.h.b16 %v5671
        %v5750 = vunpack.c.l.b16 %v5672
        %v5751 = vunpack.c.l.b16 %v5673
        %v5752 = vunpack.c.h.b16 %v5673
        %v5753 = vunpack.c.l.b16 %v5674
        %v5754 = vunpack.c.l.b16 %v5675
        %v5755 = vunpack.c.h.b16 %v5675
        %v5756 = vunpack.c.l.b16 %v5676
        %v5757 = vunpack.c.l.b16 %v5677
        %v5758 = vunpack.c.h.b16 %v5677
        %v5759 = vunpack.c.l.b16 %v5678
        %v5760 = vunpack.c.l.b16 %v5679
        %v5761 = vunpack.c.h.b16 %v5679
        %v5762 = vunpack.c.l.b16 %v5680
        %v5763 = vunpack.c.l.b16 %v5681
        %v5764 = vunpack.c.h.b16 %v5681
        %v5765 = vunpack.c.l.b16 %v5682
        %v5766 = vunpack.c.l.b16 %v5683
        %v5767 = vunpack.c.h.b16 %v5683
        %v5768 = vunpack.c.l.b16 %v5684
        %v5769 = vunpack.c.l.b16 %v5685
        %v5770 = vunpack.c.h.b16 %v5685
        %v5771 = vunpack.c.l.b16 %v5686
        %v5772 = vunpack.c.l.b16 %v5687
        %v5773 = vunpack.c.h.b16 %v5687
        %v5774 = vunpack.c.l.b16 %v5688
        %v5775 = vunpack.c.l.b16 %v5689
        %v5776 = vunpack.c.h.b16 %v5689
        %v5777 = vunpack.c.l.b16 %v5690
        %v5778 = vunpack.c.l.b16 %v5691
        %v5779 = vunpack.c.h.b16 %v5691
        %v5780 = vunpack.c.l.b16 %v5692
        %v5781 = vunpack.c.l.b16 %v5693
        %v5782 = vunpack.c.h.b16 %v5693
        %v5783 = vunpack.c.l.b16 %v5694
        %v5784 = vunpack.c.l.b16 %v5695
        %v5785 = vunpack.c.h.b16 %v5695
        %v5786 = vunpack.c.l.b16 %v5696
        %v5787 = vpack.c.b16 %v5733, %v5733
        %v5788 = vpack.c.b16 %v5734, %v5734
        %v5789 = vpack.c.b16 %v5735, %v5735
        %v5790 = vpack.c.b16 %v5736, %v5736
        %v5791 = vpack.c.b16 %v5737, %v5737
        %v5792 = vpack.c.b16 %v5738, %v5738
        %v5793 = vpack.c.b16 %v5739, %v5739
        %v5794 = vpack.c.b16 %v5740, %v5740
        %v5795 = vpack.c.b16 %v5741, %v5741
        %v5796 = vpack.c.b16 %v5742, %v5742
        %v5797 = vpack.c.b16 %v5743, %v5743
        %v5798 = vpack.c.b16 %v5744, %v5744
        %v5799 = vpack.c.b16 %v5745, %v5745
        %v5800 = vpack.c.b16 %v5746, %v5746
        %v5801 = vpack.c.b16 %v5747, %v5747
        %v5802 = vpack.c.b16 %v5748, %v5748
        %v5803 = vpack.c.b16 %v5749, %v5749
        %v5804 = vpack.c.b16 %v5750, %v5750
        %v5805 = vpack.c.b16 %v5751, %v5751
        %v5806 = vpack.c.b16 %v5752, %v5752
        %v5807 = vpack.c.b16 %v5753, %v5753
        %v5808 = vpack.c.b16 %v5754, %v5754
        %v5809 = vpack.c.b16 %v5755, %v5755
        %v5810 = vpack.c.b16 %v5756, %v5756
        %v5811 = vpack.c.b16 %v5757, %v5757
        %v5812 = vpack.c.b16 %v5758, %v5758
        %v5813 = vpack.c.b16 %v5759, %v5759
        %v5814 = vpack.c.b16 %v5760, %v5760
        %v5815 = vpack.c.b16 %v5761, %v5761
        %v5816 = vpack.c.b16 %v5762, %v5762
        %v5817 = vpack.c.b16 %v5763, %v5763
        %v5818 = vpack.c.b16 %v5764, %v5764
        %v5819 = vpack.c.b16 %v5765, %v5765
        %v5820 = vpack.c.b16 %v5766, %v5766
        %v5821 = vpack.c.b16 %v5767, %v5767
        %v5822 = vpack.c.b16 %v5768, %v5768
        %v5823 = vpack.c.b16 %v5769, %v5769
        %v5824 = vpack.c.b16 %v5770, %v5770
        %v5825 = vpack.c.b16 %v5771, %v5771
        %v5826 = vpack.c.b16 %v5772, %v5772
        %v5827 = vpack.c.b16 %v5773, %v5773
        %v5828 = vpack.c.b16 %v5774, %v5774
        %v5829 = vpack.c.b16 %v5775, %v5775
        %v5830 = vpack.c.b16 %v5776, %v5776
        %v5831 = vpack.c.b16 %v5777, %v5777
        %v5832 = vpack.c.b16 %v5778, %v5778
        %v5833 = vpack.c.b16 %v5779, %v5779
        %v5834 = vpack.c.b16 %v5780, %v5780
        %v5835 = vpack.c.b16 %v5781, %v5781
        %v5836 = vpack.c.b16 %v5782, %v5782
        %v5837 = vpack.c.b16 %v5783, %v5783
        %v5838 = vpack.c.b16 %v5784, %v5784
        %v5839 = vpack.c.b16 %v5785, %v5785
        %v5840 = vpack.c.b16 %v5786, %v5786
        %5895 = vst [vmem:[#allocation2] sm:$0xf] %v5787
        %5896 = vst [vmem:[#allocation2 + $0x4] sm:$0xf] %v5788
        %5897 = vst [vmem:[#allocation2 + $0x8] sm:$0xf] %v5789
        %5898 = vst [vmem:[#allocation2 + $0xc] sm:$0xf] %v5790
        %5899 = vst [vmem:[#allocation2 + $0x10] sm:$0xf] %v5791
        %5900 = vst [vmem:[#allocation2 + $0x14] sm:$0xf] %v5792
        %5901 = vst [vmem:[#allocation2 + $0x18] sm:$0xf] %v5793
        %5902 = vst [vmem:[#allocation2 + $0x1c] sm:$0xf] %v5794
        %5903 = vst [vmem:[#allocation2 + $0x20] sm:$0xf] %v5795
        %5904 = vst [vmem:[#allocation2 + $0x24] sm:$0xf] %v5796
        %5905 = vst [vmem:[#allocation2 + $0x28] sm:$0xf] %v5797
        %5906 = vst [vmem:[#allocation2 + $0x2c] sm:$0xf] %v5798
        %5907 = vst [vmem:[#allocation2 + $0x30] sm:$0xf] %v5799
        %5908 = vst [vmem:[#allocation2 + $0x34] sm:$0xf] %v5800
        %5909 = vst [vmem:[#allocation2 + $0x38] sm:$0xf] %v5801
        %5910 = vst [vmem:[#allocation2 + $0x3c] sm:$0xf] %v5802
        %5911 = vst [vmem:[#allocation2 + $0x40] sm:$0xf] %v5803
        %5912 = vst [vmem:[#allocation2 + $0x44] sm:$0xf] %v5804
        %5913 = vst [vmem:[#allocation2 + $0x48] sm:$0xf] %v5805
        %5914 = vst [vmem:[#allocation2 + $0x4c] sm:$0xf] %v5806
        %5915 = vst [vmem:[#allocation2 + $0x50] sm:$0xf] %v5807
        %5916 = vst [vmem:[#allocation2 + $0x54] sm:$0xf] %v5808
        %5917 = vst [vmem:[#allocation2 + $0x58] sm:$0xf] %v5809
        %5918 = vst [vmem:[#allocation2 + $0x5c] sm:$0xf] %v5810
        %5919 = vst [vmem:[#allocation2 + $0x60] sm:$0xf] %v5811
        %5920 = vst [vmem:[#allocation2 + $0x64] sm:$0xf] %v5812
        %5921 = vst [vmem:[#allocation2 + $0x68] sm:$0xf] %v5813
        %5922 = vst [vmem:[#allocation2 + $0x6c] sm:$0xf] %v5814
        %5923 = vst [vmem:[#allocation2 + $0x70] sm:$0xf] %v5815
        %5924 = vst [vmem:[#allocation2 + $0x74] sm:$0xf] %v5816
        %5925 = vst [vmem:[#allocation2 + $0x78] sm:$0xf] %v5817
        %5926 = vst [vmem:[#allocation2 + $0x7c] sm:$0xf] %v5818
        %5927 = vst [vmem:[#allocation2 + $0x80] sm:$0xf] %v5819
        %5928 = vst [vmem:[#allocation2 + $0x84] sm:$0xf] %v5820
        %5929 = vst [vmem:[#allocation2 + $0x88] sm:$0xf] %v5821
        %5930 = vst [vmem:[#allocation2 + $0x8c] sm:$0xf] %v5822
        %5931 = vst [vmem:[#allocation2 + $0x90] sm:$0xf] %v5823
        %5932 = vst [vmem:[#allocation2 + $0x94] sm:$0xf] %v5824
        %5933 = vst [vmem:[#allocation2 + $0x98] sm:$0xf] %v5825
        %5934 = vst [vmem:[#allocation2 + $0x9c] sm:$0xf] %v5826
        %5935 = vst [vmem:[#allocation2 + $0xa0] sm:$0xf] %v5827
        %5936 = vst [vmem:[#allocation2 + $0xa4] sm:$0xf] %v5828
        %5937 = vst [vmem:[#allocation2 + $0xa8] sm:$0xf] %v5829
        %5938 = vst [vmem:[#allocation2 + $0xac] sm:$0xf] %v5830
        %5939 = vst [vmem:[#allocation2 + $0xb0] sm:$0xf] %v5831
        %5940 = vst [vmem:[#allocation2 + $0xb4] sm:$0xf] %v5832
        %5941 = vst [vmem:[#allocation2 + $0xb8] sm:$0xf] %v5833
        %5942 = vst [vmem:[#allocation2 + $0xbc] sm:$0xf] %v5834
        %5943 = vst [vmem:[#allocation2 + $0xc0] sm:$0xf] %v5835
        %5944 = vst [vmem:[#allocation2 + $0xc4] sm:$0xf] %v5836
        %5945 = vst [vmem:[#allocation2 + $0xc8] sm:$0xf] %v5837
        %5946 = vst [vmem:[#allocation2 + $0xcc] sm:$0xf] %v5838
        %5947 = vst [vmem:[#allocation2 + $0xd0] sm:$0xf] %v5839
        %5948 = vst [vmem:[#allocation2 + $0xd4] sm:$0xf] %v5840
        %v5949 = vld [vmem:[#allocation2] sm:$0xf]
        %v5950 = vld [vmem:[#allocation2 + $0x4] sm:$0xf]
        %v5951 = vld [vmem:[#allocation2 + $0xc] sm:$0xf]
        %v5952 = vld [vmem:[#allocation2 + $0x10] sm:$0xf]
        %v5953 = vld [vmem:[#allocation2 + $0x18] sm:$0xf]
        %v5954 = vld [vmem:[#allocation2 + $0x1c] sm:$0xf]
        %v5955 = vld [vmem:[#allocation2 + $0x24] sm:$0xf]
        %v5956 = vld [vmem:[#allocation2 + $0x28] sm:$0xf]
        %v5957 = vld [vmem:[#allocation2 + $0x30] sm:$0xf]
        %v5958 = vld [vmem:[#allocation2 + $0x34] sm:$0xf]
        %v5959 = vld [vmem:[#allocation2 + $0x3c] sm:$0xf]
        %v5960 = vld [vmem:[#allocation2 + $0x40] sm:$0xf]
        %v5961 = vld [vmem:[#allocation2 + $0x48] sm:$0xf]
        %v5962 = vld [vmem:[#allocation2 + $0x4c] sm:$0xf]
        %v5963 = vld [vmem:[#allocation2 + $0x54] sm:$0xf]
        %v5964 = vld [vmem:[#allocation2 + $0x58] sm:$0xf]
        %v5965 = vld [vmem:[#allocation2 + $0x60] sm:$0xf]
        %v5966 = vld [vmem:[#allocation2 + $0x64] sm:$0xf]
        %v5967 = vld [vmem:[#allocation2 + $0x6c] sm:$0xf]
        %v5968 = vld [vmem:[#allocation2 + $0x70] sm:$0xf]
        %v5969 = vld [vmem:[#allocation2 + $0x78] sm:$0xf]
        %v5970 = vld [vmem:[#allocation2 + $0x7c] sm:$0xf]
        %v5971 = vld [vmem:[#allocation2 + $0x84] sm:$0xf]
        %v5972 = vld [vmem:[#allocation2 + $0x88] sm:$0xf]
        %v5973 = vld [vmem:[#allocation2 + $0x90] sm:$0xf]
        %v5974 = vld [vmem:[#allocation2 + $0x94] sm:$0xf]
        %v5975 = vld [vmem:[#allocation2 + $0x9c] sm:$0xf]
        %v5976 = vld [vmem:[#allocation2 + $0xa0] sm:$0xf]
        %v5977 = vld [vmem:[#allocation2 + $0xa8] sm:$0xf]
        %v5978 = vld [vmem:[#allocation2 + $0xac] sm:$0xf]
        %v5979 = vld [vmem:[#allocation2 + $0xb4] sm:$0xf]
        %v5980 = vld [vmem:[#allocation2 + $0xb8] sm:$0xf]
        %v5981 = vld [vmem:[#allocation11] sm:$0xf]
        %v5982 = vld [vmem:[#allocation11 + $0x4] sm:$0xf]
        %v5983 = vld [vmem:[#allocation11 + $0x8] sm:$0xf]
        %v5984 = vld [vmem:[#allocation11 + $0xc] sm:$0xf]
        %v5985 = vld [vmem:[#allocation11 + $0x10] sm:$0xf]
        %v5986 = vld [vmem:[#allocation11 + $0x14] sm:$0xf]
        %v5987 = vld [vmem:[#allocation11 + $0x18] sm:$0xf]
        %v5988 = vld [vmem:[#allocation11 + $0x1c] sm:$0xf]
        %v5989 = vld [vmem:[#allocation11 + $0x20] sm:$0xf]
        %v5990 = vld [vmem:[#allocation11 + $0x24] sm:$0xf]
        %v5991 = vld [vmem:[#allocation11 + $0x28] sm:$0xf]
        %v5992 = vld [vmem:[#allocation11 + $0x2c] sm:$0xf]
        %v5993 = vld [vmem:[#allocation11 + $0x30] sm:$0xf]
        %v5994 = vld [vmem:[#allocation11 + $0x34] sm:$0xf]
        %v5995 = vld [vmem:[#allocation11 + $0x38] sm:$0xf]
        %v5996 = vld [vmem:[#allocation11 + $0x3c] sm:$0xf]
        %s5997 = scalar_lea.vmem [#allocation2], 12
        %v5998 = vld [vmem:[%s5997] sm:$0xf]
        %v5999 = vld [vmem:[%s5997 + $0x4] sm:$0xf]
        %v6000 = vld [vmem:[%s5997 + $0xc] sm:$0xf]
        %v6001 = vld [vmem:[%s5997 + $0x10] sm:$0xf]
        %v6002 = vld [vmem:[%s5997 + $0x18] sm:$0xf]
        %v6003 = vld [vmem:[%s5997 + $0x1c] sm:$0xf]
        %v6004 = vld [vmem:[%s5997 + $0x24] sm:$0xf]
        %v6005 = vld [vmem:[%s5997 + $0x28] sm:$0xf]
        %v6006 = vld [vmem:[%s5997 + $0x30] sm:$0xf]
        %v6007 = vld [vmem:[%s5997 + $0x34] sm:$0xf]
        %v6008 = vld [vmem:[%s5997 + $0x3c] sm:$0xf]
        %v6009 = vld [vmem:[%s5997 + $0x40] sm:$0xf]
        %v6010 = vld [vmem:[%s5997 + $0x48] sm:$0xf]
        %v6011 = vld [vmem:[%s5997 + $0x4c] sm:$0xf]
        %v6012 = vld [vmem:[%s5997 + $0x54] sm:$0xf]
        %v6013 = vld [vmem:[%s5997 + $0x58] sm:$0xf]
        %v6014 = vld [vmem:[%s5997 + $0x60] sm:$0xf]
        %v6015 = vld [vmem:[%s5997 + $0x64] sm:$0xf]
        %v6016 = vld [vmem:[%s5997 + $0x6c] sm:$0xf]
        %v6017 = vld [vmem:[%s5997 + $0x70] sm:$0xf]
        %v6018 = vld [vmem:[%s5997 + $0x78] sm:$0xf]
        %v6019 = vld [vmem:[%s5997 + $0x7c] sm:$0xf]
        %v6020 = vld [vmem:[%s5997 + $0x84] sm:$0xf]
        %v6021 = vld [vmem:[%s5997 + $0x88] sm:$0xf]
        %v6022 = vld [vmem:[%s5997 + $0x90] sm:$0xf]
        %v6023 = vld [vmem:[%s5997 + $0x94] sm:$0xf]
        %v6024 = vld [vmem:[%s5997 + $0x9c] sm:$0xf]
        %v6025 = vld [vmem:[%s5997 + $0xa0] sm:$0xf]
        %v6026 = vld [vmem:[%s5997 + $0xa8] sm:$0xf]
        %v6027 = vld [vmem:[%s5997 + $0xac] sm:$0xf]
        %v6028 = vld [vmem:[%s5997 + $0xb4] sm:$0xf]
        %v6029 = vld [vmem:[%s5997 + $0xb8] sm:$0xf]
        %s6030 = scalar_lea.vmem [#allocation11], 192
        %v6031 = vld [vmem:[%s6030] sm:$0xf]
        %v6032 = vld [vmem:[%s6030 + $0x4] sm:$0xf]
        %v6033 = vld [vmem:[%s6030 + $0x8] sm:$0xf]
        %v6034 = vld [vmem:[%s6030 + $0xc] sm:$0xf]
        %v6035 = vld [vmem:[%s6030 + $0x10] sm:$0xf]
        %v6036 = vld [vmem:[%s6030 + $0x14] sm:$0xf]
        %v6037 = vld [vmem:[%s6030 + $0x18] sm:$0xf]
        %v6038 = vld [vmem:[%s6030 + $0x1c] sm:$0xf]
        %v6039 = vld [vmem:[%s6030 + $0x20] sm:$0xf]
        %v6040 = vld [vmem:[%s6030 + $0x24] sm:$0xf]
        %v6041 = vld [vmem:[%s6030 + $0x28] sm:$0xf]
        %v6042 = vld [vmem:[%s6030 + $0x2c] sm:$0xf]
        %v6043 = vld [vmem:[%s6030 + $0x30] sm:$0xf]
        %v6044 = vld [vmem:[%s6030 + $0x34] sm:$0xf]
        %v6045 = vld [vmem:[%s6030 + $0x38] sm:$0xf]
        %v6046 = vld [vmem:[%s6030 + $0x3c] sm:$0xf]
        %v6079 = vunpack.c.l.b16 %v5998
        %v6080 = vunpack.c.l.b16 %v5999
        %v6081 = vunpack.c.l.b16 %v6000
        %v6082 = vunpack.c.l.b16 %v6001
        %v6083 = vunpack.c.l.b16 %v6002
        %v6084 = vunpack.c.l.b16 %v6003
        %v6085 = vunpack.c.l.b16 %v6004
        %v6086 = vunpack.c.l.b16 %v6005
        %v6087 = vunpack.c.l.b16 %v6006
        %v6088 = vunpack.c.l.b16 %v6007
        %v6089 = vunpack.c.l.b16 %v6008
        %v6090 = vunpack.c.l.b16 %v6009
        %v6091 = vunpack.c.l.b16 %v6010
        %v6092 = vunpack.c.l.b16 %v6011
        %v6093 = vunpack.c.l.b16 %v6012
        %v6094 = vunpack.c.l.b16 %v6013
        %v6095 = vunpack.c.l.b16 %v6014
        %v6096 = vunpack.c.l.b16 %v6015
        %v6097 = vunpack.c.l.b16 %v6016
        %v6098 = vunpack.c.l.b16 %v6017
        %v6099 = vunpack.c.l.b16 %v6018
        %v6100 = vunpack.c.l.b16 %v6019
        %v6101 = vunpack.c.l.b16 %v6020
        %v6102 = vunpack.c.l.b16 %v6021
        %v6103 = vunpack.c.l.b16 %v6022
        %v6104 = vunpack.c.l.b16 %v6023
        %v6105 = vunpack.c.l.b16 %v6024
        %v6106 = vunpack.c.l.b16 %v6025
        %v6107 = vunpack.c.l.b16 %v6026
        %v6108 = vunpack.c.l.b16 %v6027
        %v6109 = vunpack.c.l.b16 %v6028
        %v6110 = vunpack.c.l.b16 %v6029
        %v6111 = vpack.c.b16 %v6080, %v6079
        %v6112 = vpack.c.b16 %v6082, %v6081
        %v6113 = vpack.c.b16 %v6084, %v6083
        %v6114 = vpack.c.b16 %v6086, %v6085
        %v6115 = vpack.c.b16 %v6088, %v6087
        %v6116 = vpack.c.b16 %v6090, %v6089
        %v6117 = vpack.c.b16 %v6092, %v6091
        %v6118 = vpack.c.b16 %v6094, %v6093
        %v6119 = vpack.c.b16 %v6096, %v6095
        %v6120 = vpack.c.b16 %v6098, %v6097
        %v6121 = vpack.c.b16 %v6100, %v6099
        %v6122 = vpack.c.b16 %v6102, %v6101
        %v6123 = vpack.c.b16 %v6104, %v6103
        %v6124 = vpack.c.b16 %v6106, %v6105
        %v6125 = vpack.c.b16 %v6108, %v6107
        %v6126 = vpack.c.b16 %v6110, %v6109
        %v6159 = vunpack.c.l.b16 %v6031
        %v6160 = vunpack.c.l.b16 %v6032
        %v6161 = vunpack.c.l.b16 %v6033
        %v6162 = vunpack.c.l.b16 %v6034
        %v6163 = vunpack.c.l.b16 %v6035
        %v6164 = vunpack.c.l.b16 %v6036
        %v6165 = vunpack.c.l.b16 %v6037
        %v6166 = vunpack.c.l.b16 %v6038
        %v6167 = vunpack.c.l.b16 %v6039
        %v6168 = vunpack.c.l.b16 %v6040
        %v6169 = vunpack.c.l.b16 %v6041
        %v6170 = vunpack.c.l.b16 %v6042
        %v6171 = vunpack.c.l.b16 %v6043
        %v6172 = vunpack.c.l.b16 %v6044
        %v6173 = vunpack.c.l.b16 %v6045
        %v6174 = vunpack.c.l.b16 %v6046
        %v6175 = vpack.c.b16 %v6160, %v6159
        %v6176 = vpack.c.b16 %v6162, %v6161
        %v6177 = vpack.c.b16 %v6164, %v6163
        %v6178 = vpack.c.b16 %v6166, %v6165
        %v6179 = vpack.c.b16 %v6168, %v6167
        %v6180 = vpack.c.b16 %v6170, %v6169
        %v6181 = vpack.c.b16 %v6172, %v6171
        %v6182 = vpack.c.b16 %v6174, %v6173
        %6191 = vmatprep.subr.bf16.mxu0 0
        %6192 = vmatpush1.bf16.msra.mxu0 %v6175
        %6193 = vmatprep.subr.bf16.mxu0 0
        %6194 = vmatpush1.bf16.msra.mxu0 %v6176
        %6195 = vmatprep.subr.bf16.mxu0 0
        %6196 = vmatpush1.bf16.msra.mxu0 %v6177
        %6197 = vmatprep.subr.bf16.mxu0 0
        %6198 = vmatpush1.bf16.msra.mxu0 %v6178
        %6199 = vmatprep.subr.bf16.mxu0 0
        %6200 = vmatpush1.bf16.msra.mxu0 %v6179
        %6201 = vmatprep.subr.bf16.mxu0 0
        %6202 = vmatpush1.bf16.msra.mxu0 %v6180
        %6203 = vmatprep.subr.bf16.mxu0 0
        %6204 = vmatpush1.bf16.msra.mxu0 %v6181
        %6205 = vmatprep.subr.bf16.mxu0 0
        %6206 = vmatpush1.bf16.msra.mxu0 %v6182
        %6207 = vmatprep.subr.bf16.mxu0 0
        %6208 = vmatpush1.bf16.msra.mxu0 0
        %6209 = vmatprep.subr.bf16.mxu0 0
        %6210 = vmatpush1.bf16.msra.mxu0 0
        %6211 = vmatprep.subr.bf16.mxu0 0
        %6212 = vmatpush1.bf16.msra.mxu0 0
        %6213 = vmatprep.subr.bf16.mxu0 0
        %6214 = vmatpush1.bf16.msra.mxu0 0
        %6215 = vmatprep.subr.bf16.mxu0 0
        %6216 = vmatpush1.bf16.msra.mxu0 0
        %6217 = vmatprep.subr.bf16.mxu0 0
        %6218 = vmatpush1.bf16.msra.mxu0 0
        %6219 = vmatprep.subr.bf16.mxu0 0
        %6220 = vmatpush1.bf16.msra.mxu0 0
        %6221 = vmatprep.subr.bf16.mxu0 0
        %6222 = vmatpush1.bf16.msra.mxu0 0
        %6223 = vmatprep.mubr.bf16.mxu0 0
        %6224 = vmatmul.mubr.bf16.gmra.mrb[0].mxu0 %v6111
        %v6225 = vpop.f32.mrb[0].mxu0
        %v6226 = vadd.f32 0.0, %v6225
        %v6227 = vpop.f32.mrb[0].mxu0
        %v6228 = vpop.f32.mrb[0].mxu0
        %v6229 = vadd.f32 0.0, %v6228
        %v6230 = vpop.f32.mrb[0].mxu0
        %6231 = vmatprep.mubr.bf16.mxu0 0
        %6232 = vmatmul.mubr.bf16.gmra.mrb[0].mxu0 %v6112
        %v6233 = vpop.f32.mrb[0].mxu0
        %v6234 = vadd.f32 0.0, %v6233
        %v6235 = vpop.f32.mrb[0].mxu0
        %v6236 = vpop.f32.mrb[0].mxu0
        %v6237 = vadd.f32 0.0, %v6236
        %v6238 = vpop.f32.mrb[0].mxu0
        %6239 = vmatprep.mubr.bf16.mxu0 0
        %6240 = vmatmul.mubr.bf16.gmra.mrb[0].mxu0 %v6113
        %v6241 = vpop.f32.mrb[0].mxu0
        %v6242 = vadd.f32 0.0, %v6241
        %v6243 = vpop.f32.mrb[0].mxu0
        %v6244 = vpop.f32.mrb[0].mxu0
        %v6245 = vadd.f32 0.0, %v6244
        %v6246 = vpop.f32.mrb[0].mxu0
        %6247 = vmatprep.mubr.bf16.mxu0 0
        %6248 = vmatmul.mubr.bf16.gmra.mrb[0].mxu0 %v6114
        %v6249 = vpop.f32.mrb[0].mxu0
        %v6250 = vadd.f32 0.0, %v6249
        %v6251 = vpop.f32.mrb[0].mxu0
        %v6252 = vpop.f32.mrb[0].mxu0
        %v6253 = vadd.f32 0.0, %v6252
        %v6254 = vpop.f32.mrb[0].mxu0
        %6255 = vmatprep.mubr.bf16.mxu0 0
        %6256 = vmatmul.mubr.bf16.gmra.mrb[0].mxu0 %v6115
        %v6257 = vpop.f32.mrb[0].mxu0
        %v6258 = vadd.f32 0.0, %v6257
        %v6259 = vpop.f32.mrb[0].mxu0
        %v6260 = vpop.f32.mrb[0].mxu0
        %v6261 = vadd.f32 0.0, %v6260
        %v6262 = vpop.f32.mrb[0].mxu0
        %6263 = vmatprep.mubr.bf16.mxu0 0
        %6264 = vmatmul.mubr.bf16.gmra.mrb[0].mxu0 %v6116
        %v6265 = vpop.f32.mrb[0].mxu0
        %v6266 = vadd.f32 0.0, %v6265
        %v6267 = vpop.f32.mrb[0].mxu0
        %v6268 = vpop.f32.mrb[0].mxu0
        %v6269 = vadd.f32 0.0, %v6268
        %v6270 = vpop.f32.mrb[0].mxu0
        %6271 = vmatprep.mubr.bf16.mxu0 0
        %6272 = vmatmul.mubr.bf16.gmra.mrb[0].mxu0 %v6117
        %v6273 = vpop.f32.mrb[0].mxu0
        %v6274 = vadd.f32 0.0, %v6273
        %v6275 = vpop.f32.mrb[0].mxu0
        %v6276 = vpop.f32.mrb[0].mxu0
        %v6277 = vadd.f32 0.0, %v6276
        %v6278 = vpop.f32.mrb[0].mxu0
        %6279 = vmatprep.mubr.bf16.mxu0 0
        %6280 = vmatmul.mubr.bf16.gmra.mrb[0].mxu0 %v6118
        %v6281 = vpop.f32.mrb[0].mxu0
        %v6282 = vadd.f32 0.0, %v6281
        %v6283 = vpop.f32.mrb[0].mxu0
        %v6284 = vpop.f32.mrb[0].mxu0
        %v6285 = vadd.f32 0.0, %v6284
        %v6286 = vpop.f32.mrb[0].mxu0
        %6287 = vmatprep.mubr.bf16.mxu0 0
        %6288 = vmatmul.mubr.bf16.gmra.mrb[0].mxu0 %v6119
        %v6289 = vpop.f32.mrb[0].mxu0
        %v6290 = vadd.f32 0.0, %v6289
        %v6291 = vpop.f32.mrb[0].mxu0
        %v6292 = vpop.f32.mrb[0].mxu0
        %v6293 = vadd.f32 0.0, %v6292
        %v6294 = vpop.f32.mrb[0].mxu0
        %6295 = vmatprep.mubr.bf16.mxu0 0
        %6296 = vmatmul.mubr.bf16.gmra.mrb[0].mxu0 %v6120
        %v6297 = vpop.f32.mrb[0].mxu0
        %v6298 = vadd.f32 0.0, %v6297
        %v6299 = vpop.f32.mrb[0].mxu0
        %v6300 = vpop.f32.mrb[0].mxu0
        %v6301 = vadd.f32 0.0, %v6300
        %v6302 = vpop.f32.mrb[0].mxu0
        %6303 = vmatprep.mubr.bf16.mxu0 0
        %6304 = vmatmul.mubr.bf16.gmra.mrb[0].mxu0 %v6121
        %v6305 = vpop.f32.mrb[0].mxu0
        %v6306 = vadd.f32 0.0, %v6305
        %v6307 = vpop.f32.mrb[0].mxu0
        %v6308 = vpop.f32.mrb[0].mxu0
        %v6309 = vadd.f32 0.0, %v6308
        %v6310 = vpop.f32.mrb[0].mxu0
        %6311 = vmatprep.mubr.bf16.mxu0 0
        %6312 = vmatmul.mubr.bf16.gmra.mrb[0].mxu0 %v6122
        %v6313 = vpop.f32.mrb[0].mxu0
        %v6314 = vadd.f32 0.0, %v6313
        %v6315 = vpop.f32.mrb[0].mxu0
        %v6316 = vpop.f32.mrb[0].mxu0
        %v6317 = vadd.f32 0.0, %v6316
        %v6318 = vpop.f32.mrb[0].mxu0
        %6319 = vmatprep.mubr.bf16.mxu0 0
        %6320 = vmatmul.mubr.bf16.gmra.mrb[0].mxu0 %v6123
        %v6321 = vpop.f32.mrb[0].mxu0
        %v6322 = vadd.f32 0.0, %v6321
        %v6323 = vpop.f32.mrb[0].mxu0
        %v6324 = vpop.f32.mrb[0].mxu0
        %v6325 = vadd.f32 0.0, %v6324
        %v6326 = vpop.f32.mrb[0].mxu0
        %6327 = vmatprep.mubr.bf16.mxu0 0
        %6328 = vmatmul.mubr.bf16.gmra.mrb[0].mxu0 %v6124
        %v6329 = vpop.f32.mrb[0].mxu0
        %v6330 = vadd.f32 0.0, %v6329
        %v6331 = vpop.f32.mrb[0].mxu0
        %v6332 = vpop.f32.mrb[0].mxu0
        %v6333 = vadd.f32 0.0, %v6332
        %v6334 = vpop.f32.mrb[0].mxu0
        %6335 = vmatprep.mubr.bf16.mxu0 0
        %6336 = vmatmul.mubr.bf16.gmra.mrb[0].mxu0 %v6125
        %v6337 = vpop.f32.mrb[0].mxu0
        %v6338 = vadd.f32 0.0, %v6337
        %v6339 = vpop.f32.mrb[0].mxu0
        %v6340 = vpop.f32.mrb[0].mxu0
        %v6341 = vadd.f32 0.0, %v6340
        %v6342 = vpop.f32.mrb[0].mxu0
        %6343 = vmatprep.mubr.bf16.mxu0 0
        %6344 = vmatmul.mubr.bf16.gmra.mrb[0].mxu0 %v6126
        %v6345 = vpop.f32.mrb[0].mxu0
        %v6346 = vadd.f32 0.0, %v6345
        %v6347 = vpop.f32.mrb[0].mxu0
        %v6348 = vpop.f32.mrb[0].mxu0
        %v6349 = vadd.f32 0.0, %v6348
        %v6350 = vpop.f32.mrb[0].mxu0
        %6351 = vdwg.mxu0
        %v6384 = vunpack.c.l.b16 %v5949
        %v6385 = vunpack.c.l.b16 %v5950
        %v6386 = vunpack.c.l.b16 %v5951
        %v6387 = vunpack.c.l.b16 %v5952
        %v6388 = vunpack.c.l.b16 %v5953
        %v6389 = vunpack.c.l.b16 %v5954
        %v6390 = vunpack.c.l.b16 %v5955
        %v6391 = vunpack.c.l.b16 %v5956
        %v6392 = vunpack.c.l.b16 %v5957
        %v6393 = vunpack.c.l.b16 %v5958
        %v6394 = vunpack.c.l.b16 %v5959
        %v6395 = vunpack.c.l.b16 %v5960
        %v6396 = vunpack.c.l.b16 %v5961
        %v6397 = vunpack.c.l.b16 %v5962
        %v6398 = vunpack.c.l.b16 %v5963
        %v6399 = vunpack.c.l.b16 %v5964
        %v6400 = vunpack.c.l.b16 %v5965
        %v6401 = vunpack.c.l.b16 %v5966
        %v6402 = vunpack.c.l.b16 %v5967
        %v6403 = vunpack.c.l.b16 %v5968
        %v6404 = vunpack.c.l.b16 %v5969
        %v6405 = vunpack.c.l.b16 %v5970
        %v6406 = vunpack.c.l.b16 %v5971
        %v6407 = vunpack.c.l.b16 %v5972
        %v6408 = vunpack.c.l.b16 %v5973
        %v6409 = vunpack.c.l.b16 %v5974
        %v6410 = vunpack.c.l.b16 %v5975
        %v6411 = vunpack.c.l.b16 %v5976
        %v6412 = vunpack.c.l.b16 %v5977
        %v6413 = vunpack.c.l.b16 %v5978
        %v6414 = vunpack.c.l.b16 %v5979
        %v6415 = vunpack.c.l.b16 %v5980
        %v6416 = vpack.c.b16 %v6385, %v6384
        %v6417 = vpack.c.b16 %v6387, %v6386
        %v6418 = vpack.c.b16 %v6389, %v6388
        %v6419 = vpack.c.b16 %v6391, %v6390
        %v6420 = vpack.c.b16 %v6393, %v6392
        %v6421 = vpack.c.b16 %v6395, %v6394
        %v6422 = vpack.c.b16 %v6397, %v6396
        %v6423 = vpack.c.b16 %v6399, %v6398
        %v6424 = vpack.c.b16 %v6401, %v6400
        %v6425 = vpack.c.b16 %v6403, %v6402
        %v6426 = vpack.c.b16 %v6405, %v6404
        %v6427 = vpack.c.b16 %v6407, %v6406
        %v6428 = vpack.c.b16 %v6409, %v6408
        %v6429 = vpack.c.b16 %v6411, %v6410
        %v6430 = vpack.c.b16 %v6413, %v6412
        %v6431 = vpack.c.b16 %v6415, %v6414
        %v6464 = vunpack.c.l.b16 %v5981
        %v6465 = vunpack.c.l.b16 %v5982
        %v6466 = vunpack.c.l.b16 %v5983
        %v6467 = vunpack.c.l.b16 %v5984
        %v6468 = vunpack.c.l.b16 %v5985
        %v6469 = vunpack.c.l.b16 %v5986
        %v6470 = vunpack.c.l.b16 %v5987
        %v6471 = vunpack.c.l.b16 %v5988
        %v6472 = vunpack.c.l.b16 %v5989
        %v6473 = vunpack.c.l.b16 %v5990
        %v6474 = vunpack.c.l.b16 %v5991
        %v6475 = vunpack.c.l.b16 %v5992
        %v6476 = vunpack.c.l.b16 %v5993
        %v6477 = vunpack.c.l.b16 %v5994
        %v6478 = vunpack.c.l.b16 %v5995
        %v6479 = vunpack.c.l.b16 %v5996
        %v6480 = vpack.c.b16 %v6465, %v6464
        %v6481 = vpack.c.b16 %v6467, %v6466
        %v6482 = vpack.c.b16 %v6469, %v6468
        %v6483 = vpack.c.b16 %v6471, %v6470
        %v6484 = vpack.c.b16 %v6473, %v6472
        %v6485 = vpack.c.b16 %v6475, %v6474
        %v6486 = vpack.c.b16 %v6477, %v6476
        %v6487 = vpack.c.b16 %v6479, %v6478
        %6496 = vmatprep.subr.bf16.mxu0 0
        %6497 = vmatpush1.bf16.msra.mxu0 %v6480
        %6498 = vmatprep.subr.bf16.mxu0 0
        %6499 = vmatpush1.bf16.msra.mxu0 %v6481
        %6500 = vmatprep.subr.bf16.mxu0 0
        %6501 = vmatpush1.bf16.msra.mxu0 %v6482
        %6502 = vmatprep.subr.bf16.mxu0 0
        %6503 = vmatpush1.bf16.msra.mxu0 %v6483
        %6504 = vmatprep.subr.bf16.mxu0 0
        %6505 = vmatpush1.bf16.msra.mxu0 %v6484
        %6506 = vmatprep.subr.bf16.mxu0 0
        %6507 = vmatpush1.bf16.msra.mxu0 %v6485
        %6508 = vmatprep.subr.bf16.mxu0 0
        %6509 = vmatpush1.bf16.msra.mxu0 %v6486
        %6510 = vmatprep.subr.bf16.mxu0 0
        %6511 = vmatpush1.bf16.msra.mxu0 %v6487
        %6512 = vmatprep.subr.bf16.mxu0 0
        %6513 = vmatpush1.bf16.msra.mxu0 0
        %6514 = vmatprep.subr.bf16.mxu0 0
        %6515 = vmatpush1.bf16.msra.mxu0 0
        %6516 = vmatprep.subr.bf16.mxu0 0
        %6517 = vmatpush1.bf16.msra.mxu0 0
        %6518 = vmatprep.subr.bf16.mxu0 0
        %6519 = vmatpush1.bf16.msra.mxu0 0
        %6520 = vmatprep.subr.bf16.mxu0 0
        %6521 = vmatpush1.bf16.msra.mxu0 0
        %6522 = vmatprep.subr.bf16.mxu0 0
        %6523 = vmatpush1.bf16.msra.mxu0 0
        %6524 = vmatprep.subr.bf16.mxu0 0
        %6525 = vmatpush1.bf16.msra.mxu0 0
        %6526 = vmatprep.subr.bf16.mxu0 0
        %6527 = vmatpush1.bf16.msra.mxu0 0
        %6528 = vmatprep.mubr.bf16.mxu0 0
        %6529 = vmatmul.mubr.bf16.gmra.mrb[0].mxu0 %v6416
        %v6530 = vpop.f32.mrb[0].mxu0
        %v6531 = vadd.f32 %v6226, %v6530
        %v6532 = vpop.f32.mrb[0].mxu0
        %v6533 = vpop.f32.mrb[0].mxu0
        %v6534 = vadd.f32 %v6229, %v6533
        %v6535 = vpop.f32.mrb[0].mxu0
        %6536 = vmatprep.mubr.bf16.mxu0 0
        %6537 = vmatmul.mubr.bf16.gmra.mrb[0].mxu0 %v6417
        %v6538 = vpop.f32.mrb[0].mxu0
        %v6539 = vadd.f32 %v6234, %v6538
        %v6540 = vpop.f32.mrb[0].mxu0
        %v6541 = vpop.f32.mrb[0].mxu0
        %v6542 = vadd.f32 %v6237, %v6541
        %v6543 = vpop.f32.mrb[0].mxu0
        %6544 = vmatprep.mubr.bf16.mxu0 0
        %6545 = vmatmul.mubr.bf16.gmra.mrb[0].mxu0 %v6418
        %v6546 = vpop.f32.mrb[0].mxu0
        %v6547 = vadd.f32 %v6242, %v6546
        %v6548 = vpop.f32.mrb[0].mxu0
        %v6549 = vpop.f32.mrb[0].mxu0
        %v6550 = vadd.f32 %v6245, %v6549
        %v6551 = vpop.f32.mrb[0].mxu0
        %6552 = vmatprep.mubr.bf16.mxu0 0
        %6553 = vmatmul.mubr.bf16.gmra.mrb[0].mxu0 %v6419
        %v6554 = vpop.f32.mrb[0].mxu0
        %v6555 = vadd.f32 %v6250, %v6554
        %v6556 = vpop.f32.mrb[0].mxu0
        %v6557 = vpop.f32.mrb[0].mxu0
        %v6558 = vadd.f32 %v6253, %v6557
        %v6559 = vpop.f32.mrb[0].mxu0
        %6560 = vmatprep.mubr.bf16.mxu0 0
        %6561 = vmatmul.mubr.bf16.gmra.mrb[0].mxu0 %v6420
        %v6562 = vpop.f32.mrb[0].mxu0
        %v6563 = vadd.f32 %v6258, %v6562
        %v6564 = vpop.f32.mrb[0].mxu0
        %v6565 = vpop.f32.mrb[0].mxu0
        %v6566 = vadd.f32 %v6261, %v6565
        %v6567 = vpop.f32.mrb[0].mxu0
        %6568 = vmatprep.mubr.bf16.mxu0 0
        %6569 = vmatmul.mubr.bf16.gmra.mrb[0].mxu0 %v6421
        %v6570 = vpop.f32.mrb[0].mxu0
        %v6571 = vadd.f32 %v6266, %v6570
        %v6572 = vpop.f32.mrb[0].mxu0
        %v6573 = vpop.f32.mrb[0].mxu0
        %v6574 = vadd.f32 %v6269, %v6573
        %v6575 = vpop.f32.mrb[0].mxu0
        %6576 = vmatprep.mubr.bf16.mxu0 0
        %6577 = vmatmul.mubr.bf16.gmra.mrb[0].mxu0 %v6422
        %v6578 = vpop.f32.mrb[0].mxu0
        %v6579 = vadd.f32 %v6274, %v6578
        %v6580 = vpop.f32.mrb[0].mxu0
        %v6581 = vpop.f32.mrb[0].mxu0
        %v6582 = vadd.f32 %v6277, %v6581
        %v6583 = vpop.f32.mrb[0].mxu0
        %6584 = vmatprep.mubr.bf16.mxu0 0
        %6585 = vmatmul.mubr.bf16.gmra.mrb[0].mxu0 %v6423
        %v6586 = vpop.f32.mrb[0].mxu0
        %v6587 = vadd.f32 %v6282, %v6586
        %v6588 = vpop.f32.mrb[0].mxu0
        %v6589 = vpop.f32.mrb[0].mxu0
        %v6590 = vadd.f32 %v6285, %v6589
        %v6591 = vpop.f32.mrb[0].mxu0
        %6592 = vmatprep.mubr.bf16.mxu0 0
        %6593 = vmatmul.mubr.bf16.gmra.mrb[0].mxu0 %v6424
        %v6594 = vpop.f32.mrb[0].mxu0
        %v6595 = vadd.f32 %v6290, %v6594
        %v6596 = vpop.f32.mrb[0].mxu0
        %v6597 = vpop.f32.mrb[0].mxu0
        %v6598 = vadd.f32 %v6293, %v6597
        %v6599 = vpop.f32.mrb[0].mxu0
        %6600 = vmatprep.mubr.bf16.mxu0 0
        %6601 = vmatmul.mubr.bf16.gmra.mrb[0].mxu0 %v6425
        %v6602 = vpop.f32.mrb[0].mxu0
        %v6603 = vadd.f32 %v6298, %v6602
        %v6604 = vpop.f32.mrb[0].mxu0
        %v6605 = vpop.f32.mrb[0].mxu0
        %v6606 = vadd.f32 %v6301, %v6605
        %v6607 = vpop.f32.mrb[0].mxu0
        %6608 = vmatprep.mubr.bf16.mxu0 0
        %6609 = vmatmul.mubr.bf16.gmra.mrb[0].mxu0 %v6426
        %v6610 = vpop.f32.mrb[0].mxu0
        %v6611 = vadd.f32 %v6306, %v6610
        %v6612 = vpop.f32.mrb[0].mxu0
        %v6613 = vpop.f32.mrb[0].mxu0
        %v6614 = vadd.f32 %v6309, %v6613
        %v6615 = vpop.f32.mrb[0].mxu0
        %6616 = vmatprep.mubr.bf16.mxu0 0
        %6617 = vmatmul.mubr.bf16.gmra.mrb[0].mxu0 %v6427
        %v6618 = vpop.f32.mrb[0].mxu0
        %v6619 = vadd.f32 %v6314, %v6618
        %v6620 = vpop.f32.mrb[0].mxu0
        %v6621 = vpop.f32.mrb[0].mxu0
        %v6622 = vadd.f32 %v6317, %v6621
        %v6623 = vpop.f32.mrb[0].mxu0
        %6624 = vmatprep.mubr.bf16.mxu0 0
        %6625 = vmatmul.mubr.bf16.gmra.mrb[0].mxu0 %v6428
        %v6626 = vpop.f32.mrb[0].mxu0
        %v6627 = vadd.f32 %v6322, %v6626
        %v6628 = vpop.f32.mrb[0].mxu0
        %v6629 = vpop.f32.mrb[0].mxu0
        %v6630 = vadd.f32 %v6325, %v6629
        %v6631 = vpop.f32.mrb[0].mxu0
        %6632 = vmatprep.mubr.bf16.mxu0 0
        %6633 = vmatmul.mubr.bf16.gmra.mrb[0].mxu0 %v6429
        %v6634 = vpop.f32.mrb[0].mxu0
        %v6635 = vadd.f32 %v6330, %v6634
        %v6636 = vpop.f32.mrb[0].mxu0
        %v6637 = vpop.f32.mrb[0].mxu0
        %v6638 = vadd.f32 %v6333, %v6637
        %v6639 = vpop.f32.mrb[0].mxu0
        %6640 = vmatprep.mubr.bf16.mxu0 0
        %6641 = vmatmul.mubr.bf16.gmra.mrb[0].mxu0 %v6430
        %v6642 = vpop.f32.mrb[0].mxu0
        %v6643 = vadd.f32 %v6338, %v6642
        %v6644 = vpop.f32.mrb[0].mxu0
        %v6645 = vpop.f32.mrb[0].mxu0
        %v6646 = vadd.f32 %v6341, %v6645
        %v6647 = vpop.f32.mrb[0].mxu0
        %6648 = vmatprep.mubr.bf16.mxu0 0
        %6649 = vmatmul.mubr.bf16.gmra.mrb[0].mxu0 %v6431
        %v6650 = vpop.f32.mrb[0].mxu0
        %v6651 = vadd.f32 %v6346, %v6650
        %v6652 = vpop.f32.mrb[0].mxu0
        %v6653 = vpop.f32.mrb[0].mxu0
        %v6654 = vadd.f32 %v6349, %v6653
        %v6655 = vpop.f32.mrb[0].mxu0
        %6656 = vdwg.mxu0
        %s6657 = scalar_lea.vmem [#allocation2], 24
        %v6658 = vld [vmem:[%s6657] sm:$0xf]
        %v6659 = vld [vmem:[%s6657 + $0x4] sm:$0xf]
        %v6660 = vld [vmem:[%s6657 + $0xc] sm:$0xf]
        %v6661 = vld [vmem:[%s6657 + $0x10] sm:$0xf]
        %v6662 = vld [vmem:[%s6657 + $0x18] sm:$0xf]
        %v6663 = vld [vmem:[%s6657 + $0x1c] sm:$0xf]
        %v6664 = vld [vmem:[%s6657 + $0x24] sm:$0xf]
        %v6665 = vld [vmem:[%s6657 + $0x28] sm:$0xf]
        %v6666 = vld [vmem:[%s6657 + $0x30] sm:$0xf]
        %v6667 = vld [vmem:[%s6657 + $0x34] sm:$0xf]
        %v6668 = vld [vmem:[%s6657 + $0x3c] sm:$0xf]
        %v6669 = vld [vmem:[%s6657 + $0x40] sm:$0xf]
        %v6670 = vld [vmem:[%s6657 + $0x48] sm:$0xf]
        %v6671 = vld [vmem:[%s6657 + $0x4c] sm:$0xf]
        %v6672 = vld [vmem:[%s6657 + $0x54] sm:$0xf]
        %v6673 = vld [vmem:[%s6657 + $0x58] sm:$0xf]
        %v6674 = vld [vmem:[%s6657 + $0x60] sm:$0xf]
        %v6675 = vld [vmem:[%s6657 + $0x64] sm:$0xf]
        %v6676 = vld [vmem:[%s6657 + $0x6c] sm:$0xf]
        %v6677 = vld [vmem:[%s6657 + $0x70] sm:$0xf]
        %v6678 = vld [vmem:[%s6657 + $0x78] sm:$0xf]
        %v6679 = vld [vmem:[%s6657 + $0x7c] sm:$0xf]
        %v6680 = vld [vmem:[%s6657 + $0x84] sm:$0xf]
        %v6681 = vld [vmem:[%s6657 + $0x88] sm:$0xf]
        %v6682 = vld [vmem:[%s6657 + $0x90] sm:$0xf]
        %v6683 = vld [vmem:[%s6657 + $0x94] sm:$0xf]
        %v6684 = vld [vmem:[%s6657 + $0x9c] sm:$0xf]
        %v6685 = vld [vmem:[%s6657 + $0xa0] sm:$0xf]
        %v6686 = vld [vmem:[%s6657 + $0xa8] sm:$0xf]
        %v6687 = vld [vmem:[%s6657 + $0xac] sm:$0xf]
        %v6688 = vld [vmem:[%s6657 + $0xb4] sm:$0xf]
        %v6689 = vld [vmem:[%s6657 + $0xb8] sm:$0xf]
        %s6690 = scalar_lea.vmem [#allocation11], 384
        %v6691 = vld [vmem:[%s6690] sm:$0xf]
        %v6692 = vld [vmem:[%s6690 + $0x4] sm:$0xf]
        %v6693 = vld [vmem:[%s6690 + $0x8] sm:$0xf]
        %v6694 = vld [vmem:[%s6690 + $0xc] sm:$0xf]
        %v6695 = vld [vmem:[%s6690 + $0x10] sm:$0xf]
        %v6696 = vld [vmem:[%s6690 + $0x14] sm:$0xf]
        %v6697 = vld [vmem:[%s6690 + $0x18] sm:$0xf]
        %v6698 = vld [vmem:[%s6690 + $0x1c] sm:$0xf]
        %v6699 = vld [vmem:[%s6690 + $0x20] sm:$0xf]
        %v6700 = vld [vmem:[%s6690 + $0x24] sm:$0xf]
        %v6701 = vld [vmem:[%s6690 + $0x28] sm:$0xf]
        %v6702 = vld [vmem:[%s6690 + $0x2c] sm:$0xf]
        %v6703 = vld [vmem:[%s6690 + $0x30] sm:$0xf]
        %v6704 = vld [vmem:[%s6690 + $0x34] sm:$0xf]
        %v6705 = vld [vmem:[%s6690 + $0x38] sm:$0xf]
        %v6706 = vld [vmem:[%s6690 + $0x3c] sm:$0xf]
        %v6739 = vunpack.c.l.b16 %v6658
        %v6740 = vunpack.c.l.b16 %v6659
        %v6741 = vunpack.c.l.b16 %v6660
        %v6742 = vunpack.c.l.b16 %v6661
        %v6743 = vunpack.c.l.b16 %v6662
        %v6744 = vunpack.c.l.b16 %v6663
        %v6745 = vunpack.c.l.b16 %v6664
        %v6746 = vunpack.c.l.b16 %v6665
        %v6747 = vunpack.c.l.b16 %v6666
        %v6748 = vunpack.c.l.b16 %v6667
        %v6749 = vunpack.c.l.b16 %v6668
        %v6750 = vunpack.c.l.b16 %v6669
        %v6751 = vunpack.c.l.b16 %v6670
        %v6752 = vunpack.c.l.b16 %v6671
        %v6753 = vunpack.c.l.b16 %v6672
        %v6754 = vunpack.c.l.b16 %v6673
        %v6755 = vunpack.c.l.b16 %v6674
        %v6756 = vunpack.c.l.b16 %v6675
        %v6757 = vunpack.c.l.b16 %v6676
        %v6758 = vunpack.c.l.b16 %v6677
        %v6759 = vunpack.c.l.b16 %v6678
        %v6760 = vunpack.c.l.b16 %v6679
        %v6761 = vunpack.c.l.b16 %v6680
        %v6762 = vunpack.c.l.b16 %v6681
        %v6763 = vunpack.c.l.b16 %v6682
        %v6764 = vunpack.c.l.b16 %v6683
        %v6765 = vunpack.c.l.b16 %v6684
        %v6766 = vunpack.c.l.b16 %v6685
        %v6767 = vunpack.c.l.b16 %v6686
        %v6768 = vunpack.c.l.b16 %v6687
        %v6769 = vunpack.c.l.b16 %v6688
        %v6770 = vunpack.c.l.b16 %v6689
        %v6771 = vpack.c.b16 %v6740, %v6739
        %v6772 = vpack.c.b16 %v6742, %v6741
        %v6773 = vpack.c.b16 %v6744, %v6743
        %v6774 = vpack.c.b16 %v6746, %v6745
        %v6775 = vpack.c.b16 %v6748, %v6747
        %v6776 = vpack.c.b16 %v6750, %v6749
        %v6777 = vpack.c.b16 %v6752, %v6751
        %v6778 = vpack.c.b16 %v6754, %v6753
        %v6779 = vpack.c.b16 %v6756, %v6755
        %v6780 = vpack.c.b16 %v6758, %v6757
        %v6781 = vpack.c.b16 %v6760, %v6759
        %v6782 = vpack.c.b16 %v6762, %v6761
        %v6783 = vpack.c.b16 %v6764, %v6763
        %v6784 = vpack.c.b16 %v6766, %v6765
        %v6785 = vpack.c.b16 %v6768, %v6767
        %v6786 = vpack.c.b16 %v6770, %v6769
        %v6819 = vunpack.c.l.b16 %v6691
        %v6820 = vunpack.c.l.b16 %v6692
        %v6821 = vunpack.c.l.b16 %v6693
        %v6822 = vunpack.c.l.b16 %v6694
        %v6823 = vunpack.c.l.b16 %v6695
        %v6824 = vunpack.c.l.b16 %v6696
        %v6825 = vunpack.c.l.b16 %v6697
        %v6826 = vunpack.c.l.b16 %v6698
        %v6827 = vunpack.c.l.b16 %v6699
        %v6828 = vunpack.c.l.b16 %v6700
        %v6829 = vunpack.c.l.b16 %v6701
        %v6830 = vunpack.c.l.b16 %v6702
        %v6831 = vunpack.c.l.b16 %v6703
        %v6832 = vunpack.c.l.b16 %v6704
        %v6833 = vunpack.c.l.b16 %v6705
        %v6834 = vunpack.c.l.b16 %v6706
        %v6835 = vpack.c.b16 %v6820, %v6819
        %v6836 = vpack.c.b16 %v6822, %v6821
        %v6837 = vpack.c.b16 %v6824, %v6823
        %v6838 = vpack.c.b16 %v6826, %v6825
        %v6839 = vpack.c.b16 %v6828, %v6827
        %v6840 = vpack.c.b16 %v6830, %v6829
        %v6841 = vpack.c.b16 %v6832, %v6831
        %v6842 = vpack.c.b16 %v6834, %v6833
        %6851 = vmatprep.subr.bf16.mxu0 0
        %6852 = vmatpush1.bf16.msra.mxu0 %v6835
        %6853 = vmatprep.subr.bf16.mxu0 0
        %6854 = vmatpush1.bf16.msra.mxu0 %v6836
        %6855 = vmatprep.subr.bf16.mxu0 0
        %6856 = vmatpush1.bf16.msra.mxu0 %v6837
        %6857 = vmatprep.subr.bf16.mxu0 0
        %6858 = vmatpush1.bf16.msra.mxu0 %v6838
        %6859 = vmatprep.subr.bf16.mxu0 0
        %6860 = vmatpush1.bf16.msra.mxu0 %v6839
        %6861 = vmatprep.subr.bf16.mxu0 0
        %6862 = vmatpush1.bf16.msra.mxu0 %v6840
        %6863 = vmatprep.subr.bf16.mxu0 0
        %6864 = vmatpush1.bf16.msra.mxu0 %v6841
        %6865 = vmatprep.subr.bf16.mxu0 0
        %6866 = vmatpush1.bf16.msra.mxu0 %v6842
        %6867 = vmatprep.subr.bf16.mxu0 0
        %6868 = vmatpush1.bf16.msra.mxu0 0
        %6869 = vmatprep.subr.bf16.mxu0 0
        %6870 = vmatpush1.bf16.msra.mxu0 0
        %6871 = vmatprep.subr.bf16.mxu0 0
        %6872 = vmatpush1.bf16.msra.mxu0 0
        %6873 = vmatprep.subr.bf16.mxu0 0
        %6874 = vmatpush1.bf16.msra.mxu0 0
        %6875 = vmatprep.subr.bf16.mxu0 0
        %6876 = vmatpush1.bf16.msra.mxu0 0
        %6877 = vmatprep.subr.bf16.mxu0 0
        %6878 = vmatpush1.bf16.msra.mxu0 0
        %6879 = vmatprep.subr.bf16.mxu0 0
        %6880 = vmatpush1.bf16.msra.mxu0 0
        %6881 = vmatprep.subr.bf16.mxu0 0
        %6882 = vmatpush1.bf16.msra.mxu0 0
        %6883 = vmatprep.mubr.bf16.mxu0 0
        %6884 = vmatmul.mubr.bf16.gmra.mrb[0].mxu0 %v6771
        %v6885 = vpop.f32.mrb[0].mxu0
        %v6886 = vadd.f32 0.0, %v6885
        %v6887 = vpop.f32.mrb[0].mxu0
        %v6888 = vpop.f32.mrb[0].mxu0
        %v6889 = vadd.f32 0.0, %v6888
        %v6890 = vpop.f32.mrb[0].mxu0
        %6891 = vmatprep.mubr.bf16.mxu0 0
        %6892 = vmatmul.mubr.bf16.gmra.mrb[0].mxu0 %v6772
        %v6893 = vpop.f32.mrb[0].mxu0
        %v6894 = vadd.f32 0.0, %v6893
        %v6895 = vpop.f32.mrb[0].mxu0
        %v6896 = vpop.f32.mrb[0].mxu0
        %v6897 = vadd.f32 0.0, %v6896
        %v6898 = vpop.f32.mrb[0].mxu0
        %6899 = vmatprep.mubr.bf16.mxu0 0
        %6900 = vmatmul.mubr.bf16.gmra.mrb[0].mxu0 %v6773
        %v6901 = vpop.f32.mrb[0].mxu0
        %v6902 = vadd.f32 0.0, %v6901
        %v6903 = vpop.f32.mrb[0].mxu0
        %v6904 = vpop.f32.mrb[0].mxu0
        %v6905 = vadd.f32 0.0, %v6904
        %v6906 = vpop.f32.mrb[0].mxu0
        %6907 = vmatprep.mubr.bf16.mxu0 0
        %6908 = vmatmul.mubr.bf16.gmra.mrb[0].mxu0 %v6774
        %v6909 = vpop.f32.mrb[0].mxu0
        %v6910 = vadd.f32 0.0, %v6909
        %v6911 = vpop.f32.mrb[0].mxu0
        %v6912 = vpop.f32.mrb[0].mxu0
        %v6913 = vadd.f32 0.0, %v6912
        %v6914 = vpop.f32.mrb[0].mxu0
        %6915 = vmatprep.mubr.bf16.mxu0 0
        %6916 = vmatmul.mubr.bf16.gmra.mrb[0].mxu0 %v6775
        %v6917 = vpop.f32.mrb[0].mxu0
        %v6918 = vadd.f32 0.0, %v6917
        %v6919 = vpop.f32.mrb[0].mxu0
        %v6920 = vpop.f32.mrb[0].mxu0
        %v6921 = vadd.f32 0.0, %v6920
        %v6922 = vpop.f32.mrb[0].mxu0
        %6923 = vmatprep.mubr.bf16.mxu0 0
        %6924 = vmatmul.mubr.bf16.gmra.mrb[0].mxu0 %v6776
        %v6925 = vpop.f32.mrb[0].mxu0
        %v6926 = vadd.f32 0.0, %v6925
        %v6927 = vpop.f32.mrb[0].mxu0
        %v6928 = vpop.f32.mrb[0].mxu0
        %v6929 = vadd.f32 0.0, %v6928
        %v6930 = vpop.f32.mrb[0].mxu0
        %6931 = vmatprep.mubr.bf16.mxu0 0
        %6932 = vmatmul.mubr.bf16.gmra.mrb[0].mxu0 %v6777
        %v6933 = vpop.f32.mrb[0].mxu0
        %v6934 = vadd.f32 0.0, %v6933
        %v6935 = vpop.f32.mrb[0].mxu0
        %v6936 = vpop.f32.mrb[0].mxu0
        %v6937 = vadd.f32 0.0, %v6936
        %v6938 = vpop.f32.mrb[0].mxu0
        %6939 = vmatprep.mubr.bf16.mxu0 0
        %6940 = vmatmul.mubr.bf16.gmra.mrb[0].mxu0 %v6778
        %v6941 = vpop.f32.mrb[0].mxu0
        %v6942 = vadd.f32 0.0, %v6941
        %v6943 = vpop.f32.mrb[0].mxu0
        %v6944 = vpop.f32.mrb[0].mxu0
        %v6945 = vadd.f32 0.0, %v6944
        %v6946 = vpop.f32.mrb[0].mxu0
        %6947 = vmatprep.mubr.bf16.mxu0 0
        %6948 = vmatmul.mubr.bf16.gmra.mrb[0].mxu0 %v6779
        %v6949 = vpop.f32.mrb[0].mxu0
        %v6950 = vadd.f32 0.0, %v6949
        %v6951 = vpop.f32.mrb[0].mxu0
        %v6952 = vpop.f32.mrb[0].mxu0
        %v6953 = vadd.f32 0.0, %v6952
        %v6954 = vpop.f32.mrb[0].mxu0
        %6955 = vmatprep.mubr.bf16.mxu0 0
        %6956 = vmatmul.mubr.bf16.gmra.mrb[0].mxu0 %v6780
        %v6957 = vpop.f32.mrb[0].mxu0
        %v6958 = vadd.f32 0.0, %v6957
        %v6959 = vpop.f32.mrb[0].mxu0
        %v6960 = vpop.f32.mrb[0].mxu0
        %v6961 = vadd.f32 0.0, %v6960
        %v6962 = vpop.f32.mrb[0].mxu0
        %6963 = vmatprep.mubr.bf16.mxu0 0
        %6964 = vmatmul.mubr.bf16.gmra.mrb[0].mxu0 %v6781
        %v6965 = vpop.f32.mrb[0].mxu0
        %v6966 = vadd.f32 0.0, %v6965
        %v6967 = vpop.f32.mrb[0].mxu0
        %v6968 = vpop.f32.mrb[0].mxu0
        %v6969 = vadd.f32 0.0, %v6968
        %v6970 = vpop.f32.mrb[0].mxu0
        %6971 = vmatprep.mubr.bf16.mxu0 0
        %6972 = vmatmul.mubr.bf16.gmra.mrb[0].mxu0 %v6782
        %v6973 = vpop.f32.mrb[0].mxu0
        %v6974 = vadd.f32 0.0, %v6973
        %v6975 = vpop.f32.mrb[0].mxu0
        %v6976 = vpop.f32.mrb[0].mxu0
        %v6977 = vadd.f32 0.0, %v6976
        %v6978 = vpop.f32.mrb[0].mxu0
        %6979 = vmatprep.mubr.bf16.mxu0 0
        %6980 = vmatmul.mubr.bf16.gmra.mrb[0].mxu0 %v6783
        %v6981 = vpop.f32.mrb[0].mxu0
        %v6982 = vadd.f32 0.0, %v6981
        %v6983 = vpop.f32.mrb[0].mxu0
        %v6984 = vpop.f32.mrb[0].mxu0
        %v6985 = vadd.f32 0.0, %v6984
        %v6986 = vpop.f32.mrb[0].mxu0
        %6987 = vmatprep.mubr.bf16.mxu0 0
        %6988 = vmatmul.mubr.bf16.gmra.mrb[0].mxu0 %v6784
        %v6989 = vpop.f32.mrb[0].mxu0
        %v6990 = vadd.f32 0.0, %v6989
        %v6991 = vpop.f32.mrb[0].mxu0
        %v6992 = vpop.f32.mrb[0].mxu0
        %v6993 = vadd.f32 0.0, %v6992
        %v6994 = vpop.f32.mrb[0].mxu0
        %6995 = vmatprep.mubr.bf16.mxu0 0
        %6996 = vmatmul.mubr.bf16.gmra.mrb[0].mxu0 %v6785
        %v6997 = vpop.f32.mrb[0].mxu0
        %v6998 = vadd.f32 0.0, %v6997
        %v6999 = vpop.f32.mrb[0].mxu0
        %v7000 = vpop.f32.mrb[0].mxu0
        %v7001 = vadd.f32 0.0, %v7000
        %v7002 = vpop.f32.mrb[0].mxu0
        %7003 = vmatprep.mubr.bf16.mxu0 0
        %7004 = vmatmul.mubr.bf16.gmra.mrb[0].mxu0 %v6786
        %v7005 = vpop.f32.mrb[0].mxu0
        %v7006 = vadd.f32 0.0, %v7005
        %v7007 = vpop.f32.mrb[0].mxu0
        %v7008 = vpop.f32.mrb[0].mxu0
        %v7009 = vadd.f32 0.0, %v7008
        %v7010 = vpop.f32.mrb[0].mxu0
        %7011 = vdwg.mxu0
        %v7012 = vadd.f32 %v6531, %v6886
        %v7013 = vadd.f32 %v6534, %v6889
        %v7014 = vadd.f32 %v6539, %v6894
        %v7015 = vadd.f32 %v6542, %v6897
        %v7016 = vadd.f32 %v6547, %v6902
        %v7017 = vadd.f32 %v6550, %v6905
        %v7018 = vadd.f32 %v6555, %v6910
        %v7019 = vadd.f32 %v6558, %v6913
        %v7020 = vadd.f32 %v6563, %v6918
        %v7021 = vadd.f32 %v6566, %v6921
        %v7022 = vadd.f32 %v6571, %v6926
        %v7023 = vadd.f32 %v6574, %v6929
        %v7024 = vadd.f32 %v6579, %v6934
        %v7025 = vadd.f32 %v6582, %v6937
        %v7026 = vadd.f32 %v6587, %v6942
        %v7027 = vadd.f32 %v6590, %v6945
        %v7028 = vadd.f32 %v6595, %v6950
        %v7029 = vadd.f32 %v6598, %v6953
        %v7030 = vadd.f32 %v6603, %v6958
        %v7031 = vadd.f32 %v6606, %v6961
        %v7032 = vadd.f32 %v6611, %v6966
        %v7033 = vadd.f32 %v6614, %v6969
        %v7034 = vadd.f32 %v6619, %v6974
        %v7035 = vadd.f32 %v6622, %v6977
        %v7036 = vadd.f32 %v6627, %v6982
        %v7037 = vadd.f32 %v6630, %v6985
        %v7038 = vadd.f32 %v6635, %v6990
        %v7039 = vadd.f32 %v6638, %v6993
        %v7040 = vadd.f32 %v6643, %v6998
        %v7041 = vadd.f32 %v6646, %v7001
        %v7042 = vadd.f32 %v6651, %v7006
        %v7043 = vadd.f32 %v6654, %v7009
        %v7044 = vld [vmem:[#allocation2] sm:$0xf]
        %v7045 = vld [vmem:[#allocation2 + $0x4] sm:$0xf]
        %v7046 = vld [vmem:[#allocation2 + $0x8] sm:$0x1]
        %v7047 = vld [vmem:[#allocation2 + $0xc] sm:$0xf]
        %v7048 = vld [vmem:[#allocation2 + $0x10] sm:$0xf]
        %v7049 = vld [vmem:[#allocation2 + $0x14] sm:$0x1]
        %v7050 = vld [vmem:[#allocation2 + $0x18] sm:$0xf]
        %v7051 = vld [vmem:[#allocation2 + $0x1c] sm:$0xf]
        %v7052 = vld [vmem:[#allocation2 + $0x20] sm:$0x1]
        %v7053 = vld [vmem:[#allocation2 + $0x24] sm:$0xf]
        %v7054 = vld [vmem:[#allocation2 + $0x28] sm:$0xf]
        %v7055 = vld [vmem:[#allocation2 + $0x2c] sm:$0x1]
        %v7056 = vld [vmem:[#allocation2 + $0x30] sm:$0xf]
        %v7057 = vld [vmem:[#allocation2 + $0x34] sm:$0xf]
        %v7058 = vld [vmem:[#allocation2 + $0x38] sm:$0x1]
        %v7059 = vld [vmem:[#allocation2 + $0x3c] sm:$0xf]
        %v7060 = vld [vmem:[#allocation2 + $0x40] sm:$0xf]
        %v7061 = vld [vmem:[#allocation2 + $0x44] sm:$0x1]
        %v7062 = vld [vmem:[#allocation2 + $0x48] sm:$0xf]
        %v7063 = vld [vmem:[#allocation2 + $0x4c] sm:$0xf]
        %v7064 = vld [vmem:[#allocation2 + $0x50] sm:$0x1]
        %v7065 = vld [vmem:[#allocation2 + $0x54] sm:$0xf]
        %v7066 = vld [vmem:[#allocation2 + $0x58] sm:$0xf]
        %v7067 = vld [vmem:[#allocation2 + $0x5c] sm:$0x1]
        %v7068 = vld [vmem:[#allocation2 + $0x60] sm:$0xf]
        %v7069 = vld [vmem:[#allocation2 + $0x64] sm:$0xf]
        %v7070 = vld [vmem:[#allocation2 + $0x68] sm:$0x1]
        %v7071 = vld [vmem:[#allocation2 + $0x6c] sm:$0xf]
        %v7072 = vld [vmem:[#allocation2 + $0x70] sm:$0xf]
        %v7073 = vld [vmem:[#allocation2 + $0x74] sm:$0x1]
        %v7074 = vld [vmem:[#allocation2 + $0x78] sm:$0xf]
        %v7075 = vld [vmem:[#allocation2 + $0x7c] sm:$0xf]
        %v7076 = vld [vmem:[#allocation2 + $0x80] sm:$0x1]
        %v7077 = vld [vmem:[#allocation2 + $0x84] sm:$0xf]
        %v7078 = vld [vmem:[#allocation2 + $0x88] sm:$0xf]
        %v7079 = vld [vmem:[#allocation2 + $0x8c] sm:$0x1]
        %v7080 = vld [vmem:[#allocation2 + $0x90] sm:$0xf]
        %v7081 = vld [vmem:[#allocation2 + $0x94] sm:$0xf]
        %v7082 = vld [vmem:[#allocation2 + $0x98] sm:$0x1]
        %v7083 = vld [vmem:[#allocation2 + $0x9c] sm:$0xf]
        %v7084 = vld [vmem:[#allocation2 + $0xa0] sm:$0xf]
        %v7085 = vld [vmem:[#allocation2 + $0xa4] sm:$0x1]
        %v7086 = vld [vmem:[#allocation2 + $0xa8] sm:$0xf]
        %v7087 = vld [vmem:[#allocation2 + $0xac] sm:$0xf]
        %v7088 = vld [vmem:[#allocation2 + $0xb0] sm:$0x1]
        %v7089 = vld [vmem:[#allocation2 + $0xb4] sm:$0xf]
        %v7090 = vld [vmem:[#allocation2 + $0xb8] sm:$0xf]
        %v7091 = vld [vmem:[#allocation2 + $0xbc] sm:$0x1]
        %v7093 = vshrl.u32 %v7044, 16
        %v7095 = vrot.slane %v7093, 4
        %v7096 = vshll.u32 %v7044, 16
        %v7098 = vrot.slane %v7096, 5
        %v7099 = vor.u32 %v7095, %v7098
        %v7100 = vrot.slane %v7099, 4
        %v7102 = vshll.u32 %v7045, 16
        %v7104 = vrot.slane %v7102, 5
        %v7105 = vsel %vm1780, %v7100, %v7104
        %v7106 = vshrl.u32 %v7045, 16
        %v7108 = vrot.slane %v7106, 4
        %v7109 = vor.u32 %v7108, %v7104
        %v7110 = vrot.slane %v7109, 4
        %v7112 = vshll.u32 %v7046, 16
        %v7114 = vrot.slane %v7112, 5
        %v7115 = vsel %vm1780, %v7110, %v7114
        %v7117 = vshrl.u32 %v7047, 16
        %v7119 = vrot.slane %v7117, 4
        %v7120 = vshll.u32 %v7047, 16
        %v7122 = vrot.slane %v7120, 5
        %v7123 = vor.u32 %v7119, %v7122
        %v7124 = vrot.slane %v7123, 4
        %v7126 = vshll.u32 %v7048, 16
        %v7128 = vrot.slane %v7126, 5
        %v7129 = vsel %vm1780, %v7124, %v7128
        %v7130 = vshrl.u32 %v7048, 16
        %v7132 = vrot.slane %v7130, 4
        %v7133 = vor.u32 %v7132, %v7128
        %v7134 = vrot.slane %v7133, 4
        %v7136 = vshll.u32 %v7049, 16
        %v7138 = vrot.slane %v7136, 5
        %v7139 = vsel %vm1780, %v7134, %v7138
        %v7141 = vshrl.u32 %v7050, 16
        %v7143 = vrot.slane %v7141, 4
        %v7144 = vshll.u32 %v7050, 16
        %v7146 = vrot.slane %v7144, 5
        %v7147 = vor.u32 %v7143, %v7146
        %v7148 = vrot.slane %v7147, 4
        %v7150 = vshll.u32 %v7051, 16
        %v7152 = vrot.slane %v7150, 5
        %v7153 = vsel %vm1780, %v7148, %v7152
        %v7154 = vshrl.u32 %v7051, 16
        %v7156 = vrot.slane %v7154, 4
        %v7157 = vor.u32 %v7156, %v7152
        %v7158 = vrot.slane %v7157, 4
        %v7160 = vshll.u32 %v7052, 16
        %v7162 = vrot.slane %v7160, 5
        %v7163 = vsel %vm1780, %v7158, %v7162
        %v7165 = vshrl.u32 %v7053, 16
        %v7167 = vrot.slane %v7165, 4
        %v7168 = vshll.u32 %v7053, 16
        %v7170 = vrot.slane %v7168, 5
        %v7171 = vor.u32 %v7167, %v7170
        %v7172 = vrot.slane %v7171, 4
        %v7174 = vshll.u32 %v7054, 16
        %v7176 = vrot.slane %v7174, 5
        %v7177 = vsel %vm1780, %v7172, %v7176
        %v7178 = vshrl.u32 %v7054, 16
        %v7180 = vrot.slane %v7178, 4
        %v7181 = vor.u32 %v7180, %v7176
        %v7182 = vrot.slane %v7181, 4
        %v7184 = vshll.u32 %v7055, 16
        %v7186 = vrot.slane %v7184, 5
        %v7187 = vsel %vm1780, %v7182, %v7186
        %v7189 = vshrl.u32 %v7056, 16
        %v7191 = vrot.slane %v7189, 4
        %v7192 = vshll.u32 %v7056, 16
        %v7194 = vrot.slane %v7192, 5
        %v7195 = vor.u32 %v7191, %v7194
        %v7196 = vrot.slane %v7195, 4
        %v7198 = vshll.u32 %v7057, 16
        %v7200 = vrot.slane %v7198, 5
        %v7201 = vsel %vm1780, %v7196, %v7200
        %v7202 = vshrl.u32 %v7057, 16
        %v7204 = vrot.slane %v7202, 4
        %v7205 = vor.u32 %v7204, %v7200
        %v7206 = vrot.slane %v7205, 4
        %v7208 = vshll.u32 %v7058, 16
        %v7210 = vrot.slane %v7208, 5
        %v7211 = vsel %vm1780, %v7206, %v7210
        %v7213 = vshrl.u32 %v7059, 16
        %v7215 = vrot.slane %v7213, 4
        %v7216 = vshll.u32 %v7059, 16
        %v7218 = vrot.slane %v7216, 5
        %v7219 = vor.u32 %v7215, %v7218
        %v7220 = vrot.slane %v7219, 4
        %v7222 = vshll.u32 %v7060, 16
        %v7224 = vrot.slane %v7222, 5
        %v7225 = vsel %vm1780, %v7220, %v7224
        %v7226 = vshrl.u32 %v7060, 16
        %v7228 = vrot.slane %v7226, 4
        %v7229 = vor.u32 %v7228, %v7224
        %v7230 = vrot.slane %v7229, 4
        %v7232 = vshll.u32 %v7061, 16
        %v7234 = vrot.slane %v7232, 5
        %v7235 = vsel %vm1780, %v7230, %v7234
        %v7237 = vshrl.u32 %v7062, 16
        %v7239 = vrot.slane %v7237, 4
        %v7240 = vshll.u32 %v7062, 16
        %v7242 = vrot.slane %v7240, 5
        %v7243 = vor.u32 %v7239, %v7242
        %v7244 = vrot.slane %v7243, 4
        %v7246 = vshll.u32 %v7063, 16
        %v7248 = vrot.slane %v7246, 5
        %v7249 = vsel %vm1780, %v7244, %v7248
        %v7250 = vshrl.u32 %v7063, 16
        %v7252 = vrot.slane %v7250, 4
        %v7253 = vor.u32 %v7252, %v7248
        %v7254 = vrot.slane %v7253, 4
        %v7256 = vshll.u32 %v7064, 16
        %v7258 = vrot.slane %v7256, 5
        %v7259 = vsel %vm1780, %v7254, %v7258
        %v7261 = vshrl.u32 %v7065, 16
        %v7263 = vrot.slane %v7261, 4
        %v7264 = vshll.u32 %v7065, 16
        %v7266 = vrot.slane %v7264, 5
        %v7267 = vor.u32 %v7263, %v7266
        %v7268 = vrot.slane %v7267, 4
        %v7270 = vshll.u32 %v7066, 16
        %v7272 = vrot.slane %v7270, 5
        %v7273 = vsel %vm1780, %v7268, %v7272
        %v7274 = vshrl.u32 %v7066, 16
        %v7276 = vrot.slane %v7274, 4
        %v7277 = vor.u32 %v7276, %v7272
        %v7278 = vrot.slane %v7277, 4
        %v7280 = vshll.u32 %v7067, 16
        %v7282 = vrot.slane %v7280, 5
        %v7283 = vsel %vm1780, %v7278, %v7282
        %v7285 = vshrl.u32 %v7068, 16
        %v7287 = vrot.slane %v7285, 4
        %v7288 = vshll.u32 %v7068, 16
        %v7290 = vrot.slane %v7288, 5
        %v7291 = vor.u32 %v7287, %v7290
        %v7292 = vrot.slane %v7291, 4
        %v7294 = vshll.u32 %v7069, 16
        %v7296 = vrot.slane %v7294, 5
        %v7297 = vsel %vm1780, %v7292, %v7296
        %v7298 = vshrl.u32 %v7069, 16
        %v7300 = vrot.slane %v7298, 4
        %v7301 = vor.u32 %v7300, %v7296
        %v7302 = vrot.slane %v7301, 4
        %v7304 = vshll.u32 %v7070, 16
        %v7306 = vrot.slane %v7304, 5
        %v7307 = vsel %vm1780, %v7302, %v7306
        %v7309 = vshrl.u32 %v7071, 16
        %v7311 = vrot.slane %v7309, 4
        %v7312 = vshll.u32 %v7071, 16
        %v7314 = vrot.slane %v7312, 5
        %v7315 = vor.u32 %v7311, %v7314
        %v7316 = vrot.slane %v7315, 4
        %v7318 = vshll.u32 %v7072, 16
        %v7320 = vrot.slane %v7318, 5
        %v7321 = vsel %vm1780, %v7316, %v7320
        %v7322 = vshrl.u32 %v7072, 16
        %v7324 = vrot.slane %v7322, 4
        %v7325 = vor.u32 %v7324, %v7320
        %v7326 = vrot.slane %v7325, 4
        %v7328 = vshll.u32 %v7073, 16
        %v7330 = vrot.slane %v7328, 5
        %v7331 = vsel %vm1780, %v7326, %v7330
        %v7333 = vshrl.u32 %v7074, 16
        %v7335 = vrot.slane %v7333, 4
        %v7336 = vshll.u32 %v7074, 16
        %v7338 = vrot.slane %v7336, 5
        %v7339 = vor.u32 %v7335, %v7338
        %v7340 = vrot.slane %v7339, 4
        %v7342 = vshll.u32 %v7075, 16
        %v7344 = vrot.slane %v7342, 5
        %v7345 = vsel %vm1780, %v7340, %v7344
        %v7346 = vshrl.u32 %v7075, 16
        %v7348 = vrot.slane %v7346, 4
        %v7349 = vor.u32 %v7348, %v7344
        %v7350 = vrot.slane %v7349, 4
        %v7352 = vshll.u32 %v7076, 16
        %v7354 = vrot.slane %v7352, 5
        %v7355 = vsel %vm1780, %v7350, %v7354
        %v7357 = vshrl.u32 %v7077, 16
        %v7359 = vrot.slane %v7357, 4
        %v7360 = vshll.u32 %v7077, 16
        %v7362 = vrot.slane %v7360, 5
        %v7363 = vor.u32 %v7359, %v7362
        %v7364 = vrot.slane %v7363, 4
        %v7366 = vshll.u32 %v7078, 16
        %v7368 = vrot.slane %v7366, 5
        %v7369 = vsel %vm1780, %v7364, %v7368
        %v7370 = vshrl.u32 %v7078, 16
        %v7372 = vrot.slane %v7370, 4
        %v7373 = vor.u32 %v7372, %v7368
        %v7374 = vrot.slane %v7373, 4
        %v7376 = vshll.u32 %v7079, 16
        %v7378 = vrot.slane %v7376, 5
        %v7379 = vsel %vm1780, %v7374, %v7378
        %v7381 = vshrl.u32 %v7080, 16
        %v7383 = vrot.slane %v7381, 4
        %v7384 = vshll.u32 %v7080, 16
        %v7386 = vrot.slane %v7384, 5
        %v7387 = vor.u32 %v7383, %v7386
        %v7388 = vrot.slane %v7387, 4
        %v7390 = vshll.u32 %v7081, 16
        %v7392 = vrot.slane %v7390, 5
        %v7393 = vsel %vm1780, %v7388, %v7392
        %v7394 = vshrl.u32 %v7081, 16
        %v7396 = vrot.slane %v7394, 4
        %v7397 = vor.u32 %v7396, %v7392
        %v7398 = vrot.slane %v7397, 4
        %v7400 = vshll.u32 %v7082, 16
        %v7402 = vrot.slane %v7400, 5
        %v7403 = vsel %vm1780, %v7398, %v7402
        %v7405 = vshrl.u32 %v7083, 16
        %v7407 = vrot.slane %v7405, 4
        %v7408 = vshll.u32 %v7083, 16
        %v7410 = vrot.slane %v7408, 5
        %v7411 = vor.u32 %v7407, %v7410
        %v7412 = vrot.slane %v7411, 4
        %v7414 = vshll.u32 %v7084, 16
        %v7416 = vrot.slane %v7414, 5
        %v7417 = vsel %vm1780, %v7412, %v7416
        %v7418 = vshrl.u32 %v7084, 16
        %v7420 = vrot.slane %v7418, 4
        %v7421 = vor.u32 %v7420, %v7416
        %v7422 = vrot.slane %v7421, 4
        %v7424 = vshll.u32 %v7085, 16
        %v7426 = vrot.slane %v7424, 5
        %v7427 = vsel %vm1780, %v7422, %v7426
        %v7429 = vshrl.u32 %v7086, 16
        %v7431 = vrot.slane %v7429, 4
        %v7432 = vshll.u32 %v7086, 16
        %v7434 = vrot.slane %v7432, 5
        %v7435 = vor.u32 %v7431, %v7434
        %v7436 = vrot.slane %v7435, 4
        %v7438 = vshll.u32 %v7087, 16
        %v7440 = vrot.slane %v7438, 5
        %v7441 = vsel %vm1780, %v7436, %v7440
        %v7442 = vshrl.u32 %v7087, 16
        %v7444 = vrot.slane %v7442, 4
        %v7445 = vor.u32 %v7444, %v7440
        %v7446 = vrot.slane %v7445, 4
        %v7448 = vshll.u32 %v7088, 16
        %v7450 = vrot.slane %v7448, 5
        %v7451 = vsel %vm1780, %v7446, %v7450
        %v7453 = vshrl.u32 %v7089, 16
        %v7455 = vrot.slane %v7453, 4
        %v7456 = vshll.u32 %v7089, 16
        %v7458 = vrot.slane %v7456, 5
        %v7459 = vor.u32 %v7455, %v7458
        %v7460 = vrot.slane %v7459, 4
        %v7462 = vshll.u32 %v7090, 16
        %v7464 = vrot.slane %v7462, 5
        %v7465 = vsel %vm1780, %v7460, %v7464
        %v7466 = vshrl.u32 %v7090, 16
        %v7468 = vrot.slane %v7466, 4
        %v7469 = vor.u32 %v7468, %v7464
        %v7470 = vrot.slane %v7469, 4
        %v7472 = vshll.u32 %v7091, 16
        %v7474 = vrot.slane %v7472, 5
        %v7475 = vsel %vm1780, %v7470, %v7474
        %s7476 = scalar_lea.vmem [#allocation11], 64
        %v7477 = vld [vmem:[%s7476] sm:$0xf]
        %v7478 = vld [vmem:[%s7476 + $0x4] sm:$0xf]
        %v7479 = vld [vmem:[%s7476 + $0x8] sm:$0xf]
        %v7480 = vld [vmem:[%s7476 + $0xc] sm:$0xf]
        %v7481 = vld [vmem:[%s7476 + $0x10] sm:$0xf]
        %v7482 = vld [vmem:[%s7476 + $0x14] sm:$0xf]
        %v7483 = vld [vmem:[%s7476 + $0x18] sm:$0xf]
        %v7484 = vld [vmem:[%s7476 + $0x1c] sm:$0xf]
        %v7485 = vld [vmem:[%s7476 + $0x20] sm:$0xf]
        %v7486 = vld [vmem:[%s7476 + $0x24] sm:$0xf]
        %v7487 = vld [vmem:[%s7476 + $0x28] sm:$0xf]
        %v7488 = vld [vmem:[%s7476 + $0x2c] sm:$0xf]
        %v7489 = vld [vmem:[%s7476 + $0x30] sm:$0xf]
        %v7490 = vld [vmem:[%s7476 + $0x34] sm:$0xf]
        %v7491 = vld [vmem:[%s7476 + $0x38] sm:$0xf]
        %v7492 = vld [vmem:[%s7476 + $0x3c] sm:$0xf]
        %v7493 = vunpack.c.l.b16 %v7105
        %v7494 = vunpack.c.l.b16 %v7115
        %v7495 = vunpack.c.l.b16 %v7129
        %v7496 = vunpack.c.l.b16 %v7139
        %v7497 = vunpack.c.l.b16 %v7153
        %v7498 = vunpack.c.l.b16 %v7163
        %v7499 = vunpack.c.l.b16 %v7177
        %v7500 = vunpack.c.l.b16 %v7187
        %v7501 = vunpack.c.l.b16 %v7201
        %v7502 = vunpack.c.l.b16 %v7211
        %v7503 = vunpack.c.l.b16 %v7225
        %v7504 = vunpack.c.l.b16 %v7235
        %v7505 = vunpack.c.l.b16 %v7249
        %v7506 = vunpack.c.l.b16 %v7259
        %v7507 = vunpack.c.l.b16 %v7273
        %v7508 = vunpack.c.l.b16 %v7283
        %v7509 = vunpack.c.l.b16 %v7297
        %v7510 = vunpack.c.l.b16 %v7307
        %v7511 = vunpack.c.l.b16 %v7321
        %v7512 = vunpack.c.l.b16 %v7331
        %v7513 = vunpack.c.l.b16 %v7345
        %v7514 = vunpack.c.l.b16 %v7355
        %v7515 = vunpack.c.l.b16 %v7369
        %v7516 = vunpack.c.l.b16 %v7379
        %v7517 = vunpack.c.l.b16 %v7393
        %v7518 = vunpack.c.l.b16 %v7403
        %v7519 = vunpack.c.l.b16 %v7417
        %v7520 = vunpack.c.l.b16 %v7427
        %v7521 = vunpack.c.l.b16 %v7441
        %v7522 = vunpack.c.l.b16 %v7451
        %v7523 = vunpack.c.l.b16 %v7465
        %v7524 = vunpack.c.l.b16 %v7475
        %v7525 = vpack.c.b16 %v7494, %v7493
        %v7526 = vpack.c.b16 %v7496, %v7495
        %v7527 = vpack.c.b16 %v7498, %v7497
        %v7528 = vpack.c.b16 %v7500, %v7499
        %v7529 = vpack.c.b16 %v7502, %v7501
        %v7530 = vpack.c.b16 %v7504, %v7503
        %v7531 = vpack.c.b16 %v7506, %v7505
        %v7532 = vpack.c.b16 %v7508, %v7507
        %v7533 = vpack.c.b16 %v7510, %v7509
        %v7534 = vpack.c.b16 %v7512, %v7511
        %v7535 = vpack.c.b16 %v7514, %v7513
        %v7536 = vpack.c.b16 %v7516, %v7515
        %v7537 = vpack.c.b16 %v7518, %v7517
        %v7538 = vpack.c.b16 %v7520, %v7519
        %v7539 = vpack.c.b16 %v7522, %v7521
        %v7540 = vpack.c.b16 %v7524, %v7523
        %v7573 = vunpack.c.l.b16 %v7477
        %v7574 = vunpack.c.l.b16 %v7478
        %v7575 = vunpack.c.l.b16 %v7479
        %v7576 = vunpack.c.l.b16 %v7480
        %v7577 = vunpack.c.l.b16 %v7481
        %v7578 = vunpack.c.l.b16 %v7482
        %v7579 = vunpack.c.l.b16 %v7483
        %v7580 = vunpack.c.l.b16 %v7484
        %v7581 = vunpack.c.l.b16 %v7485
        %v7582 = vunpack.c.l.b16 %v7486
        %v7583 = vunpack.c.l.b16 %v7487
        %v7584 = vunpack.c.l.b16 %v7488
        %v7585 = vunpack.c.l.b16 %v7489
        %v7586 = vunpack.c.l.b16 %v7490
        %v7587 = vunpack.c.l.b16 %v7491
        %v7588 = vunpack.c.l.b16 %v7492
        %v7589 = vpack.c.b16 %v7574, %v7573
        %v7590 = vpack.c.b16 %v7576, %v7575
        %v7591 = vpack.c.b16 %v7578, %v7577
        %v7592 = vpack.c.b16 %v7580, %v7579
        %v7593 = vpack.c.b16 %v7582, %v7581
        %v7594 = vpack.c.b16 %v7584, %v7583
        %v7595 = vpack.c.b16 %v7586, %v7585
        %v7596 = vpack.c.b16 %v7588, %v7587
        %7605 = vmatprep.subr.bf16.mxu0 0
        %7606 = vmatpush1.bf16.msra.mxu0 %v7589
        %7607 = vmatprep.subr.bf16.mxu0 0
        %7608 = vmatpush1.bf16.msra.mxu0 %v7590
        %7609 = vmatprep.subr.bf16.mxu0 0
        %7610 = vmatpush1.bf16.msra.mxu0 %v7591
        %7611 = vmatprep.subr.bf16.mxu0 0
        %7612 = vmatpush1.bf16.msra.mxu0 %v7592
        %7613 = vmatprep.subr.bf16.mxu0 0
        %7614 = vmatpush1.bf16.msra.mxu0 %v7593
        %7615 = vmatprep.subr.bf16.mxu0 0
        %7616 = vmatpush1.bf16.msra.mxu0 %v7594
        %7617 = vmatprep.subr.bf16.mxu0 0
        %7618 = vmatpush1.bf16.msra.mxu0 %v7595
        %7619 = vmatprep.subr.bf16.mxu0 0
        %7620 = vmatpush1.bf16.msra.mxu0 %v7596
        %7621 = vmatprep.subr.bf16.mxu0 0
        %7622 = vmatpush1.bf16.msra.mxu0 0
        %7623 = vmatprep.subr.bf16.mxu0 0
        %7624 = vmatpush1.bf16.msra.mxu0 0
        %7625 = vmatprep.subr.bf16.mxu0 0
        %7626 = vmatpush1.bf16.msra.mxu0 0
        %7627 = vmatprep.subr.bf16.mxu0 0
        %7628 = vmatpush1.bf16.msra.mxu0 0
        %7629 = vmatprep.subr.bf16.mxu0 0
        %7630 = vmatpush1.bf16.msra.mxu0 0
        %7631 = vmatprep.subr.bf16.mxu0 0
        %7632 = vmatpush1.bf16.msra.mxu0 0
        %7633 = vmatprep.subr.bf16.mxu0 0
        %7634 = vmatpush1.bf16.msra.mxu0 0
        %7635 = vmatprep.subr.bf16.mxu0 0
        %7636 = vmatpush1.bf16.msra.mxu0 0
        %7637 = vmatprep.mubr.bf16.mxu0 0
        %7638 = vmatmul.mubr.bf16.gmra.mrb[0].mxu0 %v7525
        %v7639 = vpop.f32.mrb[0].mxu0
        %v7640 = vadd.f32 0.0, %v7639
        %v7641 = vpop.f32.mrb[0].mxu0
        %v7642 = vpop.f32.mrb[0].mxu0
        %v7643 = vadd.f32 0.0, %v7642
        %v7644 = vpop.f32.mrb[0].mxu0
        %7645 = vmatprep.mubr.bf16.mxu0 0
        %7646 = vmatmul.mubr.bf16.gmra.mrb[0].mxu0 %v7526
        %v7647 = vpop.f32.mrb[0].mxu0
        %v7648 = vadd.f32 0.0, %v7647
        %v7649 = vpop.f32.mrb[0].mxu0
        %v7650 = vpop.f32.mrb[0].mxu0
        %v7651 = vadd.f32 0.0, %v7650
        %v7652 = vpop.f32.mrb[0].mxu0
        %7653 = vmatprep.mubr.bf16.mxu0 0
        %7654 = vmatmul.mubr.bf16.gmra.mrb[0].mxu0 %v7527
        %v7655 = vpop.f32.mrb[0].mxu0
        %v7656 = vadd.f32 0.0, %v7655
        %v7657 = vpop.f32.mrb[0].mxu0
        %v7658 = vpop.f32.mrb[0].mxu0
        %v7659 = vadd.f32 0.0, %v7658
        %v7660 = vpop.f32.mrb[0].mxu0
        %7661 = vmatprep.mubr.bf16.mxu0 0
        %7662 = vmatmul.mubr.bf16.gmra.mrb[0].mxu0 %v7528
        %v7663 = vpop.f32.mrb[0].mxu0
        %v7664 = vadd.f32 0.0, %v7663
        %v7665 = vpop.f32.mrb[0].mxu0
        %v7666 = vpop.f32.mrb[0].mxu0
        %v7667 = vadd.f32 0.0, %v7666
        %v7668 = vpop.f32.mrb[0].mxu0
        %7669 = vmatprep.mubr.bf16.mxu0 0
        %7670 = vmatmul.mubr.bf16.gmra.mrb[0].mxu0 %v7529
        %v7671 = vpop.f32.mrb[0].mxu0
        %v7672 = vadd.f32 0.0, %v7671
        %v7673 = vpop.f32.mrb[0].mxu0
        %v7674 = vpop.f32.mrb[0].mxu0
        %v7675 = vadd.f32 0.0, %v7674
        %v7676 = vpop.f32.mrb[0].mxu0
        %7677 = vmatprep.mubr.bf16.mxu0 0
        %7678 = vmatmul.mubr.bf16.gmra.mrb[0].mxu0 %v7530
        %v7679 = vpop.f32.mrb[0].mxu0
        %v7680 = vadd.f32 0.0, %v7679
        %v7681 = vpop.f32.mrb[0].mxu0
        %v7682 = vpop.f32.mrb[0].mxu0
        %v7683 = vadd.f32 0.0, %v7682
        %v7684 = vpop.f32.mrb[0].mxu0
        %7685 = vmatprep.mubr.bf16.mxu0 0
        %7686 = vmatmul.mubr.bf16.gmra.mrb[0].mxu0 %v7531
        %v7687 = vpop.f32.mrb[0].mxu0
        %v7688 = vadd.f32 0.0, %v7687
        %v7689 = vpop.f32.mrb[0].mxu0
        %v7690 = vpop.f32.mrb[0].mxu0
        %v7691 = vadd.f32 0.0, %v7690
        %v7692 = vpop.f32.mrb[0].mxu0
        %7693 = vmatprep.mubr.bf16.mxu0 0
        %7694 = vmatmul.mubr.bf16.gmra.mrb[0].mxu0 %v7532
        %v7695 = vpop.f32.mrb[0].mxu0
        %v7696 = vadd.f32 0.0, %v7695
        %v7697 = vpop.f32.mrb[0].mxu0
        %v7698 = vpop.f32.mrb[0].mxu0
        %v7699 = vadd.f32 0.0, %v7698
        %v7700 = vpop.f32.mrb[0].mxu0
        %7701 = vmatprep.mubr.bf16.mxu0 0
        %7702 = vmatmul.mubr.bf16.gmra.mrb[0].mxu0 %v7533
        %v7703 = vpop.f32.mrb[0].mxu0
        %v7704 = vadd.f32 0.0, %v7703
        %v7705 = vpop.f32.mrb[0].mxu0
        %v7706 = vpop.f32.mrb[0].mxu0
        %v7707 = vadd.f32 0.0, %v7706
        %v7708 = vpop.f32.mrb[0].mxu0
        %7709 = vmatprep.mubr.bf16.mxu0 0
        %7710 = vmatmul.mubr.bf16.gmra.mrb[0].mxu0 %v7534
        %v7711 = vpop.f32.mrb[0].mxu0
        %v7712 = vadd.f32 0.0, %v7711
        %v7713 = vpop.f32.mrb[0].mxu0
        %v7714 = vpop.f32.mrb[0].mxu0
        %v7715 = vadd.f32 0.0, %v7714
        %v7716 = vpop.f32.mrb[0].mxu0
        %7717 = vmatprep.mubr.bf16.mxu0 0
        %7718 = vmatmul.mubr.bf16.gmra.mrb[0].mxu0 %v7535
        %v7719 = vpop.f32.mrb[0].mxu0
        %v7720 = vadd.f32 0.0, %v7719
        %v7721 = vpop.f32.mrb[0].mxu0
        %v7722 = vpop.f32.mrb[0].mxu0
        %v7723 = vadd.f32 0.0, %v7722
        %v7724 = vpop.f32.mrb[0].mxu0
        %7725 = vmatprep.mubr.bf16.mxu0 0
        %7726 = vmatmul.mubr.bf16.gmra.mrb[0].mxu0 %v7536
        %v7727 = vpop.f32.mrb[0].mxu0
        %v7728 = vadd.f32 0.0, %v7727
        %v7729 = vpop.f32.mrb[0].mxu0
        %v7730 = vpop.f32.mrb[0].mxu0
        %v7731 = vadd.f32 0.0, %v7730
        %v7732 = vpop.f32.mrb[0].mxu0
        %7733 = vmatprep.mubr.bf16.mxu0 0
        %7734 = vmatmul.mubr.bf16.gmra.mrb[0].mxu0 %v7537
        %v7735 = vpop.f32.mrb[0].mxu0
        %v7736 = vadd.f32 0.0, %v7735
        %v7737 = vpop.f32.mrb[0].mxu0
        %v7738 = vpop.f32.mrb[0].mxu0
        %v7739 = vadd.f32 0.0, %v7738
        %v7740 = vpop.f32.mrb[0].mxu0
        %7741 = vmatprep.mubr.bf16.mxu0 0
        %7742 = vmatmul.mubr.bf16.gmra.mrb[0].mxu0 %v7538
        %v7743 = vpop.f32.mrb[0].mxu0
        %v7744 = vadd.f32 0.0, %v7743
        %v7745 = vpop.f32.mrb[0].mxu0
        %v7746 = vpop.f32.mrb[0].mxu0
        %v7747 = vadd.f32 0.0, %v7746
        %v7748 = vpop.f32.mrb[0].mxu0
        %7749 = vmatprep.mubr.bf16.mxu0 0
        %7750 = vmatmul.mubr.bf16.gmra.mrb[0].mxu0 %v7539
        %v7751 = vpop.f32.mrb[0].mxu0
        %v7752 = vadd.f32 0.0, %v7751
        %v7753 = vpop.f32.mrb[0].mxu0
        %v7754 = vpop.f32.mrb[0].mxu0
        %v7755 = vadd.f32 0.0, %v7754
        %v7756 = vpop.f32.mrb[0].mxu0
        %7757 = vmatprep.mubr.bf16.mxu0 0
        %7758 = vmatmul.mubr.bf16.gmra.mrb[0].mxu0 %v7540
        %v7759 = vpop.f32.mrb[0].mxu0
        %v7760 = vadd.f32 0.0, %v7759
        %v7761 = vpop.f32.mrb[0].mxu0
        %v7762 = vpop.f32.mrb[0].mxu0
        %v7763 = vadd.f32 0.0, %v7762
        %v7764 = vpop.f32.mrb[0].mxu0
        %7765 = vdwg.mxu0
        %v7766 = vadd.f32 %v7012, %v7640
        %v7767 = vadd.f32 %v7013, %v7643
        %v7768 = vadd.f32 %v7014, %v7648
        %v7769 = vadd.f32 %v7015, %v7651
        %v7770 = vadd.f32 %v7016, %v7656
        %v7771 = vadd.f32 %v7017, %v7659
        %v7772 = vadd.f32 %v7018, %v7664
        %v7773 = vadd.f32 %v7019, %v7667
        %v7774 = vadd.f32 %v7020, %v7672
        %v7775 = vadd.f32 %v7021, %v7675
        %v7776 = vadd.f32 %v7022, %v7680
        %v7777 = vadd.f32 %v7023, %v7683
        %v7778 = vadd.f32 %v7024, %v7688
        %v7779 = vadd.f32 %v7025, %v7691
        %v7780 = vadd.f32 %v7026, %v7696
        %v7781 = vadd.f32 %v7027, %v7699
        %v7782 = vadd.f32 %v7028, %v7704
        %v7783 = vadd.f32 %v7029, %v7707
        %v7784 = vadd.f32 %v7030, %v7712
        %v7785 = vadd.f32 %v7031, %v7715
        %v7786 = vadd.f32 %v7032, %v7720
        %v7787 = vadd.f32 %v7033, %v7723
        %v7788 = vadd.f32 %v7034, %v7728
        %v7789 = vadd.f32 %v7035, %v7731
        %v7790 = vadd.f32 %v7036, %v7736
        %v7791 = vadd.f32 %v7037, %v7739
        %v7792 = vadd.f32 %v7038, %v7744
        %v7793 = vadd.f32 %v7039, %v7747
        %v7794 = vadd.f32 %v7040, %v7752
        %v7795 = vadd.f32 %v7041, %v7755
        %v7796 = vadd.f32 %v7042, %v7760
        %v7797 = vadd.f32 %v7043, %v7763
        %v7798 = vld [vmem:[%s5997] sm:$0xf]
        %v7799 = vld [vmem:[%s5997 + $0x4] sm:$0xf]
        %v7800 = vld [vmem:[%s5997 + $0x8] sm:$0x1]
        %v7801 = vld [vmem:[%s5997 + $0xc] sm:$0xf]
        %v7802 = vld [vmem:[%s5997 + $0x10] sm:$0xf]
        %v7803 = vld [vmem:[%s5997 + $0x14] sm:$0x1]
        %v7804 = vld [vmem:[%s5997 + $0x18] sm:$0xf]
        %v7805 = vld [vmem:[%s5997 + $0x1c] sm:$0xf]
        %v7806 = vld [vmem:[%s5997 + $0x20] sm:$0x1]
        %v7807 = vld [vmem:[%s5997 + $0x24] sm:$0xf]
        %v7808 = vld [vmem:[%s5997 + $0x28] sm:$0xf]
        %v7809 = vld [vmem:[%s5997 + $0x2c] sm:$0x1]
        %v7810 = vld [vmem:[%s5997 + $0x30] sm:$0xf]
        %v7811 = vld [vmem:[%s5997 + $0x34] sm:$0xf]
        %v7812 = vld [vmem:[%s5997 + $0x38] sm:$0x1]
        %v7813 = vld [vmem:[%s5997 + $0x3c] sm:$0xf]
        %v7814 = vld [vmem:[%s5997 + $0x40] sm:$0xf]
        %v7815 = vld [vmem:[%s5997 + $0x44] sm:$0x1]
        %v7816 = vld [vmem:[%s5997 + $0x48] sm:$0xf]
        %v7817 = vld [vmem:[%s5997 + $0x4c] sm:$0xf]
        %v7818 = vld [vmem:[%s5997 + $0x50] sm:$0x1]
        %v7819 = vld [vmem:[%s5997 + $0x54] sm:$0xf]
        %v7820 = vld [vmem:[%s5997 + $0x58] sm:$0xf]
        %v7821 = vld [vmem:[%s5997 + $0x5c] sm:$0x1]
        %v7822 = vld [vmem:[%s5997 + $0x60] sm:$0xf]
        %v7823 = vld [vmem:[%s5997 + $0x64] sm:$0xf]
        %v7824 = vld [vmem:[%s5997 + $0x68] sm:$0x1]
        %v7825 = vld [vmem:[%s5997 + $0x6c] sm:$0xf]
        %v7826 = vld [vmem:[%s5997 + $0x70] sm:$0xf]
        %v7827 = vld [vmem:[%s5997 + $0x74] sm:$0x1]
        %v7828 = vld [vmem:[%s5997 + $0x78] sm:$0xf]
        %v7829 = vld [vmem:[%s5997 + $0x7c] sm:$0xf]
        %v7830 = vld [vmem:[%s5997 + $0x80] sm:$0x1]
        %v7831 = vld [vmem:[%s5997 + $0x84] sm:$0xf]
        %v7832 = vld [vmem:[%s5997 + $0x88] sm:$0xf]
        %v7833 = vld [vmem:[%s5997 + $0x8c] sm:$0x1]
        %v7834 = vld [vmem:[%s5997 + $0x90] sm:$0xf]
        %v7835 = vld [vmem:[%s5997 + $0x94] sm:$0xf]
        %v7836 = vld [vmem:[%s5997 + $0x98] sm:$0x1]
        %v7837 = vld [vmem:[%s5997 + $0x9c] sm:$0xf]
        %v7838 = vld [vmem:[%s5997 + $0xa0] sm:$0xf]
        %v7839 = vld [vmem:[%s5997 + $0xa4] sm:$0x1]
        %v7840 = vld [vmem:[%s5997 + $0xa8] sm:$0xf]
        %v7841 = vld [vmem:[%s5997 + $0xac] sm:$0xf]
        %v7842 = vld [vmem:[%s5997 + $0xb0] sm:$0x1]
        %v7843 = vld [vmem:[%s5997 + $0xb4] sm:$0xf]
        %v7844 = vld [vmem:[%s5997 + $0xb8] sm:$0xf]
        %v7845 = vld [vmem:[%s5997 + $0xbc] sm:$0x1]
        %v7847 = vshrl.u32 %v7798, 16
        %v7849 = vrot.slane %v7847, 4
        %v7850 = vshll.u32 %v7798, 16
        %v7852 = vrot.slane %v7850, 5
        %v7853 = vor.u32 %v7849, %v7852
        %v7854 = vrot.slane %v7853, 4
        %v7856 = vshll.u32 %v7799, 16
        %v7858 = vrot.slane %v7856, 5
        %v7859 = vsel %vm1780, %v7854, %v7858
        %v7860 = vshrl.u32 %v7799, 16
        %v7862 = vrot.slane %v7860, 4
        %v7863 = vor.u32 %v7862, %v7858
        %v7864 = vrot.slane %v7863, 4
        %v7866 = vshll.u32 %v7800, 16
        %v7868 = vrot.slane %v7866, 5
        %v7869 = vsel %vm1780, %v7864, %v7868
        %v7871 = vshrl.u32 %v7801, 16
        %v7873 = vrot.slane %v7871, 4
        %v7874 = vshll.u32 %v7801, 16
        %v7876 = vrot.slane %v7874, 5
        %v7877 = vor.u32 %v7873, %v7876
        %v7878 = vrot.slane %v7877, 4
        %v7880 = vshll.u32 %v7802, 16
        %v7882 = vrot.slane %v7880, 5
        %v7883 = vsel %vm1780, %v7878, %v7882
        %v7884 = vshrl.u32 %v7802, 16
        %v7886 = vrot.slane %v7884, 4
        %v7887 = vor.u32 %v7886, %v7882
        %v7888 = vrot.slane %v7887, 4
        %v7890 = vshll.u32 %v7803, 16
        %v7892 = vrot.slane %v7890, 5
        %v7893 = vsel %vm1780, %v7888, %v7892
        %v7895 = vshrl.u32 %v7804, 16
        %v7897 = vrot.slane %v7895, 4
        %v7898 = vshll.u32 %v7804, 16
        %v7900 = vrot.slane %v7898, 5
        %v7901 = vor.u32 %v7897, %v7900
        %v7902 = vrot.slane %v7901, 4
        %v7904 = vshll.u32 %v7805, 16
        %v7906 = vrot.slane %v7904, 5
        %v7907 = vsel %vm1780, %v7902, %v7906
        %v7908 = vshrl.u32 %v7805, 16
        %v7910 = vrot.slane %v7908, 4
        %v7911 = vor.u32 %v7910, %v7906
        %v7912 = vrot.slane %v7911, 4
        %v7914 = vshll.u32 %v7806, 16
        %v7916 = vrot.slane %v7914, 5
        %v7917 = vsel %vm1780, %v7912, %v7916
        %v7919 = vshrl.u32 %v7807, 16
        %v7921 = vrot.slane %v7919, 4
        %v7922 = vshll.u32 %v7807, 16
        %v7924 = vrot.slane %v7922, 5
        %v7925 = vor.u32 %v7921, %v7924
        %v7926 = vrot.slane %v7925, 4
        %v7928 = vshll.u32 %v7808, 16
        %v7930 = vrot.slane %v7928, 5
        %v7931 = vsel %vm1780, %v7926, %v7930
        %v7932 = vshrl.u32 %v7808, 16
        %v7934 = vrot.slane %v7932, 4
        %v7935 = vor.u32 %v7934, %v7930
        %v7936 = vrot.slane %v7935, 4
        %v7938 = vshll.u32 %v7809, 16
        %v7940 = vrot.slane %v7938, 5
        %v7941 = vsel %vm1780, %v7936, %v7940
        %v7943 = vshrl.u32 %v7810, 16
        %v7945 = vrot.slane %v7943, 4
        %v7946 = vshll.u32 %v7810, 16
        %v7948 = vrot.slane %v7946, 5
        %v7949 = vor.u32 %v7945, %v7948
        %v7950 = vrot.slane %v7949, 4
        %v7952 = vshll.u32 %v7811, 16
        %v7954 = vrot.slane %v7952, 5
        %v7955 = vsel %vm1780, %v7950, %v7954
        %v7956 = vshrl.u32 %v7811, 16
        %v7958 = vrot.slane %v7956, 4
        %v7959 = vor.u32 %v7958, %v7954
        %v7960 = vrot.slane %v7959, 4
        %v7962 = vshll.u32 %v7812, 16
        %v7964 = vrot.slane %v7962, 5
        %v7965 = vsel %vm1780, %v7960, %v7964
        %v7967 = vshrl.u32 %v7813, 16
        %v7969 = vrot.slane %v7967, 4
        %v7970 = vshll.u32 %v7813, 16
        %v7972 = vrot.slane %v7970, 5
        %v7973 = vor.u32 %v7969, %v7972
        %v7974 = vrot.slane %v7973, 4
        %v7976 = vshll.u32 %v7814, 16
        %v7978 = vrot.slane %v7976, 5
        %v7979 = vsel %vm1780, %v7974, %v7978
        %v7980 = vshrl.u32 %v7814, 16
        %v7982 = vrot.slane %v7980, 4
        %v7983 = vor.u32 %v7982, %v7978
        %v7984 = vrot.slane %v7983, 4
        %v7986 = vshll.u32 %v7815, 16
        %v7988 = vrot.slane %v7986, 5
        %v7989 = vsel %vm1780, %v7984, %v7988
        %v7991 = vshrl.u32 %v7816, 16
        %v7993 = vrot.slane %v7991, 4
        %v7994 = vshll.u32 %v7816, 16
        %v7996 = vrot.slane %v7994, 5
        %v7997 = vor.u32 %v7993, %v7996
        %v7998 = vrot.slane %v7997, 4
        %v8000 = vshll.u32 %v7817, 16
        %v8002 = vrot.slane %v8000, 5
        %v8003 = vsel %vm1780, %v7998, %v8002
        %v8004 = vshrl.u32 %v7817, 16
        %v8006 = vrot.slane %v8004, 4
        %v8007 = vor.u32 %v8006, %v8002
        %v8008 = vrot.slane %v8007, 4
        %v8010 = vshll.u32 %v7818, 16
        %v8012 = vrot.slane %v8010, 5
        %v8013 = vsel %vm1780, %v8008, %v8012
        %v8015 = vshrl.u32 %v7819, 16
        %v8017 = vrot.slane %v8015, 4
        %v8018 = vshll.u32 %v7819, 16
        %v8020 = vrot.slane %v8018, 5
        %v8021 = vor.u32 %v8017, %v8020
        %v8022 = vrot.slane %v8021, 4
        %v8024 = vshll.u32 %v7820, 16
        %v8026 = vrot.slane %v8024, 5
        %v8027 = vsel %vm1780, %v8022, %v8026
        %v8028 = vshrl.u32 %v7820, 16
        %v8030 = vrot.slane %v8028, 4
        %v8031 = vor.u32 %v8030, %v8026
        %v8032 = vrot.slane %v8031, 4
        %v8034 = vshll.u32 %v7821, 16
        %v8036 = vrot.slane %v8034, 5
        %v8037 = vsel %vm1780, %v8032, %v8036
        %v8039 = vshrl.u32 %v7822, 16
        %v8041 = vrot.slane %v8039, 4
        %v8042 = vshll.u32 %v7822, 16
        %v8044 = vrot.slane %v8042, 5
        %v8045 = vor.u32 %v8041, %v8044
        %v8046 = vrot.slane %v8045, 4
        %v8048 = vshll.u32 %v7823, 16
        %v8050 = vrot.slane %v8048, 5
        %v8051 = vsel %vm1780, %v8046, %v8050
        %v8052 = vshrl.u32 %v7823, 16
        %v8054 = vrot.slane %v8052, 4
        %v8055 = vor.u32 %v8054, %v8050
        %v8056 = vrot.slane %v8055, 4
        %v8058 = vshll.u32 %v7824, 16
        %v8060 = vrot.slane %v8058, 5
        %v8061 = vsel %vm1780, %v8056, %v8060
        %v8063 = vshrl.u32 %v7825, 16
        %v8065 = vrot.slane %v8063, 4
        %v8066 = vshll.u32 %v7825, 16
        %v8068 = vrot.slane %v8066, 5
        %v8069 = vor.u32 %v8065, %v8068
        %v8070 = vrot.slane %v8069, 4
        %v8072 = vshll.u32 %v7826, 16
        %v8074 = vrot.slane %v8072, 5
        %v8075 = vsel %vm1780, %v8070, %v8074
        %v8076 = vshrl.u32 %v7826, 16
        %v8078 = vrot.slane %v8076, 4
        %v8079 = vor.u32 %v8078, %v8074
        %v8080 = vrot.slane %v8079, 4
        %v8082 = vshll.u32 %v7827, 16
        %v8084 = vrot.slane %v8082, 5
        %v8085 = vsel %vm1780, %v8080, %v8084
        %v8087 = vshrl.u32 %v7828, 16
        %v8089 = vrot.slane %v8087, 4
        %v8090 = vshll.u32 %v7828, 16
        %v8092 = vrot.slane %v8090, 5
        %v8093 = vor.u32 %v8089, %v8092
        %v8094 = vrot.slane %v8093, 4
        %v8096 = vshll.u32 %v7829, 16
        %v8098 = vrot.slane %v8096, 5
        %v8099 = vsel %vm1780, %v8094, %v8098
        %v8100 = vshrl.u32 %v7829, 16
        %v8102 = vrot.slane %v8100, 4
        %v8103 = vor.u32 %v8102, %v8098
        %v8104 = vrot.slane %v8103, 4
        %v8106 = vshll.u32 %v7830, 16
        %v8108 = vrot.slane %v8106, 5
        %v8109 = vsel %vm1780, %v8104, %v8108
        %v8111 = vshrl.u32 %v7831, 16
        %v8113 = vrot.slane %v8111, 4
        %v8114 = vshll.u32 %v7831, 16
        %v8116 = vrot.slane %v8114, 5
        %v8117 = vor.u32 %v8113, %v8116
        %v8118 = vrot.slane %v8117, 4
        %v8120 = vshll.u32 %v7832, 16
        %v8122 = vrot.slane %v8120, 5
        %v8123 = vsel %vm1780, %v8118, %v8122
        %v8124 = vshrl.u32 %v7832, 16
        %v8126 = vrot.slane %v8124, 4
        %v8127 = vor.u32 %v8126, %v8122
        %v8128 = vrot.slane %v8127, 4
        %v8130 = vshll.u32 %v7833, 16
        %v8132 = vrot.slane %v8130, 5
        %v8133 = vsel %vm1780, %v8128, %v8132
        %v8135 = vshrl.u32 %v7834, 16
        %v8137 = vrot.slane %v8135, 4
        %v8138 = vshll.u32 %v7834, 16
        %v8140 = vrot.slane %v8138, 5
        %v8141 = vor.u32 %v8137, %v8140
        %v8142 = vrot.slane %v8141, 4
        %v8144 = vshll.u32 %v7835, 16
        %v8146 = vrot.slane %v8144, 5
        %v8147 = vsel %vm1780, %v8142, %v8146
        %v8148 = vshrl.u32 %v7835, 16
        %v8150 = vrot.slane %v8148, 4
        %v8151 = vor.u32 %v8150, %v8146
        %v8152 = vrot.slane %v8151, 4
        %v8154 = vshll.u32 %v7836, 16
        %v8156 = vrot.slane %v8154, 5
        %v8157 = vsel %vm1780, %v8152, %v8156
        %v8159 = vshrl.u32 %v7837, 16
        %v8161 = vrot.slane %v8159, 4
        %v8162 = vshll.u32 %v7837, 16
        %v8164 = vrot.slane %v8162, 5
        %v8165 = vor.u32 %v8161, %v8164
        %v8166 = vrot.slane %v8165, 4
        %v8168 = vshll.u32 %v7838, 16
        %v8170 = vrot.slane %v8168, 5
        %v8171 = vsel %vm1780, %v8166, %v8170
        %v8172 = vshrl.u32 %v7838, 16
        %v8174 = vrot.slane %v8172, 4
        %v8175 = vor.u32 %v8174, %v8170
        %v8176 = vrot.slane %v8175, 4
        %v8178 = vshll.u32 %v7839, 16
        %v8180 = vrot.slane %v8178, 5
        %v8181 = vsel %vm1780, %v8176, %v8180
        %v8183 = vshrl.u32 %v7840, 16
        %v8185 = vrot.slane %v8183, 4
        %v8186 = vshll.u32 %v7840, 16
        %v8188 = vrot.slane %v8186, 5
        %v8189 = vor.u32 %v8185, %v8188
        %v8190 = vrot.slane %v8189, 4
        %v8192 = vshll.u32 %v7841, 16
        %v8194 = vrot.slane %v8192, 5
        %v8195 = vsel %vm1780, %v8190, %v8194
        %v8196 = vshrl.u32 %v7841, 16
        %v8198 = vrot.slane %v8196, 4
        %v8199 = vor.u32 %v8198, %v8194
        %v8200 = vrot.slane %v8199, 4
        %v8202 = vshll.u32 %v7842, 16
        %v8204 = vrot.slane %v8202, 5
        %v8205 = vsel %vm1780, %v8200, %v8204
        %v8207 = vshrl.u32 %v7843, 16
        %v8209 = vrot.slane %v8207, 4
        %v8210 = vshll.u32 %v7843, 16
        %v8212 = vrot.slane %v8210, 5
        %v8213 = vor.u32 %v8209, %v8212
        %v8214 = vrot.slane %v8213, 4
        %v8216 = vshll.u32 %v7844, 16
        %v8218 = vrot.slane %v8216, 5
        %v8219 = vsel %vm1780, %v8214, %v8218
        %v8220 = vshrl.u32 %v7844, 16
        %v8222 = vrot.slane %v8220, 4
        %v8223 = vor.u32 %v8222, %v8218
        %v8224 = vrot.slane %v8223, 4
        %v8226 = vshll.u32 %v7845, 16
        %v8228 = vrot.slane %v8226, 5
        %v8229 = vsel %vm1780, %v8224, %v8228
        %s8230 = scalar_lea.vmem [#allocation11], 256
        %v8231 = vld [vmem:[%s8230] sm:$0xf]
        %v8232 = vld [vmem:[%s8230 + $0x4] sm:$0xf]
        %v8233 = vld [vmem:[%s8230 + $0x8] sm:$0xf]
        %v8234 = vld [vmem:[%s8230 + $0xc] sm:$0xf]
        %v8235 = vld [vmem:[%s8230 + $0x10] sm:$0xf]
        %v8236 = vld [vmem:[%s8230 + $0x14] sm:$0xf]
        %v8237 = vld [vmem:[%s8230 + $0x18] sm:$0xf]
        %v8238 = vld [vmem:[%s8230 + $0x1c] sm:$0xf]
        %v8239 = vld [vmem:[%s8230 + $0x20] sm:$0xf]
        %v8240 = vld [vmem:[%s8230 + $0x24] sm:$0xf]
        %v8241 = vld [vmem:[%s8230 + $0x28] sm:$0xf]
        %v8242 = vld [vmem:[%s8230 + $0x2c] sm:$0xf]
        %v8243 = vld [vmem:[%s8230 + $0x30] sm:$0xf]
        %v8244 = vld [vmem:[%s8230 + $0x34] sm:$0xf]
        %v8245 = vld [vmem:[%s8230 + $0x38] sm:$0xf]
        %v8246 = vld [vmem:[%s8230 + $0x3c] sm:$0xf]
        %v8247 = vunpack.c.l.b16 %v7859
        %v8248 = vunpack.c.l.b16 %v7869
        %v8249 = vunpack.c.l.b16 %v7883
        %v8250 = vunpack.c.l.b16 %v7893
        %v8251 = vunpack.c.l.b16 %v7907
        %v8252 = vunpack.c.l.b16 %v7917
        %v8253 = vunpack.c.l.b16 %v7931
        %v8254 = vunpack.c.l.b16 %v7941
        %v8255 = vunpack.c.l.b16 %v7955
        %v8256 = vunpack.c.l.b16 %v7965
        %v8257 = vunpack.c.l.b16 %v7979
        %v8258 = vunpack.c.l.b16 %v7989
        %v8259 = vunpack.c.l.b16 %v8003
        %v8260 = vunpack.c.l.b16 %v8013
        %v8261 = vunpack.c.l.b16 %v8027
        %v8262 = vunpack.c.l.b16 %v8037
        %v8263 = vunpack.c.l.b16 %v8051
        %v8264 = vunpack.c.l.b16 %v8061
        %v8265 = vunpack.c.l.b16 %v8075
        %v8266 = vunpack.c.l.b16 %v8085
        %v8267 = vunpack.c.l.b16 %v8099
        %v8268 = vunpack.c.l.b16 %v8109
        %v8269 = vunpack.c.l.b16 %v8123
        %v8270 = vunpack.c.l.b16 %v8133
        %v8271 = vunpack.c.l.b16 %v8147
        %v8272 = vunpack.c.l.b16 %v8157
        %v8273 = vunpack.c.l.b16 %v8171
        %v8274 = vunpack.c.l.b16 %v8181
        %v8275 = vunpack.c.l.b16 %v8195
        %v8276 = vunpack.c.l.b16 %v8205
        %v8277 = vunpack.c.l.b16 %v8219
        %v8278 = vunpack.c.l.b16 %v8229
        %v8279 = vpack.c.b16 %v8248, %v8247
        %v8280 = vpack.c.b16 %v8250, %v8249
        %v8281 = vpack.c.b16 %v8252, %v8251
        %v8282 = vpack.c.b16 %v8254, %v8253
        %v8283 = vpack.c.b16 %v8256, %v8255
        %v8284 = vpack.c.b16 %v8258, %v8257
        %v8285 = vpack.c.b16 %v8260, %v8259
        %v8286 = vpack.c.b16 %v8262, %v8261
        %v8287 = vpack.c.b16 %v8264, %v8263
        %v8288 = vpack.c.b16 %v8266, %v8265
        %v8289 = vpack.c.b16 %v8268, %v8267
        %v8290 = vpack.c.b16 %v8270, %v8269
        %v8291 = vpack.c.b16 %v8272, %v8271
        %v8292 = vpack.c.b16 %v8274, %v8273
        %v8293 = vpack.c.b16 %v8276, %v8275
        %v8294 = vpack.c.b16 %v8278, %v8277
        %v8327 = vunpack.c.l.b16 %v8231
        %v8328 = vunpack.c.l.b16 %v8232
        %v8329 = vunpack.c.l.b16 %v8233
        %v8330 = vunpack.c.l.b16 %v8234
        %v8331 = vunpack.c.l.b16 %v8235
        %v8332 = vunpack.c.l.b16 %v8236
        %v8333 = vunpack.c.l.b16 %v8237
        %v8334 = vunpack.c.l.b16 %v8238
        %v8335 = vunpack.c.l.b16 %v8239
        %v8336 = vunpack.c.l.b16 %v8240
        %v8337 = vunpack.c.l.b16 %v8241
        %v8338 = vunpack.c.l.b16 %v8242
        %v8339 = vunpack.c.l.b16 %v8243
        %v8340 = vunpack.c.l.b16 %v8244
        %v8341 = vunpack.c.l.b16 %v8245
        %v8342 = vunpack.c.l.b16 %v8246
        %v8343 = vpack.c.b16 %v8328, %v8327
        %v8344 = vpack.c.b16 %v8330, %v8329
        %v8345 = vpack.c.b16 %v8332, %v8331
        %v8346 = vpack.c.b16 %v8334, %v8333
        %v8347 = vpack.c.b16 %v8336, %v8335
        %v8348 = vpack.c.b16 %v8338, %v8337
        %v8349 = vpack.c.b16 %v8340, %v8339
        %v8350 = vpack.c.b16 %v8342, %v8341
        %8359 = vmatprep.subr.bf16.mxu0 0
        %8360 = vmatpush1.bf16.msra.mxu0 %v8343
        %8361 = vmatprep.subr.bf16.mxu0 0
        %8362 = vmatpush1.bf16.msra.mxu0 %v8344
        %8363 = vmatprep.subr.bf16.mxu0 0
        %8364 = vmatpush1.bf16.msra.mxu0 %v8345
        %8365 = vmatprep.subr.bf16.mxu0 0
        %8366 = vmatpush1.bf16.msra.mxu0 %v8346
        %8367 = vmatprep.subr.bf16.mxu0 0
        %8368 = vmatpush1.bf16.msra.mxu0 %v8347
        %8369 = vmatprep.subr.bf16.mxu0 0
        %8370 = vmatpush1.bf16.msra.mxu0 %v8348
        %8371 = vmatprep.subr.bf16.mxu0 0
        %8372 = vmatpush1.bf16.msra.mxu0 %v8349
        %8373 = vmatprep.subr.bf16.mxu0 0
        %8374 = vmatpush1.bf16.msra.mxu0 %v8350
        %8375 = vmatprep.subr.bf16.mxu0 0
        %8376 = vmatpush1.bf16.msra.mxu0 0
        %8377 = vmatprep.subr.bf16.mxu0 0
        %8378 = vmatpush1.bf16.msra.mxu0 0
        %8379 = vmatprep.subr.bf16.mxu0 0
        %8380 = vmatpush1.bf16.msra.mxu0 0
        %8381 = vmatprep.subr.bf16.mxu0 0
        %8382 = vmatpush1.bf16.msra.mxu0 0
        %8383 = vmatprep.subr.bf16.mxu0 0
        %8384 = vmatpush1.bf16.msra.mxu0 0
        %8385 = vmatprep.subr.bf16.mxu0 0
        %8386 = vmatpush1.bf16.msra.mxu0 0
        %8387 = vmatprep.subr.bf16.mxu0 0
        %8388 = vmatpush1.bf16.msra.mxu0 0
        %8389 = vmatprep.subr.bf16.mxu0 0
        %8390 = vmatpush1.bf16.msra.mxu0 0
        %8391 = vmatprep.mubr.bf16.mxu0 0
        %8392 = vmatmul.mubr.bf16.gmra.mrb[0].mxu0 %v8279
        %v8393 = vpop.f32.mrb[0].mxu0
        %v8394 = vadd.f32 0.0, %v8393
        %v8395 = vpop.f32.mrb[0].mxu0
        %v8396 = vpop.f32.mrb[0].mxu0
        %v8397 = vadd.f32 0.0, %v8396
        %v8398 = vpop.f32.mrb[0].mxu0
        %8399 = vmatprep.mubr.bf16.mxu0 0
        %8400 = vmatmul.mubr.bf16.gmra.mrb[0].mxu0 %v8280
        %v8401 = vpop.f32.mrb[0].mxu0
        %v8402 = vadd.f32 0.0, %v8401
        %v8403 = vpop.f32.mrb[0].mxu0
        %v8404 = vpop.f32.mrb[0].mxu0
        %v8405 = vadd.f32 0.0, %v8404
        %v8406 = vpop.f32.mrb[0].mxu0
        %8407 = vmatprep.mubr.bf16.mxu0 0
        %8408 = vmatmul.mubr.bf16.gmra.mrb[0].mxu0 %v8281
        %v8409 = vpop.f32.mrb[0].mxu0
        %v8410 = vadd.f32 0.0, %v8409
        %v8411 = vpop.f32.mrb[0].mxu0
        %v8412 = vpop.f32.mrb[0].mxu0
        %v8413 = vadd.f32 0.0, %v8412
        %v8414 = vpop.f32.mrb[0].mxu0
        %8415 = vmatprep.mubr.bf16.mxu0 0
        %8416 = vmatmul.mubr.bf16.gmra.mrb[0].mxu0 %v8282
        %v8417 = vpop.f32.mrb[0].mxu0
        %v8418 = vadd.f32 0.0, %v8417
        %v8419 = vpop.f32.mrb[0].mxu0
        %v8420 = vpop.f32.mrb[0].mxu0
        %v8421 = vadd.f32 0.0, %v8420
        %v8422 = vpop.f32.mrb[0].mxu0
        %8423 = vmatprep.mubr.bf16.mxu0 0
        %8424 = vmatmul.mubr.bf16.gmra.mrb[0].mxu0 %v8283
        %v8425 = vpop.f32.mrb[0].mxu0
        %v8426 = vadd.f32 0.0, %v8425
        %v8427 = vpop.f32.mrb[0].mxu0
        %v8428 = vpop.f32.mrb[0].mxu0
        %v8429 = vadd.f32 0.0, %v8428
        %v8430 = vpop.f32.mrb[0].mxu0
        %8431 = vmatprep.mubr.bf16.mxu0 0
        %8432 = vmatmul.mubr.bf16.gmra.mrb[0].mxu0 %v8284
        %v8433 = vpop.f32.mrb[0].mxu0
        %v8434 = vadd.f32 0.0, %v8433
        %v8435 = vpop.f32.mrb[0].mxu0
        %v8436 = vpop.f32.mrb[0].mxu0
        %v8437 = vadd.f32 0.0, %v8436
        %v8438 = vpop.f32.mrb[0].mxu0
        %8439 = vmatprep.mubr.bf16.mxu0 0
        %8440 = vmatmul.mubr.bf16.gmra.mrb[0].mxu0 %v8285
        %v8441 = vpop.f32.mrb[0].mxu0
        %v8442 = vadd.f32 0.0, %v8441
        %v8443 = vpop.f32.mrb[0].mxu0
        %v8444 = vpop.f32.mrb[0].mxu0
        %v8445 = vadd.f32 0.0, %v8444
        %v8446 = vpop.f32.mrb[0].mxu0
        %8447 = vmatprep.mubr.bf16.mxu0 0
        %8448 = vmatmul.mubr.bf16.gmra.mrb[0].mxu0 %v8286
        %v8449 = vpop.f32.mrb[0].mxu0
        %v8450 = vadd.f32 0.0, %v8449
        %v8451 = vpop.f32.mrb[0].mxu0
        %v8452 = vpop.f32.mrb[0].mxu0
        %v8453 = vadd.f32 0.0, %v8452
        %v8454 = vpop.f32.mrb[0].mxu0
        %8455 = vmatprep.mubr.bf16.mxu0 0
        %8456 = vmatmul.mubr.bf16.gmra.mrb[0].mxu0 %v8287
        %v8457 = vpop.f32.mrb[0].mxu0
        %v8458 = vadd.f32 0.0, %v8457
        %v8459 = vpop.f32.mrb[0].mxu0
        %v8460 = vpop.f32.mrb[0].mxu0
        %v8461 = vadd.f32 0.0, %v8460
        %v8462 = vpop.f32.mrb[0].mxu0
        %8463 = vmatprep.mubr.bf16.mxu0 0
        %8464 = vmatmul.mubr.bf16.gmra.mrb[0].mxu0 %v8288
        %v8465 = vpop.f32.mrb[0].mxu0
        %v8466 = vadd.f32 0.0, %v8465
        %v8467 = vpop.f32.mrb[0].mxu0
        %v8468 = vpop.f32.mrb[0].mxu0
        %v8469 = vadd.f32 0.0, %v8468
        %v8470 = vpop.f32.mrb[0].mxu0
        %8471 = vmatprep.mubr.bf16.mxu0 0
        %8472 = vmatmul.mubr.bf16.gmra.mrb[0].mxu0 %v8289
        %v8473 = vpop.f32.mrb[0].mxu0
        %v8474 = vadd.f32 0.0, %v8473
        %v8475 = vpop.f32.mrb[0].mxu0
        %v8476 = vpop.f32.mrb[0].mxu0
        %v8477 = vadd.f32 0.0, %v8476
        %v8478 = vpop.f32.mrb[0].mxu0
        %8479 = vmatprep.mubr.bf16.mxu0 0
        %8480 = vmatmul.mubr.bf16.gmra.mrb[0].mxu0 %v8290
        %v8481 = vpop.f32.mrb[0].mxu0
        %v8482 = vadd.f32 0.0, %v8481
        %v8483 = vpop.f32.mrb[0].mxu0
        %v8484 = vpop.f32.mrb[0].mxu0
        %v8485 = vadd.f32 0.0, %v8484
        %v8486 = vpop.f32.mrb[0].mxu0
        %8487 = vmatprep.mubr.bf16.mxu0 0
        %8488 = vmatmul.mubr.bf16.gmra.mrb[0].mxu0 %v8291
        %v8489 = vpop.f32.mrb[0].mxu0
        %v8490 = vadd.f32 0.0, %v8489
        %v8491 = vpop.f32.mrb[0].mxu0
        %v8492 = vpop.f32.mrb[0].mxu0
        %v8493 = vadd.f32 0.0, %v8492
        %v8494 = vpop.f32.mrb[0].mxu0
        %8495 = vmatprep.mubr.bf16.mxu0 0
        %8496 = vmatmul.mubr.bf16.gmra.mrb[0].mxu0 %v8292
        %v8497 = vpop.f32.mrb[0].mxu0
        %v8498 = vadd.f32 0.0, %v8497
        %v8499 = vpop.f32.mrb[0].mxu0
        %v8500 = vpop.f32.mrb[0].mxu0
        %v8501 = vadd.f32 0.0, %v8500
        %v8502 = vpop.f32.mrb[0].mxu0
        %8503 = vmatprep.mubr.bf16.mxu0 0
        %8504 = vmatmul.mubr.bf16.gmra.mrb[0].mxu0 %v8293
        %v8505 = vpop.f32.mrb[0].mxu0
        %v8506 = vadd.f32 0.0, %v8505
        %v8507 = vpop.f32.mrb[0].mxu0
        %v8508 = vpop.f32.mrb[0].mxu0
        %v8509 = vadd.f32 0.0, %v8508
        %v8510 = vpop.f32.mrb[0].mxu0
        %8511 = vmatprep.mubr.bf16.mxu0 0
        %8512 = vmatmul.mubr.bf16.gmra.mrb[0].mxu0 %v8294
        %v8513 = vpop.f32.mrb[0].mxu0
        %v8514 = vadd.f32 0.0, %v8513
        %v8515 = vpop.f32.mrb[0].mxu0
        %v8516 = vpop.f32.mrb[0].mxu0
        %v8517 = vadd.f32 0.0, %v8516
        %v8518 = vpop.f32.mrb[0].mxu0
        %8519 = vdwg.mxu0
        %v8520 = vadd.f32 %v7766, %v8394
        %v8521 = vadd.f32 %v7767, %v8397
        %v8522 = vadd.f32 %v7768, %v8402
        %v8523 = vadd.f32 %v7769, %v8405
        %v8524 = vadd.f32 %v7770, %v8410
        %v8525 = vadd.f32 %v7771, %v8413
        %v8526 = vadd.f32 %v7772, %v8418
        %v8527 = vadd.f32 %v7773, %v8421
        %v8528 = vadd.f32 %v7774, %v8426
        %v8529 = vadd.f32 %v7775, %v8429
        %v8530 = vadd.f32 %v7776, %v8434
        %v8531 = vadd.f32 %v7777, %v8437
        %v8532 = vadd.f32 %v7778, %v8442
        %v8533 = vadd.f32 %v7779, %v8445
        %v8534 = vadd.f32 %v7780, %v8450
        %v8535 = vadd.f32 %v7781, %v8453
        %v8536 = vadd.f32 %v7782, %v8458
        %v8537 = vadd.f32 %v7783, %v8461
        %v8538 = vadd.f32 %v7784, %v8466
        %v8539 = vadd.f32 %v7785, %v8469
        %v8540 = vadd.f32 %v7786, %v8474
        %v8541 = vadd.f32 %v7787, %v8477
        %v8542 = vadd.f32 %v7788, %v8482
        %v8543 = vadd.f32 %v7789, %v8485
        %v8544 = vadd.f32 %v7790, %v8490
        %v8545 = vadd.f32 %v7791, %v8493
        %v8546 = vadd.f32 %v7792, %v8498
        %v8547 = vadd.f32 %v7793, %v8501
        %v8548 = vadd.f32 %v7794, %v8506
        %v8549 = vadd.f32 %v7795, %v8509
        %v8550 = vadd.f32 %v7796, %v8514
        %v8551 = vadd.f32 %v7797, %v8517
        %v8552 = vld [vmem:[%s6657] sm:$0xf]
        %v8553 = vld [vmem:[%s6657 + $0x4] sm:$0xf]
        %v8554 = vld [vmem:[%s6657 + $0x8] sm:$0x1]
        %v8555 = vld [vmem:[%s6657 + $0xc] sm:$0xf]
        %v8556 = vld [vmem:[%s6657 + $0x10] sm:$0xf]
        %v8557 = vld [vmem:[%s6657 + $0x14] sm:$0x1]
        %v8558 = vld [vmem:[%s6657 + $0x18] sm:$0xf]
        %v8559 = vld [vmem:[%s6657 + $0x1c] sm:$0xf]
        %v8560 = vld [vmem:[%s6657 + $0x20] sm:$0x1]
        %v8561 = vld [vmem:[%s6657 + $0x24] sm:$0xf]
        %v8562 = vld [vmem:[%s6657 + $0x28] sm:$0xf]
        %v8563 = vld [vmem:[%s6657 + $0x2c] sm:$0x1]
        %v8564 = vld [vmem:[%s6657 + $0x30] sm:$0xf]
        %v8565 = vld [vmem:[%s6657 + $0x34] sm:$0xf]
        %v8566 = vld [vmem:[%s6657 + $0x38] sm:$0x1]
        %v8567 = vld [vmem:[%s6657 + $0x3c] sm:$0xf]
        %v8568 = vld [vmem:[%s6657 + $0x40] sm:$0xf]
        %v8569 = vld [vmem:[%s6657 + $0x44] sm:$0x1]
        %v8570 = vld [vmem:[%s6657 + $0x48] sm:$0xf]
        %v8571 = vld [vmem:[%s6657 + $0x4c] sm:$0xf]
        %v8572 = vld [vmem:[%s6657 + $0x50] sm:$0x1]
        %v8573 = vld [vmem:[%s6657 + $0x54] sm:$0xf]
        %v8574 = vld [vmem:[%s6657 + $0x58] sm:$0xf]
        %v8575 = vld [vmem:[%s6657 + $0x5c] sm:$0x1]
        %v8576 = vld [vmem:[%s6657 + $0x60] sm:$0xf]
        %v8577 = vld [vmem:[%s6657 + $0x64] sm:$0xf]
        %v8578 = vld [vmem:[%s6657 + $0x68] sm:$0x1]
        %v8579 = vld [vmem:[%s6657 + $0x6c] sm:$0xf]
        %v8580 = vld [vmem:[%s6657 + $0x70] sm:$0xf]
        %v8581 = vld [vmem:[%s6657 + $0x74] sm:$0x1]
        %v8582 = vld [vmem:[%s6657 + $0x78] sm:$0xf]
        %v8583 = vld [vmem:[%s6657 + $0x7c] sm:$0xf]
        %v8584 = vld [vmem:[%s6657 + $0x80] sm:$0x1]
        %v8585 = vld [vmem:[%s6657 + $0x84] sm:$0xf]
        %v8586 = vld [vmem:[%s6657 + $0x88] sm:$0xf]
        %v8587 = vld [vmem:[%s6657 + $0x8c] sm:$0x1]
        %v8588 = vld [vmem:[%s6657 + $0x90] sm:$0xf]
        %v8589 = vld [vmem:[%s6657 + $0x94] sm:$0xf]
        %v8590 = vld [vmem:[%s6657 + $0x98] sm:$0x1]
        %v8591 = vld [vmem:[%s6657 + $0x9c] sm:$0xf]
        %v8592 = vld [vmem:[%s6657 + $0xa0] sm:$0xf]
        %v8593 = vld [vmem:[%s6657 + $0xa4] sm:$0x1]
        %v8594 = vld [vmem:[%s6657 + $0xa8] sm:$0xf]
        %v8595 = vld [vmem:[%s6657 + $0xac] sm:$0xf]
        %v8596 = vld [vmem:[%s6657 + $0xb0] sm:$0x1]
        %v8597 = vld [vmem:[%s6657 + $0xb4] sm:$0xf]
        %v8598 = vld [vmem:[%s6657 + $0xb8] sm:$0xf]
        %v8599 = vld [vmem:[%s6657 + $0xbc] sm:$0x1]
        %v8601 = vshrl.u32 %v8552, 16
        %v8603 = vrot.slane %v8601, 4
        %v8604 = vshll.u32 %v8552, 16
        %v8606 = vrot.slane %v8604, 5
        %v8607 = vor.u32 %v8603, %v8606
        %v8608 = vrot.slane %v8607, 4
        %v8610 = vshll.u32 %v8553, 16
        %v8612 = vrot.slane %v8610, 5
        %v8613 = vsel %vm1780, %v8608, %v8612
        %v8614 = vshrl.u32 %v8553, 16
        %v8616 = vrot.slane %v8614, 4
        %v8617 = vor.u32 %v8616, %v8612
        %v8618 = vrot.slane %v8617, 4
        %v8620 = vshll.u32 %v8554, 16
        %v8622 = vrot.slane %v8620, 5
        %v8623 = vsel %vm1780, %v8618, %v8622
        %v8625 = vshrl.u32 %v8555, 16
        %v8627 = vrot.slane %v8625, 4
        %v8628 = vshll.u32 %v8555, 16
        %v8630 = vrot.slane %v8628, 5
        %v8631 = vor.u32 %v8627, %v8630
        %v8632 = vrot.slane %v8631, 4
        %v8634 = vshll.u32 %v8556, 16
        %v8636 = vrot.slane %v8634, 5
        %v8637 = vsel %vm1780, %v8632, %v8636
        %v8638 = vshrl.u32 %v8556, 16
        %v8640 = vrot.slane %v8638, 4
        %v8641 = vor.u32 %v8640, %v8636
        %v8642 = vrot.slane %v8641, 4
        %v8644 = vshll.u32 %v8557, 16
        %v8646 = vrot.slane %v8644, 5
        %v8647 = vsel %vm1780, %v8642, %v8646
        %v8649 = vshrl.u32 %v8558, 16
        %v8651 = vrot.slane %v8649, 4
        %v8652 = vshll.u32 %v8558, 16
        %v8654 = vrot.slane %v8652, 5
        %v8655 = vor.u32 %v8651, %v8654
        %v8656 = vrot.slane %v8655, 4
        %v8658 = vshll.u32 %v8559, 16
        %v8660 = vrot.slane %v8658, 5
        %v8661 = vsel %vm1780, %v8656, %v8660
        %v8662 = vshrl.u32 %v8559, 16
        %v8664 = vrot.slane %v8662, 4
        %v8665 = vor.u32 %v8664, %v8660
        %v8666 = vrot.slane %v8665, 4
        %v8668 = vshll.u32 %v8560, 16
        %v8670 = vrot.slane %v8668, 5
        %v8671 = vsel %vm1780, %v8666, %v8670
        %v8673 = vshrl.u32 %v8561, 16
        %v8675 = vrot.slane %v8673, 4
        %v8676 = vshll.u32 %v8561, 16
        %v8678 = vrot.slane %v8676, 5
        %v8679 = vor.u32 %v8675, %v8678
        %v8680 = vrot.slane %v8679, 4
        %v8682 = vshll.u32 %v8562, 16
        %v8684 = vrot.slane %v8682, 5
        %v8685 = vsel %vm1780, %v8680, %v8684
        %v8686 = vshrl.u32 %v8562, 16
        %v8688 = vrot.slane %v8686, 4
        %v8689 = vor.u32 %v8688, %v8684
        %v8690 = vrot.slane %v8689, 4
        %v8692 = vshll.u32 %v8563, 16
        %v8694 = vrot.slane %v8692, 5
        %v8695 = vsel %vm1780, %v8690, %v8694
        %v8697 = vshrl.u32 %v8564, 16
        %v8699 = vrot.slane %v8697, 4
        %v8700 = vshll.u32 %v8564, 16
        %v8702 = vrot.slane %v8700, 5
        %v8703 = vor.u32 %v8699, %v8702
        %v8704 = vrot.slane %v8703, 4
        %v8706 = vshll.u32 %v8565, 16
        %v8708 = vrot.slane %v8706, 5
        %v8709 = vsel %vm1780, %v8704, %v8708
        %v8710 = vshrl.u32 %v8565, 16
        %v8712 = vrot.slane %v8710, 4
        %v8713 = vor.u32 %v8712, %v8708
        %v8714 = vrot.slane %v8713, 4
        %v8716 = vshll.u32 %v8566, 16
        %v8718 = vrot.slane %v8716, 5
        %v8719 = vsel %vm1780, %v8714, %v8718
        %v8721 = vshrl.u32 %v8567, 16
        %v8723 = vrot.slane %v8721, 4
        %v8724 = vshll.u32 %v8567, 16
        %v8726 = vrot.slane %v8724, 5
        %v8727 = vor.u32 %v8723, %v8726
        %v8728 = vrot.slane %v8727, 4
        %v8730 = vshll.u32 %v8568, 16
        %v8732 = vrot.slane %v8730, 5
        %v8733 = vsel %vm1780, %v8728, %v8732
        %v8734 = vshrl.u32 %v8568, 16
        %v8736 = vrot.slane %v8734, 4
        %v8737 = vor.u32 %v8736, %v8732
        %v8738 = vrot.slane %v8737, 4
        %v8740 = vshll.u32 %v8569, 16
        %v8742 = vrot.slane %v8740, 5
        %v8743 = vsel %vm1780, %v8738, %v8742
        %v8745 = vshrl.u32 %v8570, 16
        %v8747 = vrot.slane %v8745, 4
        %v8748 = vshll.u32 %v8570, 16
        %v8750 = vrot.slane %v8748, 5
        %v8751 = vor.u32 %v8747, %v8750
        %v8752 = vrot.slane %v8751, 4
        %v8754 = vshll.u32 %v8571, 16
        %v8756 = vrot.slane %v8754, 5
        %v8757 = vsel %vm1780, %v8752, %v8756
        %v8758 = vshrl.u32 %v8571, 16
        %v8760 = vrot.slane %v8758, 4
        %v8761 = vor.u32 %v8760, %v8756
        %v8762 = vrot.slane %v8761, 4
        %v8764 = vshll.u32 %v8572, 16
        %v8766 = vrot.slane %v8764, 5
        %v8767 = vsel %vm1780, %v8762, %v8766
        %v8769 = vshrl.u32 %v8573, 16
        %v8771 = vrot.slane %v8769, 4
        %v8772 = vshll.u32 %v8573, 16
        %v8774 = vrot.slane %v8772, 5
        %v8775 = vor.u32 %v8771, %v8774
        %v8776 = vrot.slane %v8775, 4
        %v8778 = vshll.u32 %v8574, 16
        %v8780 = vrot.slane %v8778, 5
        %v8781 = vsel %vm1780, %v8776, %v8780
        %v8782 = vshrl.u32 %v8574, 16
        %v8784 = vrot.slane %v8782, 4
        %v8785 = vor.u32 %v8784, %v8780
        %v8786 = vrot.slane %v8785, 4
        %v8788 = vshll.u32 %v8575, 16
        %v8790 = vrot.slane %v8788, 5
        %v8791 = vsel %vm1780, %v8786, %v8790
        %v8793 = vshrl.u32 %v8576, 16
        %v8795 = vrot.slane %v8793, 4
        %v8796 = vshll.u32 %v8576, 16
        %v8798 = vrot.slane %v8796, 5
        %v8799 = vor.u32 %v8795, %v8798
        %v8800 = vrot.slane %v8799, 4
        %v8802 = vshll.u32 %v8577, 16
        %v8804 = vrot.slane %v8802, 5
        %v8805 = vsel %vm1780, %v8800, %v8804
        %v8806 = vshrl.u32 %v8577, 16
        %v8808 = vrot.slane %v8806, 4
        %v8809 = vor.u32 %v8808, %v8804
        %v8810 = vrot.slane %v8809, 4
        %v8812 = vshll.u32 %v8578, 16
        %v8814 = vrot.slane %v8812, 5
        %v8815 = vsel %vm1780, %v8810, %v8814
        %v8817 = vshrl.u32 %v8579, 16
        %v8819 = vrot.slane %v8817, 4
        %v8820 = vshll.u32 %v8579, 16
        %v8822 = vrot.slane %v8820, 5
        %v8823 = vor.u32 %v8819, %v8822
        %v8824 = vrot.slane %v8823, 4
        %v8826 = vshll.u32 %v8580, 16
        %v8828 = vrot.slane %v8826, 5
        %v8829 = vsel %vm1780, %v8824, %v8828
        %v8830 = vshrl.u32 %v8580, 16
        %v8832 = vrot.slane %v8830, 4
        %v8833 = vor.u32 %v8832, %v8828
        %v8834 = vrot.slane %v8833, 4
        %v8836 = vshll.u32 %v8581, 16
        %v8838 = vrot.slane %v8836, 5
        %v8839 = vsel %vm1780, %v8834, %v8838
        %v8841 = vshrl.u32 %v8582, 16
        %v8843 = vrot.slane %v8841, 4
        %v8844 = vshll.u32 %v8582, 16
        %v8846 = vrot.slane %v8844, 5
        %v8847 = vor.u32 %v8843, %v8846
        %v8848 = vrot.slane %v8847, 4
        %v8850 = vshll.u32 %v8583, 16
        %v8852 = vrot.slane %v8850, 5
        %v8853 = vsel %vm1780, %v8848, %v8852
        %v8854 = vshrl.u32 %v8583, 16
        %v8856 = vrot.slane %v8854, 4
        %v8857 = vor.u32 %v8856, %v8852
        %v8858 = vrot.slane %v8857, 4
        %v8860 = vshll.u32 %v8584, 16
        %v8862 = vrot.slane %v8860, 5
        %v8863 = vsel %vm1780, %v8858, %v8862
        %v8865 = vshrl.u32 %v8585, 16
        %v8867 = vrot.slane %v8865, 4
        %v8868 = vshll.u32 %v8585, 16
        %v8870 = vrot.slane %v8868, 5
        %v8871 = vor.u32 %v8867, %v8870
        %v8872 = vrot.slane %v8871, 4
        %v8874 = vshll.u32 %v8586, 16
        %v8876 = vrot.slane %v8874, 5
        %v8877 = vsel %vm1780, %v8872, %v8876
        %v8878 = vshrl.u32 %v8586, 16
        %v8880 = vrot.slane %v8878, 4
        %v8881 = vor.u32 %v8880, %v8876
        %v8882 = vrot.slane %v8881, 4
        %v8884 = vshll.u32 %v8587, 16
        %v8886 = vrot.slane %v8884, 5
        %v8887 = vsel %vm1780, %v8882, %v8886
        %v8889 = vshrl.u32 %v8588, 16
        %v8891 = vrot.slane %v8889, 4
        %v8892 = vshll.u32 %v8588, 16
        %v8894 = vrot.slane %v8892, 5
        %v8895 = vor.u32 %v8891, %v8894
        %v8896 = vrot.slane %v8895, 4
        %v8898 = vshll.u32 %v8589, 16
        %v8900 = vrot.slane %v8898, 5
        %v8901 = vsel %vm1780, %v8896, %v8900
        %v8902 = vshrl.u32 %v8589, 16
        %v8904 = vrot.slane %v8902, 4
        %v8905 = vor.u32 %v8904, %v8900
        %v8906 = vrot.slane %v8905, 4
        %v8908 = vshll.u32 %v8590, 16
        %v8910 = vrot.slane %v8908, 5
        %v8911 = vsel %vm1780, %v8906, %v8910
        %v8913 = vshrl.u32 %v8591, 16
        %v8915 = vrot.slane %v8913, 4
        %v8916 = vshll.u32 %v8591, 16
        %v8918 = vrot.slane %v8916, 5
        %v8919 = vor.u32 %v8915, %v8918
        %v8920 = vrot.slane %v8919, 4
        %v8922 = vshll.u32 %v8592, 16
        %v8924 = vrot.slane %v8922, 5
        %v8925 = vsel %vm1780, %v8920, %v8924
        %v8926 = vshrl.u32 %v8592, 16
        %v8928 = vrot.slane %v8926, 4
        %v8929 = vor.u32 %v8928, %v8924
        %v8930 = vrot.slane %v8929, 4
        %v8932 = vshll.u32 %v8593, 16
        %v8934 = vrot.slane %v8932, 5
        %v8935 = vsel %vm1780, %v8930, %v8934
        %v8937 = vshrl.u32 %v8594, 16
        %v8939 = vrot.slane %v8937, 4
        %v8940 = vshll.u32 %v8594, 16
        %v8942 = vrot.slane %v8940, 5
        %v8943 = vor.u32 %v8939, %v8942
        %v8944 = vrot.slane %v8943, 4
        %v8946 = vshll.u32 %v8595, 16
        %v8948 = vrot.slane %v8946, 5
        %v8949 = vsel %vm1780, %v8944, %v8948
        %v8950 = vshrl.u32 %v8595, 16
        %v8952 = vrot.slane %v8950, 4
        %v8953 = vor.u32 %v8952, %v8948
        %v8954 = vrot.slane %v8953, 4
        %v8956 = vshll.u32 %v8596, 16
        %v8958 = vrot.slane %v8956, 5
        %v8959 = vsel %vm1780, %v8954, %v8958
        %v8961 = vshrl.u32 %v8597, 16
        %v8963 = vrot.slane %v8961, 4
        %v8964 = vshll.u32 %v8597, 16
        %v8966 = vrot.slane %v8964, 5
        %v8967 = vor.u32 %v8963, %v8966
        %v8968 = vrot.slane %v8967, 4
        %v8970 = vshll.u32 %v8598, 16
        %v8972 = vrot.slane %v8970, 5
        %v8973 = vsel %vm1780, %v8968, %v8972
        %v8974 = vshrl.u32 %v8598, 16
        %v8976 = vrot.slane %v8974, 4
        %v8977 = vor.u32 %v8976, %v8972
        %v8978 = vrot.slane %v8977, 4
        %v8980 = vshll.u32 %v8599, 16
        %v8982 = vrot.slane %v8980, 5
        %v8983 = vsel %vm1780, %v8978, %v8982
        %s8984 = scalar_lea.vmem [#allocation11], 448
        %v8985 = vld [vmem:[%s8984] sm:$0xf]
        %v8986 = vld [vmem:[%s8984 + $0x4] sm:$0xf]
        %v8987 = vld [vmem:[%s8984 + $0x8] sm:$0xf]
        %v8988 = vld [vmem:[%s8984 + $0xc] sm:$0xf]
        %v8989 = vld [vmem:[%s8984 + $0x10] sm:$0xf]
        %v8990 = vld [vmem:[%s8984 + $0x14] sm:$0xf]
        %v8991 = vld [vmem:[%s8984 + $0x18] sm:$0xf]
        %v8992 = vld [vmem:[%s8984 + $0x1c] sm:$0xf]
        %v8993 = vld [vmem:[%s8984 + $0x20] sm:$0xf]
        %v8994 = vld [vmem:[%s8984 + $0x24] sm:$0xf]
        %v8995 = vld [vmem:[%s8984 + $0x28] sm:$0xf]
        %v8996 = vld [vmem:[%s8984 + $0x2c] sm:$0xf]
        %v8997 = vld [vmem:[%s8984 + $0x30] sm:$0xf]
        %v8998 = vld [vmem:[%s8984 + $0x34] sm:$0xf]
        %v8999 = vld [vmem:[%s8984 + $0x38] sm:$0xf]
        %v9000 = vld [vmem:[%s8984 + $0x3c] sm:$0xf]
        %v9001 = vunpack.c.l.b16 %v8613
        %v9002 = vunpack.c.l.b16 %v8623
        %v9003 = vunpack.c.l.b16 %v8637
        %v9004 = vunpack.c.l.b16 %v8647
        %v9005 = vunpack.c.l.b16 %v8661
        %v9006 = vunpack.c.l.b16 %v8671
        %v9007 = vunpack.c.l.b16 %v8685
        %v9008 = vunpack.c.l.b16 %v8695
        %v9009 = vunpack.c.l.b16 %v8709
        %v9010 = vunpack.c.l.b16 %v8719
        %v9011 = vunpack.c.l.b16 %v8733
        %v9012 = vunpack.c.l.b16 %v8743
        %v9013 = vunpack.c.l.b16 %v8757
        %v9014 = vunpack.c.l.b16 %v8767
        %v9015 = vunpack.c.l.b16 %v8781
        %v9016 = vunpack.c.l.b16 %v8791
        %v9017 = vunpack.c.l.b16 %v8805
        %v9018 = vunpack.c.l.b16 %v8815
        %v9019 = vunpack.c.l.b16 %v8829
        %v9020 = vunpack.c.l.b16 %v8839
        %v9021 = vunpack.c.l.b16 %v8853
        %v9022 = vunpack.c.l.b16 %v8863
        %v9023 = vunpack.c.l.b16 %v8877
        %v9024 = vunpack.c.l.b16 %v8887
        %v9025 = vunpack.c.l.b16 %v8901
        %v9026 = vunpack.c.l.b16 %v8911
        %v9027 = vunpack.c.l.b16 %v8925
        %v9028 = vunpack.c.l.b16 %v8935
        %v9029 = vunpack.c.l.b16 %v8949
        %v9030 = vunpack.c.l.b16 %v8959
        %v9031 = vunpack.c.l.b16 %v8973
        %v9032 = vunpack.c.l.b16 %v8983
        %v9033 = vpack.c.b16 %v9002, %v9001
        %v9034 = vpack.c.b16 %v9004, %v9003
        %v9035 = vpack.c.b16 %v9006, %v9005
        %v9036 = vpack.c.b16 %v9008, %v9007
        %v9037 = vpack.c.b16 %v9010, %v9009
        %v9038 = vpack.c.b16 %v9012, %v9011
        %v9039 = vpack.c.b16 %v9014, %v9013
        %v9040 = vpack.c.b16 %v9016, %v9015
        %v9041 = vpack.c.b16 %v9018, %v9017
        %v9042 = vpack.c.b16 %v9020, %v9019
        %v9043 = vpack.c.b16 %v9022, %v9021
        %v9044 = vpack.c.b16 %v9024, %v9023
        %v9045 = vpack.c.b16 %v9026, %v9025
        %v9046 = vpack.c.b16 %v9028, %v9027
        %v9047 = vpack.c.b16 %v9030, %v9029
        %v9048 = vpack.c.b16 %v9032, %v9031
        %v9081 = vunpack.c.l.b16 %v8985
        %v9082 = vunpack.c.l.b16 %v8986
        %v9083 = vunpack.c.l.b16 %v8987
        %v9084 = vunpack.c.l.b16 %v8988
        %v9085 = vunpack.c.l.b16 %v8989
        %v9086 = vunpack.c.l.b16 %v8990
        %v9087 = vunpack.c.l.b16 %v8991
        %v9088 = vunpack.c.l.b16 %v8992
        %v9089 = vunpack.c.l.b16 %v8993
        %v9090 = vunpack.c.l.b16 %v8994
        %v9091 = vunpack.c.l.b16 %v8995
        %v9092 = vunpack.c.l.b16 %v8996
        %v9093 = vunpack.c.l.b16 %v8997
        %v9094 = vunpack.c.l.b16 %v8998
        %v9095 = vunpack.c.l.b16 %v8999
        %v9096 = vunpack.c.l.b16 %v9000
        %v9097 = vpack.c.b16 %v9082, %v9081
        %v9098 = vpack.c.b16 %v9084, %v9083
        %v9099 = vpack.c.b16 %v9086, %v9085
        %v9100 = vpack.c.b16 %v9088, %v9087
        %v9101 = vpack.c.b16 %v9090, %v9089
        %v9102 = vpack.c.b16 %v9092, %v9091
        %v9103 = vpack.c.b16 %v9094, %v9093
        %v9104 = vpack.c.b16 %v9096, %v9095
        %9113 = vmatprep.subr.bf16.mxu0 0
        %9114 = vmatpush1.bf16.msra.mxu0 %v9097
        %9115 = vmatprep.subr.bf16.mxu0 0
        %9116 = vmatpush1.bf16.msra.mxu0 %v9098
        %9117 = vmatprep.subr.bf16.mxu0 0
        %9118 = vmatpush1.bf16.msra.mxu0 %v9099
        %9119 = vmatprep.subr.bf16.mxu0 0
        %9120 = vmatpush1.bf16.msra.mxu0 %v9100
        %9121 = vmatprep.subr.bf16.mxu0 0
        %9122 = vmatpush1.bf16.msra.mxu0 %v9101
        %9123 = vmatprep.subr.bf16.mxu0 0
        %9124 = vmatpush1.bf16.msra.mxu0 %v9102
        %9125 = vmatprep.subr.bf16.mxu0 0
        %9126 = vmatpush1.bf16.msra.mxu0 %v9103
        %9127 = vmatprep.subr.bf16.mxu0 0
        %9128 = vmatpush1.bf16.msra.mxu0 %v9104
        %9129 = vmatprep.subr.bf16.mxu0 0
        %9130 = vmatpush1.bf16.msra.mxu0 0
        %9131 = vmatprep.subr.bf16.mxu0 0
        %9132 = vmatpush1.bf16.msra.mxu0 0
        %9133 = vmatprep.subr.bf16.mxu0 0
        %9134 = vmatpush1.bf16.msra.mxu0 0
        %9135 = vmatprep.subr.bf16.mxu0 0
        %9136 = vmatpush1.bf16.msra.mxu0 0
        %9137 = vmatprep.subr.bf16.mxu0 0
        %9138 = vmatpush1.bf16.msra.mxu0 0
        %9139 = vmatprep.subr.bf16.mxu0 0
        %9140 = vmatpush1.bf16.msra.mxu0 0
        %9141 = vmatprep.subr.bf16.mxu0 0
        %9142 = vmatpush1.bf16.msra.mxu0 0
        %9143 = vmatprep.subr.bf16.mxu0 0
        %9144 = vmatpush1.bf16.msra.mxu0 0
        %9145 = vmatprep.mubr.bf16.mxu0 0
        %9146 = vmatmul.mubr.bf16.gmra.mrb[0].mxu0 %v9033
        %v9147 = vpop.f32.mrb[0].mxu0
        %v9148 = vadd.f32 0.0, %v9147
        %v9149 = vpop.f32.mrb[0].mxu0
        %v9150 = vpop.f32.mrb[0].mxu0
        %v9151 = vadd.f32 0.0, %v9150
        %v9152 = vpop.f32.mrb[0].mxu0
        %9153 = vmatprep.mubr.bf16.mxu0 0
        %9154 = vmatmul.mubr.bf16.gmra.mrb[0].mxu0 %v9034
        %v9155 = vpop.f32.mrb[0].mxu0
        %v9156 = vadd.f32 0.0, %v9155
        %v9157 = vpop.f32.mrb[0].mxu0
        %v9158 = vpop.f32.mrb[0].mxu0
        %v9159 = vadd.f32 0.0, %v9158
        %v9160 = vpop.f32.mrb[0].mxu0
        %9161 = vmatprep.mubr.bf16.mxu0 0
        %9162 = vmatmul.mubr.bf16.gmra.mrb[0].mxu0 %v9035
        %v9163 = vpop.f32.mrb[0].mxu0
        %v9164 = vadd.f32 0.0, %v9163
        %v9165 = vpop.f32.mrb[0].mxu0
        %v9166 = vpop.f32.mrb[0].mxu0
        %v9167 = vadd.f32 0.0, %v9166
        %v9168 = vpop.f32.mrb[0].mxu0
        %9169 = vmatprep.mubr.bf16.mxu0 0
        %9170 = vmatmul.mubr.bf16.gmra.mrb[0].mxu0 %v9036
        %v9171 = vpop.f32.mrb[0].mxu0
        %v9172 = vadd.f32 0.0, %v9171
        %v9173 = vpop.f32.mrb[0].mxu0
        %v9174 = vpop.f32.mrb[0].mxu0
        %v9175 = vadd.f32 0.0, %v9174
        %v9176 = vpop.f32.mrb[0].mxu0
        %9177 = vmatprep.mubr.bf16.mxu0 0
        %9178 = vmatmul.mubr.bf16.gmra.mrb[0].mxu0 %v9037
        %v9179 = vpop.f32.mrb[0].mxu0
        %v9180 = vadd.f32 0.0, %v9179
        %v9181 = vpop.f32.mrb[0].mxu0
        %v9182 = vpop.f32.mrb[0].mxu0
        %v9183 = vadd.f32 0.0, %v9182
        %v9184 = vpop.f32.mrb[0].mxu0
        %9185 = vmatprep.mubr.bf16.mxu0 0
        %9186 = vmatmul.mubr.bf16.gmra.mrb[0].mxu0 %v9038
        %v9187 = vpop.f32.mrb[0].mxu0
        %v9188 = vadd.f32 0.0, %v9187
        %v9189 = vpop.f32.mrb[0].mxu0
        %v9190 = vpop.f32.mrb[0].mxu0
        %v9191 = vadd.f32 0.0, %v9190
        %v9192 = vpop.f32.mrb[0].mxu0
        %9193 = vmatprep.mubr.bf16.mxu0 0
        %9194 = vmatmul.mubr.bf16.gmra.mrb[0].mxu0 %v9039
        %v9195 = vpop.f32.mrb[0].mxu0
        %v9196 = vadd.f32 0.0, %v9195
        %v9197 = vpop.f32.mrb[0].mxu0
        %v9198 = vpop.f32.mrb[0].mxu0
        %v9199 = vadd.f32 0.0, %v9198
        %v9200 = vpop.f32.mrb[0].mxu0
        %9201 = vmatprep.mubr.bf16.mxu0 0
        %9202 = vmatmul.mubr.bf16.gmra.mrb[0].mxu0 %v9040
        %v9203 = vpop.f32.mrb[0].mxu0
        %v9204 = vadd.f32 0.0, %v9203
        %v9205 = vpop.f32.mrb[0].mxu0
        %v9206 = vpop.f32.mrb[0].mxu0
        %v9207 = vadd.f32 0.0, %v9206
        %v9208 = vpop.f32.mrb[0].mxu0
        %9209 = vmatprep.mubr.bf16.mxu0 0
        %9210 = vmatmul.mubr.bf16.gmra.mrb[0].mxu0 %v9041
        %v9211 = vpop.f32.mrb[0].mxu0
        %v9212 = vadd.f32 0.0, %v9211
        %v9213 = vpop.f32.mrb[0].mxu0
        %v9214 = vpop.f32.mrb[0].mxu0
        %v9215 = vadd.f32 0.0, %v9214
        %v9216 = vpop.f32.mrb[0].mxu0
        %9217 = vmatprep.mubr.bf16.mxu0 0
        %9218 = vmatmul.mubr.bf16.gmra.mrb[0].mxu0 %v9042
        %v9219 = vpop.f32.mrb[0].mxu0
        %v9220 = vadd.f32 0.0, %v9219
        %v9221 = vpop.f32.mrb[0].mxu0
        %v9222 = vpop.f32.mrb[0].mxu0
        %v9223 = vadd.f32 0.0, %v9222
        %v9224 = vpop.f32.mrb[0].mxu0
        %9225 = vmatprep.mubr.bf16.mxu0 0
        %9226 = vmatmul.mubr.bf16.gmra.mrb[0].mxu0 %v9043
        %v9227 = vpop.f32.mrb[0].mxu0
        %v9228 = vadd.f32 0.0, %v9227
        %v9229 = vpop.f32.mrb[0].mxu0
        %v9230 = vpop.f32.mrb[0].mxu0
        %v9231 = vadd.f32 0.0, %v9230
        %v9232 = vpop.f32.mrb[0].mxu0
        %9233 = vmatprep.mubr.bf16.mxu0 0
        %9234 = vmatmul.mubr.bf16.gmra.mrb[0].mxu0 %v9044
        %v9235 = vpop.f32.mrb[0].mxu0
        %v9236 = vadd.f32 0.0, %v9235
        %v9237 = vpop.f32.mrb[0].mxu0
        %v9238 = vpop.f32.mrb[0].mxu0
        %v9239 = vadd.f32 0.0, %v9238
        %v9240 = vpop.f32.mrb[0].mxu0
        %9241 = vmatprep.mubr.bf16.mxu0 0
        %9242 = vmatmul.mubr.bf16.gmra.mrb[0].mxu0 %v9045
        %v9243 = vpop.f32.mrb[0].mxu0
        %v9244 = vadd.f32 0.0, %v9243
        %v9245 = vpop.f32.mrb[0].mxu0
        %v9246 = vpop.f32.mrb[0].mxu0
        %v9247 = vadd.f32 0.0, %v9246
        %v9248 = vpop.f32.mrb[0].mxu0
        %9249 = vmatprep.mubr.bf16.mxu0 0
        %9250 = vmatmul.mubr.bf16.gmra.mrb[0].mxu0 %v9046
        %v9251 = vpop.f32.mrb[0].mxu0
        %v9252 = vadd.f32 0.0, %v9251
        %v9253 = vpop.f32.mrb[0].mxu0
        %v9254 = vpop.f32.mrb[0].mxu0
        %v9255 = vadd.f32 0.0, %v9254
        %v9256 = vpop.f32.mrb[0].mxu0
        %9257 = vmatprep.mubr.bf16.mxu0 0
        %9258 = vmatmul.mubr.bf16.gmra.mrb[0].mxu0 %v9047
        %v9259 = vpop.f32.mrb[0].mxu0
        %v9260 = vadd.f32 0.0, %v9259
        %v9261 = vpop.f32.mrb[0].mxu0
        %v9262 = vpop.f32.mrb[0].mxu0
        %v9263 = vadd.f32 0.0, %v9262
        %v9264 = vpop.f32.mrb[0].mxu0
        %9265 = vmatprep.mubr.bf16.mxu0 0
        %9266 = vmatmul.mubr.bf16.gmra.mrb[0].mxu0 %v9048
        %v9267 = vpop.f32.mrb[0].mxu0
        %v9268 = vadd.f32 0.0, %v9267
        %v9269 = vpop.f32.mrb[0].mxu0
        %v9270 = vpop.f32.mrb[0].mxu0
        %v9271 = vadd.f32 0.0, %v9270
        %v9272 = vpop.f32.mrb[0].mxu0
        %9273 = vdwg.mxu0
        %v9274 = vadd.f32 %v8520, %v9148
        %v9275 = vadd.f32 %v8521, %v9151
        %v9276 = vadd.f32 %v8522, %v9156
        %v9277 = vadd.f32 %v8523, %v9159
        %v9278 = vadd.f32 %v8524, %v9164
        %v9279 = vadd.f32 %v8525, %v9167
        %v9280 = vadd.f32 %v8526, %v9172
        %v9281 = vadd.f32 %v8527, %v9175
        %v9282 = vadd.f32 %v8528, %v9180
        %v9283 = vadd.f32 %v8529, %v9183
        %v9284 = vadd.f32 %v8530, %v9188
        %v9285 = vadd.f32 %v8531, %v9191
        %v9286 = vadd.f32 %v8532, %v9196
        %v9287 = vadd.f32 %v8533, %v9199
        %v9288 = vadd.f32 %v8534, %v9204
        %v9289 = vadd.f32 %v8535, %v9207
        %v9290 = vadd.f32 %v8536, %v9212
        %v9291 = vadd.f32 %v8537, %v9215
        %v9292 = vadd.f32 %v8538, %v9220
        %v9293 = vadd.f32 %v8539, %v9223
        %v9294 = vadd.f32 %v8540, %v9228
        %v9295 = vadd.f32 %v8541, %v9231
        %v9296 = vadd.f32 %v8542, %v9236
        %v9297 = vadd.f32 %v8543, %v9239
        %v9298 = vadd.f32 %v8544, %v9244
        %v9299 = vadd.f32 %v8545, %v9247
        %v9300 = vadd.f32 %v8546, %v9252
        %v9301 = vadd.f32 %v8547, %v9255
        %v9302 = vadd.f32 %v8548, %v9260
        %v9303 = vadd.f32 %v8549, %v9263
        %v9304 = vadd.f32 %v8550, %v9268
        %v9305 = vadd.f32 %v8551, %v9271
        %v9306 = vld [vmem:[#allocation2] sm:$0xe]
        %v9307 = vld [vmem:[#allocation2 + $0xc] sm:$0xe]
        %v9308 = vld [vmem:[#allocation2 + $0x18] sm:$0xe]
        %v9309 = vld [vmem:[#allocation2 + $0x24] sm:$0xe]
        %v9310 = vld [vmem:[#allocation2 + $0x30] sm:$0xe]
        %v9311 = vld [vmem:[#allocation2 + $0x3c] sm:$0xe]
        %v9312 = vld [vmem:[#allocation2 + $0x48] sm:$0xe]
        %v9313 = vld [vmem:[#allocation2 + $0x54] sm:$0xe]
        %v9314 = vld [vmem:[#allocation2 + $0x60] sm:$0xe]
        %v9315 = vld [vmem:[#allocation2 + $0x6c] sm:$0xe]
        %v9316 = vld [vmem:[#allocation2 + $0x78] sm:$0xe]
        %v9317 = vld [vmem:[#allocation2 + $0x84] sm:$0xe]
        %v9318 = vld [vmem:[#allocation2 + $0x90] sm:$0xe]
        %v9319 = vld [vmem:[#allocation2 + $0x9c] sm:$0xe]
        %v9320 = vld [vmem:[#allocation2 + $0xa8] sm:$0xe]
        %v9321 = vld [vmem:[#allocation2 + $0xb4] sm:$0xe]
        %v9370 = vrot.slane %v9306, 5
        %v9371 = vrot.slane %v9370, 4
        %v9372 = vrot.slane %v7045, 5
        %v9373 = vsel %vm3759, %v9371, %v9372
        %v9374 = vrot.slane %v9372, 4
        %v9375 = vrot.slane %v7046, 5
        %v9376 = vsel %vm3759, %v9374, %v9375
        %v9377 = vrot.slane %v9307, 5
        %v9378 = vrot.slane %v9377, 4
        %v9379 = vrot.slane %v7048, 5
        %v9380 = vsel %vm3759, %v9378, %v9379
        %v9381 = vrot.slane %v9379, 4
        %v9382 = vrot.slane %v7049, 5
        %v9383 = vsel %vm3759, %v9381, %v9382
        %v9384 = vrot.slane %v9308, 5
        %v9385 = vrot.slane %v9384, 4
        %v9386 = vrot.slane %v7051, 5
        %v9387 = vsel %vm3759, %v9385, %v9386
        %v9388 = vrot.slane %v9386, 4
        %v9389 = vrot.slane %v7052, 5
        %v9390 = vsel %vm3759, %v9388, %v9389
        %v9391 = vrot.slane %v9309, 5
        %v9392 = vrot.slane %v9391, 4
        %v9393 = vrot.slane %v7054, 5
        %v9394 = vsel %vm3759, %v9392, %v9393
        %v9395 = vrot.slane %v9393, 4
        %v9396 = vrot.slane %v7055, 5
        %v9397 = vsel %vm3759, %v9395, %v9396
        %v9398 = vrot.slane %v9310, 5
        %v9399 = vrot.slane %v9398, 4
        %v9400 = vrot.slane %v7057, 5
        %v9401 = vsel %vm3759, %v9399, %v9400
        %v9402 = vrot.slane %v9400, 4
        %v9403 = vrot.slane %v7058, 5
        %v9404 = vsel %vm3759, %v9402, %v9403
        %v9405 = vrot.slane %v9311, 5
        %v9406 = vrot.slane %v9405, 4
        %v9407 = vrot.slane %v7060, 5
        %v9408 = vsel %vm3759, %v9406, %v9407
        %v9409 = vrot.slane %v9407, 4
        %v9410 = vrot.slane %v7061, 5
        %v9411 = vsel %vm3759, %v9409, %v9410
        %v9412 = vrot.slane %v9312, 5
        %v9413 = vrot.slane %v9412, 4
        %v9414 = vrot.slane %v7063, 5
        %v9415 = vsel %vm3759, %v9413, %v9414
        %v9416 = vrot.slane %v9414, 4
        %v9417 = vrot.slane %v7064, 5
        %v9418 = vsel %vm3759, %v9416, %v9417
        %v9419 = vrot.slane %v9313, 5
        %v9420 = vrot.slane %v9419, 4
        %v9421 = vrot.slane %v7066, 5
        %v9422 = vsel %vm3759, %v9420, %v9421
        %v9423 = vrot.slane %v9421, 4
        %v9424 = vrot.slane %v7067, 5
        %v9425 = vsel %vm3759, %v9423, %v9424
        %v9426 = vrot.slane %v9314, 5
        %v9427 = vrot.slane %v9426, 4
        %v9428 = vrot.slane %v7069, 5
        %v9429 = vsel %vm3759, %v9427, %v9428
        %v9430 = vrot.slane %v9428, 4
        %v9431 = vrot.slane %v7070, 5
        %v9432 = vsel %vm3759, %v9430, %v9431
        %v9433 = vrot.slane %v9315, 5
        %v9434 = vrot.slane %v9433, 4
        %v9435 = vrot.slane %v7072, 5
        %v9436 = vsel %vm3759, %v9434, %v9435
        %v9437 = vrot.slane %v9435, 4
        %v9438 = vrot.slane %v7073, 5
        %v9439 = vsel %vm3759, %v9437, %v9438
        %v9440 = vrot.slane %v9316, 5
        %v9441 = vrot.slane %v9440, 4
        %v9442 = vrot.slane %v7075, 5
        %v9443 = vsel %vm3759, %v9441, %v9442
        %v9444 = vrot.slane %v9442, 4
        %v9445 = vrot.slane %v7076, 5
        %v9446 = vsel %vm3759, %v9444, %v9445
        %v9447 = vrot.slane %v9317, 5
        %v9448 = vrot.slane %v9447, 4
        %v9449 = vrot.slane %v7078, 5
        %v9450 = vsel %vm3759, %v9448, %v9449
        %v9451 = vrot.slane %v9449, 4
        %v9452 = vrot.slane %v7079, 5
        %v9453 = vsel %vm3759, %v9451, %v9452
        %v9454 = vrot.slane %v9318, 5
        %v9455 = vrot.slane %v9454, 4
        %v9456 = vrot.slane %v7081, 5
        %v9457 = vsel %vm3759, %v9455, %v9456
        %v9458 = vrot.slane %v9456, 4
        %v9459 = vrot.slane %v7082, 5
        %v9460 = vsel %vm3759, %v9458, %v9459
        %v9461 = vrot.slane %v9319, 5
        %v9462 = vrot.slane %v9461, 4
        %v9463 = vrot.slane %v7084, 5
        %v9464 = vsel %vm3759, %v9462, %v9463
        %v9465 = vrot.slane %v9463, 4
        %v9466 = vrot.slane %v7085, 5
        %v9467 = vsel %vm3759, %v9465, %v9466
        %v9468 = vrot.slane %v9320, 5
        %v9469 = vrot.slane %v9468, 4
        %v9470 = vrot.slane %v7087, 5
        %v9471 = vsel %vm3759, %v9469, %v9470
        %v9472 = vrot.slane %v9470, 4
        %v9473 = vrot.slane %v7088, 5
        %v9474 = vsel %vm3759, %v9472, %v9473
        %v9475 = vrot.slane %v9321, 5
        %v9476 = vrot.slane %v9475, 4
        %v9477 = vrot.slane %v7090, 5
        %v9478 = vsel %vm3759, %v9476, %v9477
        %v9479 = vrot.slane %v9477, 4
        %v9480 = vrot.slane %v7091, 5
        %v9481 = vsel %vm3759, %v9479, %v9480
        %s9482 = scalar_lea.vmem [#allocation11], 128
        %v9483 = vld [vmem:[%s9482] sm:$0xf]
        %v9484 = vld [vmem:[%s9482 + $0x4] sm:$0xf]
        %v9485 = vld [vmem:[%s9482 + $0x8] sm:$0xf]
        %v9486 = vld [vmem:[%s9482 + $0xc] sm:$0xf]
        %v9487 = vld [vmem:[%s9482 + $0x10] sm:$0xf]
        %v9488 = vld [vmem:[%s9482 + $0x14] sm:$0xf]
        %v9489 = vld [vmem:[%s9482 + $0x18] sm:$0xf]
        %v9490 = vld [vmem:[%s9482 + $0x1c] sm:$0xf]
        %v9491 = vld [vmem:[%s9482 + $0x20] sm:$0xf]
        %v9492 = vld [vmem:[%s9482 + $0x24] sm:$0xf]
        %v9493 = vld [vmem:[%s9482 + $0x28] sm:$0xf]
        %v9494 = vld [vmem:[%s9482 + $0x2c] sm:$0xf]
        %v9495 = vld [vmem:[%s9482 + $0x30] sm:$0xf]
        %v9496 = vld [vmem:[%s9482 + $0x34] sm:$0xf]
        %v9497 = vld [vmem:[%s9482 + $0x38] sm:$0xf]
        %v9498 = vld [vmem:[%s9482 + $0x3c] sm:$0xf]
        %v9499 = vunpack.c.l.b16 %v9373
        %v9500 = vunpack.c.l.b16 %v9376
        %v9501 = vunpack.c.l.b16 %v9380
        %v9502 = vunpack.c.l.b16 %v9383
        %v9503 = vunpack.c.l.b16 %v9387
        %v9504 = vunpack.c.l.b16 %v9390
        %v9505 = vunpack.c.l.b16 %v9394
        %v9506 = vunpack.c.l.b16 %v9397
        %v9507 = vunpack.c.l.b16 %v9401
        %v9508 = vunpack.c.l.b16 %v9404
        %v9509 = vunpack.c.l.b16 %v9408
        %v9510 = vunpack.c.l.b16 %v9411
        %v9511 = vunpack.c.l.b16 %v9415
        %v9512 = vunpack.c.l.b16 %v9418
        %v9513 = vunpack.c.l.b16 %v9422
        %v9514 = vunpack.c.l.b16 %v9425
        %v9515 = vunpack.c.l.b16 %v9429
        %v9516 = vunpack.c.l.b16 %v9432
        %v9517 = vunpack.c.l.b16 %v9436
        %v9518 = vunpack.c.l.b16 %v9439
        %v9519 = vunpack.c.l.b16 %v9443
        %v9520 = vunpack.c.l.b16 %v9446
        %v9521 = vunpack.c.l.b16 %v9450
        %v9522 = vunpack.c.l.b16 %v9453
        %v9523 = vunpack.c.l.b16 %v9457
        %v9524 = vunpack.c.l.b16 %v9460
        %v9525 = vunpack.c.l.b16 %v9464
        %v9526 = vunpack.c.l.b16 %v9467
        %v9527 = vunpack.c.l.b16 %v9471
        %v9528 = vunpack.c.l.b16 %v9474
        %v9529 = vunpack.c.l.b16 %v9478
        %v9530 = vunpack.c.l.b16 %v9481
        %v9531 = vpack.c.b16 %v9500, %v9499
        %v9532 = vpack.c.b16 %v9502, %v9501
        %v9533 = vpack.c.b16 %v9504, %v9503
        %v9534 = vpack.c.b16 %v9506, %v9505
        %v9535 = vpack.c.b16 %v9508, %v9507
        %v9536 = vpack.c.b16 %v9510, %v9509
        %v9537 = vpack.c.b16 %v9512, %v9511
        %v9538 = vpack.c.b16 %v9514, %v9513
        %v9539 = vpack.c.b16 %v9516, %v9515
        %v9540 = vpack.c.b16 %v9518, %v9517
        %v9541 = vpack.c.b16 %v9520, %v9519
        %v9542 = vpack.c.b16 %v9522, %v9521
        %v9543 = vpack.c.b16 %v9524, %v9523
        %v9544 = vpack.c.b16 %v9526, %v9525
        %v9545 = vpack.c.b16 %v9528, %v9527
        %v9546 = vpack.c.b16 %v9530, %v9529
        %v9579 = vunpack.c.l.b16 %v9483
        %v9580 = vunpack.c.l.b16 %v9484
        %v9581 = vunpack.c.l.b16 %v9485
        %v9582 = vunpack.c.l.b16 %v9486
        %v9583 = vunpack.c.l.b16 %v9487
        %v9584 = vunpack.c.l.b16 %v9488
        %v9585 = vunpack.c.l.b16 %v9489
        %v9586 = vunpack.c.l.b16 %v9490
        %v9587 = vunpack.c.l.b16 %v9491
        %v9588 = vunpack.c.l.b16 %v9492
        %v9589 = vunpack.c.l.b16 %v9493
        %v9590 = vunpack.c.l.b16 %v9494
        %v9591 = vunpack.c.l.b16 %v9495
        %v9592 = vunpack.c.l.b16 %v9496
        %v9593 = vunpack.c.l.b16 %v9497
        %v9594 = vunpack.c.l.b16 %v9498
        %v9595 = vpack.c.b16 %v9580, %v9579
        %v9596 = vpack.c.b16 %v9582, %v9581
        %v9597 = vpack.c.b16 %v9584, %v9583
        %v9598 = vpack.c.b16 %v9586, %v9585
        %v9599 = vpack.c.b16 %v9588, %v9587
        %v9600 = vpack.c.b16 %v9590, %v9589
        %v9601 = vpack.c.b16 %v9592, %v9591
        %v9602 = vpack.c.b16 %v9594, %v9593
        %9611 = vmatprep.subr.bf16.mxu0 0
        %9612 = vmatpush1.bf16.msra.mxu0 %v9595
        %9613 = vmatprep.subr.bf16.mxu0 0
        %9614 = vmatpush1.bf16.msra.mxu0 %v9596
        %9615 = vmatprep.subr.bf16.mxu0 0
        %9616 = vmatpush1.bf16.msra.mxu0 %v9597
        %9617 = vmatprep.subr.bf16.mxu0 0
        %9618 = vmatpush1.bf16.msra.mxu0 %v9598
        %9619 = vmatprep.subr.bf16.mxu0 0
        %9620 = vmatpush1.bf16.msra.mxu0 %v9599
        %9621 = vmatprep.subr.bf16.mxu0 0
        %9622 = vmatpush1.bf16.msra.mxu0 %v9600
        %9623 = vmatprep.subr.bf16.mxu0 0
        %9624 = vmatpush1.bf16.msra.mxu0 %v9601
        %9625 = vmatprep.subr.bf16.mxu0 0
        %9626 = vmatpush1.bf16.msra.mxu0 %v9602
        %9627 = vmatprep.subr.bf16.mxu0 0
        %9628 = vmatpush1.bf16.msra.mxu0 0
        %9629 = vmatprep.subr.bf16.mxu0 0
        %9630 = vmatpush1.bf16.msra.mxu0 0
        %9631 = vmatprep.subr.bf16.mxu0 0
        %9632 = vmatpush1.bf16.msra.mxu0 0
        %9633 = vmatprep.subr.bf16.mxu0 0
        %9634 = vmatpush1.bf16.msra.mxu0 0
        %9635 = vmatprep.subr.bf16.mxu0 0
        %9636 = vmatpush1.bf16.msra.mxu0 0
        %9637 = vmatprep.subr.bf16.mxu0 0
        %9638 = vmatpush1.bf16.msra.mxu0 0
        %9639 = vmatprep.subr.bf16.mxu0 0
        %9640 = vmatpush1.bf16.msra.mxu0 0
        %9641 = vmatprep.subr.bf16.mxu0 0
        %9642 = vmatpush1.bf16.msra.mxu0 0
        %9643 = vmatprep.mubr.bf16.mxu0 0
        %9644 = vmatmul.mubr.bf16.gmra.mrb[0].mxu0 %v9531
        %v9645 = vpop.f32.mrb[0].mxu0
        %v9646 = vadd.f32 0.0, %v9645
        %v9647 = vpop.f32.mrb[0].mxu0
        %v9648 = vpop.f32.mrb[0].mxu0
        %v9649 = vadd.f32 0.0, %v9648
        %v9650 = vpop.f32.mrb[0].mxu0
        %9651 = vmatprep.mubr.bf16.mxu0 0
        %9652 = vmatmul.mubr.bf16.gmra.mrb[0].mxu0 %v9532
        %v9653 = vpop.f32.mrb[0].mxu0
        %v9654 = vadd.f32 0.0, %v9653
        %v9655 = vpop.f32.mrb[0].mxu0
        %v9656 = vpop.f32.mrb[0].mxu0
        %v9657 = vadd.f32 0.0, %v9656
        %v9658 = vpop.f32.mrb[0].mxu0
        %9659 = vmatprep.mubr.bf16.mxu0 0
        %9660 = vmatmul.mubr.bf16.gmra.mrb[0].mxu0 %v9533
        %v9661 = vpop.f32.mrb[0].mxu0
        %v9662 = vadd.f32 0.0, %v9661
        %v9663 = vpop.f32.mrb[0].mxu0
        %v9664 = vpop.f32.mrb[0].mxu0
        %v9665 = vadd.f32 0.0, %v9664
        %v9666 = vpop.f32.mrb[0].mxu0
        %9667 = vmatprep.mubr.bf16.mxu0 0
        %9668 = vmatmul.mubr.bf16.gmra.mrb[0].mxu0 %v9534
        %v9669 = vpop.f32.mrb[0].mxu0
        %v9670 = vadd.f32 0.0, %v9669
        %v9671 = vpop.f32.mrb[0].mxu0
        %v9672 = vpop.f32.mrb[0].mxu0
        %v9673 = vadd.f32 0.0, %v9672
        %v9674 = vpop.f32.mrb[0].mxu0
        %9675 = vmatprep.mubr.bf16.mxu0 0
        %9676 = vmatmul.mubr.bf16.gmra.mrb[0].mxu0 %v9535
        %v9677 = vpop.f32.mrb[0].mxu0
        %v9678 = vadd.f32 0.0, %v9677
        %v9679 = vpop.f32.mrb[0].mxu0
        %v9680 = vpop.f32.mrb[0].mxu0
        %v9681 = vadd.f32 0.0, %v9680
        %v9682 = vpop.f32.mrb[0].mxu0
        %9683 = vmatprep.mubr.bf16.mxu0 0
        %9684 = vmatmul.mubr.bf16.gmra.mrb[0].mxu0 %v9536
        %v9685 = vpop.f32.mrb[0].mxu0
        %v9686 = vadd.f32 0.0, %v9685
        %v9687 = vpop.f32.mrb[0].mxu0
        %v9688 = vpop.f32.mrb[0].mxu0
        %v9689 = vadd.f32 0.0, %v9688
        %v9690 = vpop.f32.mrb[0].mxu0
        %9691 = vmatprep.mubr.bf16.mxu0 0
        %9692 = vmatmul.mubr.bf16.gmra.mrb[0].mxu0 %v9537
        %v9693 = vpop.f32.mrb[0].mxu0
        %v9694 = vadd.f32 0.0, %v9693
        %v9695 = vpop.f32.mrb[0].mxu0
        %v9696 = vpop.f32.mrb[0].mxu0
        %v9697 = vadd.f32 0.0, %v9696
        %v9698 = vpop.f32.mrb[0].mxu0
        %9699 = vmatprep.mubr.bf16.mxu0 0
        %9700 = vmatmul.mubr.bf16.gmra.mrb[0].mxu0 %v9538
        %v9701 = vpop.f32.mrb[0].mxu0
        %v9702 = vadd.f32 0.0, %v9701
        %v9703 = vpop.f32.mrb[0].mxu0
        %v9704 = vpop.f32.mrb[0].mxu0
        %v9705 = vadd.f32 0.0, %v9704
        %v9706 = vpop.f32.mrb[0].mxu0
        %9707 = vmatprep.mubr.bf16.mxu0 0
        %9708 = vmatmul.mubr.bf16.gmra.mrb[0].mxu0 %v9539
        %v9709 = vpop.f32.mrb[0].mxu0
        %v9710 = vadd.f32 0.0, %v9709
        %v9711 = vpop.f32.mrb[0].mxu0
        %v9712 = vpop.f32.mrb[0].mxu0
        %v9713 = vadd.f32 0.0, %v9712
        %v9714 = vpop.f32.mrb[0].mxu0
        %9715 = vmatprep.mubr.bf16.mxu0 0
        %9716 = vmatmul.mubr.bf16.gmra.mrb[0].mxu0 %v9540
        %v9717 = vpop.f32.mrb[0].mxu0
        %v9718 = vadd.f32 0.0, %v9717
        %v9719 = vpop.f32.mrb[0].mxu0
        %v9720 = vpop.f32.mrb[0].mxu0
        %v9721 = vadd.f32 0.0, %v9720
        %v9722 = vpop.f32.mrb[0].mxu0
        %9723 = vmatprep.mubr.bf16.mxu0 0
        %9724 = vmatmul.mubr.bf16.gmra.mrb[0].mxu0 %v9541
        %v9725 = vpop.f32.mrb[0].mxu0
        %v9726 = vadd.f32 0.0, %v9725
        %v9727 = vpop.f32.mrb[0].mxu0
        %v9728 = vpop.f32.mrb[0].mxu0
        %v9729 = vadd.f32 0.0, %v9728
        %v9730 = vpop.f32.mrb[0].mxu0
        %9731 = vmatprep.mubr.bf16.mxu0 0
        %9732 = vmatmul.mubr.bf16.gmra.mrb[0].mxu0 %v9542
        %v9733 = vpop.f32.mrb[0].mxu0
        %v9734 = vadd.f32 0.0, %v9733
        %v9735 = vpop.f32.mrb[0].mxu0
        %v9736 = vpop.f32.mrb[0].mxu0
        %v9737 = vadd.f32 0.0, %v9736
        %v9738 = vpop.f32.mrb[0].mxu0
        %9739 = vmatprep.mubr.bf16.mxu0 0
        %9740 = vmatmul.mubr.bf16.gmra.mrb[0].mxu0 %v9543
        %v9741 = vpop.f32.mrb[0].mxu0
        %v9742 = vadd.f32 0.0, %v9741
        %v9743 = vpop.f32.mrb[0].mxu0
        %v9744 = vpop.f32.mrb[0].mxu0
        %v9745 = vadd.f32 0.0, %v9744
        %v9746 = vpop.f32.mrb[0].mxu0
        %9747 = vmatprep.mubr.bf16.mxu0 0
        %9748 = vmatmul.mubr.bf16.gmra.mrb[0].mxu0 %v9544
        %v9749 = vpop.f32.mrb[0].mxu0
        %v9750 = vadd.f32 0.0, %v9749
        %v9751 = vpop.f32.mrb[0].mxu0
        %v9752 = vpop.f32.mrb[0].mxu0
        %v9753 = vadd.f32 0.0, %v9752
        %v9754 = vpop.f32.mrb[0].mxu0
        %9755 = vmatprep.mubr.bf16.mxu0 0
        %9756 = vmatmul.mubr.bf16.gmra.mrb[0].mxu0 %v9545
        %v9757 = vpop.f32.mrb[0].mxu0
        %v9758 = vadd.f32 0.0, %v9757
        %v9759 = vpop.f32.mrb[0].mxu0
        %v9760 = vpop.f32.mrb[0].mxu0
        %v9761 = vadd.f32 0.0, %v9760
        %v9762 = vpop.f32.mrb[0].mxu0
        %9763 = vmatprep.mubr.bf16.mxu0 0
        %9764 = vmatmul.mubr.bf16.gmra.mrb[0].mxu0 %v9546
        %v9765 = vpop.f32.mrb[0].mxu0
        %v9766 = vadd.f32 0.0, %v9765
        %v9767 = vpop.f32.mrb[0].mxu0
        %v9768 = vpop.f32.mrb[0].mxu0
        %v9769 = vadd.f32 0.0, %v9768
        %v9770 = vpop.f32.mrb[0].mxu0
        %9771 = vdwg.mxu0
        %v9772 = vadd.f32 %v9274, %v9646
        %v9773 = vadd.f32 %v9275, %v9649
        %v9774 = vadd.f32 %v9276, %v9654
        %v9775 = vadd.f32 %v9277, %v9657
        %v9776 = vadd.f32 %v9278, %v9662
        %v9777 = vadd.f32 %v9279, %v9665
        %v9778 = vadd.f32 %v9280, %v9670
        %v9779 = vadd.f32 %v9281, %v9673
        %v9780 = vadd.f32 %v9282, %v9678
        %v9781 = vadd.f32 %v9283, %v9681
        %v9782 = vadd.f32 %v9284, %v9686
        %v9783 = vadd.f32 %v9285, %v9689
        %v9784 = vadd.f32 %v9286, %v9694
        %v9785 = vadd.f32 %v9287, %v9697
        %v9786 = vadd.f32 %v9288, %v9702
        %v9787 = vadd.f32 %v9289, %v9705
        %v9788 = vadd.f32 %v9290, %v9710
        %v9789 = vadd.f32 %v9291, %v9713
        %v9790 = vadd.f32 %v9292, %v9718
        %v9791 = vadd.f32 %v9293, %v9721
        %v9792 = vadd.f32 %v9294, %v9726
        %v9793 = vadd.f32 %v9295, %v9729
        %v9794 = vadd.f32 %v9296, %v9734
        %v9795 = vadd.f32 %v9297, %v9737
        %v9796 = vadd.f32 %v9298, %v9742
        %v9797 = vadd.f32 %v9299, %v9745
        %v9798 = vadd.f32 %v9300, %v9750
        %v9799 = vadd.f32 %v9301, %v9753
        %v9800 = vadd.f32 %v9302, %v9758
        %v9801 = vadd.f32 %v9303, %v9761
        %v9802 = vadd.f32 %v9304, %v9766
        %v9803 = vadd.f32 %v9305, %v9769
        %v9804 = vld [vmem:[%s5997] sm:$0xe]
        %v9805 = vld [vmem:[%s5997 + $0xc] sm:$0xe]
        %v9806 = vld [vmem:[%s5997 + $0x18] sm:$0xe]
        %v9807 = vld [vmem:[%s5997 + $0x24] sm:$0xe]
        %v9808 = vld [vmem:[%s5997 + $0x30] sm:$0xe]
        %v9809 = vld [vmem:[%s5997 + $0x3c] sm:$0xe]
        %v9810 = vld [vmem:[%s5997 + $0x48] sm:$0xe]
        %v9811 = vld [vmem:[%s5997 + $0x54] sm:$0xe]
        %v9812 = vld [vmem:[%s5997 + $0x60] sm:$0xe]
        %v9813 = vld [vmem:[%s5997 + $0x6c] sm:$0xe]
        %v9814 = vld [vmem:[%s5997 + $0x78] sm:$0xe]
        %v9815 = vld [vmem:[%s5997 + $0x84] sm:$0xe]
        %v9816 = vld [vmem:[%s5997 + $0x90] sm:$0xe]
        %v9817 = vld [vmem:[%s5997 + $0x9c] sm:$0xe]
        %v9818 = vld [vmem:[%s5997 + $0xa8] sm:$0xe]
        %v9819 = vld [vmem:[%s5997 + $0xb4] sm:$0xe]
        %v9868 = vrot.slane %v9804, 5
        %v9869 = vrot.slane %v9868, 4
        %v9870 = vrot.slane %v7799, 5
        %v9871 = vsel %vm3759, %v9869, %v9870
        %v9872 = vrot.slane %v9870, 4
        %v9873 = vrot.slane %v7800, 5
        %v9874 = vsel %vm3759, %v9872, %v9873
        %v9875 = vrot.slane %v9805, 5
        %v9876 = vrot.slane %v9875, 4
        %v9877 = vrot.slane %v7802, 5
        %v9878 = vsel %vm3759, %v9876, %v9877
        %v9879 = vrot.slane %v9877, 4
        %v9880 = vrot.slane %v7803, 5
        %v9881 = vsel %vm3759, %v9879, %v9880
        %v9882 = vrot.slane %v9806, 5
        %v9883 = vrot.slane %v9882, 4
        %v9884 = vrot.slane %v7805, 5
        %v9885 = vsel %vm3759, %v9883, %v9884
        %v9886 = vrot.slane %v9884, 4
        %v9887 = vrot.slane %v7806, 5
        %v9888 = vsel %vm3759, %v9886, %v9887
        %v9889 = vrot.slane %v9807, 5
        %v9890 = vrot.slane %v9889, 4
        %v9891 = vrot.slane %v7808, 5
        %v9892 = vsel %vm3759, %v9890, %v9891
        %v9893 = vrot.slane %v9891, 4
        %v9894 = vrot.slane %v7809, 5
        %v9895 = vsel %vm3759, %v9893, %v9894
        %v9896 = vrot.slane %v9808, 5
        %v9897 = vrot.slane %v9896, 4
        %v9898 = vrot.slane %v7811, 5
        %v9899 = vsel %vm3759, %v9897, %v9898
        %v9900 = vrot.slane %v9898, 4
        %v9901 = vrot.slane %v7812, 5
        %v9902 = vsel %vm3759, %v9900, %v9901
        %v9903 = vrot.slane %v9809, 5
        %v9904 = vrot.slane %v9903, 4
        %v9905 = vrot.slane %v7814, 5
        %v9906 = vsel %vm3759, %v9904, %v9905
        %v9907 = vrot.slane %v9905, 4
        %v9908 = vrot.slane %v7815, 5
        %v9909 = vsel %vm3759, %v9907, %v9908
        %v9910 = vrot.slane %v9810, 5
        %v9911 = vrot.slane %v9910, 4
        %v9912 = vrot.slane %v7817, 5
        %v9913 = vsel %vm3759, %v9911, %v9912
        %v9914 = vrot.slane %v9912, 4
        %v9915 = vrot.slane %v7818, 5
        %v9916 = vsel %vm3759, %v9914, %v9915
        %v9917 = vrot.slane %v9811, 5
        %v9918 = vrot.slane %v9917, 4
        %v9919 = vrot.slane %v7820, 5
        %v9920 = vsel %vm3759, %v9918, %v9919
        %v9921 = vrot.slane %v9919, 4
        %v9922 = vrot.slane %v7821, 5
        %v9923 = vsel %vm3759, %v9921, %v9922
        %v9924 = vrot.slane %v9812, 5
        %v9925 = vrot.slane %v9924, 4
        %v9926 = vrot.slane %v7823, 5
        %v9927 = vsel %vm3759, %v9925, %v9926
        %v9928 = vrot.slane %v9926, 4
        %v9929 = vrot.slane %v7824, 5
        %v9930 = vsel %vm3759, %v9928, %v9929
        %v9931 = vrot.slane %v9813, 5
        %v9932 = vrot.slane %v9931, 4
        %v9933 = vrot.slane %v7826, 5
        %v9934 = vsel %vm3759, %v9932, %v9933
        %v9935 = vrot.slane %v9933, 4
        %v9936 = vrot.slane %v7827, 5
        %v9937 = vsel %vm3759, %v9935, %v9936
        %v9938 = vrot.slane %v9814, 5
        %v9939 = vrot.slane %v9938, 4
        %v9940 = vrot.slane %v7829, 5
        %v9941 = vsel %vm3759, %v9939, %v9940
        %v9942 = vrot.slane %v9940, 4
        %v9943 = vrot.slane %v7830, 5
        %v9944 = vsel %vm3759, %v9942, %v9943
        %v9945 = vrot.slane %v9815, 5
        %v9946 = vrot.slane %v9945, 4
        %v9947 = vrot.slane %v7832, 5
        %v9948 = vsel %vm3759, %v9946, %v9947
        %v9949 = vrot.slane %v9947, 4
        %v9950 = vrot.slane %v7833, 5
        %v9951 = vsel %vm3759, %v9949, %v9950
        %v9952 = vrot.slane %v9816, 5
        %v9953 = vrot.slane %v9952, 4
        %v9954 = vrot.slane %v7835, 5
        %v9955 = vsel %vm3759, %v9953, %v9954
        %v9956 = vrot.slane %v9954, 4
        %v9957 = vrot.slane %v7836, 5
        %v9958 = vsel %vm3759, %v9956, %v9957
        %v9959 = vrot.slane %v9817, 5
        %v9960 = vrot.slane %v9959, 4
        %v9961 = vrot.slane %v7838, 5
        %v9962 = vsel %vm3759, %v9960, %v9961
        %v9963 = vrot.slane %v9961, 4
        %v9964 = vrot.slane %v7839, 5
        %v9965 = vsel %vm3759, %v9963, %v9964
        %v9966 = vrot.slane %v9818, 5
        %v9967 = vrot.slane %v9966, 4
        %v9968 = vrot.slane %v7841, 5
        %v9969 = vsel %vm3759, %v9967, %v9968
        %v9970 = vrot.slane %v9968, 4
        %v9971 = vrot.slane %v7842, 5
        %v9972 = vsel %vm3759, %v9970, %v9971
        %v9973 = vrot.slane %v9819, 5
        %v9974 = vrot.slane %v9973, 4
        %v9975 = vrot.slane %v7844, 5
        %v9976 = vsel %vm3759, %v9974, %v9975
        %v9977 = vrot.slane %v9975, 4
        %v9978 = vrot.slane %v7845, 5
        %v9979 = vsel %vm3759, %v9977, %v9978
        %s9980 = scalar_lea.vmem [#allocation11], 320
        %v9981 = vld [vmem:[%s9980] sm:$0xf]
        %v9982 = vld [vmem:[%s9980 + $0x4] sm:$0xf]
        %v9983 = vld [vmem:[%s9980 + $0x8] sm:$0xf]
        %v9984 = vld [vmem:[%s9980 + $0xc] sm:$0xf]
        %v9985 = vld [vmem:[%s9980 + $0x10] sm:$0xf]
        %v9986 = vld [vmem:[%s9980 + $0x14] sm:$0xf]
        %v9987 = vld [vmem:[%s9980 + $0x18] sm:$0xf]
        %v9988 = vld [vmem:[%s9980 + $0x1c] sm:$0xf]
        %v9989 = vld [vmem:[%s9980 + $0x20] sm:$0xf]
        %v9990 = vld [vmem:[%s9980 + $0x24] sm:$0xf]
        %v9991 = vld [vmem:[%s9980 + $0x28] sm:$0xf]
        %v9992 = vld [vmem:[%s9980 + $0x2c] sm:$0xf]
        %v9993 = vld [vmem:[%s9980 + $0x30] sm:$0xf]
        %v9994 = vld [vmem:[%s9980 + $0x34] sm:$0xf]
        %v9995 = vld [vmem:[%s9980 + $0x38] sm:$0xf]
        %v9996 = vld [vmem:[%s9980 + $0x3c] sm:$0xf]
        %v9997 = vunpack.c.l.b16 %v9871
        %v9998 = vunpack.c.l.b16 %v9874
        %v9999 = vunpack.c.l.b16 %v9878
        %v10000 = vunpack.c.l.b16 %v9881
        %v10001 = vunpack.c.l.b16 %v9885
        %v10002 = vunpack.c.l.b16 %v9888
        %v10003 = vunpack.c.l.b16 %v9892
        %v10004 = vunpack.c.l.b16 %v9895
        %v10005 = vunpack.c.l.b16 %v9899
        %v10006 = vunpack.c.l.b16 %v9902
        %v10007 = vunpack.c.l.b16 %v9906
        %v10008 = vunpack.c.l.b16 %v9909
        %v10009 = vunpack.c.l.b16 %v9913
        %v10010 = vunpack.c.l.b16 %v9916
        %v10011 = vunpack.c.l.b16 %v9920
        %v10012 = vunpack.c.l.b16 %v9923
        %v10013 = vunpack.c.l.b16 %v9927
        %v10014 = vunpack.c.l.b16 %v9930
        %v10015 = vunpack.c.l.b16 %v9934
        %v10016 = vunpack.c.l.b16 %v9937
        %v10017 = vunpack.c.l.b16 %v9941
        %v10018 = vunpack.c.l.b16 %v9944
        %v10019 = vunpack.c.l.b16 %v9948
        %v10020 = vunpack.c.l.b16 %v9951
        %v10021 = vunpack.c.l.b16 %v9955
        %v10022 = vunpack.c.l.b16 %v9958
        %v10023 = vunpack.c.l.b16 %v9962
        %v10024 = vunpack.c.l.b16 %v9965
        %v10025 = vunpack.c.l.b16 %v9969
        %v10026 = vunpack.c.l.b16 %v9972
        %v10027 = vunpack.c.l.b16 %v9976
        %v10028 = vunpack.c.l.b16 %v9979
        %v10029 = vpack.c.b16 %v9998, %v9997
        %v10030 = vpack.c.b16 %v10000, %v9999
        %v10031 = vpack.c.b16 %v10002, %v10001
        %v10032 = vpack.c.b16 %v10004, %v10003
        %v10033 = vpack.c.b16 %v10006, %v10005
        %v10034 = vpack.c.b16 %v10008, %v10007
        %v10035 = vpack.c.b16 %v10010, %v10009
        %v10036 = vpack.c.b16 %v10012, %v10011
        %v10037 = vpack.c.b16 %v10014, %v10013
        %v10038 = vpack.c.b16 %v10016, %v10015
        %v10039 = vpack.c.b16 %v10018, %v10017
        %v10040 = vpack.c.b16 %v10020, %v10019
        %v10041 = vpack.c.b16 %v10022, %v10021
        %v10042 = vpack.c.b16 %v10024, %v10023
        %v10043 = vpack.c.b16 %v10026, %v10025
        %v10044 = vpack.c.b16 %v10028, %v10027
        %v10077 = vunpack.c.l.b16 %v9981
        %v10078 = vunpack.c.l.b16 %v9982
        %v10079 = vunpack.c.l.b16 %v9983
        %v10080 = vunpack.c.l.b16 %v9984
        %v10081 = vunpack.c.l.b16 %v9985
        %v10082 = vunpack.c.l.b16 %v9986
        %v10083 = vunpack.c.l.b16 %v9987
        %v10084 = vunpack.c.l.b16 %v9988
        %v10085 = vunpack.c.l.b16 %v9989
        %v10086 = vunpack.c.l.b16 %v9990
        %v10087 = vunpack.c.l.b16 %v9991
        %v10088 = vunpack.c.l.b16 %v9992
        %v10089 = vunpack.c.l.b16 %v9993
        %v10090 = vunpack.c.l.b16 %v9994
        %v10091 = vunpack.c.l.b16 %v9995
        %v10092 = vunpack.c.l.b16 %v9996
        %v10093 = vpack.c.b16 %v10078, %v10077
        %v10094 = vpack.c.b16 %v10080, %v10079
        %v10095 = vpack.c.b16 %v10082, %v10081
        %v10096 = vpack.c.b16 %v10084, %v10083
        %v10097 = vpack.c.b16 %v10086, %v10085
        %v10098 = vpack.c.b16 %v10088, %v10087
        %v10099 = vpack.c.b16 %v10090, %v10089
        %v10100 = vpack.c.b16 %v10092, %v10091
        %10109 = vmatprep.subr.bf16.mxu0 0
        %10110 = vmatpush1.bf16.msra.mxu0 %v10093
        %10111 = vmatprep.subr.bf16.mxu0 0
        %10112 = vmatpush1.bf16.msra.mxu0 %v10094
        %10113 = vmatprep.subr.bf16.mxu0 0
        %10114 = vmatpush1.bf16.msra.mxu0 %v10095
        %10115 = vmatprep.subr.bf16.mxu0 0
        %10116 = vmatpush1.bf16.msra.mxu0 %v10096
        %10117 = vmatprep.subr.bf16.mxu0 0
        %10118 = vmatpush1.bf16.msra.mxu0 %v10097
        %10119 = vmatprep.subr.bf16.mxu0 0
        %10120 = vmatpush1.bf16.msra.mxu0 %v10098
        %10121 = vmatprep.subr.bf16.mxu0 0
        %10122 = vmatpush1.bf16.msra.mxu0 %v10099
        %10123 = vmatprep.subr.bf16.mxu0 0
        %10124 = vmatpush1.bf16.msra.mxu0 %v10100
        %10125 = vmatprep.subr.bf16.mxu0 0
        %10126 = vmatpush1.bf16.msra.mxu0 0
        %10127 = vmatprep.subr.bf16.mxu0 0
        %10128 = vmatpush1.bf16.msra.mxu0 0
        %10129 = vmatprep.subr.bf16.mxu0 0
        %10130 = vmatpush1.bf16.msra.mxu0 0
        %10131 = vmatprep.subr.bf16.mxu0 0
        %10132 = vmatpush1.bf16.msra.mxu0 0
        %10133 = vmatprep.subr.bf16.mxu0 0
        %10134 = vmatpush1.bf16.msra.mxu0 0
        %10135 = vmatprep.subr.bf16.mxu0 0
        %10136 = vmatpush1.bf16.msra.mxu0 0
        %10137 = vmatprep.subr.bf16.mxu0 0
        %10138 = vmatpush1.bf16.msra.mxu0 0
        %10139 = vmatprep.subr.bf16.mxu0 0
        %10140 = vmatpush1.bf16.msra.mxu0 0
        %10141 = vmatprep.mubr.bf16.mxu0 0
        %10142 = vmatmul.mubr.bf16.gmra.mrb[0].mxu0 %v10029
        %v10143 = vpop.f32.mrb[0].mxu0
        %v10144 = vadd.f32 0.0, %v10143
        %v10145 = vpop.f32.mrb[0].mxu0
        %v10146 = vpop.f32.mrb[0].mxu0
        %v10147 = vadd.f32 0.0, %v10146
        %v10148 = vpop.f32.mrb[0].mxu0
        %10149 = vmatprep.mubr.bf16.mxu0 0
        %10150 = vmatmul.mubr.bf16.gmra.mrb[0].mxu0 %v10030
        %v10151 = vpop.f32.mrb[0].mxu0
        %v10152 = vadd.f32 0.0, %v10151
        %v10153 = vpop.f32.mrb[0].mxu0
        %v10154 = vpop.f32.mrb[0].mxu0
        %v10155 = vadd.f32 0.0, %v10154
        %v10156 = vpop.f32.mrb[0].mxu0
        %10157 = vmatprep.mubr.bf16.mxu0 0
        %10158 = vmatmul.mubr.bf16.gmra.mrb[0].mxu0 %v10031
        %v10159 = vpop.f32.mrb[0].mxu0
        %v10160 = vadd.f32 0.0, %v10159
        %v10161 = vpop.f32.mrb[0].mxu0
        %v10162 = vpop.f32.mrb[0].mxu0
        %v10163 = vadd.f32 0.0, %v10162
        %v10164 = vpop.f32.mrb[0].mxu0
        %10165 = vmatprep.mubr.bf16.mxu0 0
        %10166 = vmatmul.mubr.bf16.gmra.mrb[0].mxu0 %v10032
        %v10167 = vpop.f32.mrb[0].mxu0
        %v10168 = vadd.f32 0.0, %v10167
        %v10169 = vpop.f32.mrb[0].mxu0
        %v10170 = vpop.f32.mrb[0].mxu0
        %v10171 = vadd.f32 0.0, %v10170
        %v10172 = vpop.f32.mrb[0].mxu0
        %10173 = vmatprep.mubr.bf16.mxu0 0
        %10174 = vmatmul.mubr.bf16.gmra.mrb[0].mxu0 %v10033
        %v10175 = vpop.f32.mrb[0].mxu0
        %v10176 = vadd.f32 0.0, %v10175
        %v10177 = vpop.f32.mrb[0].mxu0
        %v10178 = vpop.f32.mrb[0].mxu0
        %v10179 = vadd.f32 0.0, %v10178
        %v10180 = vpop.f32.mrb[0].mxu0
        %10181 = vmatprep.mubr.bf16.mxu0 0
        %10182 = vmatmul.mubr.bf16.gmra.mrb[0].mxu0 %v10034
        %v10183 = vpop.f32.mrb[0].mxu0
        %v10184 = vadd.f32 0.0, %v10183
        %v10185 = vpop.f32.mrb[0].mxu0
        %v10186 = vpop.f32.mrb[0].mxu0
        %v10187 = vadd.f32 0.0, %v10186
        %v10188 = vpop.f32.mrb[0].mxu0
        %10189 = vmatprep.mubr.bf16.mxu0 0
        %10190 = vmatmul.mubr.bf16.gmra.mrb[0].mxu0 %v10035
        %v10191 = vpop.f32.mrb[0].mxu0
        %v10192 = vadd.f32 0.0, %v10191
        %v10193 = vpop.f32.mrb[0].mxu0
        %v10194 = vpop.f32.mrb[0].mxu0
        %v10195 = vadd.f32 0.0, %v10194
        %v10196 = vpop.f32.mrb[0].mxu0
        %10197 = vmatprep.mubr.bf16.mxu0 0
        %10198 = vmatmul.mubr.bf16.gmra.mrb[0].mxu0 %v10036
        %v10199 = vpop.f32.mrb[0].mxu0
        %v10200 = vadd.f32 0.0, %v10199
        %v10201 = vpop.f32.mrb[0].mxu0
        %v10202 = vpop.f32.mrb[0].mxu0
        %v10203 = vadd.f32 0.0, %v10202
        %v10204 = vpop.f32.mrb[0].mxu0
        %10205 = vmatprep.mubr.bf16.mxu0 0
        %10206 = vmatmul.mubr.bf16.gmra.mrb[0].mxu0 %v10037
        %v10207 = vpop.f32.mrb[0].mxu0
        %v10208 = vadd.f32 0.0, %v10207
        %v10209 = vpop.f32.mrb[0].mxu0
        %v10210 = vpop.f32.mrb[0].mxu0
        %v10211 = vadd.f32 0.0, %v10210
        %v10212 = vpop.f32.mrb[0].mxu0
        %10213 = vmatprep.mubr.bf16.mxu0 0
        %10214 = vmatmul.mubr.bf16.gmra.mrb[0].mxu0 %v10038
        %v10215 = vpop.f32.mrb[0].mxu0
        %v10216 = vadd.f32 0.0, %v10215
        %v10217 = vpop.f32.mrb[0].mxu0
        %v10218 = vpop.f32.mrb[0].mxu0
        %v10219 = vadd.f32 0.0, %v10218
        %v10220 = vpop.f32.mrb[0].mxu0
        %10221 = vmatprep.mubr.bf16.mxu0 0
        %10222 = vmatmul.mubr.bf16.gmra.mrb[0].mxu0 %v10039
        %v10223 = vpop.f32.mrb[0].mxu0
        %v10224 = vadd.f32 0.0, %v10223
        %v10225 = vpop.f32.mrb[0].mxu0
        %v10226 = vpop.f32.mrb[0].mxu0
        %v10227 = vadd.f32 0.0, %v10226
        %v10228 = vpop.f32.mrb[0].mxu0
        %10229 = vmatprep.mubr.bf16.mxu0 0
        %10230 = vmatmul.mubr.bf16.gmra.mrb[0].mxu0 %v10040
        %v10231 = vpop.f32.mrb[0].mxu0
        %v10232 = vadd.f32 0.0, %v10231
        %v10233 = vpop.f32.mrb[0].mxu0
        %v10234 = vpop.f32.mrb[0].mxu0
        %v10235 = vadd.f32 0.0, %v10234
        %v10236 = vpop.f32.mrb[0].mxu0
        %10237 = vmatprep.mubr.bf16.mxu0 0
        %10238 = vmatmul.mubr.bf16.gmra.mrb[0].mxu0 %v10041
        %v10239 = vpop.f32.mrb[0].mxu0
        %v10240 = vadd.f32 0.0, %v10239
        %v10241 = vpop.f32.mrb[0].mxu0
        %v10242 = vpop.f32.mrb[0].mxu0
        %v10243 = vadd.f32 0.0, %v10242
        %v10244 = vpop.f32.mrb[0].mxu0
        %10245 = vmatprep.mubr.bf16.mxu0 0
        %10246 = vmatmul.mubr.bf16.gmra.mrb[0].mxu0 %v10042
        %v10247 = vpop.f32.mrb[0].mxu0
        %v10248 = vadd.f32 0.0, %v10247
        %v10249 = vpop.f32.mrb[0].mxu0
        %v10250 = vpop.f32.mrb[0].mxu0
        %v10251 = vadd.f32 0.0, %v10250
        %v10252 = vpop.f32.mrb[0].mxu0
        %10253 = vmatprep.mubr.bf16.mxu0 0
        %10254 = vmatmul.mubr.bf16.gmra.mrb[0].mxu0 %v10043
        %v10255 = vpop.f32.mrb[0].mxu0
        %v10256 = vadd.f32 0.0, %v10255
        %v10257 = vpop.f32.mrb[0].mxu0
        %v10258 = vpop.f32.mrb[0].mxu0
        %v10259 = vadd.f32 0.0, %v10258
        %v10260 = vpop.f32.mrb[0].mxu0
        %10261 = vmatprep.mubr.bf16.mxu0 0
        %10262 = vmatmul.mubr.bf16.gmra.mrb[0].mxu0 %v10044
        %v10263 = vpop.f32.mrb[0].mxu0
        %v10264 = vadd.f32 0.0, %v10263
        %v10265 = vpop.f32.mrb[0].mxu0
        %v10266 = vpop.f32.mrb[0].mxu0
        %v10267 = vadd.f32 0.0, %v10266
        %v10268 = vpop.f32.mrb[0].mxu0
        %10269 = vdwg.mxu0
        %v10270 = vadd.f32 %v9772, %v10144
        %v10271 = vadd.f32 %v9773, %v10147
        %v10272 = vadd.f32 %v9774, %v10152
        %v10273 = vadd.f32 %v9775, %v10155
        %v10274 = vadd.f32 %v9776, %v10160
        %v10275 = vadd.f32 %v9777, %v10163
        %v10276 = vadd.f32 %v9778, %v10168
        %v10277 = vadd.f32 %v9779, %v10171
        %v10278 = vadd.f32 %v9780, %v10176
        %v10279 = vadd.f32 %v9781, %v10179
        %v10280 = vadd.f32 %v9782, %v10184
        %v10281 = vadd.f32 %v9783, %v10187
        %v10282 = vadd.f32 %v9784, %v10192
        %v10283 = vadd.f32 %v9785, %v10195
        %v10284 = vadd.f32 %v9786, %v10200
        %v10285 = vadd.f32 %v9787, %v10203
        %v10286 = vadd.f32 %v9788, %v10208
        %v10287 = vadd.f32 %v9789, %v10211
        %v10288 = vadd.f32 %v9790, %v10216
        %v10289 = vadd.f32 %v9791, %v10219
        %v10290 = vadd.f32 %v9792, %v10224
        %v10291 = vadd.f32 %v9793, %v10227
        %v10292 = vadd.f32 %v9794, %v10232
        %v10293 = vadd.f32 %v9795, %v10235
        %v10294 = vadd.f32 %v9796, %v10240
        %v10295 = vadd.f32 %v9797, %v10243
        %v10296 = vadd.f32 %v9798, %v10248
        %v10297 = vadd.f32 %v9799, %v10251
        %v10298 = vadd.f32 %v9800, %v10256
        %v10299 = vadd.f32 %v9801, %v10259
        %v10300 = vadd.f32 %v9802, %v10264
        %v10301 = vadd.f32 %v9803, %v10267
        %v10302 = vld [vmem:[%s6657] sm:$0xe]
        %v10303 = vld [vmem:[%s6657 + $0xc] sm:$0xe]
        %v10304 = vld [vmem:[%s6657 + $0x18] sm:$0xe]
        %v10305 = vld [vmem:[%s6657 + $0x24] sm:$0xe]
        %v10306 = vld [vmem:[%s6657 + $0x30] sm:$0xe]
        %v10307 = vld [vmem:[%s6657 + $0x3c] sm:$0xe]
        %v10308 = vld [vmem:[%s6657 + $0x48] sm:$0xe]
        %v10309 = vld [vmem:[%s6657 + $0x54] sm:$0xe]
        %v10310 = vld [vmem:[%s6657 + $0x60] sm:$0xe]
        %v10311 = vld [vmem:[%s6657 + $0x6c] sm:$0xe]
        %v10312 = vld [vmem:[%s6657 + $0x78] sm:$0xe]
        %v10313 = vld [vmem:[%s6657 + $0x84] sm:$0xe]
        %v10314 = vld [vmem:[%s6657 + $0x90] sm:$0xe]
        %v10315 = vld [vmem:[%s6657 + $0x9c] sm:$0xe]
        %v10316 = vld [vmem:[%s6657 + $0xa8] sm:$0xe]
        %v10317 = vld [vmem:[%s6657 + $0xb4] sm:$0xe]
        %v10366 = vrot.slane %v10302, 5
        %v10367 = vrot.slane %v10366, 4
        %v10368 = vrot.slane %v8553, 5
        %v10369 = vsel %vm3759, %v10367, %v10368
        %v10370 = vrot.slane %v10368, 4
        %v10371 = vrot.slane %v8554, 5
        %v10372 = vsel %vm3759, %v10370, %v10371
        %v10373 = vrot.slane %v10303, 5
        %v10374 = vrot.slane %v10373, 4
        %v10375 = vrot.slane %v8556, 5
        %v10376 = vsel %vm3759, %v10374, %v10375
        %v10377 = vrot.slane %v10375, 4
        %v10378 = vrot.slane %v8557, 5
        %v10379 = vsel %vm3759, %v10377, %v10378
        %v10380 = vrot.slane %v10304, 5
        %v10381 = vrot.slane %v10380, 4
        %v10382 = vrot.slane %v8559, 5
        %v10383 = vsel %vm3759, %v10381, %v10382
        %v10384 = vrot.slane %v10382, 4
        %v10385 = vrot.slane %v8560, 5
        %v10386 = vsel %vm3759, %v10384, %v10385
        %v10387 = vrot.slane %v10305, 5
        %v10388 = vrot.slane %v10387, 4
        %v10389 = vrot.slane %v8562, 5
        %v10390 = vsel %vm3759, %v10388, %v10389
        %v10391 = vrot.slane %v10389, 4
        %v10392 = vrot.slane %v8563, 5
        %v10393 = vsel %vm3759, %v10391, %v10392
        %v10394 = vrot.slane %v10306, 5
        %v10395 = vrot.slane %v10394, 4
        %v10396 = vrot.slane %v8565, 5
        %v10397 = vsel %vm3759, %v10395, %v10396
        %v10398 = vrot.slane %v10396, 4
        %v10399 = vrot.slane %v8566, 5
        %v10400 = vsel %vm3759, %v10398, %v10399
        %v10401 = vrot.slane %v10307, 5
        %v10402 = vrot.slane %v10401, 4
        %v10403 = vrot.slane %v8568, 5
        %v10404 = vsel %vm3759, %v10402, %v10403
        %v10405 = vrot.slane %v10403, 4
        %v10406 = vrot.slane %v8569, 5
        %v10407 = vsel %vm3759, %v10405, %v10406
        %v10408 = vrot.slane %v10308, 5
        %v10409 = vrot.slane %v10408, 4
        %v10410 = vrot.slane %v8571, 5
        %v10411 = vsel %vm3759, %v10409, %v10410
        %v10412 = vrot.slane %v10410, 4
        %v10413 = vrot.slane %v8572, 5
        %v10414 = vsel %vm3759, %v10412, %v10413
        %v10415 = vrot.slane %v10309, 5
        %v10416 = vrot.slane %v10415, 4
        %v10417 = vrot.slane %v8574, 5
        %v10418 = vsel %vm3759, %v10416, %v10417
        %v10419 = vrot.slane %v10417, 4
        %v10420 = vrot.slane %v8575, 5
        %v10421 = vsel %vm3759, %v10419, %v10420
        %v10422 = vrot.slane %v10310, 5
        %v10423 = vrot.slane %v10422, 4
        %v10424 = vrot.slane %v8577, 5
        %v10425 = vsel %vm3759, %v10423, %v10424
        %v10426 = vrot.slane %v10424, 4
        %v10427 = vrot.slane %v8578, 5
        %v10428 = vsel %vm3759, %v10426, %v10427
        %v10429 = vrot.slane %v10311, 5
        %v10430 = vrot.slane %v10429, 4
        %v10431 = vrot.slane %v8580, 5
        %v10432 = vsel %vm3759, %v10430, %v10431
        %v10433 = vrot.slane %v10431, 4
        %v10434 = vrot.slane %v8581, 5
        %v10435 = vsel %vm3759, %v10433, %v10434
        %v10436 = vrot.slane %v10312, 5
        %v10437 = vrot.slane %v10436, 4
        %v10438 = vrot.slane %v8583, 5
        %v10439 = vsel %vm3759, %v10437, %v10438
        %v10440 = vrot.slane %v10438, 4
        %v10441 = vrot.slane %v8584, 5
        %v10442 = vsel %vm3759, %v10440, %v10441
        %v10443 = vrot.slane %v10313, 5
        %v10444 = vrot.slane %v10443, 4
        %v10445 = vrot.slane %v8586, 5
        %v10446 = vsel %vm3759, %v10444, %v10445
        %v10447 = vrot.slane %v10445, 4
        %v10448 = vrot.slane %v8587, 5
        %v10449 = vsel %vm3759, %v10447, %v10448
        %v10450 = vrot.slane %v10314, 5
        %v10451 = vrot.slane %v10450, 4
        %v10452 = vrot.slane %v8589, 5
        %v10453 = vsel %vm3759, %v10451, %v10452
        %v10454 = vrot.slane %v10452, 4
        %v10455 = vrot.slane %v8590, 5
        %v10456 = vsel %vm3759, %v10454, %v10455
        %v10457 = vrot.slane %v10315, 5
        %v10458 = vrot.slane %v10457, 4
        %v10459 = vrot.slane %v8592, 5
        %v10460 = vsel %vm3759, %v10458, %v10459
        %v10461 = vrot.slane %v10459, 4
        %v10462 = vrot.slane %v8593, 5
        %v10463 = vsel %vm3759, %v10461, %v10462
        %v10464 = vrot.slane %v10316, 5
        %v10465 = vrot.slane %v10464, 4
        %v10466 = vrot.slane %v8595, 5
        %v10467 = vsel %vm3759, %v10465, %v10466
        %v10468 = vrot.slane %v10466, 4
        %v10469 = vrot.slane %v8596, 5
        %v10470 = vsel %vm3759, %v10468, %v10469
        %v10471 = vrot.slane %v10317, 5
        %v10472 = vrot.slane %v10471, 4
        %v10473 = vrot.slane %v8598, 5
        %v10474 = vsel %vm3759, %v10472, %v10473
        %v10475 = vrot.slane %v10473, 4
        %v10476 = vrot.slane %v8599, 5
        %v10477 = vsel %vm3759, %v10475, %v10476
        %s10478 = scalar_lea.vmem [#allocation11], 512
        %v10479 = vld [vmem:[%s10478] sm:$0xf]
        %v10480 = vld [vmem:[%s10478 + $0x4] sm:$0xf]
        %v10481 = vld [vmem:[%s10478 + $0x8] sm:$0xf]
        %v10482 = vld [vmem:[%s10478 + $0xc] sm:$0xf]
        %v10483 = vld [vmem:[%s10478 + $0x10] sm:$0xf]
        %v10484 = vld [vmem:[%s10478 + $0x14] sm:$0xf]
        %v10485 = vld [vmem:[%s10478 + $0x18] sm:$0xf]
        %v10486 = vld [vmem:[%s10478 + $0x1c] sm:$0xf]
        %v10487 = vld [vmem:[%s10478 + $0x20] sm:$0xf]
        %v10488 = vld [vmem:[%s10478 + $0x24] sm:$0xf]
        %v10489 = vld [vmem:[%s10478 + $0x28] sm:$0xf]
        %v10490 = vld [vmem:[%s10478 + $0x2c] sm:$0xf]
        %v10491 = vld [vmem:[%s10478 + $0x30] sm:$0xf]
        %v10492 = vld [vmem:[%s10478 + $0x34] sm:$0xf]
        %v10493 = vld [vmem:[%s10478 + $0x38] sm:$0xf]
        %v10494 = vld [vmem:[%s10478 + $0x3c] sm:$0xf]
        %v10495 = vunpack.c.l.b16 %v10369
        %v10496 = vunpack.c.l.b16 %v10372
        %v10497 = vunpack.c.l.b16 %v10376
        %v10498 = vunpack.c.l.b16 %v10379
        %v10499 = vunpack.c.l.b16 %v10383
        %v10500 = vunpack.c.l.b16 %v10386
        %v10501 = vunpack.c.l.b16 %v10390
        %v10502 = vunpack.c.l.b16 %v10393
        %v10503 = vunpack.c.l.b16 %v10397
        %v10504 = vunpack.c.l.b16 %v10400
        %v10505 = vunpack.c.l.b16 %v10404
        %v10506 = vunpack.c.l.b16 %v10407
        %v10507 = vunpack.c.l.b16 %v10411
        %v10508 = vunpack.c.l.b16 %v10414
        %v10509 = vunpack.c.l.b16 %v10418
        %v10510 = vunpack.c.l.b16 %v10421
        %v10511 = vunpack.c.l.b16 %v10425
        %v10512 = vunpack.c.l.b16 %v10428
        %v10513 = vunpack.c.l.b16 %v10432
        %v10514 = vunpack.c.l.b16 %v10435
        %v10515 = vunpack.c.l.b16 %v10439
        %v10516 = vunpack.c.l.b16 %v10442
        %v10517 = vunpack.c.l.b16 %v10446
        %v10518 = vunpack.c.l.b16 %v10449
        %v10519 = vunpack.c.l.b16 %v10453
        %v10520 = vunpack.c.l.b16 %v10456
        %v10521 = vunpack.c.l.b16 %v10460
        %v10522 = vunpack.c.l.b16 %v10463
        %v10523 = vunpack.c.l.b16 %v10467
        %v10524 = vunpack.c.l.b16 %v10470
        %v10525 = vunpack.c.l.b16 %v10474
        %v10526 = vunpack.c.l.b16 %v10477
        %v10527 = vpack.c.b16 %v10496, %v10495
        %v10528 = vpack.c.b16 %v10498, %v10497
        %v10529 = vpack.c.b16 %v10500, %v10499
        %v10530 = vpack.c.b16 %v10502, %v10501
        %v10531 = vpack.c.b16 %v10504, %v10503
        %v10532 = vpack.c.b16 %v10506, %v10505
        %v10533 = vpack.c.b16 %v10508, %v10507
        %v10534 = vpack.c.b16 %v10510, %v10509
        %v10535 = vpack.c.b16 %v10512, %v10511
        %v10536 = vpack.c.b16 %v10514, %v10513
        %v10537 = vpack.c.b16 %v10516, %v10515
        %v10538 = vpack.c.b16 %v10518, %v10517
        %v10539 = vpack.c.b16 %v10520, %v10519
        %v10540 = vpack.c.b16 %v10522, %v10521
        %v10541 = vpack.c.b16 %v10524, %v10523
        %v10542 = vpack.c.b16 %v10526, %v10525
        %v10575 = vunpack.c.l.b16 %v10479
        %v10576 = vunpack.c.l.b16 %v10480
        %v10577 = vunpack.c.l.b16 %v10481
        %v10578 = vunpack.c.l.b16 %v10482
        %v10579 = vunpack.c.l.b16 %v10483
        %v10580 = vunpack.c.l.b16 %v10484
        %v10581 = vunpack.c.l.b16 %v10485
        %v10582 = vunpack.c.l.b16 %v10486
        %v10583 = vunpack.c.l.b16 %v10487
        %v10584 = vunpack.c.l.b16 %v10488
        %v10585 = vunpack.c.l.b16 %v10489
        %v10586 = vunpack.c.l.b16 %v10490
        %v10587 = vunpack.c.l.b16 %v10491
        %v10588 = vunpack.c.l.b16 %v10492
        %v10589 = vunpack.c.l.b16 %v10493
        %v10590 = vunpack.c.l.b16 %v10494
        %v10591 = vpack.c.b16 %v10576, %v10575
        %v10592 = vpack.c.b16 %v10578, %v10577
        %v10593 = vpack.c.b16 %v10580, %v10579
        %v10594 = vpack.c.b16 %v10582, %v10581
        %v10595 = vpack.c.b16 %v10584, %v10583
        %v10596 = vpack.c.b16 %v10586, %v10585
        %v10597 = vpack.c.b16 %v10588, %v10587
        %v10598 = vpack.c.b16 %v10590, %v10589
        %10607 = vmatprep.subr.bf16.mxu0 0
        %10608 = vmatpush1.bf16.msra.mxu0 %v10591
        %10609 = vmatprep.subr.bf16.mxu0 0
        %10610 = vmatpush1.bf16.msra.mxu0 %v10592
        %10611 = vmatprep.subr.bf16.mxu0 0
        %10612 = vmatpush1.bf16.msra.mxu0 %v10593
        %10613 = vmatprep.subr.bf16.mxu0 0
        %10614 = vmatpush1.bf16.msra.mxu0 %v10594
        %10615 = vmatprep.subr.bf16.mxu0 0
        %10616 = vmatpush1.bf16.msra.mxu0 %v10595
        %10617 = vmatprep.subr.bf16.mxu0 0
        %10618 = vmatpush1.bf16.msra.mxu0 %v10596
        %10619 = vmatprep.subr.bf16.mxu0 0
        %10620 = vmatpush1.bf16.msra.mxu0 %v10597
        %10621 = vmatprep.subr.bf16.mxu0 0
        %10622 = vmatpush1.bf16.msra.mxu0 %v10598
        %10623 = vmatprep.subr.bf16.mxu0 0
        %10624 = vmatpush1.bf16.msra.mxu0 0
        %10625 = vmatprep.subr.bf16.mxu0 0
        %10626 = vmatpush1.bf16.msra.mxu0 0
        %10627 = vmatprep.subr.bf16.mxu0 0
        %10628 = vmatpush1.bf16.msra.mxu0 0
        %10629 = vmatprep.subr.bf16.mxu0 0
        %10630 = vmatpush1.bf16.msra.mxu0 0
        %10631 = vmatprep.subr.bf16.mxu0 0
        %10632 = vmatpush1.bf16.msra.mxu0 0
        %10633 = vmatprep.subr.bf16.mxu0 0
        %10634 = vmatpush1.bf16.msra.mxu0 0
        %10635 = vmatprep.subr.bf16.mxu0 0
        %10636 = vmatpush1.bf16.msra.mxu0 0
        %10637 = vmatprep.subr.bf16.mxu0 0
        %10638 = vmatpush1.bf16.msra.mxu0 0
        %10639 = vmatprep.mubr.bf16.mxu0 0
        %10640 = vmatmul.mubr.bf16.gmra.mrb[0].mxu0 %v10527
        %v10641 = vpop.f32.mrb[0].mxu0
        %v10642 = vadd.f32 0.0, %v10641
        %v10643 = vpop.f32.mrb[0].mxu0
        %v10644 = vpop.f32.mrb[0].mxu0
        %v10645 = vadd.f32 0.0, %v10644
        %v10646 = vpop.f32.mrb[0].mxu0
        %10647 = vmatprep.mubr.bf16.mxu0 0
        %10648 = vmatmul.mubr.bf16.gmra.mrb[0].mxu0 %v10528
        %v10649 = vpop.f32.mrb[0].mxu0
        %v10650 = vadd.f32 0.0, %v10649
        %v10651 = vpop.f32.mrb[0].mxu0
        %v10652 = vpop.f32.mrb[0].mxu0
        %v10653 = vadd.f32 0.0, %v10652
        %v10654 = vpop.f32.mrb[0].mxu0
        %10655 = vmatprep.mubr.bf16.mxu0 0
        %10656 = vmatmul.mubr.bf16.gmra.mrb[0].mxu0 %v10529
        %v10657 = vpop.f32.mrb[0].mxu0
        %v10658 = vadd.f32 0.0, %v10657
        %v10659 = vpop.f32.mrb[0].mxu0
        %v10660 = vpop.f32.mrb[0].mxu0
        %v10661 = vadd.f32 0.0, %v10660
        %v10662 = vpop.f32.mrb[0].mxu0
        %10663 = vmatprep.mubr.bf16.mxu0 0
        %10664 = vmatmul.mubr.bf16.gmra.mrb[0].mxu0 %v10530
        %v10665 = vpop.f32.mrb[0].mxu0
        %v10666 = vadd.f32 0.0, %v10665
        %v10667 = vpop.f32.mrb[0].mxu0
        %v10668 = vpop.f32.mrb[0].mxu0
        %v10669 = vadd.f32 0.0, %v10668
        %v10670 = vpop.f32.mrb[0].mxu0
        %10671 = vmatprep.mubr.bf16.mxu0 0
        %10672 = vmatmul.mubr.bf16.gmra.mrb[0].mxu0 %v10531
        %v10673 = vpop.f32.mrb[0].mxu0
        %v10674 = vadd.f32 0.0, %v10673
        %v10675 = vpop.f32.mrb[0].mxu0
        %v10676 = vpop.f32.mrb[0].mxu0
        %v10677 = vadd.f32 0.0, %v10676
        %v10678 = vpop.f32.mrb[0].mxu0
        %10679 = vmatprep.mubr.bf16.mxu0 0
        %10680 = vmatmul.mubr.bf16.gmra.mrb[0].mxu0 %v10532
        %v10681 = vpop.f32.mrb[0].mxu0
        %v10682 = vadd.f32 0.0, %v10681
        %v10683 = vpop.f32.mrb[0].mxu0
        %v10684 = vpop.f32.mrb[0].mxu0
        %v10685 = vadd.f32 0.0, %v10684
        %v10686 = vpop.f32.mrb[0].mxu0
        %10687 = vmatprep.mubr.bf16.mxu0 0
        %10688 = vmatmul.mubr.bf16.gmra.mrb[0].mxu0 %v10533
        %v10689 = vpop.f32.mrb[0].mxu0
        %v10690 = vadd.f32 0.0, %v10689
        %v10691 = vpop.f32.mrb[0].mxu0
        %v10692 = vpop.f32.mrb[0].mxu0
        %v10693 = vadd.f32 0.0, %v10692
        %v10694 = vpop.f32.mrb[0].mxu0
        %10695 = vmatprep.mubr.bf16.mxu0 0
        %10696 = vmatmul.mubr.bf16.gmra.mrb[0].mxu0 %v10534
        %v10697 = vpop.f32.mrb[0].mxu0
        %v10698 = vadd.f32 0.0, %v10697
        %v10699 = vpop.f32.mrb[0].mxu0
        %v10700 = vpop.f32.mrb[0].mxu0
        %v10701 = vadd.f32 0.0, %v10700
        %v10702 = vpop.f32.mrb[0].mxu0
        %10703 = vmatprep.mubr.bf16.mxu0 0
        %10704 = vmatmul.mubr.bf16.gmra.mrb[0].mxu0 %v10535
        %v10705 = vpop.f32.mrb[0].mxu0
        %v10706 = vadd.f32 0.0, %v10705
        %v10707 = vpop.f32.mrb[0].mxu0
        %v10708 = vpop.f32.mrb[0].mxu0
        %v10709 = vadd.f32 0.0, %v10708
        %v10710 = vpop.f32.mrb[0].mxu0
        %10711 = vmatprep.mubr.bf16.mxu0 0
        %10712 = vmatmul.mubr.bf16.gmra.mrb[0].mxu0 %v10536
        %v10713 = vpop.f32.mrb[0].mxu0
        %v10714 = vadd.f32 0.0, %v10713
        %v10715 = vpop.f32.mrb[0].mxu0
        %v10716 = vpop.f32.mrb[0].mxu0
        %v10717 = vadd.f32 0.0, %v10716
        %v10718 = vpop.f32.mrb[0].mxu0
        %10719 = vmatprep.mubr.bf16.mxu0 0
        %10720 = vmatmul.mubr.bf16.gmra.mrb[0].mxu0 %v10537
        %v10721 = vpop.f32.mrb[0].mxu0
        %v10722 = vadd.f32 0.0, %v10721
        %v10723 = vpop.f32.mrb[0].mxu0
        %v10724 = vpop.f32.mrb[0].mxu0
        %v10725 = vadd.f32 0.0, %v10724
        %v10726 = vpop.f32.mrb[0].mxu0
        %10727 = vmatprep.mubr.bf16.mxu0 0
        %10728 = vmatmul.mubr.bf16.gmra.mrb[0].mxu0 %v10538
        %v10729 = vpop.f32.mrb[0].mxu0
        %v10730 = vadd.f32 0.0, %v10729
        %v10731 = vpop.f32.mrb[0].mxu0
        %v10732 = vpop.f32.mrb[0].mxu0
        %v10733 = vadd.f32 0.0, %v10732
        %v10734 = vpop.f32.mrb[0].mxu0
        %10735 = vmatprep.mubr.bf16.mxu0 0
        %10736 = vmatmul.mubr.bf16.gmra.mrb[0].mxu0 %v10539
        %v10737 = vpop.f32.mrb[0].mxu0
        %v10738 = vadd.f32 0.0, %v10737
        %v10739 = vpop.f32.mrb[0].mxu0
        %v10740 = vpop.f32.mrb[0].mxu0
        %v10741 = vadd.f32 0.0, %v10740
        %v10742 = vpop.f32.mrb[0].mxu0
        %10743 = vmatprep.mubr.bf16.mxu0 0
        %10744 = vmatmul.mubr.bf16.gmra.mrb[0].mxu0 %v10540
        %v10745 = vpop.f32.mrb[0].mxu0
        %v10746 = vadd.f32 0.0, %v10745
        %v10747 = vpop.f32.mrb[0].mxu0
        %v10748 = vpop.f32.mrb[0].mxu0
        %v10749 = vadd.f32 0.0, %v10748
        %v10750 = vpop.f32.mrb[0].mxu0
        %10751 = vmatprep.mubr.bf16.mxu0 0
        %10752 = vmatmul.mubr.bf16.gmra.mrb[0].mxu0 %v10541
        %v10753 = vpop.f32.mrb[0].mxu0
        %v10754 = vadd.f32 0.0, %v10753
        %v10755 = vpop.f32.mrb[0].mxu0
        %v10756 = vpop.f32.mrb[0].mxu0
        %v10757 = vadd.f32 0.0, %v10756
        %v10758 = vpop.f32.mrb[0].mxu0
        %10759 = vmatprep.mubr.bf16.mxu0 0
        %10760 = vmatmul.mubr.bf16.gmra.mrb[0].mxu0 %v10542
        %v10761 = vpop.f32.mrb[0].mxu0
        %v10762 = vadd.f32 0.0, %v10761
        %v10763 = vpop.f32.mrb[0].mxu0
        %v10764 = vpop.f32.mrb[0].mxu0
        %v10765 = vadd.f32 0.0, %v10764
        %v10766 = vpop.f32.mrb[0].mxu0
        %10767 = vdwg.mxu0
        %v10768 = vadd.f32 %v10270, %v10642
        %v10769 = vadd.f32 %v10271, %v10645
        %v10770 = vadd.f32 %v10272, %v10650
        %v10771 = vadd.f32 %v10273, %v10653
        %v10772 = vadd.f32 %v10274, %v10658
        %v10773 = vadd.f32 %v10275, %v10661
        %v10774 = vadd.f32 %v10276, %v10666
        %v10775 = vadd.f32 %v10277, %v10669
        %v10776 = vadd.f32 %v10278, %v10674
        %v10777 = vadd.f32 %v10279, %v10677
        %v10778 = vadd.f32 %v10280, %v10682
        %v10779 = vadd.f32 %v10281, %v10685
        %v10780 = vadd.f32 %v10282, %v10690
        %v10781 = vadd.f32 %v10283, %v10693
        %v10782 = vadd.f32 %v10284, %v10698
        %v10783 = vadd.f32 %v10285, %v10701
        %v10784 = vadd.f32 %v10286, %v10706
        %v10785 = vadd.f32 %v10287, %v10709
        %v10786 = vadd.f32 %v10288, %v10714
        %v10787 = vadd.f32 %v10289, %v10717
        %v10788 = vadd.f32 %v10290, %v10722
        %v10789 = vadd.f32 %v10291, %v10725
        %v10790 = vadd.f32 %v10292, %v10730
        %v10791 = vadd.f32 %v10293, %v10733
        %v10792 = vadd.f32 %v10294, %v10738
        %v10793 = vadd.f32 %v10295, %v10741
        %v10794 = vadd.f32 %v10296, %v10746
        %v10795 = vadd.f32 %v10297, %v10749
        %v10796 = vadd.f32 %v10298, %v10754
        %v10797 = vadd.f32 %v10299, %v10757
        %v10798 = vadd.f32 %v10300, %v10762
        %v10799 = vadd.f32 %v10301, %v10765
        %v10800 = vld [vmem:[#allocation12] sm:$0x1]
        %v10802 = vlaneseq
        %v10803 = vshrl.u32 %v10802, 7
        %v10804 = vsub.s32 0, %v10803
        %v10805 = vrot.slane %v10800, %v10804
        %v10807 = vmul.f32 %v10768, %v10805
        %v10808 = vmul.f32 %v10769, %v10805
        %v10809 = vmul.f32 %v10770, %v10805
        %v10810 = vmul.f32 %v10771, %v10805
        %v10811 = vmul.f32 %v10772, %v10805
        %v10812 = vmul.f32 %v10773, %v10805
        %v10813 = vmul.f32 %v10774, %v10805
        %v10814 = vmul.f32 %v10775, %v10805
        %v10815 = vmul.f32 %v10776, %v10805
        %v10816 = vmul.f32 %v10777, %v10805
        %v10817 = vmul.f32 %v10778, %v10805
        %v10818 = vmul.f32 %v10779, %v10805
        %v10819 = vmul.f32 %v10780, %v10805
        %v10820 = vmul.f32 %v10781, %v10805
        %v10821 = vmul.f32 %v10782, %v10805
        %v10822 = vmul.f32 %v10783, %v10805
        %v10823 = vmul.f32 %v10784, %v10805
        %v10824 = vmul.f32 %v10785, %v10805
        %v10825 = vmul.f32 %v10786, %v10805
        %v10826 = vmul.f32 %v10787, %v10805
        %v10827 = vmul.f32 %v10788, %v10805
        %v10828 = vmul.f32 %v10789, %v10805
        %v10829 = vmul.f32 %v10790, %v10805
        %v10830 = vmul.f32 %v10791, %v10805
        %v10831 = vmul.f32 %v10792, %v10805
        %v10832 = vmul.f32 %v10793, %v10805
        %v10833 = vmul.f32 %v10794, %v10805
        %v10834 = vmul.f32 %v10795, %v10805
        %v10835 = vmul.f32 %v10796, %v10805
        %v10836 = vmul.f32 %v10797, %v10805
        %v10837 = vmul.f32 %v10798, %v10805
        %v10838 = vmul.f32 %v10799, %v10805
        %v10839 = vld [vmem:[#allocation14] sm:$0x1]
        %v10841 = vlaneseq
        %v10842 = vshrl.u32 %v10841, 7
        %v10843 = vsub.s32 0, %v10842
        %v10844 = vrot.slane %v10839, %v10843
        %v10846 = vadd.f32 %v10807, %v10844
        %v10847 = vadd.f32 %v10808, %v10844
        %v10848 = vadd.f32 %v10809, %v10844
        %v10849 = vadd.f32 %v10810, %v10844
        %v10850 = vadd.f32 %v10811, %v10844
        %v10851 = vadd.f32 %v10812, %v10844
        %v10852 = vadd.f32 %v10813, %v10844
        %v10853 = vadd.f32 %v10814, %v10844
        %v10854 = vadd.f32 %v10815, %v10844
        %v10855 = vadd.f32 %v10816, %v10844
        %v10856 = vadd.f32 %v10817, %v10844
        %v10857 = vadd.f32 %v10818, %v10844
        %v10858 = vadd.f32 %v10819, %v10844
        %v10859 = vadd.f32 %v10820, %v10844
        %v10860 = vadd.f32 %v10821, %v10844
        %v10861 = vadd.f32 %v10822, %v10844
        %v10862 = vadd.f32 %v10823, %v10844
        %v10863 = vadd.f32 %v10824, %v10844
        %v10864 = vadd.f32 %v10825, %v10844
        %v10865 = vadd.f32 %v10826, %v10844
        %v10866 = vadd.f32 %v10827, %v10844
        %v10867 = vadd.f32 %v10828, %v10844
        %v10868 = vadd.f32 %v10829, %v10844
        %v10869 = vadd.f32 %v10830, %v10844
        %v10870 = vadd.f32 %v10831, %v10844
        %v10871 = vadd.f32 %v10832, %v10844
        %v10872 = vadd.f32 %v10833, %v10844
        %v10873 = vadd.f32 %v10834, %v10844
        %v10874 = vadd.f32 %v10835, %v10844
        %v10875 = vadd.f32 %v10836, %v10844
        %v10876 = vadd.f32 %v10837, %v10844
        %v10877 = vadd.f32 %v10838, %v10844
        %v10878 = vld [vmem:[%s428] sm:$0xff]
        %v10879 = vld [vmem:[%s428 + $0x8] sm:$0xff]
        %v10880 = vld [vmem:[%s428 + $0x10] sm:$0xff]
        %v10881 = vld [vmem:[%s428 + $0x18] sm:$0xff]
        %v10882 = vld [vmem:[%s428 + $0x20] sm:$0xff]
        %v10883 = vld [vmem:[%s428 + $0x28] sm:$0xff]
        %v10884 = vld [vmem:[%s428 + $0x30] sm:$0xff]
        %v10885 = vld [vmem:[%s428 + $0x38] sm:$0xff]
        %v10886 = vld [vmem:[%s428 + $0x40] sm:$0xff]
        %v10887 = vld [vmem:[%s428 + $0x48] sm:$0xff]
        %v10888 = vld [vmem:[%s428 + $0x50] sm:$0xff]
        %v10889 = vld [vmem:[%s428 + $0x58] sm:$0xff]
        %v10890 = vld [vmem:[%s428 + $0x60] sm:$0xff]
        %v10891 = vld [vmem:[%s428 + $0x68] sm:$0xff]
        %v10892 = vld [vmem:[%s428 + $0x70] sm:$0xff]
        %v10893 = vld [vmem:[%s428 + $0x78] sm:$0xff]
        %v10894 = vld [vmem:[%s428 + $0x80] sm:$0xff]
        %v10895 = vld [vmem:[%s428 + $0x88] sm:$0xff]
        %v10896 = vld [vmem:[%s428 + $0x90] sm:$0xff]
        %v10897 = vld [vmem:[%s428 + $0x98] sm:$0xff]
        %v10898 = vld [vmem:[%s428 + $0xa0] sm:$0xff]
        %v10899 = vld [vmem:[%s428 + $0xa8] sm:$0xff]
        %v10900 = vld [vmem:[%s428 + $0xb0] sm:$0xff]
        %v10901 = vld [vmem:[%s428 + $0xb8] sm:$0xff]
        %v10902 = vld [vmem:[%s428 + $0xc0] sm:$0xff]
        %v10903 = vld [vmem:[%s428 + $0xc8] sm:$0xff]
        %v10904 = vld [vmem:[%s428 + $0xd0] sm:$0xff]
        %v10905 = vld [vmem:[%s428 + $0xd8] sm:$0xff]
        %v10906 = vld [vmem:[%s428 + $0xe0] sm:$0xff]
        %v10907 = vld [vmem:[%s428 + $0xe8] sm:$0xff]
        %v10908 = vld [vmem:[%s428 + $0xf0] sm:$0xff]
        %v10909 = vld [vmem:[%s428 + $0xf8] sm:$0xff]
        %v10910 = vadd.f32 %v10846, %v10878
        %v10911 = vadd.f32 %v10847, %v10879
        %v10912 = vadd.f32 %v10848, %v10880
        %v10913 = vadd.f32 %v10849, %v10881
        %v10914 = vadd.f32 %v10850, %v10882
        %v10915 = vadd.f32 %v10851, %v10883
        %v10916 = vadd.f32 %v10852, %v10884
        %v10917 = vadd.f32 %v10853, %v10885
        %v10918 = vadd.f32 %v10854, %v10886
        %v10919 = vadd.f32 %v10855, %v10887
        %v10920 = vadd.f32 %v10856, %v10888
        %v10921 = vadd.f32 %v10857, %v10889
        %v10922 = vadd.f32 %v10858, %v10890
        %v10923 = vadd.f32 %v10859, %v10891
        %v10924 = vadd.f32 %v10860, %v10892
        %v10925 = vadd.f32 %v10861, %v10893
        %v10926 = vadd.f32 %v10862, %v10894
        %v10927 = vadd.f32 %v10863, %v10895
        %v10928 = vadd.f32 %v10864, %v10896
        %v10929 = vadd.f32 %v10865, %v10897
        %v10930 = vadd.f32 %v10866, %v10898
        %v10931 = vadd.f32 %v10867, %v10899
        %v10932 = vadd.f32 %v10868, %v10900
        %v10933 = vadd.f32 %v10869, %v10901
        %v10934 = vadd.f32 %v10870, %v10902
        %v10935 = vadd.f32 %v10871, %v10903
        %v10936 = vadd.f32 %v10872, %v10904
        %v10937 = vadd.f32 %v10873, %v10905
        %v10938 = vadd.f32 %v10874, %v10906
        %v10939 = vadd.f32 %v10875, %v10907
        %v10940 = vadd.f32 %v10876, %v10908
        %v10941 = vadd.f32 %v10877, %v10909
        %v10942 = vmax.f32 %v10910, 0.0
        %v10943 = vmax.f32 %v10911, 0.0
        %v10944 = vmax.f32 %v10912, 0.0
        %v10945 = vmax.f32 %v10913, 0.0
        %v10946 = vmax.f32 %v10914, 0.0
        %v10947 = vmax.f32 %v10915, 0.0
        %v10948 = vmax.f32 %v10916, 0.0
        %v10949 = vmax.f32 %v10917, 0.0
        %v10950 = vmax.f32 %v10918, 0.0
        %v10951 = vmax.f32 %v10919, 0.0
        %v10952 = vmax.f32 %v10920, 0.0
        %v10953 = vmax.f32 %v10921, 0.0
        %v10954 = vmax.f32 %v10922, 0.0
        %v10955 = vmax.f32 %v10923, 0.0
        %v10956 = vmax.f32 %v10924, 0.0
        %v10957 = vmax.f32 %v10925, 0.0
        %v10958 = vmax.f32 %v10926, 0.0
        %v10959 = vmax.f32 %v10927, 0.0
        %v10960 = vmax.f32 %v10928, 0.0
        %v10961 = vmax.f32 %v10929, 0.0
        %v10962 = vmax.f32 %v10930, 0.0
        %v10963 = vmax.f32 %v10931, 0.0
        %v10964 = vmax.f32 %v10932, 0.0
        %v10965 = vmax.f32 %v10933, 0.0
        %v10966 = vmax.f32 %v10934, 0.0
        %v10967 = vmax.f32 %v10935, 0.0
        %v10968 = vmax.f32 %v10936, 0.0
        %v10969 = vmax.f32 %v10937, 0.0
        %v10970 = vmax.f32 %v10938, 0.0
        %v10971 = vmax.f32 %v10939, 0.0
        %v10972 = vmax.f32 %v10940, 0.0
        %v10973 = vmax.f32 %v10941, 0.0
        %10974 = vst [vmem:[%s465] sm:$0xff] %v10942
        %10975 = vst [vmem:[%s465 + $0x8] sm:$0xff] %v10943
        %10976 = vst [vmem:[%s465 + $0x10] sm:$0xff] %v10944
        %10977 = vst [vmem:[%s465 + $0x18] sm:$0xff] %v10945
        %10978 = vst [vmem:[%s465 + $0x20] sm:$0xff] %v10946
        %10979 = vst [vmem:[%s465 + $0x28] sm:$0xff] %v10947
        %10980 = vst [vmem:[%s465 + $0x30] sm:$0xff] %v10948
        %10981 = vst [vmem:[%s465 + $0x38] sm:$0xff] %v10949
        %10982 = vst [vmem:[%s465 + $0x40] sm:$0xff] %v10950
        %10983 = vst [vmem:[%s465 + $0x48] sm:$0xff] %v10951
        %10984 = vst [vmem:[%s465 + $0x50] sm:$0xff] %v10952
        %10985 = vst [vmem:[%s465 + $0x58] sm:$0xff] %v10953
        %10986 = vst [vmem:[%s465 + $0x60] sm:$0xff] %v10954
        %10987 = vst [vmem:[%s465 + $0x68] sm:$0xff] %v10955
        %10988 = vst [vmem:[%s465 + $0x70] sm:$0xff] %v10956
        %10989 = vst [vmem:[%s465 + $0x78] sm:$0xff] %v10957
        %10990 = vst [vmem:[%s465 + $0x80] sm:$0xff] %v10958
        %10991 = vst [vmem:[%s465 + $0x88] sm:$0xff] %v10959
        %10992 = vst [vmem:[%s465 + $0x90] sm:$0xff] %v10960
        %10993 = vst [vmem:[%s465 + $0x98] sm:$0xff] %v10961
        %10994 = vst [vmem:[%s465 + $0xa0] sm:$0xff] %v10962
        %10995 = vst [vmem:[%s465 + $0xa8] sm:$0xff] %v10963
        %10996 = vst [vmem:[%s465 + $0xb0] sm:$0xff] %v10964
        %10997 = vst [vmem:[%s465 + $0xb8] sm:$0xff] %v10965
        %10998 = vst [vmem:[%s465 + $0xc0] sm:$0xff] %v10966
        %10999 = vst [vmem:[%s465 + $0xc8] sm:$0xff] %v10967
        %11000 = vst [vmem:[%s465 + $0xd0] sm:$0xff] %v10968
        %11001 = vst [vmem:[%s465 + $0xd8] sm:$0xff] %v10969
        %11002 = vst [vmem:[%s465 + $0xe0] sm:$0xff] %v10970
        %11003 = vst [vmem:[%s465 + $0xe8] sm:$0xff] %v10971
        %11004 = vst [vmem:[%s465 + $0xf0] sm:$0xff] %v10972
        %11005 = vst [vmem:[%s465 + $0xf8] sm:$0xff] %v10973
        %s11006 = sand.u32 %s235, 1
        %s11007 = scalar_lea.sflag [#allocation5], %s11006
        %s11008 = sand.u32 %s235, 1
        %s11009 = smul.addr %s11008, 256
        %s11010 = scalar_lea.vmem [#allocation17], %s11009
        // Predicated region
        $region85: #{basic_block_forward.1} parent=51 // pred_check
          %p11011 = pneg %p245
        $region86: #{basic_block_forward.1} parent=51 // pred_check_branch
          %11013 = sbr.rel (%p11011) target = $region88
        $region87: #{basic_block_forward.1} parent=51 // pred_region
          %s11014 = smul.u32 16, %s36
          %s11016 = ssub.s32 4096, 4096
          %11017 = vsyncadd %s11007, %s11016
          %s11018 = smul.addr %s11014, 2
          %s11019 = smul.addr %s35, 32
          %s11020 = sadd.s32 %s11018, %s11019
          %s11021 = smul.addr %s11020, 128
          %s11022 = scalar_lea.hbm %s8, %s11021
          %s11023 = sshll.u32 %s11010, 4
          %s11024 = int_to_ptr.vmem [resolvable:$true] %s11023
          %11029 = dma.vmem_to_hbm [thread:$0]  %s11024, 4096, %s11022, %s11007, 128, 128, 8
        $region88: #{basic_block_forward.1} parent=51 // pred_fallthru
          _
      $region52: #{basic_block_forward.1} parent=5 // pred_fallthru
        _
      %p11030 = scmp.le.s32.totalorder 2, %s26
      // Predicated region
      $region89: #{basic_block_forward.1} parent=5 // pred_check
        %p11031 = pneg %p11030
      $region90: #{basic_block_forward.1} parent=5 // pred_check_branch
        %11033 = sbr.rel (%p11031) target = $region92
      $region91: #{basic_block_forward.1} parent=5 // pred_region
        %s11034 = ssub.s32 %s26, 2
        // Predicated region
        $region93: #{basic_block_forward.1} parent=91 // pred_check
          %p11035 = pneg %p251
        $region94: #{basic_block_forward.1} parent=91 // pred_check_branch
          %11037 = sbr.rel (%p11035) target = $region96
        $region95: #{basic_block_forward.1} parent=91 // pred_region
          %s11038 = sand.u32 %s236, 1
          %s11039 = scalar_lea.sflag [#allocation5], %s11038
          %s11040 = sand.u32 %s236, 1
          %s11041 = smul.addr %s11040, 256
          %s11042 = scalar_lea.vmem [#allocation17], %s11041
          %11043 = dma.done %s11039, 4096
        $region96: #{basic_block_forward.1} parent=91 // pred_fallthru
          _
      $region92: #{basic_block_forward.1} parent=5 // pred_fallthru
        _
    $region6: #{basic_block_forward.1} parent=1 // loop_footer
      %s30 = sadd.s32 1, %s26
    $region7: #{basic_block_forward.1} parent=1 // loop_footer_branch
      %25 = sbr.rel target = $region3
    $region8: #{basic_block_forward.1} parent=1 // loop_exit
      _
    %11044 = vsyncpa [#allocation4], 1
    %s11045 = scalar_lea.sflag [#allocation4], 1
    %11046 = vsyncpa %s11045, 1
    %11047 = vsyncpa [#allocation7], 1
    %11048 = vsyncpa [#allocation10], 1
    %11049 = vsyncpa [#allocation13], 1
    %11050 = vsyncpa [#allocation16], 1
    %s11051 = scalar_lea.sflag [#allocation16], 1
    %11052 = vsyncpa %s11051, 1
    %11053 = vsyncpa [#allocation5], 1
    %s11054 = scalar_lea.sflag [#allocation5], 1
    %11055 = vsyncpa %s11054, 1

</llo_original>
